<compile_context>
chip_gen: v6e
topology: v6e:2x2x1
jax: 0.10.0
libtpu: 0.0.40
codegen_flags: <defaults>
</compile_context>

<pallas_src>
import jax
import jax.numpy as jnp
from jax.experimental import pallas as pl
from jax.experimental.pallas import tpu as pltpu


# ----------------------------------------------------------------------------
# The single fused kernel (processes one image per grid step).
# ----------------------------------------------------------------------------
def _network_kernel(p1_ref,                     # (1, 676, 147) bf16  conv1 im2col patches
                    w1_ref, b1_ref,             # (147, 32) bf16, (1, 32) f32
                    w2_ref, b2_ref,             # (288, 64) bf16, (1, 64) f32
                    w3_ref, b3_ref,             # (576, 128) bf16, (1, 128) f32
                    wf1_ref, bf1_ref,           # (128, 128) bf16, (1, 128) f32
                    wf2_ref, bf2_ref,           # (128, 10) bf16, (1, 10) f32
                    out_ref, code_ref,          # (1, 1, 10) f32, (1, 1, 128) f32
                    d1_ref,                     # (13, 26, 32) f32   conv1 out, pooled over h
                    a1_ref,                     # (13, 13, 32) bf16  conv1 pooled activation
                    p2_ref,                     # (11, 11, 288) bf16 conv2 im2col patches
                    d2_ref,                     # (5, 11, 64) f32    conv2 out, pooled over h
                    a2_ref,                     # (5, 5, 64) bf16    conv2 pooled activation
                    p3_ref):                    # (3, 3, 576) bf16   conv3 im2col patches
    f32 = jnp.float32
    bf16 = jnp.bfloat16

    # ---- conv1: 7x7, 3->32, ReLU, 2x2 maxpool (32x32 -> 26x26 -> 13x13) ----
    # p1 rows are (ho, wo) row-major; process two conv rows (one pooled row)
    # per GEMM so the h-direction of the pool fuses into the epilogue.
    w1 = w1_ref[...]
    b1 = b1_ref[...]
    for ph in range(13):
        lhs = p1_ref[0, pl.ds(ph * 52, 52), :]                      # rows ho = 2ph, 2ph+1
        y = jnp.dot(lhs, w1, preferred_element_type=f32)            # (52, 32) f32 on MXU
        y = jnp.maximum(y + b1, 0.0)                                # f32 epilogue (v5e-safe)
        d1_ref[ph] = jnp.maximum(y[0:26, :], y[26:52, :])           # max over the ho pair
    for pw in range(13):                                            # max over the wo pair
        m = jnp.maximum(d1_ref[:, 2 * pw, :], d1_ref[:, 2 * pw + 1, :])
        a1_ref[:, pw, :] = m.astype(bf16)

    # ---- conv2: 3x3, 32->64, ReLU, 2x2 maxpool (13x13 -> 11x11 -> 5x5) ----
    # In-kernel im2col: 9 lane-offset tap stores (feature order = (i, j, c)).
    for i in range(3):
        for j in range(3):
            t = i * 3 + j
            p2_ref[:, :, pl.ds(t * 32, 32)] = a1_ref[pl.ds(i, 11), pl.ds(j, 11), :]
    w2 = w2_ref[...]
    b2 = b2_ref[...]
    for ph in range(5):
        ya = jnp.maximum(jnp.dot(p2_ref[2 * ph], w2, preferred_element_type=f32) + b2, 0.0)
        yb = jnp.maximum(jnp.dot(p2_ref[2 * ph + 1], w2, preferred_element_type=f32) + b2, 0.0)
        d2_ref[ph] = jnp.maximum(ya, yb)                            # (11, 64), h-pooled
    for pw in range(5):
        m = jnp.maximum(d2_ref[:, 2 * pw, :], d2_ref[:, 2 * pw + 1, :])
        a2_ref[:, pw, :] = m.astype(bf16)

    # ---- conv3: 3x3, 64->128, ReLU, 2x2 maxpool (5x5 -> 3x3 -> 1x1) ----
    for i in range(3):
        for j in range(3):
            t = i * 3 + j
            p3_ref[:, :, pl.ds(t * 64, 64)] = a2_ref[pl.ds(i, 3), pl.ds(j, 3), :]
    w3 = w3_ref[...]
    b3 = b3_ref[...]
    ya = jnp.maximum(jnp.dot(p3_ref[0], w3, preferred_element_type=f32) + b3, 0.0)  # (3, 128)
    yb = jnp.maximum(jnp.dot(p3_ref[1], w3, preferred_element_type=f32) + b3, 0.0)
    m = jnp.maximum(ya, yb)                                          # pooled over h
    flat = jnp.maximum(m[0:1, :], m[1:2, :])                         # pooled over w -> (1, 128)

    # ---- fc_code + ReLU (+ dropout=identity) and fc_output, fused ----
    code = jnp.dot(flat.astype(bf16), wf1_ref[...], preferred_element_type=f32) + bf1_ref[...]
    code = jnp.maximum(code, 0.0)
    # TODO(synk): Dropout(p=0.5) is eval-mode identity; training-mode PRNG
    # masking (pltpu.prng_seed / prng_random_bits) is intentionally omitted.
    code_ref[0] = code
    out = jnp.dot(code.astype(bf16), wf2_ref[...], preferred_element_type=f32) + bf2_ref[...]
    out_ref[0] = out


# ----------------------------------------------------------------------------
# Wrapper: one XLA patch-extraction op for conv1, one fused pallas_call.
# ----------------------------------------------------------------------------
def _full_spec(shape):
    return pl.BlockSpec(shape, lambda i: (0,) * len(shape))


def network_forward(params, x):
    """x: (N, 3, 32, 32) f32 (PyTorch NCHW).  Returns (output, code)."""
    N = x.shape[0]
    assert x.shape[1:] == (3, 32, 32), "conv/fc chain requires 3x32x32 inputs"

    # Boundary layout/dtype conversion + conv1 7x7 im2col in a single fused XLA
    # op (feature order c-major: f = c*49 + i*7 + j, matched by conv1_w layout).
    x = jnp.transpose(x, (0, 2, 3, 1)).astype(jnp.bfloat16)            # NCHW -> NHWC bf16
    p1 = jax.lax.conv_general_dilated_patches(
        x, filter_shape=(7, 7), window_strides=(1, 1), padding='VALID',
        dimension_numbers=('NHWC', 'HWIO', 'NHWC'))                    # (N, 26, 26, 147)
    p1 = p1.reshape(N, 26 * 26, 147)

    grid_spec = pltpu.PrefetchScalarGridSpec(
        num_scalar_prefetch=0,
        grid=(N,),                                                     # one image per step
        in_specs=[
            pl.BlockSpec((1, 676, 147), lambda i: (i, 0, 0)),          # this image's patches
            _full_spec((147, 32)), _full_spec((1, 32)),                # conv1
            _full_spec((288, 64)), _full_spec((1, 64)),                # conv2
            _full_spec((576, 128)), _full_spec((1, 128)),              # conv3
            _full_spec((128, 128)), _full_spec((1, 128)),              # fc_code
            _full_spec((128, 10)), _full_spec((1, 10)),                # fc_output
        ],
        out_specs=(pl.BlockSpec((1, 1, 10), lambda i: (i, 0, 0)),
                   pl.BlockSpec((1, 1, 128), lambda i: (i, 0, 0))),
        scratch_shapes=[
            pltpu.VMEM((13, 26, 32), jnp.float32),    # d1: conv1 out, h-pooled
            pltpu.VMEM((13, 13, 32), jnp.bfloat16),   # a1: conv1 pooled activation
            pltpu.VMEM((11, 11, 288), jnp.bfloat16),  # p2: conv2 patches
            pltpu.VMEM((5, 11, 64), jnp.float32),     # d2: conv2 out, h-pooled
            pltpu.VMEM((5, 5, 64), jnp.bfloat16),     # a2: conv2 pooled activation
            pltpu.VMEM((3, 3, 576), jnp.bfloat16),    # p3: conv3 patches
        ],
    )

    out, code = pl.pallas_call(
        _network_kernel,
        out_shape=(jax.ShapeDtypeStruct((N, 1, 10), jnp.float32),
                   jax.ShapeDtypeStruct((N, 1, 128), jnp.float32)),
        grid_spec=grid_spec,
        compiler_params=pltpu.CompilerParams(
            dimension_semantics=("parallel",),          # v7x: shard batch over 2 TCs
            vmem_limit_bytes=32 * 1024 * 1024),         # explicit; footprint is < 2 MiB
    )(p1,
      params["conv1_w"], params["conv1_b"],
      params["conv2_w"], params["conv2_b"],
      params["conv3_w"], params["conv3_b"],
      params["fc_code_w"], params["fc_code_b"],
      params["fc_out_w"], params["fc_out_b"])
    return out.reshape(N, 10), code.reshape(N, 128)


# ----------------------------------------------------------------------------
# Parameter init: matches init_weights(init_type='normal', gain=0.02), b = 0.
# Weights are stored pre-laid-out for the kernel (no per-forward transposes).
# ----------------------------------------------------------------------------
def init_params(key):
    ks = jax.random.split(key, 5)
    g = 0.02

    def conv1_w(k, cout, cin, kh, kw):
        # rows ordered (c, i, j)  -- matches conv_general_dilated_patches output
        w = g * jax.random.normal(k, (cout, cin, kh, kw), jnp.float32)
        return (jnp.transpose(w, (1, 2, 3, 0))
                .reshape(cin * kh * kw, cout).astype(jnp.bfloat16))

    def conv_w(k, cout, cin, kh, kw):
        # rows ordered (i, j, c)  -- matches the in-kernel patch build
        w = g * jax.random.normal(k, (cout, cin, kh, kw), jnp.float32)
        return (jnp.transpose(w, (2, 3, 1, 0))
                .reshape(kh * kw * cin, cout).astype(jnp.bfloat16))

    def fc_w(k, cout, cin):
        w = g * jax.random.normal(k, (cout, cin), jnp.float32)      # PyTorch (out, in)
        return w.T.astype(jnp.bfloat16)                             # stored (in, out)

    return {
        "conv1_w": conv1_w(ks[0], 32, 3, 7, 7),
        "conv1_b": jnp.zeros((1, 32), jnp.float32),
        "conv2_w": conv_w(ks[1], 64, 32, 3, 3),
        "conv2_b": jnp.zeros((1, 64), jnp.float32),
        "conv3_w": conv_w(ks[2], 128, 64, 3, 3),
        "conv3_b": jnp.zeros((1, 128), jnp.float32),
        "fc_code_w": fc_w(ks[3], 128, 128),
        "fc_code_b": jnp.zeros((1, 128), jnp.float32),
        "fc_out_w": fc_w(ks[4], 10, 128),
        "fc_out_b": jnp.zeros((1, 10), jnp.float32),
    }


if __name__ == "__main__":
    key = jax.random.PRNGKey(0)
    pkey, xkey = jax.random.split(key)
    params = init_params(pkey)
    # CIFAR-10-shaped input (the conv/pool chain requires 32x32), batch of 2.
    x = jax.random.normal(xkey, (2, 3, 32, 32), jnp.float32)
    fwd = jax.jit(network_forward)
    output, code = fwd(params, x)
    jax.block_until_ready((output, code))
    assert output.shape == (2, 10) and code.shape == (2, 128)
    print("KERNEL_OK")
</pallas_src>

<mosaic_0001>
module attributes {stable_mosaic.version = 11 : i64} {
  func.func @_network_kernel(%arg0: i32, %arg1: memref<1x676x147xbf16, #tpu.memory_space<vmem>>, %arg2: memref<147x32xbf16, #tpu.memory_space<vmem>>, %arg3: memref<1x32xf32, #tpu.memory_space<vmem>>, %arg4: memref<288x64xbf16, #tpu.memory_space<vmem>>, %arg5: memref<1x64xf32, #tpu.memory_space<vmem>>, %arg6: memref<576x128xbf16, #tpu.memory_space<vmem>>, %arg7: memref<1x128xf32, #tpu.memory_space<vmem>>, %arg8: memref<128x128xbf16, #tpu.memory_space<vmem>>, %arg9: memref<1x128xf32, #tpu.memory_space<vmem>>, %arg10: memref<128x10xbf16, #tpu.memory_space<vmem>>, %arg11: memref<1x10xf32, #tpu.memory_space<vmem>>, %arg12: memref<1x1x10xf32, #tpu.memory_space<vmem>>, %arg13: memref<1x1x128xf32, #tpu.memory_space<vmem>>, %arg14: memref<13x26x32xf32, #tpu.memory_space<vmem>>, %arg15: memref<13x13x32xbf16, #tpu.memory_space<vmem>>, %arg16: memref<11x11x288xbf16, #tpu.memory_space<vmem>>, %arg17: memref<5x11x64xf32, #tpu.memory_space<vmem>>, %arg18: memref<5x5x64xbf16, #tpu.memory_space<vmem>>, %arg19: memref<3x3x576xbf16, #tpu.memory_space<vmem>>) attributes {dimension_semantics = [#tpu.dimension_semantics<parallel>], iteration_bounds = array<i64: 2>, scalar_prefetch = 0 : i64, scratch_operands = 6 : i64, tpu.core_type = #tpu.core_type<tc>, window_params = [{transform_indices = @transform_0, window_bounds = array<i64: 1, 676, 147>}, {pipeline_mode = #tpu.pipeline_mode<synchronous>, transform_indices = @transform_1, window_bounds = array<i64: 147, 32>}, {pipeline_mode = #tpu.pipeline_mode<synchronous>, transform_indices = @transform_2, window_bounds = array<i64: 1, 32>}, {pipeline_mode = #tpu.pipeline_mode<synchronous>, transform_indices = @transform_3, window_bounds = array<i64: 288, 64>}, {pipeline_mode = #tpu.pipeline_mode<synchronous>, transform_indices = @transform_4, window_bounds = array<i64: 1, 64>}, {pipeline_mode = #tpu.pipeline_mode<synchronous>, transform_indices = @transform_5, window_bounds = array<i64: 576, 128>}, {pipeline_mode = #tpu.pipeline_mode<synchronous>, transform_indices = @transform_6, window_bounds = array<i64: 1, 128>}, {pipeline_mode = #tpu.pipeline_mode<synchronous>, transform_indices = @transform_7, window_bounds = array<i64: 128, 128>}, {pipeline_mode = #tpu.pipeline_mode<synchronous>, transform_indices = @transform_8, window_bounds = array<i64: 1, 128>}, {pipeline_mode = #tpu.pipeline_mode<synchronous>, transform_indices = @transform_9, window_bounds = array<i64: 128, 10>}, {pipeline_mode = #tpu.pipeline_mode<synchronous>, transform_indices = @transform_10, window_bounds = array<i64: 1, 10>}, {transform_indices = @transform_11, window_bounds = array<i64: 1, 1, 10>}, {transform_indices = @transform_12, window_bounds = array<i64: 1, 1, 128>}]} {
    %c0 = arith.constant 0 : index
    %c0_0 = arith.constant 0 : index
    %0 = vector.load %arg2[%c0, %c0_0] : memref<147x32xbf16, #tpu.memory_space<vmem>>, vector<147x32xbf16>
    %c0_1 = arith.constant 0 : index
    %c0_2 = arith.constant 0 : index
    %1 = vector.load %arg3[%c0_1, %c0_2] : memref<1x32xf32, #tpu.memory_space<vmem>>, vector<1x32xf32>
    %c0_3 = arith.constant 0 : index
    %c0_4 = arith.constant 0 : index
    %c0_5 = arith.constant 0 : index
    %2 = vector.load %arg1[%c0_3, %c0_4, %c0_5] : memref<1x676x147xbf16, #tpu.memory_space<vmem>>, vector<1x52x147xbf16>
    %3 = vector.shape_cast %2 : vector<1x52x147xbf16> to vector<52x147xbf16>
    %cst = arith.constant dense<0.000000e+00> : vector<52x32xf32>
    %4 = tpu.matmul %3, %0, %cst {dimension_numbers = #tpu.dot_dimension_numbers<[1], [0], [0], [1], [0, 0, 1, 1], [], []>} : vector<52x147xbf16>, vector<147x32xbf16>, vector<52x32xf32> -> vector<52x32xf32>
    %5 = vector.broadcast %1 : vector<1x32xf32> to vector<52x32xf32>
    %6 = arith.addf %4, %5 : vector<52x32xf32>
    %cst_6 = arith.constant 0.000000e+00 : f32
    %7 = vector.broadcast %cst_6 : f32 to vector<52x32xf32>
    %8 = arith.maximumf %6, %7 : vector<52x32xf32>
    %9 = vector.extract_strided_slice %8 {offsets = [0, 0], sizes = [26, 32], strides = [1, 1]} : vector<52x32xf32> to vector<26x32xf32>
    %10 = vector.extract_strided_slice %8 {offsets = [26, 0], sizes = [26, 32], strides = [1, 1]} : vector<52x32xf32> to vector<26x32xf32>
    %11 = arith.maximumf %9, %10 : vector<26x32xf32>
    %c0_7 = arith.constant 0 : index
    %c0_8 = arith.constant 0 : index
    %c0_9 = arith.constant 0 : index
    %12 = vector.load %arg14[%c0_7, %c0_8, %c0_9] : memref<13x26x32xf32, #tpu.memory_space<vmem>>, vector<1x26x32xf32>
    %13 = vector.shape_cast %12 : vector<1x26x32xf32> to vector<26x32xf32>
    %14 = vector.shape_cast %11 : vector<26x32xf32> to vector<1x26x32xf32>
    tpu.vector_store %arg14[%c0_7, %c0_8, %c0_9], %14 {strides = array<i32>} : memref<13x26x32xf32, #tpu.memory_space<vmem>>, vector<1x26x32xf32>,
    %c0_10 = arith.constant 0 : index
    %c52 = arith.constant 52 : index
    %c0_11 = arith.constant 0 : index
    %15 = vector.load %arg1[%c0_10, %c52, %c0_11] : memref<1x676x147xbf16, #tpu.memory_space<vmem>>, vector<1x52x147xbf16>
    %16 = vector.shape_cast %15 : vector<1x52x147xbf16> to vector<52x147xbf16>
    %cst_12 = arith.constant dense<0.000000e+00> : vector<52x32xf32>
    %17 = tpu.matmul %16, %0, %cst_12 {dimension_numbers = #tpu.dot_dimension_numbers<[1], [0], [0], [1], [0, 0, 1, 1], [], []>} : vector<52x147xbf16>, vector<147x32xbf16>, vector<52x32xf32> -> vector<52x32xf32>
    %18 = vector.broadcast %1 : vector<1x32xf32> to vector<52x32xf32>
    %19 = arith.addf %17, %18 : vector<52x32xf32>
    %cst_13 = arith.constant 0.000000e+00 : f32
    %20 = vector.broadcast %cst_13 : f32 to vector<52x32xf32>
    %21 = arith.maximumf %19, %20 : vector<52x32xf32>
    %22 = vector.extract_strided_slice %21 {offsets = [0, 0], sizes = [26, 32], strides = [1, 1]} : vector<52x32xf32> to vector<26x32xf32>
    %23 = vector.extract_strided_slice %21 {offsets = [26, 0], sizes = [26, 32], strides = [1, 1]} : vector<52x32xf32> to vector<26x32xf32>
    %24 = arith.maximumf %22, %23 : vector<26x32xf32>
    %c1 = arith.constant 1 : index
    %c0_14 = arith.constant 0 : index
    %c0_15 = arith.constant 0 : index
    %25 = vector.load %arg14[%c1, %c0_14, %c0_15] : memref<13x26x32xf32, #tpu.memory_space<vmem>>, vector<1x26x32xf32>
    %26 = vector.shape_cast %25 : vector<1x26x32xf32> to vector<26x32xf32>
    %27 = vector.shape_cast %24 : vector<26x32xf32> to vector<1x26x32xf32>
    tpu.vector_store %arg14[%c1, %c0_14, %c0_15], %27 {strides = array<i32>} : memref<13x26x32xf32, #tpu.memory_space<vmem>>, vector<1x26x32xf32>,
    %c0_16 = arith.constant 0 : index
    %c104 = arith.constant 104 : index
    %c0_17 = arith.constant 0 : index
    %28 = vector.load %arg1[%c0_16, %c104, %c0_17] : memref<1x676x147xbf16, #tpu.memory_space<vmem>>, vector<1x52x147xbf16>
    %29 = vector.shape_cast %28 : vector<1x52x147xbf16> to vector<52x147xbf16>
    %cst_18 = arith.constant dense<0.000000e+00> : vector<52x32xf32>
    %30 = tpu.matmul %29, %0, %cst_18 {dimension_numbers = #tpu.dot_dimension_numbers<[1], [0], [0], [1], [0, 0, 1, 1], [], []>} : vector<52x147xbf16>, vector<147x32xbf16>, vector<52x32xf32> -> vector<52x32xf32>
    %31 = vector.broadcast %1 : vector<1x32xf32> to vector<52x32xf32>
    %32 = arith.addf %30, %31 : vector<52x32xf32>
    %cst_19 = arith.constant 0.000000e+00 : f32
    %33 = vector.broadcast %cst_19 : f32 to vector<52x32xf32>
    %34 = arith.maximumf %32, %33 : vector<52x32xf32>
    %35 = vector.extract_strided_slice %34 {offsets = [0, 0], sizes = [26, 32], strides = [1, 1]} : vector<52x32xf32> to vector<26x32xf32>
    %36 = vector.extract_strided_slice %34 {offsets = [26, 0], sizes = [26, 32], strides = [1, 1]} : vector<52x32xf32> to vector<26x32xf32>
    %37 = arith.maximumf %35, %36 : vector<26x32xf32>
    %c2 = arith.constant 2 : index
    %c0_20 = arith.constant 0 : index
    %c0_21 = arith.constant 0 : index
    %38 = vector.load %arg14[%c2, %c0_20, %c0_21] : memref<13x26x32xf32, #tpu.memory_space<vmem>>, vector<1x26x32xf32>
    %39 = vector.shape_cast %38 : vector<1x26x32xf32> to vector<26x32xf32>
    %40 = vector.shape_cast %37 : vector<26x32xf32> to vector<1x26x32xf32>
    tpu.vector_store %arg14[%c2, %c0_20, %c0_21], %40 {strides = array<i32>} : memref<13x26x32xf32, #tpu.memory_space<vmem>>, vector<1x26x32xf32>,
    %c0_22 = arith.constant 0 : index
    %c156 = arith.constant 156 : index
    %c0_23 = arith.constant 0 : index
    %41 = vector.load %arg1[%c0_22, %c156, %c0_23] : memref<1x676x147xbf16, #tpu.memory_space<vmem>>, vector<1x52x147xbf16>
    %42 = vector.shape_cast %41 : vector<1x52x147xbf16> to vector<52x147xbf16>
    %cst_24 = arith.constant dense<0.000000e+00> : vector<52x32xf32>
    %43 = tpu.matmul %42, %0, %cst_24 {dimension_numbers = #tpu.dot_dimension_numbers<[1], [0], [0], [1], [0, 0, 1, 1], [], []>} : vector<52x147xbf16>, vector<147x32xbf16>, vector<52x32xf32> -> vector<52x32xf32>
    %44 = vector.broadcast %1 : vector<1x32xf32> to vector<52x32xf32>
    %45 = arith.addf %43, %44 : vector<52x32xf32>
    %cst_25 = arith.constant 0.000000e+00 : f32
    %46 = vector.broadcast %cst_25 : f32 to vector<52x32xf32>
    %47 = arith.maximumf %45, %46 : vector<52x32xf32>
    %48 = vector.extract_strided_slice %47 {offsets = [0, 0], sizes = [26, 32], strides = [1, 1]} : vector<52x32xf32> to vector<26x32xf32>
    %49 = vector.extract_strided_slice %47 {offsets = [26, 0], sizes = [26, 32], strides = [1, 1]} : vector<52x32xf32> to vector<26x32xf32>
    %50 = arith.maximumf %48, %49 : vector<26x32xf32>
    %c3 = arith.constant 3 : index
    %c0_26 = arith.constant 0 : index
    %c0_27 = arith.constant 0 : index
    %51 = vector.load %arg14[%c3, %c0_26, %c0_27] : memref<13x26x32xf32, #tpu.memory_space<vmem>>, vector<1x26x32xf32>
    %52 = vector.shape_cast %51 : vector<1x26x32xf32> to vector<26x32xf32>
    %53 = vector.shape_cast %50 : vector<26x32xf32> to vector<1x26x32xf32>
    tpu.vector_store %arg14[%c3, %c0_26, %c0_27], %53 {strides = array<i32>} : memref<13x26x32xf32, #tpu.memory_space<vmem>>, vector<1x26x32xf32>,
    %c0_28 = arith.constant 0 : index
    %c208 = arith.constant 208 : index
    %c0_29 = arith.constant 0 : index
    %54 = vector.load %arg1[%c0_28, %c208, %c0_29] : memref<1x676x147xbf16, #tpu.memory_space<vmem>>, vector<1x52x147xbf16>
    %55 = vector.shape_cast %54 : vector<1x52x147xbf16> to vector<52x147xbf16>
    %cst_30 = arith.constant dense<0.000000e+00> : vector<52x32xf32>
    %56 = tpu.matmul %55, %0, %cst_30 {dimension_numbers = #tpu.dot_dimension_numbers<[1], [0], [0], [1], [0, 0, 1, 1], [], []>} : vector<52x147xbf16>, vector<147x32xbf16>, vector<52x32xf32> -> vector<52x32xf32>
    %57 = vector.broadcast %1 : vector<1x32xf32> to vector<52x32xf32>
    %58 = arith.addf %56, %57 : vector<52x32xf32>
    %cst_31 = arith.constant 0.000000e+00 : f32
    %59 = vector.broadcast %cst_31 : f32 to vector<52x32xf32>
    %60 = arith.maximumf %58, %59 : vector<52x32xf32>
    %61 = vector.extract_strided_slice %60 {offsets = [0, 0], sizes = [26, 32], strides = [1, 1]} : vector<52x32xf32> to vector<26x32xf32>
    %62 = vector.extract_strided_slice %60 {offsets = [26, 0], sizes = [26, 32], strides = [1, 1]} : vector<52x32xf32> to vector<26x32xf32>
    %63 = arith.maximumf %61, %62 : vector<26x32xf32>
    %c4 = arith.constant 4 : index
    %c0_32 = arith.constant 0 : index
    %c0_33 = arith.constant 0 : index
    %64 = vector.load %arg14[%c4, %c0_32, %c0_33] : memref<13x26x32xf32, #tpu.memory_space<vmem>>, vector<1x26x32xf32>
    %65 = vector.shape_cast %64 : vector<1x26x32xf32> to vector<26x32xf32>
    %66 = vector.shape_cast %63 : vector<26x32xf32> to vector<1x26x32xf32>
    tpu.vector_store %arg14[%c4, %c0_32, %c0_33], %66 {strides = array<i32>} : memref<13x26x32xf32, #tpu.memory_space<vmem>>, vector<1x26x32xf32>,
    %c0_34 = arith.constant 0 : index
    %c260 = arith.constant 260 : index
    %c0_35 = arith.constant 0 : index
    %67 = vector.load %arg1[%c0_34, %c260, %c0_35] : memref<1x676x147xbf16, #tpu.memory_space<vmem>>, vector<1x52x147xbf16>
    %68 = vector.shape_cast %67 : vector<1x52x147xbf16> to vector<52x147xbf16>
    %cst_36 = arith.constant dense<0.000000e+00> : vector<52x32xf32>
    %69 = tpu.matmul %68, %0, %cst_36 {dimension_numbers = #tpu.dot_dimension_numbers<[1], [0], [0], [1], [0, 0, 1, 1], [], []>} : vector<52x147xbf16>, vector<147x32xbf16>, vector<52x32xf32> -> vector<52x32xf32>
    %70 = vector.broadcast %1 : vector<1x32xf32> to vector<52x32xf32>
    %71 = arith.addf %69, %70 : vector<52x32xf32>
    %cst_37 = arith.constant 0.000000e+00 : f32
    %72 = vector.broadcast %cst_37 : f32 to vector<52x32xf32>
    %73 = arith.maximumf %71, %72 : vector<52x32xf32>
    %74 = vector.extract_strided_slice %73 {offsets = [0, 0], sizes = [26, 32], strides = [1, 1]} : vector<52x32xf32> to vector<26x32xf32>
    %75 = vector.extract_strided_slice %73 {offsets = [26, 0], sizes = [26, 32], strides = [1, 1]} : vector<52x32xf32> to vector<26x32xf32>
    %76 = arith.maximumf %74, %75 : vector<26x32xf32>
    %c5 = arith.constant 5 : index
    %c0_38 = arith.constant 0 : index
    %c0_39 = arith.constant 0 : index
    %77 = vector.load %arg14[%c5, %c0_38, %c0_39] : memref<13x26x32xf32, #tpu.memory_space<vmem>>, vector<1x26x32xf32>
    %78 = vector.shape_cast %77 : vector<1x26x32xf32> to vector<26x32xf32>
    %79 = vector.shape_cast %76 : vector<26x32xf32> to vector<1x26x32xf32>
    tpu.vector_store %arg14[%c5, %c0_38, %c0_39], %79 {strides = array<i32>} : memref<13x26x32xf32, #tpu.memory_space<vmem>>, vector<1x26x32xf32>,
    %c0_40 = arith.constant 0 : index
    %c312 = arith.constant 312 : index
    %c0_41 = arith.constant 0 : index
    %80 = vector.load %arg1[%c0_40, %c312, %c0_41] : memref<1x676x147xbf16, #tpu.memory_space<vmem>>, vector<1x52x147xbf16>
    %81 = vector.shape_cast %80 : vector<1x52x147xbf16> to vector<52x147xbf16>
    %cst_42 = arith.constant dense<0.000000e+00> : vector<52x32xf32>
    %82 = tpu.matmul %81, %0, %cst_42 {dimension_numbers = #tpu.dot_dimension_numbers<[1], [0], [0], [1], [0, 0, 1, 1], [], []>} : vector<52x147xbf16>, vector<147x32xbf16>, vector<52x32xf32> -> vector<52x32xf32>
    %83 = vector.broadcast %1 : vector<1x32xf32> to vector<52x32xf32>
    %84 = arith.addf %82, %83 : vector<52x32xf32>
    %cst_43 = arith.constant 0.000000e+00 : f32
    %85 = vector.broadcast %cst_43 : f32 to vector<52x32xf32>
    %86 = arith.maximumf %84, %85 : vector<52x32xf32>
    %87 = vector.extract_strided_slice %86 {offsets = [0, 0], sizes = [26, 32], strides = [1, 1]} : vector<52x32xf32> to vector<26x32xf32>
    %88 = vector.extract_strided_slice %86 {offsets = [26, 0], sizes = [26, 32], strides = [1, 1]} : vector<52x32xf32> to vector<26x32xf32>
    %89 = arith.maximumf %87, %88 : vector<26x32xf32>
    %c6 = arith.constant 6 : index
    %c0_44 = arith.constant 0 : index
    %c0_45 = arith.constant 0 : index
    %90 = vector.load %arg14[%c6, %c0_44, %c0_45] : memref<13x26x32xf32, #tpu.memory_space<vmem>>, vector<1x26x32xf32>
    %91 = vector.shape_cast %90 : vector<1x26x32xf32> to vector<26x32xf32>
    %92 = vector.shape_cast %89 : vector<26x32xf32> to vector<1x26x32xf32>
    tpu.vector_store %arg14[%c6, %c0_44, %c0_45], %92 {strides = array<i32>} : memref<13x26x32xf32, #tpu.memory_space<vmem>>, vector<1x26x32xf32>,
    %c0_46 = arith.constant 0 : index
    %c364 = arith.constant 364 : index
    %c0_47 = arith.constant 0 : index
    %93 = vector.load %arg1[%c0_46, %c364, %c0_47] : memref<1x676x147xbf16, #tpu.memory_space<vmem>>, vector<1x52x147xbf16>
    %94 = vector.shape_cast %93 : vector<1x52x147xbf16> to vector<52x147xbf16>
    %cst_48 = arith.constant dense<0.000000e+00> : vector<52x32xf32>
    %95 = tpu.matmul %94, %0, %cst_48 {dimension_numbers = #tpu.dot_dimension_numbers<[1], [0], [0], [1], [0, 0, 1, 1], [], []>} : vector<52x147xbf16>, vector<147x32xbf16>, vector<52x32xf32> -> vector<52x32xf32>
    %96 = vector.broadcast %1 : vector<1x32xf32> to vector<52x32xf32>
    %97 = arith.addf %95, %96 : vector<52x32xf32>
    %cst_49 = arith.constant 0.000000e+00 : f32
    %98 = vector.broadcast %cst_49 : f32 to vector<52x32xf32>
    %99 = arith.maximumf %97, %98 : vector<52x32xf32>
    %100 = vector.extract_strided_slice %99 {offsets = [0, 0], sizes = [26, 32], strides = [1, 1]} : vector<52x32xf32> to vector<26x32xf32>
    %101 = vector.extract_strided_slice %99 {offsets = [26, 0], sizes = [26, 32], strides = [1, 1]} : vector<52x32xf32> to vector<26x32xf32>
    %102 = arith.maximumf %100, %101 : vector<26x32xf32>
    %c7 = arith.constant 7 : index
    %c0_50 = arith.constant 0 : index
    %c0_51 = arith.constant 0 : index
    %103 = vector.load %arg14[%c7, %c0_50, %c0_51] : memref<13x26x32xf32, #tpu.memory_space<vmem>>, vector<1x26x32xf32>
    %104 = vector.shape_cast %103 : vector<1x26x32xf32> to vector<26x32xf32>
    %105 = vector.shape_cast %102 : vector<26x32xf32> to vector<1x26x32xf32>
    tpu.vector_store %arg14[%c7, %c0_50, %c0_51], %105 {strides = array<i32>} : memref<13x26x32xf32, #tpu.memory_space<vmem>>, vector<1x26x32xf32>,
    %c0_52 = arith.constant 0 : index
    %c416 = arith.constant 416 : index
    %c0_53 = arith.constant 0 : index
    %106 = vector.load %arg1[%c0_52, %c416, %c0_53] : memref<1x676x147xbf16, #tpu.memory_space<vmem>>, vector<1x52x147xbf16>
    %107 = vector.shape_cast %106 : vector<1x52x147xbf16> to vector<52x147xbf16>
    %cst_54 = arith.constant dense<0.000000e+00> : vector<52x32xf32>
    %108 = tpu.matmul %107, %0, %cst_54 {dimension_numbers = #tpu.dot_dimension_numbers<[1], [0], [0], [1], [0, 0, 1, 1], [], []>} : vector<52x147xbf16>, vector<147x32xbf16>, vector<52x32xf32> -> vector<52x32xf32>
    %109 = vector.broadcast %1 : vector<1x32xf32> to vector<52x32xf32>
    %110 = arith.addf %108, %109 : vector<52x32xf32>
    %cst_55 = arith.constant 0.000000e+00 : f32
    %111 = vector.broadcast %cst_55 : f32 to vector<52x32xf32>
    %112 = arith.maximumf %110, %111 : vector<52x32xf32>
    %113 = vector.extract_strided_slice %112 {offsets = [0, 0], sizes = [26, 32], strides = [1, 1]} : vector<52x32xf32> to vector<26x32xf32>
    %114 = vector.extract_strided_slice %112 {offsets = [26, 0], sizes = [26, 32], strides = [1, 1]} : vector<52x32xf32> to vector<26x32xf32>
    %115 = arith.maximumf %113, %114 : vector<26x32xf32>
    %c8 = arith.constant 8 : index
    %c0_56 = arith.constant 0 : index
    %c0_57 = arith.constant 0 : index
    %116 = vector.load %arg14[%c8, %c0_56, %c0_57] : memref<13x26x32xf32, #tpu.memory_space<vmem>>, vector<1x26x32xf32>
    %117 = vector.shape_cast %116 : vector<1x26x32xf32> to vector<26x32xf32>
    %118 = vector.shape_cast %115 : vector<26x32xf32> to vector<1x26x32xf32>
    tpu.vector_store %arg14[%c8, %c0_56, %c0_57], %118 {strides = array<i32>} : memref<13x26x32xf32, #tpu.memory_space<vmem>>, vector<1x26x32xf32>,
    %c0_58 = arith.constant 0 : index
    %c468 = arith.constant 468 : index
    %c0_59 = arith.constant 0 : index
    %119 = vector.load %arg1[%c0_58, %c468, %c0_59] : memref<1x676x147xbf16, #tpu.memory_space<vmem>>, vector<1x52x147xbf16>
    %120 = vector.shape_cast %119 : vector<1x52x147xbf16> to vector<52x147xbf16>
    %cst_60 = arith.constant dense<0.000000e+00> : vector<52x32xf32>
    %121 = tpu.matmul %120, %0, %cst_60 {dimension_numbers = #tpu.dot_dimension_numbers<[1], [0], [0], [1], [0, 0, 1, 1], [], []>} : vector<52x147xbf16>, vector<147x32xbf16>, vector<52x32xf32> -> vector<52x32xf32>
    %122 = vector.broadcast %1 : vector<1x32xf32> to vector<52x32xf32>
    %123 = arith.addf %121, %122 : vector<52x32xf32>
    %cst_61 = arith.constant 0.000000e+00 : f32
    %124 = vector.broadcast %cst_61 : f32 to vector<52x32xf32>
    %125 = arith.maximumf %123, %124 : vector<52x32xf32>
    %126 = vector.extract_strided_slice %125 {offsets = [0, 0], sizes = [26, 32], strides = [1, 1]} : vector<52x32xf32> to vector<26x32xf32>
    %127 = vector.extract_strided_slice %125 {offsets = [26, 0], sizes = [26, 32], strides = [1, 1]} : vector<52x32xf32> to vector<26x32xf32>
    %128 = arith.maximumf %126, %127 : vector<26x32xf32>
    %c9 = arith.constant 9 : index
    %c0_62 = arith.constant 0 : index
    %c0_63 = arith.constant 0 : index
    %129 = vector.load %arg14[%c9, %c0_62, %c0_63] : memref<13x26x32xf32, #tpu.memory_space<vmem>>, vector<1x26x32xf32>
    %130 = vector.shape_cast %129 : vector<1x26x32xf32> to vector<26x32xf32>
    %131 = vector.shape_cast %128 : vector<26x32xf32> to vector<1x26x32xf32>
    tpu.vector_store %arg14[%c9, %c0_62, %c0_63], %131 {strides = array<i32>} : memref<13x26x32xf32, #tpu.memory_space<vmem>>, vector<1x26x32xf32>,
    %c0_64 = arith.constant 0 : index
    %c520 = arith.constant 520 : index
    %c0_65 = arith.constant 0 : index
    %132 = vector.load %arg1[%c0_64, %c520, %c0_65] : memref<1x676x147xbf16, #tpu.memory_space<vmem>>, vector<1x52x147xbf16>
    %133 = vector.shape_cast %132 : vector<1x52x147xbf16> to vector<52x147xbf16>
    %cst_66 = arith.constant dense<0.000000e+00> : vector<52x32xf32>
    %134 = tpu.matmul %133, %0, %cst_66 {dimension_numbers = #tpu.dot_dimension_numbers<[1], [0], [0], [1], [0, 0, 1, 1], [], []>} : vector<52x147xbf16>, vector<147x32xbf16>, vector<52x32xf32> -> vector<52x32xf32>
    %135 = vector.broadcast %1 : vector<1x32xf32> to vector<52x32xf32>
    %136 = arith.addf %134, %135 : vector<52x32xf32>
    %cst_67 = arith.constant 0.000000e+00 : f32
    %137 = vector.broadcast %cst_67 : f32 to vector<52x32xf32>
    %138 = arith.maximumf %136, %137 : vector<52x32xf32>
    %139 = vector.extract_strided_slice %138 {offsets = [0, 0], sizes = [26, 32], strides = [1, 1]} : vector<52x32xf32> to vector<26x32xf32>
    %140 = vector.extract_strided_slice %138 {offsets = [26, 0], sizes = [26, 32], strides = [1, 1]} : vector<52x32xf32> to vector<26x32xf32>
    %141 = arith.maximumf %139, %140 : vector<26x32xf32>
    %c10 = arith.constant 10 : index
    %c0_68 = arith.constant 0 : index
    %c0_69 = arith.constant 0 : index
    %142 = vector.load %arg14[%c10, %c0_68, %c0_69] : memref<13x26x32xf32, #tpu.memory_space<vmem>>, vector<1x26x32xf32>
    %143 = vector.shape_cast %142 : vector<1x26x32xf32> to vector<26x32xf32>
    %144 = vector.shape_cast %141 : vector<26x32xf32> to vector<1x26x32xf32>
    tpu.vector_store %arg14[%c10, %c0_68, %c0_69], %144 {strides = array<i32>} : memref<13x26x32xf32, #tpu.memory_space<vmem>>, vector<1x26x32xf32>,
    %c0_70 = arith.constant 0 : index
    %c572 = arith.constant 572 : index
    %c0_71 = arith.constant 0 : index
    %145 = vector.load %arg1[%c0_70, %c572, %c0_71] : memref<1x676x147xbf16, #tpu.memory_space<vmem>>, vector<1x52x147xbf16>
    %146 = vector.shape_cast %145 : vector<1x52x147xbf16> to vector<52x147xbf16>
    %cst_72 = arith.constant dense<0.000000e+00> : vector<52x32xf32>
    %147 = tpu.matmul %146, %0, %cst_72 {dimension_numbers = #tpu.dot_dimension_numbers<[1], [0], [0], [1], [0, 0, 1, 1], [], []>} : vector<52x147xbf16>, vector<147x32xbf16>, vector<52x32xf32> -> vector<52x32xf32>
    %148 = vector.broadcast %1 : vector<1x32xf32> to vector<52x32xf32>
    %149 = arith.addf %147, %148 : vector<52x32xf32>
    %cst_73 = arith.constant 0.000000e+00 : f32
    %150 = vector.broadcast %cst_73 : f32 to vector<52x32xf32>
    %151 = arith.maximumf %149, %150 : vector<52x32xf32>
    %152 = vector.extract_strided_slice %151 {offsets = [0, 0], sizes = [26, 32], strides = [1, 1]} : vector<52x32xf32> to vector<26x32xf32>
    %153 = vector.extract_strided_slice %151 {offsets = [26, 0], sizes = [26, 32], strides = [1, 1]} : vector<52x32xf32> to vector<26x32xf32>
    %154 = arith.maximumf %152, %153 : vector<26x32xf32>
    %c11 = arith.constant 11 : index
    %c0_74 = arith.constant 0 : index
    %c0_75 = arith.constant 0 : index
    %155 = vector.load %arg14[%c11, %c0_74, %c0_75] : memref<13x26x32xf32, #tpu.memory_space<vmem>>, vector<1x26x32xf32>
    %156 = vector.shape_cast %155 : vector<1x26x32xf32> to vector<26x32xf32>
    %157 = vector.shape_cast %154 : vector<26x32xf32> to vector<1x26x32xf32>
    tpu.vector_store %arg14[%c11, %c0_74, %c0_75], %157 {strides = array<i32>} : memref<13x26x32xf32, #tpu.memory_space<vmem>>, vector<1x26x32xf32>,
    %c0_76 = arith.constant 0 : index
    %c624 = arith.constant 624 : index
    %c0_77 = arith.constant 0 : index
    %158 = vector.load %arg1[%c0_76, %c624, %c0_77] : memref<1x676x147xbf16, #tpu.memory_space<vmem>>, vector<1x52x147xbf16>
    %159 = vector.shape_cast %158 : vector<1x52x147xbf16> to vector<52x147xbf16>
    %cst_78 = arith.constant dense<0.000000e+00> : vector<52x32xf32>
    %160 = tpu.matmul %159, %0, %cst_78 {dimension_numbers = #tpu.dot_dimension_numbers<[1], [0], [0], [1], [0, 0, 1, 1], [], []>} : vector<52x147xbf16>, vector<147x32xbf16>, vector<52x32xf32> -> vector<52x32xf32>
    %161 = vector.broadcast %1 : vector<1x32xf32> to vector<52x32xf32>
    %162 = arith.addf %160, %161 : vector<52x32xf32>
    %cst_79 = arith.constant 0.000000e+00 : f32
    %163 = vector.broadcast %cst_79 : f32 to vector<52x32xf32>
    %164 = arith.maximumf %162, %163 : vector<52x32xf32>
    %165 = vector.extract_strided_slice %164 {offsets = [0, 0], sizes = [26, 32], strides = [1, 1]} : vector<52x32xf32> to vector<26x32xf32>
    %166 = vector.extract_strided_slice %164 {offsets = [26, 0], sizes = [26, 32], strides = [1, 1]} : vector<52x32xf32> to vector<26x32xf32>
    %167 = arith.maximumf %165, %166 : vector<26x32xf32>
    %c12 = arith.constant 12 : index
    %c0_80 = arith.constant 0 : index
    %c0_81 = arith.constant 0 : index
    %168 = vector.load %arg14[%c12, %c0_80, %c0_81] : memref<13x26x32xf32, #tpu.memory_space<vmem>>, vector<1x26x32xf32>
    %169 = vector.shape_cast %168 : vector<1x26x32xf32> to vector<26x32xf32>
    %170 = vector.shape_cast %167 : vector<26x32xf32> to vector<1x26x32xf32>
    tpu.vector_store %arg14[%c12, %c0_80, %c0_81], %170 {strides = array<i32>} : memref<13x26x32xf32, #tpu.memory_space<vmem>>, vector<1x26x32xf32>,
    %c0_82 = arith.constant 0 : index
    %c0_83 = arith.constant 0 : index
    %c0_84 = arith.constant 0 : index
    %171 = vector.load %arg14[%c0_82, %c0_83, %c0_84] : memref<13x26x32xf32, #tpu.memory_space<vmem>>, vector<13x1x32xf32>
    %172 = vector.shape_cast %171 : vector<13x1x32xf32> to vector<13x32xf32>
    %c0_85 = arith.constant 0 : index
    %c1_86 = arith.constant 1 : index
    %c0_87 = arith.constant 0 : index
    %173 = vector.load %arg14[%c0_85, %c1_86, %c0_87] : memref<13x26x32xf32, #tpu.memory_space<vmem>>, vector<13x1x32xf32>
    %174 = vector.shape_cast %173 : vector<13x1x32xf32> to vector<13x32xf32>
    %175 = arith.maximumf %172, %174 : vector<13x32xf32>
    %176 = arith.truncf %175 : vector<13x32xf32> to vector<13x32xbf16>
    %c0_88 = arith.constant 0 : index
    %c0_89 = arith.constant 0 : index
    %c0_90 = arith.constant 0 : index
    %177 = vector.load %arg15[%c0_88, %c0_89, %c0_90] : memref<13x13x32xbf16, #tpu.memory_space<vmem>>, vector<13x1x32xbf16>
    %178 = vector.shape_cast %177 : vector<13x1x32xbf16> to vector<13x32xbf16>
    %179 = vector.shape_cast %176 : vector<13x32xbf16> to vector<13x1x32xbf16>
    tpu.vector_store %arg15[%c0_88, %c0_89, %c0_90], %179 {strides = array<i32>} : memref<13x13x32xbf16, #tpu.memory_space<vmem>>, vector<13x1x32xbf16>,
    %c0_91 = arith.constant 0 : index
    %c2_92 = arith.constant 2 : index
    %c0_93 = arith.constant 0 : index
    %180 = vector.load %arg14[%c0_91, %c2_92, %c0_93] : memref<13x26x32xf32, #tpu.memory_space<vmem>>, vector<13x1x32xf32>
    %181 = vector.shape_cast %180 : vector<13x1x32xf32> to vector<13x32xf32>
    %c0_94 = arith.constant 0 : index
    %c3_95 = arith.constant 3 : index
    %c0_96 = arith.constant 0 : index
    %182 = vector.load %arg14[%c0_94, %c3_95, %c0_96] : memref<13x26x32xf32, #tpu.memory_space<vmem>>, vector<13x1x32xf32>
    %183 = vector.shape_cast %182 : vector<13x1x32xf32> to vector<13x32xf32>
    %184 = arith.maximumf %181, %183 : vector<13x32xf32>
    %185 = arith.truncf %184 : vector<13x32xf32> to vector<13x32xbf16>
    %c0_97 = arith.constant 0 : index
    %c1_98 = arith.constant 1 : index
    %c0_99 = arith.constant 0 : index
    %186 = vector.load %arg15[%c0_97, %c1_98, %c0_99] : memref<13x13x32xbf16, #tpu.memory_space<vmem>>, vector<13x1x32xbf16>
    %187 = vector.shape_cast %186 : vector<13x1x32xbf16> to vector<13x32xbf16>
    %188 = vector.shape_cast %185 : vector<13x32xbf16> to vector<13x1x32xbf16>
    tpu.vector_store %arg15[%c0_97, %c1_98, %c0_99], %188 {strides = array<i32>} : memref<13x13x32xbf16, #tpu.memory_space<vmem>>, vector<13x1x32xbf16>,
    %c0_100 = arith.constant 0 : index
    %c4_101 = arith.constant 4 : index
    %c0_102 = arith.constant 0 : index
    %189 = vector.load %arg14[%c0_100, %c4_101, %c0_102] : memref<13x26x32xf32, #tpu.memory_space<vmem>>, vector<13x1x32xf32>
    %190 = vector.shape_cast %189 : vector<13x1x32xf32> to vector<13x32xf32>
    %c0_103 = arith.constant 0 : index
    %c5_104 = arith.constant 5 : index
    %c0_105 = arith.constant 0 : index
    %191 = vector.load %arg14[%c0_103, %c5_104, %c0_105] : memref<13x26x32xf32, #tpu.memory_space<vmem>>, vector<13x1x32xf32>
    %192 = vector.shape_cast %191 : vector<13x1x32xf32> to vector<13x32xf32>
    %193 = arith.maximumf %190, %192 : vector<13x32xf32>
    %194 = arith.truncf %193 : vector<13x32xf32> to vector<13x32xbf16>
    %c0_106 = arith.constant 0 : index
    %c2_107 = arith.constant 2 : index
    %c0_108 = arith.constant 0 : index
    %195 = vector.load %arg15[%c0_106, %c2_107, %c0_108] : memref<13x13x32xbf16, #tpu.memory_space<vmem>>, vector<13x1x32xbf16>
    %196 = vector.shape_cast %195 : vector<13x1x32xbf16> to vector<13x32xbf16>
    %197 = vector.shape_cast %194 : vector<13x32xbf16> to vector<13x1x32xbf16>
    tpu.vector_store %arg15[%c0_106, %c2_107, %c0_108], %197 {strides = array<i32>} : memref<13x13x32xbf16, #tpu.memory_space<vmem>>, vector<13x1x32xbf16>,
    %c0_109 = arith.constant 0 : index
    %c6_110 = arith.constant 6 : index
    %c0_111 = arith.constant 0 : index
    %198 = vector.load %arg14[%c0_109, %c6_110, %c0_111] : memref<13x26x32xf32, #tpu.memory_space<vmem>>, vector<13x1x32xf32>
    %199 = vector.shape_cast %198 : vector<13x1x32xf32> to vector<13x32xf32>
    %c0_112 = arith.constant 0 : index
    %c7_113 = arith.constant 7 : index
    %c0_114 = arith.constant 0 : index
    %200 = vector.load %arg14[%c0_112, %c7_113, %c0_114] : memref<13x26x32xf32, #tpu.memory_space<vmem>>, vector<13x1x32xf32>
    %201 = vector.shape_cast %200 : vector<13x1x32xf32> to vector<13x32xf32>
    %202 = arith.maximumf %199, %201 : vector<13x32xf32>
    %203 = arith.truncf %202 : vector<13x32xf32> to vector<13x32xbf16>
    %c0_115 = arith.constant 0 : index
    %c3_116 = arith.constant 3 : index
    %c0_117 = arith.constant 0 : index
    %204 = vector.load %arg15[%c0_115, %c3_116, %c0_117] : memref<13x13x32xbf16, #tpu.memory_space<vmem>>, vector<13x1x32xbf16>
    %205 = vector.shape_cast %204 : vector<13x1x32xbf16> to vector<13x32xbf16>
    %206 = vector.shape_cast %203 : vector<13x32xbf16> to vector<13x1x32xbf16>
    tpu.vector_store %arg15[%c0_115, %c3_116, %c0_117], %206 {strides = array<i32>} : memref<13x13x32xbf16, #tpu.memory_space<vmem>>, vector<13x1x32xbf16>,
    %c0_118 = arith.constant 0 : index
    %c8_119 = arith.constant 8 : index
    %c0_120 = arith.constant 0 : index
    %207 = vector.load %arg14[%c0_118, %c8_119, %c0_120] : memref<13x26x32xf32, #tpu.memory_space<vmem>>, vector<13x1x32xf32>
    %208 = vector.shape_cast %207 : vector<13x1x32xf32> to vector<13x32xf32>
    %c0_121 = arith.constant 0 : index
    %c9_122 = arith.constant 9 : index
    %c0_123 = arith.constant 0 : index
    %209 = vector.load %arg14[%c0_121, %c9_122, %c0_123] : memref<13x26x32xf32, #tpu.memory_space<vmem>>, vector<13x1x32xf32>
    %210 = vector.shape_cast %209 : vector<13x1x32xf32> to vector<13x32xf32>
    %211 = arith.maximumf %208, %210 : vector<13x32xf32>
    %212 = arith.truncf %211 : vector<13x32xf32> to vector<13x32xbf16>
    %c0_124 = arith.constant 0 : index
    %c4_125 = arith.constant 4 : index
    %c0_126 = arith.constant 0 : index
    %213 = vector.load %arg15[%c0_124, %c4_125, %c0_126] : memref<13x13x32xbf16, #tpu.memory_space<vmem>>, vector<13x1x32xbf16>
    %214 = vector.shape_cast %213 : vector<13x1x32xbf16> to vector<13x32xbf16>
    %215 = vector.shape_cast %212 : vector<13x32xbf16> to vector<13x1x32xbf16>
    tpu.vector_store %arg15[%c0_124, %c4_125, %c0_126], %215 {strides = array<i32>} : memref<13x13x32xbf16, #tpu.memory_space<vmem>>, vector<13x1x32xbf16>,
    %c0_127 = arith.constant 0 : index
    %c10_128 = arith.constant 10 : index
    %c0_129 = arith.constant 0 : index
    %216 = vector.load %arg14[%c0_127, %c10_128, %c0_129] : memref<13x26x32xf32, #tpu.memory_space<vmem>>, vector<13x1x32xf32>
    %217 = vector.shape_cast %216 : vector<13x1x32xf32> to vector<13x32xf32>
    %c0_130 = arith.constant 0 : index
    %c11_131 = arith.constant 11 : index
    %c0_132 = arith.constant 0 : index
    %218 = vector.load %arg14[%c0_130, %c11_131, %c0_132] : memref<13x26x32xf32, #tpu.memory_space<vmem>>, vector<13x1x32xf32>
    %219 = vector.shape_cast %218 : vector<13x1x32xf32> to vector<13x32xf32>
    %220 = arith.maximumf %217, %219 : vector<13x32xf32>
    %221 = arith.truncf %220 : vector<13x32xf32> to vector<13x32xbf16>
    %c0_133 = arith.constant 0 : index
    %c5_134 = arith.constant 5 : index
    %c0_135 = arith.constant 0 : index
    %222 = vector.load %arg15[%c0_133, %c5_134, %c0_135] : memref<13x13x32xbf16, #tpu.memory_space<vmem>>, vector<13x1x32xbf16>
    %223 = vector.shape_cast %222 : vector<13x1x32xbf16> to vector<13x32xbf16>
    %224 = vector.shape_cast %221 : vector<13x32xbf16> to vector<13x1x32xbf16>
    tpu.vector_store %arg15[%c0_133, %c5_134, %c0_135], %224 {strides = array<i32>} : memref<13x13x32xbf16, #tpu.memory_space<vmem>>, vector<13x1x32xbf16>,
    %c0_136 = arith.constant 0 : index
    %c12_137 = arith.constant 12 : index
    %c0_138 = arith.constant 0 : index
    %225 = vector.load %arg14[%c0_136, %c12_137, %c0_138] : memref<13x26x32xf32, #tpu.memory_space<vmem>>, vector<13x1x32xf32>
    %226 = vector.shape_cast %225 : vector<13x1x32xf32> to vector<13x32xf32>
    %c0_139 = arith.constant 0 : index
    %c13 = arith.constant 13 : index
    %c0_140 = arith.constant 0 : index
    %227 = vector.load %arg14[%c0_139, %c13, %c0_140] : memref<13x26x32xf32, #tpu.memory_space<vmem>>, vector<13x1x32xf32>
    %228 = vector.shape_cast %227 : vector<13x1x32xf32> to vector<13x32xf32>
    %229 = arith.maximumf %226, %228 : vector<13x32xf32>
    %230 = arith.truncf %229 : vector<13x32xf32> to vector<13x32xbf16>
    %c0_141 = arith.constant 0 : index
    %c6_142 = arith.constant 6 : index
    %c0_143 = arith.constant 0 : index
    %231 = vector.load %arg15[%c0_141, %c6_142, %c0_143] : memref<13x13x32xbf16, #tpu.memory_space<vmem>>, vector<13x1x32xbf16>
    %232 = vector.shape_cast %231 : vector<13x1x32xbf16> to vector<13x32xbf16>
    %233 = vector.shape_cast %230 : vector<13x32xbf16> to vector<13x1x32xbf16>
    tpu.vector_store %arg15[%c0_141, %c6_142, %c0_143], %233 {strides = array<i32>} : memref<13x13x32xbf16, #tpu.memory_space<vmem>>, vector<13x1x32xbf16>,
    %c0_144 = arith.constant 0 : index
    %c14 = arith.constant 14 : index
    %c0_145 = arith.constant 0 : index
    %234 = vector.load %arg14[%c0_144, %c14, %c0_145] : memref<13x26x32xf32, #tpu.memory_space<vmem>>, vector<13x1x32xf32>
    %235 = vector.shape_cast %234 : vector<13x1x32xf32> to vector<13x32xf32>
    %c0_146 = arith.constant 0 : index
    %c15 = arith.constant 15 : index
    %c0_147 = arith.constant 0 : index
    %236 = vector.load %arg14[%c0_146, %c15, %c0_147] : memref<13x26x32xf32, #tpu.memory_space<vmem>>, vector<13x1x32xf32>
    %237 = vector.shape_cast %236 : vector<13x1x32xf32> to vector<13x32xf32>
    %238 = arith.maximumf %235, %237 : vector<13x32xf32>
    %239 = arith.truncf %238 : vector<13x32xf32> to vector<13x32xbf16>
    %c0_148 = arith.constant 0 : index
    %c7_149 = arith.constant 7 : index
    %c0_150 = arith.constant 0 : index
    %240 = vector.load %arg15[%c0_148, %c7_149, %c0_150] : memref<13x13x32xbf16, #tpu.memory_space<vmem>>, vector<13x1x32xbf16>
    %241 = vector.shape_cast %240 : vector<13x1x32xbf16> to vector<13x32xbf16>
    %242 = vector.shape_cast %239 : vector<13x32xbf16> to vector<13x1x32xbf16>
    tpu.vector_store %arg15[%c0_148, %c7_149, %c0_150], %242 {strides = array<i32>} : memref<13x13x32xbf16, #tpu.memory_space<vmem>>, vector<13x1x32xbf16>,
    %c0_151 = arith.constant 0 : index
    %c16 = arith.constant 16 : index
    %c0_152 = arith.constant 0 : index
    %243 = vector.load %arg14[%c0_151, %c16, %c0_152] : memref<13x26x32xf32, #tpu.memory_space<vmem>>, vector<13x1x32xf32>
    %244 = vector.shape_cast %243 : vector<13x1x32xf32> to vector<13x32xf32>
    %c0_153 = arith.constant 0 : index
    %c17 = arith.constant 17 : index
    %c0_154 = arith.constant 0 : index
    %245 = vector.load %arg14[%c0_153, %c17, %c0_154] : memref<13x26x32xf32, #tpu.memory_space<vmem>>, vector<13x1x32xf32>
    %246 = vector.shape_cast %245 : vector<13x1x32xf32> to vector<13x32xf32>
    %247 = arith.maximumf %244, %246 : vector<13x32xf32>
    %248 = arith.truncf %247 : vector<13x32xf32> to vector<13x32xbf16>
    %c0_155 = arith.constant 0 : index
    %c8_156 = arith.constant 8 : index
    %c0_157 = arith.constant 0 : index
    %249 = vector.load %arg15[%c0_155, %c8_156, %c0_157] : memref<13x13x32xbf16, #tpu.memory_space<vmem>>, vector<13x1x32xbf16>
    %250 = vector.shape_cast %249 : vector<13x1x32xbf16> to vector<13x32xbf16>
    %251 = vector.shape_cast %248 : vector<13x32xbf16> to vector<13x1x32xbf16>
    tpu.vector_store %arg15[%c0_155, %c8_156, %c0_157], %251 {strides = array<i32>} : memref<13x13x32xbf16, #tpu.memory_space<vmem>>, vector<13x1x32xbf16>,
    %c0_158 = arith.constant 0 : index
    %c18 = arith.constant 18 : index
    %c0_159 = arith.constant 0 : index
    %252 = vector.load %arg14[%c0_158, %c18, %c0_159] : memref<13x26x32xf32, #tpu.memory_space<vmem>>, vector<13x1x32xf32>
    %253 = vector.shape_cast %252 : vector<13x1x32xf32> to vector<13x32xf32>
    %c0_160 = arith.constant 0 : index
    %c19 = arith.constant 19 : index
    %c0_161 = arith.constant 0 : index
    %254 = vector.load %arg14[%c0_160, %c19, %c0_161] : memref<13x26x32xf32, #tpu.memory_space<vmem>>, vector<13x1x32xf32>
    %255 = vector.shape_cast %254 : vector<13x1x32xf32> to vector<13x32xf32>
    %256 = arith.maximumf %253, %255 : vector<13x32xf32>
    %257 = arith.truncf %256 : vector<13x32xf32> to vector<13x32xbf16>
    %c0_162 = arith.constant 0 : index
    %c9_163 = arith.constant 9 : index
    %c0_164 = arith.constant 0 : index
    %258 = vector.load %arg15[%c0_162, %c9_163, %c0_164] : memref<13x13x32xbf16, #tpu.memory_space<vmem>>, vector<13x1x32xbf16>
    %259 = vector.shape_cast %258 : vector<13x1x32xbf16> to vector<13x32xbf16>
    %260 = vector.shape_cast %257 : vector<13x32xbf16> to vector<13x1x32xbf16>
    tpu.vector_store %arg15[%c0_162, %c9_163, %c0_164], %260 {strides = array<i32>} : memref<13x13x32xbf16, #tpu.memory_space<vmem>>, vector<13x1x32xbf16>,
    %c0_165 = arith.constant 0 : index
    %c20 = arith.constant 20 : index
    %c0_166 = arith.constant 0 : index
    %261 = vector.load %arg14[%c0_165, %c20, %c0_166] : memref<13x26x32xf32, #tpu.memory_space<vmem>>, vector<13x1x32xf32>
    %262 = vector.shape_cast %261 : vector<13x1x32xf32> to vector<13x32xf32>
    %c0_167 = arith.constant 0 : index
    %c21 = arith.constant 21 : index
    %c0_168 = arith.constant 0 : index
    %263 = vector.load %arg14[%c0_167, %c21, %c0_168] : memref<13x26x32xf32, #tpu.memory_space<vmem>>, vector<13x1x32xf32>
    %264 = vector.shape_cast %263 : vector<13x1x32xf32> to vector<13x32xf32>
    %265 = arith.maximumf %262, %264 : vector<13x32xf32>
    %266 = arith.truncf %265 : vector<13x32xf32> to vector<13x32xbf16>
    %c0_169 = arith.constant 0 : index
    %c10_170 = arith.constant 10 : index
    %c0_171 = arith.constant 0 : index
    %267 = vector.load %arg15[%c0_169, %c10_170, %c0_171] : memref<13x13x32xbf16, #tpu.memory_space<vmem>>, vector<13x1x32xbf16>
    %268 = vector.shape_cast %267 : vector<13x1x32xbf16> to vector<13x32xbf16>
    %269 = vector.shape_cast %266 : vector<13x32xbf16> to vector<13x1x32xbf16>
    tpu.vector_store %arg15[%c0_169, %c10_170, %c0_171], %269 {strides = array<i32>} : memref<13x13x32xbf16, #tpu.memory_space<vmem>>, vector<13x1x32xbf16>,
    %c0_172 = arith.constant 0 : index
    %c22 = arith.constant 22 : index
    %c0_173 = arith.constant 0 : index
    %270 = vector.load %arg14[%c0_172, %c22, %c0_173] : memref<13x26x32xf32, #tpu.memory_space<vmem>>, vector<13x1x32xf32>
    %271 = vector.shape_cast %270 : vector<13x1x32xf32> to vector<13x32xf32>
    %c0_174 = arith.constant 0 : index
    %c23 = arith.constant 23 : index
    %c0_175 = arith.constant 0 : index
    %272 = vector.load %arg14[%c0_174, %c23, %c0_175] : memref<13x26x32xf32, #tpu.memory_space<vmem>>, vector<13x1x32xf32>
    %273 = vector.shape_cast %272 : vector<13x1x32xf32> to vector<13x32xf32>
    %274 = arith.maximumf %271, %273 : vector<13x32xf32>
    %275 = arith.truncf %274 : vector<13x32xf32> to vector<13x32xbf16>
    %c0_176 = arith.constant 0 : index
    %c11_177 = arith.constant 11 : index
    %c0_178 = arith.constant 0 : index
    %276 = vector.load %arg15[%c0_176, %c11_177, %c0_178] : memref<13x13x32xbf16, #tpu.memory_space<vmem>>, vector<13x1x32xbf16>
    %277 = vector.shape_cast %276 : vector<13x1x32xbf16> to vector<13x32xbf16>
    %278 = vector.shape_cast %275 : vector<13x32xbf16> to vector<13x1x32xbf16>
    tpu.vector_store %arg15[%c0_176, %c11_177, %c0_178], %278 {strides = array<i32>} : memref<13x13x32xbf16, #tpu.memory_space<vmem>>, vector<13x1x32xbf16>,
    %c0_179 = arith.constant 0 : index
    %c24 = arith.constant 24 : index
    %c0_180 = arith.constant 0 : index
    %279 = vector.load %arg14[%c0_179, %c24, %c0_180] : memref<13x26x32xf32, #tpu.memory_space<vmem>>, vector<13x1x32xf32>
    %280 = vector.shape_cast %279 : vector<13x1x32xf32> to vector<13x32xf32>
    %c0_181 = arith.constant 0 : index
    %c25 = arith.constant 25 : index
    %c0_182 = arith.constant 0 : index
    %281 = vector.load %arg14[%c0_181, %c25, %c0_182] : memref<13x26x32xf32, #tpu.memory_space<vmem>>, vector<13x1x32xf32>
    %282 = vector.shape_cast %281 : vector<13x1x32xf32> to vector<13x32xf32>
    %283 = arith.maximumf %280, %282 : vector<13x32xf32>
    %284 = arith.truncf %283 : vector<13x32xf32> to vector<13x32xbf16>
    %c0_183 = arith.constant 0 : index
    %c12_184 = arith.constant 12 : index
    %c0_185 = arith.constant 0 : index
    %285 = vector.load %arg15[%c0_183, %c12_184, %c0_185] : memref<13x13x32xbf16, #tpu.memory_space<vmem>>, vector<13x1x32xbf16>
    %286 = vector.shape_cast %285 : vector<13x1x32xbf16> to vector<13x32xbf16>
    %287 = vector.shape_cast %284 : vector<13x32xbf16> to vector<13x1x32xbf16>
    tpu.vector_store %arg15[%c0_183, %c12_184, %c0_185], %287 {strides = array<i32>} : memref<13x13x32xbf16, #tpu.memory_space<vmem>>, vector<13x1x32xbf16>,
    %c0_186 = arith.constant 0 : index
    %c0_187 = arith.constant 0 : index
    %c0_188 = arith.constant 0 : index
    %288 = vector.load %arg15[%c0_186, %c0_187, %c0_188] : memref<13x13x32xbf16, #tpu.memory_space<vmem>>, vector<11x11x32xbf16>
    %c0_189 = arith.constant 0 : index
    %c0_190 = arith.constant 0 : index
    %c0_191 = arith.constant 0 : index
    %289 = vector.load %arg16[%c0_189, %c0_190, %c0_191] : memref<11x11x288xbf16, #tpu.memory_space<vmem>>, vector<11x11x32xbf16>
    tpu.vector_store %arg16[%c0_189, %c0_190, %c0_191], %288 {strides = array<i32>} : memref<11x11x288xbf16, #tpu.memory_space<vmem>>, vector<11x11x32xbf16>,
    %c0_192 = arith.constant 0 : index
    %c1_193 = arith.constant 1 : index
    %c0_194 = arith.constant 0 : index
    %290 = vector.load %arg15[%c0_192, %c1_193, %c0_194] : memref<13x13x32xbf16, #tpu.memory_space<vmem>>, vector<11x11x32xbf16>
    %c0_195 = arith.constant 0 : index
    %c0_196 = arith.constant 0 : index
    %c32 = arith.constant 32 : index
    %291 = vector.load %arg16[%c0_195, %c0_196, %c32] : memref<11x11x288xbf16, #tpu.memory_space<vmem>>, vector<11x11x32xbf16>
    tpu.vector_store %arg16[%c0_195, %c0_196, %c32], %290 {strides = array<i32>} : memref<11x11x288xbf16, #tpu.memory_space<vmem>>, vector<11x11x32xbf16>,
    %c0_197 = arith.constant 0 : index
    %c2_198 = arith.constant 2 : index
    %c0_199 = arith.constant 0 : index
    %292 = vector.load %arg15[%c0_197, %c2_198, %c0_199] : memref<13x13x32xbf16, #tpu.memory_space<vmem>>, vector<11x11x32xbf16>
    %c0_200 = arith.constant 0 : index
    %c0_201 = arith.constant 0 : index
    %c64 = arith.constant 64 : index
    %293 = vector.load %arg16[%c0_200, %c0_201, %c64] : memref<11x11x288xbf16, #tpu.memory_space<vmem>>, vector<11x11x32xbf16>
    tpu.vector_store %arg16[%c0_200, %c0_201, %c64], %292 {strides = array<i32>} : memref<11x11x288xbf16, #tpu.memory_space<vmem>>, vector<11x11x32xbf16>,
    %c1_202 = arith.constant 1 : index
    %c0_203 = arith.constant 0 : index
    %c0_204 = arith.constant 0 : index
    %294 = vector.load %arg15[%c1_202, %c0_203, %c0_204] : memref<13x13x32xbf16, #tpu.memory_space<vmem>>, vector<11x11x32xbf16>
    %c0_205 = arith.constant 0 : index
    %c0_206 = arith.constant 0 : index
    %c96 = arith.constant 96 : index
    %295 = vector.load %arg16[%c0_205, %c0_206, %c96] : memref<11x11x288xbf16, #tpu.memory_space<vmem>>, vector<11x11x32xbf16>
    tpu.vector_store %arg16[%c0_205, %c0_206, %c96], %294 {strides = array<i32>} : memref<11x11x288xbf16, #tpu.memory_space<vmem>>, vector<11x11x32xbf16>,
    %c1_207 = arith.constant 1 : index
    %c1_208 = arith.constant 1 : index
    %c0_209 = arith.constant 0 : index
    %296 = vector.load %arg15[%c1_207, %c1_208, %c0_209] : memref<13x13x32xbf16, #tpu.memory_space<vmem>>, vector<11x11x32xbf16>
    %c0_210 = arith.constant 0 : index
    %c0_211 = arith.constant 0 : index
    %c128 = arith.constant 128 : index
    %297 = vector.load %arg16[%c0_210, %c0_211, %c128] : memref<11x11x288xbf16, #tpu.memory_space<vmem>>, vector<11x11x32xbf16>
    tpu.vector_store %arg16[%c0_210, %c0_211, %c128], %296 {strides = array<i32>} : memref<11x11x288xbf16, #tpu.memory_space<vmem>>, vector<11x11x32xbf16>,
    %c1_212 = arith.constant 1 : index
    %c2_213 = arith.constant 2 : index
    %c0_214 = arith.constant 0 : index
    %298 = vector.load %arg15[%c1_212, %c2_213, %c0_214] : memref<13x13x32xbf16, #tpu.memory_space<vmem>>, vector<11x11x32xbf16>
    %c0_215 = arith.constant 0 : index
    %c0_216 = arith.constant 0 : index
    %c160 = arith.constant 160 : index
    %299 = vector.load %arg16[%c0_215, %c0_216, %c160] : memref<11x11x288xbf16, #tpu.memory_space<vmem>>, vector<11x11x32xbf16>
    tpu.vector_store %arg16[%c0_215, %c0_216, %c160], %298 {strides = array<i32>} : memref<11x11x288xbf16, #tpu.memory_space<vmem>>, vector<11x11x32xbf16>,
    %c2_217 = arith.constant 2 : index
    %c0_218 = arith.constant 0 : index
    %c0_219 = arith.constant 0 : index
    %300 = vector.load %arg15[%c2_217, %c0_218, %c0_219] : memref<13x13x32xbf16, #tpu.memory_space<vmem>>, vector<11x11x32xbf16>
    %c0_220 = arith.constant 0 : index
    %c0_221 = arith.constant 0 : index
    %c192 = arith.constant 192 : index
    %301 = vector.load %arg16[%c0_220, %c0_221, %c192] : memref<11x11x288xbf16, #tpu.memory_space<vmem>>, vector<11x11x32xbf16>
    tpu.vector_store %arg16[%c0_220, %c0_221, %c192], %300 {strides = array<i32>} : memref<11x11x288xbf16, #tpu.memory_space<vmem>>, vector<11x11x32xbf16>,
    %c2_222 = arith.constant 2 : index
    %c1_223 = arith.constant 1 : index
    %c0_224 = arith.constant 0 : index
    %302 = vector.load %arg15[%c2_222, %c1_223, %c0_224] : memref<13x13x32xbf16, #tpu.memory_space<vmem>>, vector<11x11x32xbf16>
    %c0_225 = arith.constant 0 : index
    %c0_226 = arith.constant 0 : index
    %c224 = arith.constant 224 : index
    %303 = vector.load %arg16[%c0_225, %c0_226, %c224] : memref<11x11x288xbf16, #tpu.memory_space<vmem>>, vector<11x11x32xbf16>
    tpu.vector_store %arg16[%c0_225, %c0_226, %c224], %302 {strides = array<i32>} : memref<11x11x288xbf16, #tpu.memory_space<vmem>>, vector<11x11x32xbf16>,
    %c2_227 = arith.constant 2 : index
    %c2_228 = arith.constant 2 : index
    %c0_229 = arith.constant 0 : index
    %304 = vector.load %arg15[%c2_227, %c2_228, %c0_229] : memref<13x13x32xbf16, #tpu.memory_space<vmem>>, vector<11x11x32xbf16>
    %c0_230 = arith.constant 0 : index
    %c0_231 = arith.constant 0 : index
    %c256 = arith.constant 256 : index
    %305 = vector.load %arg16[%c0_230, %c0_231, %c256] : memref<11x11x288xbf16, #tpu.memory_space<vmem>>, vector<11x11x32xbf16>
    tpu.vector_store %arg16[%c0_230, %c0_231, %c256], %304 {strides = array<i32>} : memref<11x11x288xbf16, #tpu.memory_space<vmem>>, vector<11x11x32xbf16>,
    %c0_232 = arith.constant 0 : index
    %c0_233 = arith.constant 0 : index
    %306 = vector.load %arg4[%c0_232, %c0_233] : memref<288x64xbf16, #tpu.memory_space<vmem>>, vector<288x64xbf16>
    %c0_234 = arith.constant 0 : index
    %c0_235 = arith.constant 0 : index
    %307 = vector.load %arg5[%c0_234, %c0_235] : memref<1x64xf32, #tpu.memory_space<vmem>>, vector<1x64xf32>
    %c0_236 = arith.constant 0 : index
    %c0_237 = arith.constant 0 : index
    %c0_238 = arith.constant 0 : index
    %308 = vector.load %arg16[%c0_236, %c0_237, %c0_238] : memref<11x11x288xbf16, #tpu.memory_space<vmem>>, vector<1x11x288xbf16>
    %309 = vector.shape_cast %308 : vector<1x11x288xbf16> to vector<11x288xbf16>
    %cst_239 = arith.constant dense<0.000000e+00> : vector<11x64xf32>
    %310 = tpu.matmul %309, %306, %cst_239 {dimension_numbers = #tpu.dot_dimension_numbers<[1], [0], [0], [1], [0, 0, 1, 1], [], []>} : vector<11x288xbf16>, vector<288x64xbf16>, vector<11x64xf32> -> vector<11x64xf32>
    %311 = vector.broadcast %307 : vector<1x64xf32> to vector<11x64xf32>
    %312 = arith.addf %310, %311 : vector<11x64xf32>
    %cst_240 = arith.constant 0.000000e+00 : f32
    %313 = vector.broadcast %cst_240 : f32 to vector<11x64xf32>
    %314 = arith.maximumf %312, %313 : vector<11x64xf32>
    %c1_241 = arith.constant 1 : index
    %c0_242 = arith.constant 0 : index
    %c0_243 = arith.constant 0 : index
    %315 = vector.load %arg16[%c1_241, %c0_242, %c0_243] : memref<11x11x288xbf16, #tpu.memory_space<vmem>>, vector<1x11x288xbf16>
    %316 = vector.shape_cast %315 : vector<1x11x288xbf16> to vector<11x288xbf16>
    %cst_244 = arith.constant dense<0.000000e+00> : vector<11x64xf32>
    %317 = tpu.matmul %316, %306, %cst_244 {dimension_numbers = #tpu.dot_dimension_numbers<[1], [0], [0], [1], [0, 0, 1, 1], [], []>} : vector<11x288xbf16>, vector<288x64xbf16>, vector<11x64xf32> -> vector<11x64xf32>
    %318 = vector.broadcast %307 : vector<1x64xf32> to vector<11x64xf32>
    %319 = arith.addf %317, %318 : vector<11x64xf32>
    %cst_245 = arith.constant 0.000000e+00 : f32
    %320 = vector.broadcast %cst_245 : f32 to vector<11x64xf32>
    %321 = arith.maximumf %319, %320 : vector<11x64xf32>
    %322 = arith.maximumf %314, %321 : vector<11x64xf32>
    %c0_246 = arith.constant 0 : index
    %c0_247 = arith.constant 0 : index
    %c0_248 = arith.constant 0 : index
    %323 = vector.load %arg17[%c0_246, %c0_247, %c0_248] : memref<5x11x64xf32, #tpu.memory_space<vmem>>, vector<1x11x64xf32>
    %324 = vector.shape_cast %323 : vector<1x11x64xf32> to vector<11x64xf32>
    %325 = vector.shape_cast %322 : vector<11x64xf32> to vector<1x11x64xf32>
    tpu.vector_store %arg17[%c0_246, %c0_247, %c0_248], %325 {strides = array<i32>} : memref<5x11x64xf32, #tpu.memory_space<vmem>>, vector<1x11x64xf32>,
    %c2_249 = arith.constant 2 : index
    %c0_250 = arith.constant 0 : index
    %c0_251 = arith.constant 0 : index
    %326 = vector.load %arg16[%c2_249, %c0_250, %c0_251] : memref<11x11x288xbf16, #tpu.memory_space<vmem>>, vector<1x11x288xbf16>
    %327 = vector.shape_cast %326 : vector<1x11x288xbf16> to vector<11x288xbf16>
    %cst_252 = arith.constant dense<0.000000e+00> : vector<11x64xf32>
    %328 = tpu.matmul %327, %306, %cst_252 {dimension_numbers = #tpu.dot_dimension_numbers<[1], [0], [0], [1], [0, 0, 1, 1], [], []>} : vector<11x288xbf16>, vector<288x64xbf16>, vector<11x64xf32> -> vector<11x64xf32>
    %329 = vector.broadcast %307 : vector<1x64xf32> to vector<11x64xf32>
    %330 = arith.addf %328, %329 : vector<11x64xf32>
    %cst_253 = arith.constant 0.000000e+00 : f32
    %331 = vector.broadcast %cst_253 : f32 to vector<11x64xf32>
    %332 = arith.maximumf %330, %331 : vector<11x64xf32>
    %c3_254 = arith.constant 3 : index
    %c0_255 = arith.constant 0 : index
    %c0_256 = arith.constant 0 : index
    %333 = vector.load %arg16[%c3_254, %c0_255, %c0_256] : memref<11x11x288xbf16, #tpu.memory_space<vmem>>, vector<1x11x288xbf16>
    %334 = vector.shape_cast %333 : vector<1x11x288xbf16> to vector<11x288xbf16>
    %cst_257 = arith.constant dense<0.000000e+00> : vector<11x64xf32>
    %335 = tpu.matmul %334, %306, %cst_257 {dimension_numbers = #tpu.dot_dimension_numbers<[1], [0], [0], [1], [0, 0, 1, 1], [], []>} : vector<11x288xbf16>, vector<288x64xbf16>, vector<11x64xf32> -> vector<11x64xf32>
    %336 = vector.broadcast %307 : vector<1x64xf32> to vector<11x64xf32>
    %337 = arith.addf %335, %336 : vector<11x64xf32>
    %cst_258 = arith.constant 0.000000e+00 : f32
    %338 = vector.broadcast %cst_258 : f32 to vector<11x64xf32>
    %339 = arith.maximumf %337, %338 : vector<11x64xf32>
    %340 = arith.maximumf %332, %339 : vector<11x64xf32>
    %c1_259 = arith.constant 1 : index
    %c0_260 = arith.constant 0 : index
    %c0_261 = arith.constant 0 : index
    %341 = vector.load %arg17[%c1_259, %c0_260, %c0_261] : memref<5x11x64xf32, #tpu.memory_space<vmem>>, vector<1x11x64xf32>
    %342 = vector.shape_cast %341 : vector<1x11x64xf32> to vector<11x64xf32>
    %343 = vector.shape_cast %340 : vector<11x64xf32> to vector<1x11x64xf32>
    tpu.vector_store %arg17[%c1_259, %c0_260, %c0_261], %343 {strides = array<i32>} : memref<5x11x64xf32, #tpu.memory_space<vmem>>, vector<1x11x64xf32>,
    %c4_262 = arith.constant 4 : index
    %c0_263 = arith.constant 0 : index
    %c0_264 = arith.constant 0 : index
    %344 = vector.load %arg16[%c4_262, %c0_263, %c0_264] : memref<11x11x288xbf16, #tpu.memory_space<vmem>>, vector<1x11x288xbf16>
    %345 = vector.shape_cast %344 : vector<1x11x288xbf16> to vector<11x288xbf16>
    %cst_265 = arith.constant dense<0.000000e+00> : vector<11x64xf32>
    %346 = tpu.matmul %345, %306, %cst_265 {dimension_numbers = #tpu.dot_dimension_numbers<[1], [0], [0], [1], [0, 0, 1, 1], [], []>} : vector<11x288xbf16>, vector<288x64xbf16>, vector<11x64xf32> -> vector<11x64xf32>
    %347 = vector.broadcast %307 : vector<1x64xf32> to vector<11x64xf32>
    %348 = arith.addf %346, %347 : vector<11x64xf32>
    %cst_266 = arith.constant 0.000000e+00 : f32
    %349 = vector.broadcast %cst_266 : f32 to vector<11x64xf32>
    %350 = arith.maximumf %348, %349 : vector<11x64xf32>
    %c5_267 = arith.constant 5 : index
    %c0_268 = arith.constant 0 : index
    %c0_269 = arith.constant 0 : index
    %351 = vector.load %arg16[%c5_267, %c0_268, %c0_269] : memref<11x11x288xbf16, #tpu.memory_space<vmem>>, vector<1x11x288xbf16>
    %352 = vector.shape_cast %351 : vector<1x11x288xbf16> to vector<11x288xbf16>
    %cst_270 = arith.constant dense<0.000000e+00> : vector<11x64xf32>
    %353 = tpu.matmul %352, %306, %cst_270 {dimension_numbers = #tpu.dot_dimension_numbers<[1], [0], [0], [1], [0, 0, 1, 1], [], []>} : vector<11x288xbf16>, vector<288x64xbf16>, vector<11x64xf32> -> vector<11x64xf32>
    %354 = vector.broadcast %307 : vector<1x64xf32> to vector<11x64xf32>
    %355 = arith.addf %353, %354 : vector<11x64xf32>
    %cst_271 = arith.constant 0.000000e+00 : f32
    %356 = vector.broadcast %cst_271 : f32 to vector<11x64xf32>
    %357 = arith.maximumf %355, %356 : vector<11x64xf32>
    %358 = arith.maximumf %350, %357 : vector<11x64xf32>
    %c2_272 = arith.constant 2 : index
    %c0_273 = arith.constant 0 : index
    %c0_274 = arith.constant 0 : index
    %359 = vector.load %arg17[%c2_272, %c0_273, %c0_274] : memref<5x11x64xf32, #tpu.memory_space<vmem>>, vector<1x11x64xf32>
    %360 = vector.shape_cast %359 : vector<1x11x64xf32> to vector<11x64xf32>
    %361 = vector.shape_cast %358 : vector<11x64xf32> to vector<1x11x64xf32>
    tpu.vector_store %arg17[%c2_272, %c0_273, %c0_274], %361 {strides = array<i32>} : memref<5x11x64xf32, #tpu.memory_space<vmem>>, vector<1x11x64xf32>,
    %c6_275 = arith.constant 6 : index
    %c0_276 = arith.constant 0 : index
    %c0_277 = arith.constant 0 : index
    %362 = vector.load %arg16[%c6_275, %c0_276, %c0_277] : memref<11x11x288xbf16, #tpu.memory_space<vmem>>, vector<1x11x288xbf16>
    %363 = vector.shape_cast %362 : vector<1x11x288xbf16> to vector<11x288xbf16>
    %cst_278 = arith.constant dense<0.000000e+00> : vector<11x64xf32>
    %364 = tpu.matmul %363, %306, %cst_278 {dimension_numbers = #tpu.dot_dimension_numbers<[1], [0], [0], [1], [0, 0, 1, 1], [], []>} : vector<11x288xbf16>, vector<288x64xbf16>, vector<11x64xf32> -> vector<11x64xf32>
    %365 = vector.broadcast %307 : vector<1x64xf32> to vector<11x64xf32>
    %366 = arith.addf %364, %365 : vector<11x64xf32>
    %cst_279 = arith.constant 0.000000e+00 : f32
    %367 = vector.broadcast %cst_279 : f32 to vector<11x64xf32>
    %368 = arith.maximumf %366, %367 : vector<11x64xf32>
    %c7_280 = arith.constant 7 : index
    %c0_281 = arith.constant 0 : index
    %c0_282 = arith.constant 0 : index
    %369 = vector.load %arg16[%c7_280, %c0_281, %c0_282] : memref<11x11x288xbf16, #tpu.memory_space<vmem>>, vector<1x11x288xbf16>
    %370 = vector.shape_cast %369 : vector<1x11x288xbf16> to vector<11x288xbf16>
    %cst_283 = arith.constant dense<0.000000e+00> : vector<11x64xf32>
    %371 = tpu.matmul %370, %306, %cst_283 {dimension_numbers = #tpu.dot_dimension_numbers<[1], [0], [0], [1], [0, 0, 1, 1], [], []>} : vector<11x288xbf16>, vector<288x64xbf16>, vector<11x64xf32> -> vector<11x64xf32>
    %372 = vector.broadcast %307 : vector<1x64xf32> to vector<11x64xf32>
    %373 = arith.addf %371, %372 : vector<11x64xf32>
    %cst_284 = arith.constant 0.000000e+00 : f32
    %374 = vector.broadcast %cst_284 : f32 to vector<11x64xf32>
    %375 = arith.maximumf %373, %374 : vector<11x64xf32>
    %376 = arith.maximumf %368, %375 : vector<11x64xf32>
    %c3_285 = arith.constant 3 : index
    %c0_286 = arith.constant 0 : index
    %c0_287 = arith.constant 0 : index
    %377 = vector.load %arg17[%c3_285, %c0_286, %c0_287] : memref<5x11x64xf32, #tpu.memory_space<vmem>>, vector<1x11x64xf32>
    %378 = vector.shape_cast %377 : vector<1x11x64xf32> to vector<11x64xf32>
    %379 = vector.shape_cast %376 : vector<11x64xf32> to vector<1x11x64xf32>
    tpu.vector_store %arg17[%c3_285, %c0_286, %c0_287], %379 {strides = array<i32>} : memref<5x11x64xf32, #tpu.memory_space<vmem>>, vector<1x11x64xf32>,
    %c8_288 = arith.constant 8 : index
    %c0_289 = arith.constant 0 : index
    %c0_290 = arith.constant 0 : index
    %380 = vector.load %arg16[%c8_288, %c0_289, %c0_290] : memref<11x11x288xbf16, #tpu.memory_space<vmem>>, vector<1x11x288xbf16>
    %381 = vector.shape_cast %380 : vector<1x11x288xbf16> to vector<11x288xbf16>
    %cst_291 = arith.constant dense<0.000000e+00> : vector<11x64xf32>
    %382 = tpu.matmul %381, %306, %cst_291 {dimension_numbers = #tpu.dot_dimension_numbers<[1], [0], [0], [1], [0, 0, 1, 1], [], []>} : vector<11x288xbf16>, vector<288x64xbf16>, vector<11x64xf32> -> vector<11x64xf32>
    %383 = vector.broadcast %307 : vector<1x64xf32> to vector<11x64xf32>
    %384 = arith.addf %382, %383 : vector<11x64xf32>
    %cst_292 = arith.constant 0.000000e+00 : f32
    %385 = vector.broadcast %cst_292 : f32 to vector<11x64xf32>
    %386 = arith.maximumf %384, %385 : vector<11x64xf32>
    %c9_293 = arith.constant 9 : index
    %c0_294 = arith.constant 0 : index
    %c0_295 = arith.constant 0 : index
    %387 = vector.load %arg16[%c9_293, %c0_294, %c0_295] : memref<11x11x288xbf16, #tpu.memory_space<vmem>>, vector<1x11x288xbf16>
    %388 = vector.shape_cast %387 : vector<1x11x288xbf16> to vector<11x288xbf16>
    %cst_296 = arith.constant dense<0.000000e+00> : vector<11x64xf32>
    %389 = tpu.matmul %388, %306, %cst_296 {dimension_numbers = #tpu.dot_dimension_numbers<[1], [0], [0], [1], [0, 0, 1, 1], [], []>} : vector<11x288xbf16>, vector<288x64xbf16>, vector<11x64xf32> -> vector<11x64xf32>
    %390 = vector.broadcast %307 : vector<1x64xf32> to vector<11x64xf32>
    %391 = arith.addf %389, %390 : vector<11x64xf32>
    %cst_297 = arith.constant 0.000000e+00 : f32
    %392 = vector.broadcast %cst_297 : f32 to vector<11x64xf32>
    %393 = arith.maximumf %391, %392 : vector<11x64xf32>
    %394 = arith.maximumf %386, %393 : vector<11x64xf32>
    %c4_298 = arith.constant 4 : index
    %c0_299 = arith.constant 0 : index
    %c0_300 = arith.constant 0 : index
    %395 = vector.load %arg17[%c4_298, %c0_299, %c0_300] : memref<5x11x64xf32, #tpu.memory_space<vmem>>, vector<1x11x64xf32>
    %396 = vector.shape_cast %395 : vector<1x11x64xf32> to vector<11x64xf32>
    %397 = vector.shape_cast %394 : vector<11x64xf32> to vector<1x11x64xf32>
    tpu.vector_store %arg17[%c4_298, %c0_299, %c0_300], %397 {strides = array<i32>} : memref<5x11x64xf32, #tpu.memory_space<vmem>>, vector<1x11x64xf32>,
    %c0_301 = arith.constant 0 : index
    %c0_302 = arith.constant 0 : index
    %c0_303 = arith.constant 0 : index
    %398 = vector.load %arg17[%c0_301, %c0_302, %c0_303] : memref<5x11x64xf32, #tpu.memory_space<vmem>>, vector<5x1x64xf32>
    %399 = vector.shape_cast %398 : vector<5x1x64xf32> to vector<5x64xf32>
    %c0_304 = arith.constant 0 : index
    %c1_305 = arith.constant 1 : index
    %c0_306 = arith.constant 0 : index
    %400 = vector.load %arg17[%c0_304, %c1_305, %c0_306] : memref<5x11x64xf32, #tpu.memory_space<vmem>>, vector<5x1x64xf32>
    %401 = vector.shape_cast %400 : vector<5x1x64xf32> to vector<5x64xf32>
    %402 = arith.maximumf %399, %401 : vector<5x64xf32>
    %403 = arith.truncf %402 : vector<5x64xf32> to vector<5x64xbf16>
    %c0_307 = arith.constant 0 : index
    %c0_308 = arith.constant 0 : index
    %c0_309 = arith.constant 0 : index
    %404 = vector.load %arg18[%c0_307, %c0_308, %c0_309] : memref<5x5x64xbf16, #tpu.memory_space<vmem>>, vector<5x1x64xbf16>
    %405 = vector.shape_cast %404 : vector<5x1x64xbf16> to vector<5x64xbf16>
    %406 = vector.shape_cast %403 : vector<5x64xbf16> to vector<5x1x64xbf16>
    tpu.vector_store %arg18[%c0_307, %c0_308, %c0_309], %406 {strides = array<i32>} : memref<5x5x64xbf16, #tpu.memory_space<vmem>>, vector<5x1x64xbf16>,
    %c0_310 = arith.constant 0 : index
    %c2_311 = arith.constant 2 : index
    %c0_312 = arith.constant 0 : index
    %407 = vector.load %arg17[%c0_310, %c2_311, %c0_312] : memref<5x11x64xf32, #tpu.memory_space<vmem>>, vector<5x1x64xf32>
    %408 = vector.shape_cast %407 : vector<5x1x64xf32> to vector<5x64xf32>
    %c0_313 = arith.constant 0 : index
    %c3_314 = arith.constant 3 : index
    %c0_315 = arith.constant 0 : index
    %409 = vector.load %arg17[%c0_313, %c3_314, %c0_315] : memref<5x11x64xf32, #tpu.memory_space<vmem>>, vector<5x1x64xf32>
    %410 = vector.shape_cast %409 : vector<5x1x64xf32> to vector<5x64xf32>
    %411 = arith.maximumf %408, %410 : vector<5x64xf32>
    %412 = arith.truncf %411 : vector<5x64xf32> to vector<5x64xbf16>
    %c0_316 = arith.constant 0 : index
    %c1_317 = arith.constant 1 : index
    %c0_318 = arith.constant 0 : index
    %413 = vector.load %arg18[%c0_316, %c1_317, %c0_318] : memref<5x5x64xbf16, #tpu.memory_space<vmem>>, vector<5x1x64xbf16>
    %414 = vector.shape_cast %413 : vector<5x1x64xbf16> to vector<5x64xbf16>
    %415 = vector.shape_cast %412 : vector<5x64xbf16> to vector<5x1x64xbf16>
    tpu.vector_store %arg18[%c0_316, %c1_317, %c0_318], %415 {strides = array<i32>} : memref<5x5x64xbf16, #tpu.memory_space<vmem>>, vector<5x1x64xbf16>,
    %c0_319 = arith.constant 0 : index
    %c4_320 = arith.constant 4 : index
    %c0_321 = arith.constant 0 : index
    %416 = vector.load %arg17[%c0_319, %c4_320, %c0_321] : memref<5x11x64xf32, #tpu.memory_space<vmem>>, vector<5x1x64xf32>
    %417 = vector.shape_cast %416 : vector<5x1x64xf32> to vector<5x64xf32>
    %c0_322 = arith.constant 0 : index
    %c5_323 = arith.constant 5 : index
    %c0_324 = arith.constant 0 : index
    %418 = vector.load %arg17[%c0_322, %c5_323, %c0_324] : memref<5x11x64xf32, #tpu.memory_space<vmem>>, vector<5x1x64xf32>
    %419 = vector.shape_cast %418 : vector<5x1x64xf32> to vector<5x64xf32>
    %420 = arith.maximumf %417, %419 : vector<5x64xf32>
    %421 = arith.truncf %420 : vector<5x64xf32> to vector<5x64xbf16>
    %c0_325 = arith.constant 0 : index
    %c2_326 = arith.constant 2 : index
    %c0_327 = arith.constant 0 : index
    %422 = vector.load %arg18[%c0_325, %c2_326, %c0_327] : memref<5x5x64xbf16, #tpu.memory_space<vmem>>, vector<5x1x64xbf16>
    %423 = vector.shape_cast %422 : vector<5x1x64xbf16> to vector<5x64xbf16>
    %424 = vector.shape_cast %421 : vector<5x64xbf16> to vector<5x1x64xbf16>
    tpu.vector_store %arg18[%c0_325, %c2_326, %c0_327], %424 {strides = array<i32>} : memref<5x5x64xbf16, #tpu.memory_space<vmem>>, vector<5x1x64xbf16>,
    %c0_328 = arith.constant 0 : index
    %c6_329 = arith.constant 6 : index
    %c0_330 = arith.constant 0 : index
    %425 = vector.load %arg17[%c0_328, %c6_329, %c0_330] : memref<5x11x64xf32, #tpu.memory_space<vmem>>, vector<5x1x64xf32>
    %426 = vector.shape_cast %425 : vector<5x1x64xf32> to vector<5x64xf32>
    %c0_331 = arith.constant 0 : index
    %c7_332 = arith.constant 7 : index
    %c0_333 = arith.constant 0 : index
    %427 = vector.load %arg17[%c0_331, %c7_332, %c0_333] : memref<5x11x64xf32, #tpu.memory_space<vmem>>, vector<5x1x64xf32>
    %428 = vector.shape_cast %427 : vector<5x1x64xf32> to vector<5x64xf32>
    %429 = arith.maximumf %426, %428 : vector<5x64xf32>
    %430 = arith.truncf %429 : vector<5x64xf32> to vector<5x64xbf16>
    %c0_334 = arith.constant 0 : index
    %c3_335 = arith.constant 3 : index
    %c0_336 = arith.constant 0 : index
    %431 = vector.load %arg18[%c0_334, %c3_335, %c0_336] : memref<5x5x64xbf16, #tpu.memory_space<vmem>>, vector<5x1x64xbf16>
    %432 = vector.shape_cast %431 : vector<5x1x64xbf16> to vector<5x64xbf16>
    %433 = vector.shape_cast %430 : vector<5x64xbf16> to vector<5x1x64xbf16>
    tpu.vector_store %arg18[%c0_334, %c3_335, %c0_336], %433 {strides = array<i32>} : memref<5x5x64xbf16, #tpu.memory_space<vmem>>, vector<5x1x64xbf16>,
    %c0_337 = arith.constant 0 : index
    %c8_338 = arith.constant 8 : index
    %c0_339 = arith.constant 0 : index
    %434 = vector.load %arg17[%c0_337, %c8_338, %c0_339] : memref<5x11x64xf32, #tpu.memory_space<vmem>>, vector<5x1x64xf32>
    %435 = vector.shape_cast %434 : vector<5x1x64xf32> to vector<5x64xf32>
    %c0_340 = arith.constant 0 : index
    %c9_341 = arith.constant 9 : index
    %c0_342 = arith.constant 0 : index
    %436 = vector.load %arg17[%c0_340, %c9_341, %c0_342] : memref<5x11x64xf32, #tpu.memory_space<vmem>>, vector<5x1x64xf32>
    %437 = vector.shape_cast %436 : vector<5x1x64xf32> to vector<5x64xf32>
    %438 = arith.maximumf %435, %437 : vector<5x64xf32>
    %439 = arith.truncf %438 : vector<5x64xf32> to vector<5x64xbf16>
    %c0_343 = arith.constant 0 : index
    %c4_344 = arith.constant 4 : index
    %c0_345 = arith.constant 0 : index
    %440 = vector.load %arg18[%c0_343, %c4_344, %c0_345] : memref<5x5x64xbf16, #tpu.memory_space<vmem>>, vector<5x1x64xbf16>
    %441 = vector.shape_cast %440 : vector<5x1x64xbf16> to vector<5x64xbf16>
    %442 = vector.shape_cast %439 : vector<5x64xbf16> to vector<5x1x64xbf16>
    tpu.vector_store %arg18[%c0_343, %c4_344, %c0_345], %442 {strides = array<i32>} : memref<5x5x64xbf16, #tpu.memory_space<vmem>>, vector<5x1x64xbf16>,
    %c0_346 = arith.constant 0 : index
    %c0_347 = arith.constant 0 : index
    %c0_348 = arith.constant 0 : index
    %443 = vector.load %arg18[%c0_346, %c0_347, %c0_348] : memref<5x5x64xbf16, #tpu.memory_space<vmem>>, vector<3x3x64xbf16>
    %c0_349 = arith.constant 0 : index
    %c0_350 = arith.constant 0 : index
    %c0_351 = arith.constant 0 : index
    %444 = vector.load %arg19[%c0_349, %c0_350, %c0_351] : memref<3x3x576xbf16, #tpu.memory_space<vmem>>, vector<3x3x64xbf16>
    tpu.vector_store %arg19[%c0_349, %c0_350, %c0_351], %443 {strides = array<i32>} : memref<3x3x576xbf16, #tpu.memory_space<vmem>>, vector<3x3x64xbf16>,
    %c0_352 = arith.constant 0 : index
    %c1_353 = arith.constant 1 : index
    %c0_354 = arith.constant 0 : index
    %445 = vector.load %arg18[%c0_352, %c1_353, %c0_354] : memref<5x5x64xbf16, #tpu.memory_space<vmem>>, vector<3x3x64xbf16>
    %c0_355 = arith.constant 0 : index
    %c0_356 = arith.constant 0 : index
    %c64_357 = arith.constant 64 : index
    %446 = vector.load %arg19[%c0_355, %c0_356, %c64_357] : memref<3x3x576xbf16, #tpu.memory_space<vmem>>, vector<3x3x64xbf16>
    tpu.vector_store %arg19[%c0_355, %c0_356, %c64_357], %445 {strides = array<i32>} : memref<3x3x576xbf16, #tpu.memory_space<vmem>>, vector<3x3x64xbf16>,
    %c0_358 = arith.constant 0 : index
    %c2_359 = arith.constant 2 : index
    %c0_360 = arith.constant 0 : index
    %447 = vector.load %arg18[%c0_358, %c2_359, %c0_360] : memref<5x5x64xbf16, #tpu.memory_space<vmem>>, vector<3x3x64xbf16>
    %c0_361 = arith.constant 0 : index
    %c0_362 = arith.constant 0 : index
    %c128_363 = arith.constant 128 : index
    %448 = vector.load %arg19[%c0_361, %c0_362, %c128_363] : memref<3x3x576xbf16, #tpu.memory_space<vmem>>, vector<3x3x64xbf16>
    tpu.vector_store %arg19[%c0_361, %c0_362, %c128_363], %447 {strides = array<i32>} : memref<3x3x576xbf16, #tpu.memory_space<vmem>>, vector<3x3x64xbf16>,
    %c1_364 = arith.constant 1 : index
    %c0_365 = arith.constant 0 : index
    %c0_366 = arith.constant 0 : index
    %449 = vector.load %arg18[%c1_364, %c0_365, %c0_366] : memref<5x5x64xbf16, #tpu.memory_space<vmem>>, vector<3x3x64xbf16>
    %c0_367 = arith.constant 0 : index
    %c0_368 = arith.constant 0 : index
    %c192_369 = arith.constant 192 : index
    %450 = vector.load %arg19[%c0_367, %c0_368, %c192_369] : memref<3x3x576xbf16, #tpu.memory_space<vmem>>, vector<3x3x64xbf16>
    tpu.vector_store %arg19[%c0_367, %c0_368, %c192_369], %449 {strides = array<i32>} : memref<3x3x576xbf16, #tpu.memory_space<vmem>>, vector<3x3x64xbf16>,
    %c1_370 = arith.constant 1 : index
    %c1_371 = arith.constant 1 : index
    %c0_372 = arith.constant 0 : index
    %451 = vector.load %arg18[%c1_370, %c1_371, %c0_372] : memref<5x5x64xbf16, #tpu.memory_space<vmem>>, vector<3x3x64xbf16>
    %c0_373 = arith.constant 0 : index
    %c0_374 = arith.constant 0 : index
    %c256_375 = arith.constant 256 : index
    %452 = vector.load %arg19[%c0_373, %c0_374, %c256_375] : memref<3x3x576xbf16, #tpu.memory_space<vmem>>, vector<3x3x64xbf16>
    tpu.vector_store %arg19[%c0_373, %c0_374, %c256_375], %451 {strides = array<i32>} : memref<3x3x576xbf16, #tpu.memory_space<vmem>>, vector<3x3x64xbf16>,
    %c1_376 = arith.constant 1 : index
    %c2_377 = arith.constant 2 : index
    %c0_378 = arith.constant 0 : index
    %453 = vector.load %arg18[%c1_376, %c2_377, %c0_378] : memref<5x5x64xbf16, #tpu.memory_space<vmem>>, vector<3x3x64xbf16>
    %c0_379 = arith.constant 0 : index
    %c0_380 = arith.constant 0 : index
    %c320 = arith.constant 320 : index
    %454 = vector.load %arg19[%c0_379, %c0_380, %c320] : memref<3x3x576xbf16, #tpu.memory_space<vmem>>, vector<3x3x64xbf16>
    tpu.vector_store %arg19[%c0_379, %c0_380, %c320], %453 {strides = array<i32>} : memref<3x3x576xbf16, #tpu.memory_space<vmem>>, vector<3x3x64xbf16>,
    %c2_381 = arith.constant 2 : index
    %c0_382 = arith.constant 0 : index
    %c0_383 = arith.constant 0 : index
    %455 = vector.load %arg18[%c2_381, %c0_382, %c0_383] : memref<5x5x64xbf16, #tpu.memory_space<vmem>>, vector<3x3x64xbf16>
    %c0_384 = arith.constant 0 : index
    %c0_385 = arith.constant 0 : index
    %c384 = arith.constant 384 : index
    %456 = vector.load %arg19[%c0_384, %c0_385, %c384] : memref<3x3x576xbf16, #tpu.memory_space<vmem>>, vector<3x3x64xbf16>
    tpu.vector_store %arg19[%c0_384, %c0_385, %c384], %455 {strides = array<i32>} : memref<3x3x576xbf16, #tpu.memory_space<vmem>>, vector<3x3x64xbf16>,
    %c2_386 = arith.constant 2 : index
    %c1_387 = arith.constant 1 : index
    %c0_388 = arith.constant 0 : index
    %457 = vector.load %arg18[%c2_386, %c1_387, %c0_388] : memref<5x5x64xbf16, #tpu.memory_space<vmem>>, vector<3x3x64xbf16>
    %c0_389 = arith.constant 0 : index
    %c0_390 = arith.constant 0 : index
    %c448 = arith.constant 448 : index
    %458 = vector.load %arg19[%c0_389, %c0_390, %c448] : memref<3x3x576xbf16, #tpu.memory_space<vmem>>, vector<3x3x64xbf16>
    tpu.vector_store %arg19[%c0_389, %c0_390, %c448], %457 {strides = array<i32>} : memref<3x3x576xbf16, #tpu.memory_space<vmem>>, vector<3x3x64xbf16>,
    %c2_391 = arith.constant 2 : index
    %c2_392 = arith.constant 2 : index
    %c0_393 = arith.constant 0 : index
    %459 = vector.load %arg18[%c2_391, %c2_392, %c0_393] : memref<5x5x64xbf16, #tpu.memory_space<vmem>>, vector<3x3x64xbf16>
    %c0_394 = arith.constant 0 : index
    %c0_395 = arith.constant 0 : index
    %c512 = arith.constant 512 : index
    %460 = vector.load %arg19[%c0_394, %c0_395, %c512] : memref<3x3x576xbf16, #tpu.memory_space<vmem>>, vector<3x3x64xbf16>
    tpu.vector_store %arg19[%c0_394, %c0_395, %c512], %459 {strides = array<i32>} : memref<3x3x576xbf16, #tpu.memory_space<vmem>>, vector<3x3x64xbf16>,
    %c0_396 = arith.constant 0 : index
    %c0_397 = arith.constant 0 : index
    %461 = vector.load %arg6[%c0_396, %c0_397] : memref<576x128xbf16, #tpu.memory_space<vmem>>, vector<576x128xbf16>
    %c0_398 = arith.constant 0 : index
    %c0_399 = arith.constant 0 : index
    %462 = vector.load %arg7[%c0_398, %c0_399] : memref<1x128xf32, #tpu.memory_space<vmem>>, vector<1x128xf32>
    %c0_400 = arith.constant 0 : index
    %c0_401 = arith.constant 0 : index
    %c0_402 = arith.constant 0 : index
    %463 = vector.load %arg19[%c0_400, %c0_401, %c0_402] : memref<3x3x576xbf16, #tpu.memory_space<vmem>>, vector<1x3x576xbf16>
    %464 = vector.shape_cast %463 : vector<1x3x576xbf16> to vector<3x576xbf16>
    %cst_403 = arith.constant dense<0.000000e+00> : vector<3x128xf32>
    %465 = tpu.matmul %464, %461, %cst_403 {dimension_numbers = #tpu.dot_dimension_numbers<[1], [0], [0], [1], [0, 0, 1, 1], [], []>} : vector<3x576xbf16>, vector<576x128xbf16>, vector<3x128xf32> -> vector<3x128xf32>
    %466 = vector.broadcast %462 : vector<1x128xf32> to vector<3x128xf32>
    %467 = arith.addf %465, %466 : vector<3x128xf32>
    %cst_404 = arith.constant 0.000000e+00 : f32
    %468 = vector.broadcast %cst_404 : f32 to vector<3x128xf32>
    %469 = arith.maximumf %467, %468 : vector<3x128xf32>
    %c1_405 = arith.constant 1 : index
    %c0_406 = arith.constant 0 : index
    %c0_407 = arith.constant 0 : index
    %470 = vector.load %arg19[%c1_405, %c0_406, %c0_407] : memref<3x3x576xbf16, #tpu.memory_space<vmem>>, vector<1x3x576xbf16>
    %471 = vector.shape_cast %470 : vector<1x3x576xbf16> to vector<3x576xbf16>
    %cst_408 = arith.constant dense<0.000000e+00> : vector<3x128xf32>
    %472 = tpu.matmul %471, %461, %cst_408 {dimension_numbers = #tpu.dot_dimension_numbers<[1], [0], [0], [1], [0, 0, 1, 1], [], []>} : vector<3x576xbf16>, vector<576x128xbf16>, vector<3x128xf32> -> vector<3x128xf32>
    %473 = vector.broadcast %462 : vector<1x128xf32> to vector<3x128xf32>
    %474 = arith.addf %472, %473 : vector<3x128xf32>
    %cst_409 = arith.constant 0.000000e+00 : f32
    %475 = vector.broadcast %cst_409 : f32 to vector<3x128xf32>
    %476 = arith.maximumf %474, %475 : vector<3x128xf32>
    %477 = arith.maximumf %469, %476 : vector<3x128xf32>
    %478 = vector.extract_strided_slice %477 {offsets = [0, 0], sizes = [1, 128], strides = [1, 1]} : vector<3x128xf32> to vector<1x128xf32>
    %479 = vector.extract_strided_slice %477 {offsets = [1, 0], sizes = [1, 128], strides = [1, 1]} : vector<3x128xf32> to vector<1x128xf32>
    %480 = arith.maximumf %478, %479 : vector<1x128xf32>
    %481 = arith.truncf %480 : vector<1x128xf32> to vector<1x128xbf16>
    %c0_410 = arith.constant 0 : index
    %c0_411 = arith.constant 0 : index
    %482 = vector.load %arg8[%c0_410, %c0_411] : memref<128x128xbf16, #tpu.memory_space<vmem>>, vector<128x128xbf16>
    %cst_412 = arith.constant dense<0.000000e+00> : vector<1x128xf32>
    %483 = tpu.matmul %481, %482, %cst_412 {dimension_numbers = #tpu.dot_dimension_numbers<[1], [0], [0], [1], [0, 0, 1, 1], [], []>} : vector<1x128xbf16>, vector<128x128xbf16>, vector<1x128xf32> -> vector<1x128xf32>
    %c0_413 = arith.constant 0 : index
    %c0_414 = arith.constant 0 : index
    %484 = vector.load %arg9[%c0_413, %c0_414] : memref<1x128xf32, #tpu.memory_space<vmem>>, vector<1x128xf32>
    %485 = arith.addf %483, %484 : vector<1x128xf32>
    %cst_415 = arith.constant 0.000000e+00 : f32
    %486 = vector.broadcast %cst_415 : f32 to vector<1x128xf32>
    %487 = arith.maximumf %485, %486 : vector<1x128xf32>
    %c0_416 = arith.constant 0 : index
    %c0_417 = arith.constant 0 : index
    %c0_418 = arith.constant 0 : index
    %488 = vector.load %arg13[%c0_416, %c0_417, %c0_418] : memref<1x1x128xf32, #tpu.memory_space<vmem>>, vector<1x1x128xf32>
    %489 = vector.shape_cast %488 : vector<1x1x128xf32> to vector<1x128xf32>
    %490 = vector.shape_cast %487 : vector<1x128xf32> to vector<1x1x128xf32>
    tpu.vector_store %arg13[%c0_416, %c0_417, %c0_418], %490 {strides = array<i32>} : memref<1x1x128xf32, #tpu.memory_space<vmem>>, vector<1x1x128xf32>,
    %491 = arith.truncf %487 : vector<1x128xf32> to vector<1x128xbf16>
    %c0_419 = arith.constant 0 : index
    %c0_420 = arith.constant 0 : index
    %492 = vector.load %arg10[%c0_419, %c0_420] : memref<128x10xbf16, #tpu.memory_space<vmem>>, vector<128x10xbf16>
    %cst_421 = arith.constant dense<0.000000e+00> : vector<1x10xf32>
    %493 = tpu.matmul %491, %492, %cst_421 {dimension_numbers = #tpu.dot_dimension_numbers<[1], [0], [0], [1], [0, 0, 1, 1], [], []>} : vector<1x128xbf16>, vector<128x10xbf16>, vector<1x10xf32> -> vector<1x10xf32>
    %c0_422 = arith.constant 0 : index
    %c0_423 = arith.constant 0 : index
    %494 = vector.load %arg11[%c0_422, %c0_423] : memref<1x10xf32, #tpu.memory_space<vmem>>, vector<1x10xf32>
    %495 = arith.addf %493, %494 : vector<1x10xf32>
    %c0_424 = arith.constant 0 : index
    %c0_425 = arith.constant 0 : index
    %c0_426 = arith.constant 0 : index
    %496 = vector.load %arg12[%c0_424, %c0_425, %c0_426] : memref<1x1x10xf32, #tpu.memory_space<vmem>>, vector<1x1x10xf32>
    %497 = vector.shape_cast %496 : vector<1x1x10xf32> to vector<1x10xf32>
    %498 = vector.shape_cast %495 : vector<1x10xf32> to vector<1x1x10xf32>
    tpu.vector_store %arg12[%c0_424, %c0_425, %c0_426], %498 {strides = array<i32>} : memref<1x1x10xf32, #tpu.memory_space<vmem>>, vector<1x1x10xf32>,
    return
  }
  func.func @transform_0(%arg0: i32) -> (i32, i32, i32) {
    %c0_i32 = arith.constant 0 : i32
    %c0_i32_0 = arith.constant 0 : i32
    %c0_i32_1 = arith.constant 0 : i32
    return %arg0, %c0_i32, %c0_i32_0 : i32, i32, i32
  }
  func.func @transform_1(%arg0: i32) -> (i32, i32) {
    %c0_i32 = arith.constant 0 : i32
    %c0_i32_0 = arith.constant 0 : i32
    %c0_i32_1 = arith.constant 0 : i32
    return %c0_i32, %c0_i32_0 : i32, i32
  }
  func.func @transform_2(%arg0: i32) -> (i32, i32) {
    %c0_i32 = arith.constant 0 : i32
    %c0_i32_0 = arith.constant 0 : i32
    %c0_i32_1 = arith.constant 0 : i32
    return %c0_i32, %c0_i32_0 : i32, i32
  }
  func.func @transform_3(%arg0: i32) -> (i32, i32) {
    %c0_i32 = arith.constant 0 : i32
    %c0_i32_0 = arith.constant 0 : i32
    %c0_i32_1 = arith.constant 0 : i32
    return %c0_i32, %c0_i32_0 : i32, i32
  }
  func.func @transform_4(%arg0: i32) -> (i32, i32) {
    %c0_i32 = arith.constant 0 : i32
    %c0_i32_0 = arith.constant 0 : i32
    %c0_i32_1 = arith.constant 0 : i32
    return %c0_i32, %c0_i32_0 : i32, i32
  }
  func.func @transform_5(%arg0: i32) -> (i32, i32) {
    %c0_i32 = arith.constant 0 : i32
    %c0_i32_0 = arith.constant 0 : i32
    %c0_i32_1 = arith.constant 0 : i32
    return %c0_i32, %c0_i32_0 : i32, i32
  }
  func.func @transform_6(%arg0: i32) -> (i32, i32) {
    %c0_i32 = arith.constant 0 : i32
    %c0_i32_0 = arith.constant 0 : i32
    %c0_i32_1 = arith.constant 0 : i32
    return %c0_i32, %c0_i32_0 : i32, i32
  }
  func.func @transform_7(%arg0: i32) -> (i32, i32) {
    %c0_i32 = arith.constant 0 : i32
    %c0_i32_0 = arith.constant 0 : i32
    %c0_i32_1 = arith.constant 0 : i32
    return %c0_i32, %c0_i32_0 : i32, i32
  }
  func.func @transform_8(%arg0: i32) -> (i32, i32) {
    %c0_i32 = arith.constant 0 : i32
    %c0_i32_0 = arith.constant 0 : i32
    %c0_i32_1 = arith.constant 0 : i32
    return %c0_i32, %c0_i32_0 : i32, i32
  }
  func.func @transform_9(%arg0: i32) -> (i32, i32) {
    %c0_i32 = arith.constant 0 : i32
    %c0_i32_0 = arith.constant 0 : i32
    %c0_i32_1 = arith.constant 0 : i32
    return %c0_i32, %c0_i32_0 : i32, i32
  }
  func.func @transform_10(%arg0: i32) -> (i32, i32) {
    %c0_i32 = arith.constant 0 : i32
    %c0_i32_0 = arith.constant 0 : i32
    %c0_i32_1 = arith.constant 0 : i32
    return %c0_i32, %c0_i32_0 : i32, i32
  }
  func.func @transform_11(%arg0: i32) -> (i32, i32, i32) {
    %c0_i32 = arith.constant 0 : i32
    %c0_i32_0 = arith.constant 0 : i32
    %c0_i32_1 = arith.constant 0 : i32
    return %arg0, %c0_i32, %c0_i32_0 : i32, i32, i32
  }
  func.func @transform_12(%arg0: i32) -> (i32, i32, i32) {
    %c0_i32 = arith.constant 0 : i32
    %c0_i32_0 = arith.constant 0 : i32
    %c0_i32_1 = arith.constant 0 : i32
    return %arg0, %c0_i32, %c0_i32_0 : i32, i32, i32
  }
}

</mosaic_0001>

<llo_original>
// kernel: network_forward.1
$region0: #{network_forward.1}
  #allocation0 [shape = 'u32[]', space=smem, size = 0x4, offset = 0x4, fixed_abs, tag = 'smem constant byte address 0x4 - core index']
  #allocation1 [shape = 'u32[144,128]{1,0:T(1,128)}', space=vmem, size = 0x12000, scoped, tag = 'internal scratch']
  #allocation2 [shape = 'f32[13,26,32]{2,1,0:T(8,128)}', space=vmem, size = 0x34000, scoped, tag = 'scratch operand']
  #allocation3 [shape = 'bf16[13,13,32]{2,1,0:T(8,128)(2,1)}', space=vmem, size = 0xd000, scoped, tag = 'scratch operand']
  #allocation4 [shape = 'bf16[11,11,288]{2,1,0:T(8,128)(2,1)}', space=vmem, size = 0x21000, scoped, tag = 'scratch operand']
  #allocation5 [shape = 'f32[5,11,64]{2,1,0:T(8,128)}', space=vmem, size = 0xa000, scoped, tag = 'scratch operand']
  #allocation6 [shape = 'bf16[5,5,64]{2,1,0:T(8,128)(2,1)}', space=vmem, size = 0x2800, scoped, tag = 'scratch operand']
  #allocation7 [shape = 'bf16[3,3,576]{2,1,0:T(4,128)(2,1)}', space=vmem, size = 0x3c00, scoped, tag = 'scratch operand']
  %s0 = inlined_call_operand.vmem [shape: bf16[2,676,147], index: 0, kind: input, shape index: {}]
  %s1 = inlined_call_operand.vmem [shape: bf16[147,32], index: 1, kind: input, shape index: {}]
  %s2 = inlined_call_operand.vmem [shape: f32[1,32], index: 2, kind: input, shape index: {}]
  %s3 = inlined_call_operand.vmem [shape: bf16[288,64], index: 3, kind: input, shape index: {}]
  %s4 = inlined_call_operand.vmem [shape: f32[1,64], index: 4, kind: input, shape index: {}]
  %s5 = inlined_call_operand.vmem [shape: bf16[576,128], index: 5, kind: input, shape index: {}]
  %s6 = inlined_call_operand.vmem [shape: f32[1,128], index: 6, kind: input, shape index: {}]
  %s7 = inlined_call_operand.vmem [shape: bf16[128,128], index: 7, kind: input, shape index: {}]
  %s8 = inlined_call_operand.vmem [shape: f32[1,128], index: 8, kind: input, shape index: {}]
  %s9 = inlined_call_operand.vmem [shape: bf16[128,10], index: 9, kind: input, shape index: {}]
  %s10 = inlined_call_operand.vmem [shape: f32[1,10], index: 10, kind: input, shape index: {}]
  %s11 = inlined_call_operand.hbm [shape: f32[2,1,10], index: 11, kind: output, shape index: {0}]
  %s12 = inlined_call_operand.hbm [shape: f32[2,1,128], index: 12, kind: output, shape index: {1}]
  %13 = xla_tuple %s11, %s12
  %s14 = sld [smem:[#allocation0]]
  $region85: #{network_forward.1} parent=0
    _
  %s16 = ssub.s32 1, %s14
  %s17 = scalar_select 0, %s16, %s14
  $region1: #{network_forward.1} parent=0
    #allocation8 [shape = 'u8[1024]{0}', space=vmem, size = 0x400, scoped, tag = 'output window, operand 0']
    #allocation9 [shape = 's32[2]{0}', space=sflag, size = 0x8, scoped, tag = 'scoped memory for network_forward.1']
    #allocation10 [shape = 'u8[1024]{0}', space=vmem, size = 0x400, scoped, tag = 'output window, operand 1']
    #allocation11 [shape = 's32[2]{0}', space=sflag, size = 0x8, scoped, tag = 'scoped memory for network_forward.1']
    %18 = vsyncpa [#allocation9], 0
    %s19 = scalar_lea.sflag [#allocation9], 1
    %20 = vsyncpa %s19, 0
    %21 = vsyncpa [#allocation11], 0
    %s22 = scalar_lea.sflag [#allocation11], 1
    %23 = vsyncpa %s22, 0
    loop: start=0, step=1, limit=4
    $region2: #{network_forward.1} parent=1 // loop_pre_header
      _
    $region3: #{network_forward.1} parent=1 // loop_header
      %s25 = sphi 0, %s29
      %p26 = scmp.ge.s32.totalorder %s25, 4
      %s35 = sphi 0, %s37
      %s38 = sphi 0, %s35
      %s39 = sphi 0, %s38
      %s55 = sphi 0, %s39
      %s59 = sphi 0, %s59
      %s61 = sphi 0, %s59
      %s62 = sphi 0, %s61
      %s76 = sphi 0, %s62
      %s80 = sphi 0, %s80
      %s82 = sphi 0, %s80
      %s83 = sphi 0, %s82
      %s97 = sphi 0, %s83
      %s101 = sphi 0, %s101
      %s103 = sphi 0, %s101
      %s104 = sphi 0, %s103
      %s118 = sphi 0, %s104
      %s122 = sphi 0, %s122
      %s124 = sphi 0, %s122
      %s125 = sphi 0, %s124
      %s139 = sphi 0, %s125
      %s143 = sphi 0, %s143
      %s145 = sphi 0, %s143
      %s146 = sphi 0, %s145
      %s160 = sphi 0, %s146
      %s164 = sphi 0, %s164
      %s166 = sphi 0, %s164
      %s167 = sphi 0, %s166
      %s181 = sphi 0, %s167
      %s185 = sphi 0, %s185
      %s187 = sphi 0, %s185
      %s188 = sphi 0, %s187
      %s202 = sphi 0, %s188
      %s206 = sphi 0, %s206
      %s208 = sphi 0, %s206
      %s209 = sphi 0, %s208
      %s223 = sphi 0, %s209
      %s227 = sphi 0, %s227
      %s229 = sphi 0, %s227
      %s230 = sphi 0, %s229
      %s244 = sphi 0, %s230
      %s248 = sphi 0, %s248
      %s250 = sphi 0, %s248
      %s251 = sphi 0, %s250
      %s265 = sphi 0, %s251
      %s271 = sphi 0, %s273
      %s274 = sphi 0, %s271
      %s275 = sphi 0, %s274
      %s291 = sphi 0, %s275
      %s297 = sphi 0, %s299
      %s300 = sphi 0, %s297
      %s301 = sphi 0, %s300
      %s317 = sphi 0, %s301
    $region4: #{network_forward.1} parent=1 // loop_header_branch
      %28 = sbr.rel (%p26) target = $region8
    $region5: #{network_forward.1} parent=1 // loop_body
      %s30 = ssub.s32 %s25, 1
      %s31 = ssub.s32 %s25, 2
      %s32 = sadd.s32 %s25, 1
      %s33 = ssub.s32 %s25, %s32
      %p34 = scmp.eq.s32.totalorder %s33, 0
      %s36 = sadd.s32 %s35, 1
      %s37 = scalar_select %p34, %s35, %s36
      %p40 = pneg %p34
      %p41 = scmp.eq.s32.totalorder %s25, 1
      %p42 = por %p40, %p41
      %p43 = scmp.ne.s32.totalorder %s35, %s38
      %p44 = scmp.eq.s32.totalorder %s25, 0
      %p45 = por %p43, %p44
      %p46 = scmp.ne.s32.totalorder %s35, %s38
      %p47 = scmp.eq.s32.totalorder %s30, 1
      %p48 = por %p46, %p47
      %p49 = scmp.ne.s32.totalorder %s38, %s39
      %p50 = scmp.eq.s32.totalorder %s30, 0
      %p51 = por %p49, %p50
      %p52 = scmp.ne.s32.totalorder %s38, %s39
      %p53 = scmp.eq.s32.totalorder %s31, 1
      %p54 = por %p52, %p53
      %p56 = scmp.ne.s32.totalorder %s39, %s55
      %p57 = scmp.eq.s32.totalorder %s31, 0
      %p58 = por %p56, %p57
      %s60 = sadd.s32 %s59, 1
      %p63 = scmp.eq.s32.totalorder %s25, 1
      %p64 = scmp.ne.s32.totalorder %s59, %s61
      %p65 = scmp.eq.s32.totalorder %s25, 0
      %p66 = por %p64, %p65
      %p67 = scmp.ne.s32.totalorder %s59, %s61
      %p68 = scmp.eq.s32.totalorder %s30, 1
      %p69 = por %p67, %p68
      %p70 = scmp.ne.s32.totalorder %s61, %s62
      %p71 = scmp.eq.s32.totalorder %s30, 0
      %p72 = por %p70, %p71
      %p73 = scmp.ne.s32.totalorder %s61, %s62
      %p74 = scmp.eq.s32.totalorder %s31, 1
      %p75 = por %p73, %p74
      %p77 = scmp.ne.s32.totalorder %s62, %s76
      %p78 = scmp.eq.s32.totalorder %s31, 0
      %p79 = por %p77, %p78
      %s81 = sadd.s32 %s80, 1
      %p84 = scmp.eq.s32.totalorder %s25, 1
      %p85 = scmp.ne.s32.totalorder %s80, %s82
      %p86 = scmp.eq.s32.totalorder %s25, 0
      %p87 = por %p85, %p86
      %p88 = scmp.ne.s32.totalorder %s80, %s82
      %p89 = scmp.eq.s32.totalorder %s30, 1
      %p90 = por %p88, %p89
      %p91 = scmp.ne.s32.totalorder %s82, %s83
      %p92 = scmp.eq.s32.totalorder %s30, 0
      %p93 = por %p91, %p92
      %p94 = scmp.ne.s32.totalorder %s82, %s83
      %p95 = scmp.eq.s32.totalorder %s31, 1
      %p96 = por %p94, %p95
      %p98 = scmp.ne.s32.totalorder %s83, %s97
      %p99 = scmp.eq.s32.totalorder %s31, 0
      %p100 = por %p98, %p99
      %s102 = sadd.s32 %s101, 1
      %p105 = scmp.eq.s32.totalorder %s25, 1
      %p106 = scmp.ne.s32.totalorder %s101, %s103
      %p107 = scmp.eq.s32.totalorder %s25, 0
      %p108 = por %p106, %p107
      %p109 = scmp.ne.s32.totalorder %s101, %s103
      %p110 = scmp.eq.s32.totalorder %s30, 1
      %p111 = por %p109, %p110
      %p112 = scmp.ne.s32.totalorder %s103, %s104
      %p113 = scmp.eq.s32.totalorder %s30, 0
      %p114 = por %p112, %p113
      %p115 = scmp.ne.s32.totalorder %s103, %s104
      %p116 = scmp.eq.s32.totalorder %s31, 1
      %p117 = por %p115, %p116
      %p119 = scmp.ne.s32.totalorder %s104, %s118
      %p120 = scmp.eq.s32.totalorder %s31, 0
      %p121 = por %p119, %p120
      %s123 = sadd.s32 %s122, 1
      %p126 = scmp.eq.s32.totalorder %s25, 1
      %p127 = scmp.ne.s32.totalorder %s122, %s124
      %p128 = scmp.eq.s32.totalorder %s25, 0
      %p129 = por %p127, %p128
      %p130 = scmp.ne.s32.totalorder %s122, %s124
      %p131 = scmp.eq.s32.totalorder %s30, 1
      %p132 = por %p130, %p131
      %p133 = scmp.ne.s32.totalorder %s124, %s125
      %p134 = scmp.eq.s32.totalorder %s30, 0
      %p135 = por %p133, %p134
      %p136 = scmp.ne.s32.totalorder %s124, %s125
      %p137 = scmp.eq.s32.totalorder %s31, 1
      %p138 = por %p136, %p137
      %p140 = scmp.ne.s32.totalorder %s125, %s139
      %p141 = scmp.eq.s32.totalorder %s31, 0
      %p142 = por %p140, %p141
      %s144 = sadd.s32 %s143, 1
      %p147 = scmp.eq.s32.totalorder %s25, 1
      %p148 = scmp.ne.s32.totalorder %s143, %s145
      %p149 = scmp.eq.s32.totalorder %s25, 0
      %p150 = por %p148, %p149
      %p151 = scmp.ne.s32.totalorder %s143, %s145
      %p152 = scmp.eq.s32.totalorder %s30, 1
      %p153 = por %p151, %p152
      %p154 = scmp.ne.s32.totalorder %s145, %s146
      %p155 = scmp.eq.s32.totalorder %s30, 0
      %p156 = por %p154, %p155
      %p157 = scmp.ne.s32.totalorder %s145, %s146
      %p158 = scmp.eq.s32.totalorder %s31, 1
      %p159 = por %p157, %p158
      %p161 = scmp.ne.s32.totalorder %s146, %s160
      %p162 = scmp.eq.s32.totalorder %s31, 0
      %p163 = por %p161, %p162
      %s165 = sadd.s32 %s164, 1
      %p168 = scmp.eq.s32.totalorder %s25, 1
      %p169 = scmp.ne.s32.totalorder %s164, %s166
      %p170 = scmp.eq.s32.totalorder %s25, 0
      %p171 = por %p169, %p170
      %p172 = scmp.ne.s32.totalorder %s164, %s166
      %p173 = scmp.eq.s32.totalorder %s30, 1
      %p174 = por %p172, %p173
      %p175 = scmp.ne.s32.totalorder %s166, %s167
      %p176 = scmp.eq.s32.totalorder %s30, 0
      %p177 = por %p175, %p176
      %p178 = scmp.ne.s32.totalorder %s166, %s167
      %p179 = scmp.eq.s32.totalorder %s31, 1
      %p180 = por %p178, %p179
      %p182 = scmp.ne.s32.totalorder %s167, %s181
      %p183 = scmp.eq.s32.totalorder %s31, 0
      %p184 = por %p182, %p183
      %s186 = sadd.s32 %s185, 1
      %p189 = scmp.eq.s32.totalorder %s25, 1
      %p190 = scmp.ne.s32.totalorder %s185, %s187
      %p191 = scmp.eq.s32.totalorder %s25, 0
      %p192 = por %p190, %p191
      %p193 = scmp.ne.s32.totalorder %s185, %s187
      %p194 = scmp.eq.s32.totalorder %s30, 1
      %p195 = por %p193, %p194
      %p196 = scmp.ne.s32.totalorder %s187, %s188
      %p197 = scmp.eq.s32.totalorder %s30, 0
      %p198 = por %p196, %p197
      %p199 = scmp.ne.s32.totalorder %s187, %s188
      %p200 = scmp.eq.s32.totalorder %s31, 1
      %p201 = por %p199, %p200
      %p203 = scmp.ne.s32.totalorder %s188, %s202
      %p204 = scmp.eq.s32.totalorder %s31, 0
      %p205 = por %p203, %p204
      %s207 = sadd.s32 %s206, 1
      %p210 = scmp.eq.s32.totalorder %s25, 1
      %p211 = scmp.ne.s32.totalorder %s206, %s208
      %p212 = scmp.eq.s32.totalorder %s25, 0
      %p213 = por %p211, %p212
      %p214 = scmp.ne.s32.totalorder %s206, %s208
      %p215 = scmp.eq.s32.totalorder %s30, 1
      %p216 = por %p214, %p215
      %p217 = scmp.ne.s32.totalorder %s208, %s209
      %p218 = scmp.eq.s32.totalorder %s30, 0
      %p219 = por %p217, %p218
      %p220 = scmp.ne.s32.totalorder %s208, %s209
      %p221 = scmp.eq.s32.totalorder %s31, 1
      %p222 = por %p220, %p221
      %p224 = scmp.ne.s32.totalorder %s209, %s223
      %p225 = scmp.eq.s32.totalorder %s31, 0
      %p226 = por %p224, %p225
      %s228 = sadd.s32 %s227, 1
      %p231 = scmp.eq.s32.totalorder %s25, 1
      %p232 = scmp.ne.s32.totalorder %s227, %s229
      %p233 = scmp.eq.s32.totalorder %s25, 0
      %p234 = por %p232, %p233
      %p235 = scmp.ne.s32.totalorder %s227, %s229
      %p236 = scmp.eq.s32.totalorder %s30, 1
      %p237 = por %p235, %p236
      %p238 = scmp.ne.s32.totalorder %s229, %s230
      %p239 = scmp.eq.s32.totalorder %s30, 0
      %p240 = por %p238, %p239
      %p241 = scmp.ne.s32.totalorder %s229, %s230
      %p242 = scmp.eq.s32.totalorder %s31, 1
      %p243 = por %p241, %p242
      %p245 = scmp.ne.s32.totalorder %s230, %s244
      %p246 = scmp.eq.s32.totalorder %s31, 0
      %p247 = por %p245, %p246
      %s249 = sadd.s32 %s248, 1
      %p252 = scmp.eq.s32.totalorder %s25, 1
      %p253 = scmp.ne.s32.totalorder %s248, %s250
      %p254 = scmp.eq.s32.totalorder %s25, 0
      %p255 = por %p253, %p254
      %p256 = scmp.ne.s32.totalorder %s248, %s250
      %p257 = scmp.eq.s32.totalorder %s30, 1
      %p258 = por %p256, %p257
      %p259 = scmp.ne.s32.totalorder %s250, %s251
      %p260 = scmp.eq.s32.totalorder %s30, 0
      %p261 = por %p259, %p260
      %p262 = scmp.ne.s32.totalorder %s250, %s251
      %p263 = scmp.eq.s32.totalorder %s31, 1
      %p264 = por %p262, %p263
      %p266 = scmp.ne.s32.totalorder %s251, %s265
      %p267 = scmp.eq.s32.totalorder %s31, 0
      %p268 = por %p266, %p267
      %s269 = ssub.s32 %s25, %s32
      %p270 = scmp.eq.s32.totalorder %s269, 0
      %s272 = sadd.s32 %s271, 1
      %s273 = scalar_select %p270, %s271, %s272
      %p276 = pneg %p270
      %p277 = scmp.eq.s32.totalorder %s25, 1
      %p278 = por %p276, %p277
      %p279 = scmp.ne.s32.totalorder %s271, %s274
      %p280 = scmp.eq.s32.totalorder %s25, 0
      %p281 = por %p279, %p280
      %p282 = scmp.ne.s32.totalorder %s271, %s274
      %p283 = scmp.eq.s32.totalorder %s30, 1
      %p284 = por %p282, %p283
      %p285 = scmp.ne.s32.totalorder %s274, %s275
      %p286 = scmp.eq.s32.totalorder %s30, 0
      %p287 = por %p285, %p286
      %p288 = scmp.ne.s32.totalorder %s274, %s275
      %p289 = scmp.eq.s32.totalorder %s31, 1
      %p290 = por %p288, %p289
      %p292 = scmp.ne.s32.totalorder %s275, %s291
      %p293 = scmp.eq.s32.totalorder %s31, 0
      %p294 = por %p292, %p293
      %s295 = ssub.s32 %s25, %s32
      %p296 = scmp.eq.s32.totalorder %s295, 0
      %s298 = sadd.s32 %s297, 1
      %s299 = scalar_select %p296, %s297, %s298
      %p302 = pneg %p296
      %p303 = scmp.eq.s32.totalorder %s25, 1
      %p304 = por %p302, %p303
      %p305 = scmp.ne.s32.totalorder %s297, %s300
      %p306 = scmp.eq.s32.totalorder %s25, 0
      %p307 = por %p305, %p306
      %p308 = scmp.ne.s32.totalorder %s297, %s300
      %p309 = scmp.eq.s32.totalorder %s30, 1
      %p310 = por %p308, %p309
      %p311 = scmp.ne.s32.totalorder %s300, %s301
      %p312 = scmp.eq.s32.totalorder %s30, 0
      %p313 = por %p311, %p312
      %p314 = scmp.ne.s32.totalorder %s300, %s301
      %p315 = scmp.eq.s32.totalorder %s31, 1
      %p316 = por %p314, %p315
      %p318 = scmp.ne.s32.totalorder %s301, %s317
      %p319 = scmp.eq.s32.totalorder %s31, 0
      %p320 = por %p318, %p319
      %p321 = scmp.le.s32.totalorder 1, %s25
      %p322 = scmp.lt.s32.totalorder %s25, 3
      %p323 = pnand %p321, %p322
      %p324 = pneg %p323
      // Predicated region
      $region9: #{network_forward.1} parent=5 // pred_check
        _
      $region10: #{network_forward.1} parent=5 // pred_check_branch
        %326 = sbr.rel (%p323) target = $region12
      $region11: #{network_forward.1} parent=5 // pred_region
        %s327 = ssub.s32 %s25, 1
        // Predicated region
        $region13: #{network_forward.1} parent=11 // pred_check
          %p328 = pneg %p72
        $region14: #{network_forward.1} parent=11 // pred_check_branch
          %330 = sbr.rel (%p328) target = $region16
        $region15: #{network_forward.1} parent=11 // pred_region
          _
        $region16: #{network_forward.1} parent=11 // pred_fallthru
          _
        // Predicated region
        $region17: #{network_forward.1} parent=11 // pred_check
          %p331 = pneg %p93
        $region18: #{network_forward.1} parent=11 // pred_check_branch
          %333 = sbr.rel (%p331) target = $region20
        $region19: #{network_forward.1} parent=11 // pred_region
          _
        $region20: #{network_forward.1} parent=11 // pred_fallthru
          _
        // Predicated region
        $region21: #{network_forward.1} parent=11 // pred_check
          %p334 = pneg %p114
        $region22: #{network_forward.1} parent=11 // pred_check_branch
          %336 = sbr.rel (%p334) target = $region24
        $region23: #{network_forward.1} parent=11 // pred_region
          _
        $region24: #{network_forward.1} parent=11 // pred_fallthru
          _
        // Predicated region
        $region25: #{network_forward.1} parent=11 // pred_check
          %p337 = pneg %p135
        $region26: #{network_forward.1} parent=11 // pred_check_branch
          %339 = sbr.rel (%p337) target = $region28
        $region27: #{network_forward.1} parent=11 // pred_region
          _
        $region28: #{network_forward.1} parent=11 // pred_fallthru
          _
        // Predicated region
        $region29: #{network_forward.1} parent=11 // pred_check
          %p340 = pneg %p156
        $region30: #{network_forward.1} parent=11 // pred_check_branch
          %342 = sbr.rel (%p340) target = $region32
        $region31: #{network_forward.1} parent=11 // pred_region
          _
        $region32: #{network_forward.1} parent=11 // pred_fallthru
          _
        // Predicated region
        $region33: #{network_forward.1} parent=11 // pred_check
          %p343 = pneg %p177
        $region34: #{network_forward.1} parent=11 // pred_check_branch
          %345 = sbr.rel (%p343) target = $region36
        $region35: #{network_forward.1} parent=11 // pred_region
          _
        $region36: #{network_forward.1} parent=11 // pred_fallthru
          _
        // Predicated region
        $region37: #{network_forward.1} parent=11 // pred_check
          %p346 = pneg %p198
        $region38: #{network_forward.1} parent=11 // pred_check_branch
          %348 = sbr.rel (%p346) target = $region40
        $region39: #{network_forward.1} parent=11 // pred_region
          _
        $region40: #{network_forward.1} parent=11 // pred_fallthru
          _
        // Predicated region
        $region41: #{network_forward.1} parent=11 // pred_check
          %p349 = pneg %p219
        $region42: #{network_forward.1} parent=11 // pred_check_branch
          %351 = sbr.rel (%p349) target = $region44
        $region43: #{network_forward.1} parent=11 // pred_region
          _
        $region44: #{network_forward.1} parent=11 // pred_fallthru
          _
        // Predicated region
        $region45: #{network_forward.1} parent=11 // pred_check
          %p352 = pneg %p240
        $region46: #{network_forward.1} parent=11 // pred_check_branch
          %354 = sbr.rel (%p352) target = $region48
        $region47: #{network_forward.1} parent=11 // pred_region
          _
        $region48: #{network_forward.1} parent=11 // pred_fallthru
          _
        // Predicated region
        $region49: #{network_forward.1} parent=11 // pred_check
          %p355 = pneg %p261
        $region50: #{network_forward.1} parent=11 // pred_check_branch
          %357 = sbr.rel (%p355) target = $region52
        $region51: #{network_forward.1} parent=11 // pred_region
          _
        $region52: #{network_forward.1} parent=11 // pred_fallthru
          _
      $region12: #{network_forward.1} parent=5 // pred_fallthru
        _
      %p358 = scmp.lt.s32.totalorder %s25, 2
      // Predicated region
      $region53: #{network_forward.1} parent=5 // pred_check
        %p359 = pneg %p358
      $region54: #{network_forward.1} parent=5 // pred_check_branch
        %361 = sbr.rel (%p359) target = $region56
      $region55: #{network_forward.1} parent=5 // pred_region
        // Predicated region
        $region57: #{network_forward.1} parent=55 // pred_check
          %p362 = pneg %p45
        $region58: #{network_forward.1} parent=55 // pred_check_branch
          %364 = sbr.rel (%p362) target = $region60
        $region59: #{network_forward.1} parent=55 // pred_region
          %p365 = scmp.lt.s32.totalorder %s25, 1
          %s366 = scalar_select %p365, %s25, 1
          %s367 = smul.addr %s366, 170
          %s368 = smul.addr %s367, 4
          %s369 = scalar_lea.vmem %s0, %s368
        $region60: #{network_forward.1} parent=55 // pred_fallthru
          _
      $region56: #{network_forward.1} parent=5 // pred_fallthru
        _
      %p370 = scmp.le.s32.totalorder 1, %s25
      %p371 = scmp.lt.s32.totalorder %s25, 3
      %p372 = pnand %p370, %p371
      %p373 = pneg %p372
      // Predicated region
      $region61: #{network_forward.1} parent=5 // pred_check
        _
      $region62: #{network_forward.1} parent=5 // pred_check_branch
        %375 = sbr.rel (%p372) target = $region64
      $region63: #{network_forward.1} parent=5 // pred_region
        %s376 = ssub.s32 %s25, 1
        %p377 = scmp.lt.s32.totalorder %s30, 1
        %s378 = scalar_select %p377, %s30, 1
        %s379 = smul.addr %s378, 170
        %s380 = smul.addr %s379, 4
        %s381 = scalar_lea.vmem %s0, %s380
        %p382 = pneg %p51
        %p383 = pneg %p48
        %p384 = pneg %p72
        %p385 = pneg %p69
        %p386 = pneg %p93
        %p387 = pneg %p90
        %p388 = pneg %p114
        %p389 = pneg %p111
        %p390 = pneg %p135
        %p391 = pneg %p132
        %p392 = pneg %p156
        %p393 = pneg %p153
        %p394 = pneg %p177
        %p395 = pneg %p174
        %p396 = pneg %p198
        %p397 = pneg %p195
        %p398 = pneg %p219
        %p399 = pneg %p216
        %p400 = pneg %p240
        %p401 = pneg %p237
        %p402 = pneg %p261
        %p403 = pneg %p258
        %p404 = pneg %p287
        %p405 = pneg %p284
        %s406 = sand.u32 %s274, 1
        %s407 = scalar_lea.sflag [#allocation9], %s406
        %s408 = sand.u32 %s274, 1
        %s409 = scalar_lea.vmem [#allocation8], %s408
        %p410 = pneg %p313
        %p411 = pneg %p310
        %s412 = sand.u32 %s300, 1
        %s413 = scalar_lea.sflag [#allocation11], %s412
        %s414 = sand.u32 %s300, 1
        %s415 = scalar_lea.vmem [#allocation10], %s414
        %p416 = scmp.lt.s32.totalorder %s30, 1
        %s417 = scalar_select %p416, %s30, 1
        %s418 = smul.addr %s417, 170
        %s419 = smul.addr %s418, 4
        %s420 = scalar_lea.vmem %s0, %s419
        %v422 = vld [vmem:[%s1] sm:$0xf]
        %v423 = vld [vmem:[%s1 + $0x4] sm:$0xf]
        %v424 = vld [vmem:[%s1 + $0x8] sm:$0xf]
        %v425 = vld [vmem:[%s1 + $0xc] sm:$0xf]
        %v426 = vld [vmem:[%s1 + $0x10] sm:$0xf]
        %v427 = vld [vmem:[%s1 + $0x14] sm:$0xf]
        %v428 = vld [vmem:[%s1 + $0x18] sm:$0xf]
        %v429 = vld [vmem:[%s1 + $0x1c] sm:$0xf]
        %v430 = vld [vmem:[%s1 + $0x20] sm:$0xf]
        %v431 = vld [vmem:[%s1 + $0x24] sm:$0xf]
        %v432 = vld [vmem:[%s1 + $0x28] sm:$0xf]
        %v433 = vld [vmem:[%s1 + $0x2c] sm:$0xf]
        %v434 = vld [vmem:[%s1 + $0x30] sm:$0xf]
        %v435 = vld [vmem:[%s1 + $0x34] sm:$0xf]
        %v436 = vld [vmem:[%s1 + $0x38] sm:$0xf]
        %v437 = vld [vmem:[%s1 + $0x3c] sm:$0xf]
        %v438 = vld [vmem:[%s1 + $0x40] sm:$0xf]
        %v439 = vld [vmem:[%s1 + $0x44] sm:$0xf]
        %v440 = vld [vmem:[%s1 + $0x48] sm:$0x3]
        %v441 = vld [vmem:[%s2] sm:$0x1]
        %v442 = vld [vmem:[%s420] sm:$0xff]
        %v443 = vld [vmem:[%s420 + $0x8] sm:$0xff]
        %v444 = vld [vmem:[%s420 + $0x10] sm:$0xff]
        %v445 = vld [vmem:[%s420 + $0x18] sm:$0xff]
        %v446 = vld [vmem:[%s420 + $0x20] sm:$0xff]
        %v447 = vld [vmem:[%s420 + $0x28] sm:$0xff]
        %v448 = vld [vmem:[%s420 + $0x30] sm:$0x33]
        %v450 = vlaneseq
        %v451 = vshrl.u32 %v450, 7
        %v452 = vsub.s32 0, %v451
        %v453 = vrot.slane %v441, %v452
        %v462 = vunpack.c.l.b16 %v442
        %v463 = vunpack.c.h.b16 %v442
        %v464 = vunpack.c.l.b16 %v443
        %v465 = vunpack.c.h.b16 %v443
        %v466 = vunpack.c.l.b16 %v444
        %v467 = vunpack.c.h.b16 %v444
        %v468 = vunpack.c.l.b16 %v445
        %v469 = vunpack.c.h.b16 %v445
        %v470 = vunpack.c.l.b16 %v446
        %v471 = vunpack.c.h.b16 %v446
        %v472 = vunpack.c.l.b16 %v447
        %v473 = vunpack.c.h.b16 %v447
        %v474 = vunpack.c.l.b16 %v448
        %v475 = vunpack.c.h.b16 %v448
        %v476 = vpack.c.b16 %v464, %v462
        %v477 = vpack.c.b16 %v465, %v463
        %v478 = vpack.c.b16 %v468, %v466
        %v479 = vpack.c.b16 %v469, %v467
        %v480 = vpack.c.b16 %v472, %v470
        %v481 = vpack.c.b16 %v473, %v471
        %v482 = vpack.c.b16 %v474, %v474
        %v483 = vpack.c.b16 %v475, %v475
        %v507 = vunpack.c.l.b16 %v422
        %v508 = vunpack.c.l.b16 %v423
        %v509 = vunpack.c.l.b16 %v424
        %v510 = vunpack.c.l.b16 %v425
        %v511 = vunpack.c.l.b16 %v426
        %v512 = vunpack.c.l.b16 %v427
        %v513 = vunpack.c.l.b16 %v428
        %v514 = vunpack.c.l.b16 %v429
        %v515 = vunpack.c.l.b16 %v430
        %v516 = vunpack.c.l.b16 %v431
        %v517 = vunpack.c.l.b16 %v432
        %v518 = vunpack.c.l.b16 %v433
        %v519 = vunpack.c.l.b16 %v434
        %v520 = vunpack.c.l.b16 %v435
        %v521 = vunpack.c.l.b16 %v436
        %v522 = vunpack.c.l.b16 %v437
        %v523 = vunpack.c.l.b16 %v438
        %v524 = vunpack.c.l.b16 %v439
        %v525 = vunpack.c.l.b16 %v440
        %v526 = vpack.c.b16 %v508, %v507
        %v527 = vpack.c.b16 %v510, %v509
        %v528 = vpack.c.b16 %v512, %v511
        %v529 = vpack.c.b16 %v514, %v513
        %v530 = vpack.c.b16 %v516, %v515
        %v531 = vpack.c.b16 %v518, %v517
        %v532 = vpack.c.b16 %v520, %v519
        %v533 = vpack.c.b16 %v522, %v521
        %v534 = vpack.c.b16 %v524, %v523
        %v535 = vpack.c.b16 %v525, %v525
        %vm545 = vcmask 154624
        %v547 = vsel %vm545, %v477, 0
        %v550 = vsel %vm545, %v479, 0
        %v553 = vsel %vm545, %v481, 0
        %v556 = vsel %vm545, %v483, 0
        %vm558 = vcmask 1040384
        %vm559 = vcmask 1041408
        %v560 = vsel %vm558, 4294967295, 65535
        %v561 = vsel %vm559, %v560, 0
        %v563 = vand.u32 %v535, %v561
        %565 = vmatprep.subr.bf16.mxu0 0
        %566 = vmatpush1.bf16.msra.mxu0 %v533
        %567 = vmatprep.subr.bf16.mxu0 0
        %568 = vmatpush1.bf16.msra.mxu0 %v532
        %569 = vmatprep.subr.bf16.mxu0 0
        %570 = vmatpush1.bf16.msra.mxu0 %v531
        %571 = vmatprep.subr.bf16.mxu0 0
        %572 = vmatpush1.bf16.msra.mxu0 %v530
        %573 = vmatprep.subr.bf16.mxu0 0
        %574 = vmatpush1.bf16.msra.mxu0 %v529
        %575 = vmatprep.subr.bf16.mxu0 0
        %576 = vmatpush1.bf16.msra.mxu0 %v528
        %577 = vmatprep.subr.bf16.mxu0 0
        %578 = vmatpush1.bf16.msra.mxu0 %v527
        %579 = vmatprep.subr.bf16.mxu0 0
        %580 = vmatpush1.bf16.msra.mxu0 %v526
        %581 = vmatprep.subr.bf16.mxu0 0
        %582 = vmatpush2.bf16.msra.mxu0 0
        %583 = vmatprep.subr.bf16.mxu0 0
        %584 = vmatpush2.bf16.msra.mxu0 0
        %585 = vmatprep.subr.bf16.mxu0 0
        %586 = vmatpush2.bf16.msra.mxu0 0
        %587 = vmatprep.subr.bf16.mxu0 0
        %588 = vmatpush2.bf16.msra.mxu0 0
        %589 = vmatprep.subr.bf16.mxu0 0
        %590 = vmatpush2.bf16.msra.mxu0 0
        %591 = vmatprep.subr.bf16.mxu0 0
        %592 = vmatpush2.bf16.msra.mxu0 0
        %593 = vmatprep.subr.bf16.mxu0 0
        %594 = vmatpush2.bf16.msra.mxu0 %v563
        %595 = vmatprep.subr.bf16.mxu0 0
        %596 = vmatpush2.bf16.msra.mxu0 %v534
        %597 = vmatprep.mubr.bf16.mxu0 %v547
        %598 = vmatmul.mubr.bf16.gmra.mxu0 %v476
        %v599 = vpop.f32.mrf.mxu0
        %v600 = vadd.f32 %v453, %v599
        %v601 = vpop.f32.mrf.mxu0
        %v602 = vpop.f32.mrf.mxu0
        %v603 = vadd.f32 %v453, %v602
        %v604 = vpop.f32.mrf.mxu0
        %605 = vmatprep.mubr.bf16.mxu0 %v550
        %606 = vmatmul.mubr.bf16.gmra.mxu0 %v478
        %v607 = vpop.f32.mrf.mxu0
        %v608 = vadd.f32 %v453, %v607
        %v609 = vpop.f32.mrf.mxu0
        %v610 = vpop.f32.mrf.mxu0
        %v611 = vadd.f32 %v453, %v610
        %v612 = vpop.f32.mrf.mxu0
        %613 = vmatprep.mubr.bf16.mxu0 %v553
        %614 = vmatmul.mubr.bf16.gmra.mxu0 %v480
        %v615 = vpop.f32.mrf.mxu0
        %v616 = vadd.f32 %v453, %v615
        %v617 = vpop.f32.mrf.mxu0
        %v618 = vpop.f32.mrf.mxu0
        %v619 = vadd.f32 %v453, %v618
        %v620 = vpop.f32.mrf.mxu0
        %621 = vmatprep.mubr.bf16.mxu0 %v556
        %622 = vmatmul.mubr.bf16.gmra.mxu0 %v482
        %v623 = vpop.f32.mrf.mxu0
        %v624 = vadd.f32 %v453, %v623
        %v625 = vpop.f32.mrf.mxu0
        %v626 = vpop.f32.mrf.mxu0
        %v627 = vpop.f32.mrf.mxu0
        %628 = vdwg.mxu0
        %v629 = vmax.f32 %v600, 0.0
        %v630 = vmax.f32 %v603, 0.0
        %v631 = vmax.f32 %v608, 0.0
        %v632 = vmax.f32 %v611, 0.0
        %v633 = vmax.f32 %v616, 0.0
        %v634 = vmax.f32 %v619, 0.0
        %v635 = vmax.f32 %v624, 0.0
        %vm640 = vcmask 1045504
        %v641 = vrot.slane %v632, 2
        %v642 = vrot.slane %v633, 2
        %v643 = vsel %vm640, %v641, %v642
        %v644 = vrot.slane %v634, 2
        %v645 = vsel %vm640, %v642, %v644
        %v646 = vrot.slane %v635, 2
        %v647 = vsel %vm640, %v644, %v646
        %v652 = vmax.f32 %v629, %v643
        %v653 = vmax.f32 %v630, %v645
        %v654 = vmax.f32 %v631, %v647
        %v655 = vmax.f32 %v632, %v646
        %vm656 = vcmask 261120
        %657 = vst.msk [vmem:[#allocation2] sm:$0xff] %vm656, %v652
        %658 = vst.msk [vmem:[#allocation2 + $0x8] sm:$0xff] %vm656, %v653
        %659 = vst.msk [vmem:[#allocation2 + $0x10] sm:$0xff] %vm656, %v654
        %vm660 = vcmask 254976
        %661 = vst.msk [vmem:[#allocation2 + $0x18] sm:$0x3] %vm660, %v655
        %v662 = vld [vmem:[%s420 + $0x30] sm:$0xcc]
        %v663 = vld [vmem:[%s420 + $0x38] sm:$0xff]
        %v664 = vld [vmem:[%s420 + $0x40] sm:$0xff]
        %v665 = vld [vmem:[%s420 + $0x48] sm:$0xff]
        %v666 = vld [vmem:[%s420 + $0x50] sm:$0xff]
        %v667 = vld [vmem:[%s420 + $0x58] sm:$0xff]
        %v668 = vld [vmem:[%s420 + $0x60] sm:$0xff]
        %v676 = vunpack.c.l.b16 %v662
        %v677 = vunpack.c.h.b16 %v662
        %v678 = vunpack.c.l.b16 %v663
        %v679 = vunpack.c.h.b16 %v663
        %v680 = vunpack.c.l.b16 %v664
        %v681 = vunpack.c.h.b16 %v664
        %v682 = vunpack.c.l.b16 %v665
        %v683 = vunpack.c.h.b16 %v665
        %v684 = vunpack.c.l.b16 %v666
        %v685 = vunpack.c.h.b16 %v666
        %v686 = vunpack.c.l.b16 %v667
        %v687 = vunpack.c.h.b16 %v667
        %v688 = vunpack.c.l.b16 %v668
        %v689 = vunpack.c.h.b16 %v668
        %v690 = vpack.c.b16 %v678, %v676
        %v691 = vpack.c.b16 %v679, %v677
        %v692 = vpack.c.b16 %v682, %v680
        %v693 = vpack.c.b16 %v683, %v681
        %v694 = vpack.c.b16 %v686, %v684
        %v695 = vpack.c.b16 %v687, %v685
        %v696 = vpack.c.b16 %v688, %v688
        %v697 = vpack.c.b16 %v689, %v689
        %vm698 = vcmask 1045504
        %v699 = vrot.slane %v690, 2
        %v700 = vrot.slane %v692, 2
        %v701 = vsel %vm698, %v699, %v700
        %v702 = vrot.slane %v691, 2
        %v703 = vrot.slane %v693, 2
        %v704 = vsel %vm698, %v702, %v703
        %v705 = vrot.slane %v694, 2
        %v706 = vsel %vm698, %v700, %v705
        %v707 = vrot.slane %v695, 2
        %v708 = vsel %vm698, %v703, %v707
        %v709 = vrot.slane %v696, 2
        %v710 = vsel %vm698, %v705, %v709
        %v711 = vrot.slane %v697, 2
        %v712 = vsel %vm698, %v707, %v711
        %v718 = vsel %vm545, %v704, 0
        %v721 = vsel %vm545, %v708, 0
        %v724 = vsel %vm545, %v712, 0
        %v727 = vsel %vm545, %v711, 0
        %729 = vmatprep.subr.bf16.mxu0 0
        %730 = vmatpush1.bf16.msra.mxu0 %v533
        %731 = vmatprep.subr.bf16.mxu0 0
        %732 = vmatpush1.bf16.msra.mxu0 %v532
        %733 = vmatprep.subr.bf16.mxu0 0
        %734 = vmatpush1.bf16.msra.mxu0 %v531
        %735 = vmatprep.subr.bf16.mxu0 0
        %736 = vmatpush1.bf16.msra.mxu0 %v530
        %737 = vmatprep.subr.bf16.mxu0 0
        %738 = vmatpush1.bf16.msra.mxu0 %v529
        %739 = vmatprep.subr.bf16.mxu0 0
        %740 = vmatpush1.bf16.msra.mxu0 %v528
        %741 = vmatprep.subr.bf16.mxu0 0
        %742 = vmatpush1.bf16.msra.mxu0 %v527
        %743 = vmatprep.subr.bf16.mxu0 0
        %744 = vmatpush1.bf16.msra.mxu0 %v526
        %745 = vmatprep.subr.bf16.mxu0 0
        %746 = vmatpush2.bf16.msra.mxu0 0
        %747 = vmatprep.subr.bf16.mxu0 0
        %748 = vmatpush2.bf16.msra.mxu0 0
        %749 = vmatprep.subr.bf16.mxu0 0
        %750 = vmatpush2.bf16.msra.mxu0 0
        %751 = vmatprep.subr.bf16.mxu0 0
        %752 = vmatpush2.bf16.msra.mxu0 0
        %753 = vmatprep.subr.bf16.mxu0 0
        %754 = vmatpush2.bf16.msra.mxu0 0
        %755 = vmatprep.subr.bf16.mxu0 0
        %756 = vmatpush2.bf16.msra.mxu0 0
        %757 = vmatprep.subr.bf16.mxu0 0
        %758 = vmatpush2.bf16.msra.mxu0 %v563
        %759 = vmatprep.subr.bf16.mxu0 0
        %760 = vmatpush2.bf16.msra.mxu0 %v534
        %761 = vmatprep.mubr.bf16.mxu0 %v718
        %762 = vmatmul.mubr.bf16.gmra.mxu0 %v701
        %v763 = vpop.f32.mrf.mxu0
        %v764 = vadd.f32 %v453, %v763
        %v765 = vpop.f32.mrf.mxu0
        %v766 = vpop.f32.mrf.mxu0
        %v767 = vadd.f32 %v453, %v766
        %v768 = vpop.f32.mrf.mxu0
        %769 = vmatprep.mubr.bf16.mxu0 %v721
        %770 = vmatmul.mubr.bf16.gmra.mxu0 %v706
        %v771 = vpop.f32.mrf.mxu0
        %v772 = vadd.f32 %v453, %v771
        %v773 = vpop.f32.mrf.mxu0
        %v774 = vpop.f32.mrf.mxu0
        %v775 = vadd.f32 %v453, %v774
        %v776 = vpop.f32.mrf.mxu0
        %777 = vmatprep.mubr.bf16.mxu0 %v724
        %778 = vmatmul.mubr.bf16.gmra.mxu0 %v710
        %v779 = vpop.f32.mrf.mxu0
        %v780 = vadd.f32 %v453, %v779
        %v781 = vpop.f32.mrf.mxu0
        %v782 = vpop.f32.mrf.mxu0
        %v783 = vadd.f32 %v453, %v782
        %v784 = vpop.f32.mrf.mxu0
        %785 = vmatprep.mubr.bf16.mxu0 %v727
        %786 = vmatmul.mubr.bf16.gmra.mxu0 %v709
        %v787 = vpop.f32.mrf.mxu0
        %v788 = vadd.f32 %v453, %v787
        %v789 = vpop.f32.mrf.mxu0
        %v790 = vpop.f32.mrf.mxu0
        %v791 = vpop.f32.mrf.mxu0
        %792 = vdwg.mxu0
        %v793 = vmax.f32 %v764, 0.0
        %v794 = vmax.f32 %v767, 0.0
        %v795 = vmax.f32 %v772, 0.0
        %v796 = vmax.f32 %v775, 0.0
        %v797 = vmax.f32 %v780, 0.0
        %v798 = vmax.f32 %v783, 0.0
        %v799 = vmax.f32 %v788, 0.0
        %v804 = vrot.slane %v796, 2
        %v805 = vrot.slane %v797, 2
        %v806 = vsel %vm640, %v804, %v805
        %v807 = vrot.slane %v798, 2
        %v808 = vsel %vm640, %v805, %v807
        %v809 = vrot.slane %v799, 2
        %v810 = vsel %vm640, %v807, %v809
        %v815 = vmax.f32 %v793, %v806
        %v816 = vmax.f32 %v794, %v808
        %v817 = vmax.f32 %v795, %v810
        %v818 = vmax.f32 %v796, %v809
        %s819 = scalar_lea.vmem [#allocation2], 32
        %820 = vst.msk [vmem:[%s819] sm:$0xff] %vm656, %v815
        %821 = vst.msk [vmem:[%s819 + $0x8] sm:$0xff] %vm656, %v816
        %822 = vst.msk [vmem:[%s819 + $0x10] sm:$0xff] %vm656, %v817
        %823 = vst.msk [vmem:[%s819 + $0x18] sm:$0x3] %vm660, %v818
        %v824 = vld [vmem:[%s420 + $0x68] sm:$0xff]
        %v825 = vld [vmem:[%s420 + $0x70] sm:$0xff]
        %v826 = vld [vmem:[%s420 + $0x78] sm:$0xff]
        %v827 = vld [vmem:[%s420 + $0x80] sm:$0xff]
        %v828 = vld [vmem:[%s420 + $0x88] sm:$0xff]
        %v829 = vld [vmem:[%s420 + $0x90] sm:$0xff]
        %v830 = vld [vmem:[%s420 + $0x98] sm:$0x33]
        %v838 = vunpack.c.l.b16 %v824
        %v839 = vunpack.c.h.b16 %v824
        %v840 = vunpack.c.l.b16 %v825
        %v841 = vunpack.c.h.b16 %v825
        %v842 = vunpack.c.l.b16 %v826
        %v843 = vunpack.c.h.b16 %v826
        %v844 = vunpack.c.l.b16 %v827
        %v845 = vunpack.c.h.b16 %v827
        %v846 = vunpack.c.l.b16 %v828
        %v847 = vunpack.c.h.b16 %v828
        %v848 = vunpack.c.l.b16 %v829
        %v849 = vunpack.c.h.b16 %v829
        %v850 = vunpack.c.l.b16 %v830
        %v851 = vunpack.c.h.b16 %v830
        %v852 = vpack.c.b16 %v840, %v838
        %v853 = vpack.c.b16 %v841, %v839
        %v854 = vpack.c.b16 %v844, %v842
        %v855 = vpack.c.b16 %v845, %v843
        %v856 = vpack.c.b16 %v848, %v846
        %v857 = vpack.c.b16 %v849, %v847
        %v858 = vpack.c.b16 %v850, %v850
        %v859 = vpack.c.b16 %v851, %v851
        %v865 = vsel %vm545, %v853, 0
        %v868 = vsel %vm545, %v855, 0
        %v871 = vsel %vm545, %v857, 0
        %v874 = vsel %vm545, %v859, 0
        %876 = vmatprep.subr.bf16.mxu0 0
        %877 = vmatpush1.bf16.msra.mxu0 %v533
        %878 = vmatprep.subr.bf16.mxu0 0
        %879 = vmatpush1.bf16.msra.mxu0 %v532
        %880 = vmatprep.subr.bf16.mxu0 0
        %881 = vmatpush1.bf16.msra.mxu0 %v531
        %882 = vmatprep.subr.bf16.mxu0 0
        %883 = vmatpush1.bf16.msra.mxu0 %v530
        %884 = vmatprep.subr.bf16.mxu0 0
        %885 = vmatpush1.bf16.msra.mxu0 %v529
        %886 = vmatprep.subr.bf16.mxu0 0
        %887 = vmatpush1.bf16.msra.mxu0 %v528
        %888 = vmatprep.subr.bf16.mxu0 0
        %889 = vmatpush1.bf16.msra.mxu0 %v527
        %890 = vmatprep.subr.bf16.mxu0 0
        %891 = vmatpush1.bf16.msra.mxu0 %v526
        %892 = vmatprep.subr.bf16.mxu0 0
        %893 = vmatpush2.bf16.msra.mxu0 0
        %894 = vmatprep.subr.bf16.mxu0 0
        %895 = vmatpush2.bf16.msra.mxu0 0
        %896 = vmatprep.subr.bf16.mxu0 0
        %897 = vmatpush2.bf16.msra.mxu0 0
        %898 = vmatprep.subr.bf16.mxu0 0
        %899 = vmatpush2.bf16.msra.mxu0 0
        %900 = vmatprep.subr.bf16.mxu0 0
        %901 = vmatpush2.bf16.msra.mxu0 0
        %902 = vmatprep.subr.bf16.mxu0 0
        %903 = vmatpush2.bf16.msra.mxu0 0
        %904 = vmatprep.subr.bf16.mxu0 0
        %905 = vmatpush2.bf16.msra.mxu0 %v563
        %906 = vmatprep.subr.bf16.mxu0 0
        %907 = vmatpush2.bf16.msra.mxu0 %v534
        %908 = vmatprep.mubr.bf16.mxu0 %v865
        %909 = vmatmul.mubr.bf16.gmra.mxu0 %v852
        %v910 = vpop.f32.mrf.mxu0
        %v911 = vadd.f32 %v453, %v910
        %v912 = vpop.f32.mrf.mxu0
        %v913 = vpop.f32.mrf.mxu0
        %v914 = vadd.f32 %v453, %v913
        %v915 = vpop.f32.mrf.mxu0
        %916 = vmatprep.mubr.bf16.mxu0 %v868
        %917 = vmatmul.mubr.bf16.gmra.mxu0 %v854
        %v918 = vpop.f32.mrf.mxu0
        %v919 = vadd.f32 %v453, %v918
        %v920 = vpop.f32.mrf.mxu0
        %v921 = vpop.f32.mrf.mxu0
        %v922 = vadd.f32 %v453, %v921
        %v923 = vpop.f32.mrf.mxu0
        %924 = vmatprep.mubr.bf16.mxu0 %v871
        %925 = vmatmul.mubr.bf16.gmra.mxu0 %v856
        %v926 = vpop.f32.mrf.mxu0
        %v927 = vadd.f32 %v453, %v926
        %v928 = vpop.f32.mrf.mxu0
        %v929 = vpop.f32.mrf.mxu0
        %v930 = vadd.f32 %v453, %v929
        %v931 = vpop.f32.mrf.mxu0
        %932 = vmatprep.mubr.bf16.mxu0 %v874
        %933 = vmatmul.mubr.bf16.gmra.mxu0 %v858
        %v934 = vpop.f32.mrf.mxu0
        %v935 = vadd.f32 %v453, %v934
        %v936 = vpop.f32.mrf.mxu0
        %v937 = vpop.f32.mrf.mxu0
        %v938 = vpop.f32.mrf.mxu0
        %939 = vdwg.mxu0
        %v940 = vmax.f32 %v911, 0.0
        %v941 = vmax.f32 %v914, 0.0
        %v942 = vmax.f32 %v919, 0.0
        %v943 = vmax.f32 %v922, 0.0
        %v944 = vmax.f32 %v927, 0.0
        %v945 = vmax.f32 %v930, 0.0
        %v946 = vmax.f32 %v935, 0.0
        %v951 = vrot.slane %v943, 2
        %v952 = vrot.slane %v944, 2
        %v953 = vsel %vm640, %v951, %v952
        %v954 = vrot.slane %v945, 2
        %v955 = vsel %vm640, %v952, %v954
        %v956 = vrot.slane %v946, 2
        %v957 = vsel %vm640, %v954, %v956
        %v962 = vmax.f32 %v940, %v953
        %v963 = vmax.f32 %v941, %v955
        %v964 = vmax.f32 %v942, %v957
        %v965 = vmax.f32 %v943, %v956
        %s966 = scalar_lea.vmem [#allocation2], 64
        %967 = vst.msk [vmem:[%s966] sm:$0xff] %vm656, %v962
        %968 = vst.msk [vmem:[%s966 + $0x8] sm:$0xff] %vm656, %v963
        %969 = vst.msk [vmem:[%s966 + $0x10] sm:$0xff] %vm656, %v964
        %970 = vst.msk [vmem:[%s966 + $0x18] sm:$0x3] %vm660, %v965
        %v971 = vld [vmem:[%s420 + $0x98] sm:$0xcc]
        %v972 = vld [vmem:[%s420 + $0xa0] sm:$0xff]
        %v973 = vld [vmem:[%s420 + $0xa8] sm:$0xff]
        %v974 = vld [vmem:[%s420 + $0xb0] sm:$0xff]
        %v975 = vld [vmem:[%s420 + $0xb8] sm:$0xff]
        %v976 = vld [vmem:[%s420 + $0xc0] sm:$0xff]
        %v977 = vld [vmem:[%s420 + $0xc8] sm:$0xff]
        %v985 = vunpack.c.l.b16 %v971
        %v986 = vunpack.c.h.b16 %v971
        %v987 = vunpack.c.l.b16 %v972
        %v988 = vunpack.c.h.b16 %v972
        %v989 = vunpack.c.l.b16 %v973
        %v990 = vunpack.c.h.b16 %v973
        %v991 = vunpack.c.l.b16 %v974
        %v992 = vunpack.c.h.b16 %v974
        %v993 = vunpack.c.l.b16 %v975
        %v994 = vunpack.c.h.b16 %v975
        %v995 = vunpack.c.l.b16 %v976
        %v996 = vunpack.c.h.b16 %v976
        %v997 = vunpack.c.l.b16 %v977
        %v998 = vunpack.c.h.b16 %v977
        %v999 = vpack.c.b16 %v987, %v985
        %v1000 = vpack.c.b16 %v988, %v986
        %v1001 = vpack.c.b16 %v991, %v989
        %v1002 = vpack.c.b16 %v992, %v990
        %v1003 = vpack.c.b16 %v995, %v993
        %v1004 = vpack.c.b16 %v996, %v994
        %v1005 = vpack.c.b16 %v997, %v997
        %v1006 = vpack.c.b16 %v998, %v998
        %v1007 = vrot.slane %v999, 2
        %v1008 = vrot.slane %v1001, 2
        %v1009 = vsel %vm698, %v1007, %v1008
        %v1010 = vrot.slane %v1000, 2
        %v1011 = vrot.slane %v1002, 2
        %v1012 = vsel %vm698, %v1010, %v1011
        %v1013 = vrot.slane %v1003, 2
        %v1014 = vsel %vm698, %v1008, %v1013
        %v1015 = vrot.slane %v1004, 2
        %v1016 = vsel %vm698, %v1011, %v1015
        %v1017 = vrot.slane %v1005, 2
        %v1018 = vsel %vm698, %v1013, %v1017
        %v1019 = vrot.slane %v1006, 2
        %v1020 = vsel %vm698, %v1015, %v1019
        %v1026 = vsel %vm545, %v1012, 0
        %v1029 = vsel %vm545, %v1016, 0
        %v1032 = vsel %vm545, %v1020, 0
        %v1035 = vsel %vm545, %v1019, 0
        %1037 = vmatprep.subr.bf16.mxu0 0
        %1038 = vmatpush1.bf16.msra.mxu0 %v533
        %1039 = vmatprep.subr.bf16.mxu0 0
        %1040 = vmatpush1.bf16.msra.mxu0 %v532
        %1041 = vmatprep.subr.bf16.mxu0 0
        %1042 = vmatpush1.bf16.msra.mxu0 %v531
        %1043 = vmatprep.subr.bf16.mxu0 0
        %1044 = vmatpush1.bf16.msra.mxu0 %v530
        %1045 = vmatprep.subr.bf16.mxu0 0
        %1046 = vmatpush1.bf16.msra.mxu0 %v529
        %1047 = vmatprep.subr.bf16.mxu0 0
        %1048 = vmatpush1.bf16.msra.mxu0 %v528
        %1049 = vmatprep.subr.bf16.mxu0 0
        %1050 = vmatpush1.bf16.msra.mxu0 %v527
        %1051 = vmatprep.subr.bf16.mxu0 0
        %1052 = vmatpush1.bf16.msra.mxu0 %v526
        %1053 = vmatprep.subr.bf16.mxu0 0
        %1054 = vmatpush2.bf16.msra.mxu0 0
        %1055 = vmatprep.subr.bf16.mxu0 0
        %1056 = vmatpush2.bf16.msra.mxu0 0
        %1057 = vmatprep.subr.bf16.mxu0 0
        %1058 = vmatpush2.bf16.msra.mxu0 0
        %1059 = vmatprep.subr.bf16.mxu0 0
        %1060 = vmatpush2.bf16.msra.mxu0 0
        %1061 = vmatprep.subr.bf16.mxu0 0
        %1062 = vmatpush2.bf16.msra.mxu0 0
        %1063 = vmatprep.subr.bf16.mxu0 0
        %1064 = vmatpush2.bf16.msra.mxu0 0
        %1065 = vmatprep.subr.bf16.mxu0 0
        %1066 = vmatpush2.bf16.msra.mxu0 %v563
        %1067 = vmatprep.subr.bf16.mxu0 0
        %1068 = vmatpush2.bf16.msra.mxu0 %v534
        %1069 = vmatprep.mubr.bf16.mxu0 %v1026
        %1070 = vmatmul.mubr.bf16.gmra.mxu0 %v1009
        %v1071 = vpop.f32.mrf.mxu0
        %v1072 = vadd.f32 %v453, %v1071
        %v1073 = vpop.f32.mrf.mxu0
        %v1074 = vpop.f32.mrf.mxu0
        %v1075 = vadd.f32 %v453, %v1074
        %v1076 = vpop.f32.mrf.mxu0
        %1077 = vmatprep.mubr.bf16.mxu0 %v1029
        %1078 = vmatmul.mubr.bf16.gmra.mxu0 %v1014
        %v1079 = vpop.f32.mrf.mxu0
        %v1080 = vadd.f32 %v453, %v1079
        %v1081 = vpop.f32.mrf.mxu0
        %v1082 = vpop.f32.mrf.mxu0
        %v1083 = vadd.f32 %v453, %v1082
        %v1084 = vpop.f32.mrf.mxu0
        %1085 = vmatprep.mubr.bf16.mxu0 %v1032
        %1086 = vmatmul.mubr.bf16.gmra.mxu0 %v1018
        %v1087 = vpop.f32.mrf.mxu0
        %v1088 = vadd.f32 %v453, %v1087
        %v1089 = vpop.f32.mrf.mxu0
        %v1090 = vpop.f32.mrf.mxu0
        %v1091 = vadd.f32 %v453, %v1090
        %v1092 = vpop.f32.mrf.mxu0
        %1093 = vmatprep.mubr.bf16.mxu0 %v1035
        %1094 = vmatmul.mubr.bf16.gmra.mxu0 %v1017
        %v1095 = vpop.f32.mrf.mxu0
        %v1096 = vadd.f32 %v453, %v1095
        %v1097 = vpop.f32.mrf.mxu0
        %v1098 = vpop.f32.mrf.mxu0
        %v1099 = vpop.f32.mrf.mxu0
        %1100 = vdwg.mxu0
        %v1101 = vmax.f32 %v1072, 0.0
        %v1102 = vmax.f32 %v1075, 0.0
        %v1103 = vmax.f32 %v1080, 0.0
        %v1104 = vmax.f32 %v1083, 0.0
        %v1105 = vmax.f32 %v1088, 0.0
        %v1106 = vmax.f32 %v1091, 0.0
        %v1107 = vmax.f32 %v1096, 0.0
        %v1112 = vrot.slane %v1104, 2
        %v1113 = vrot.slane %v1105, 2
        %v1114 = vsel %vm640, %v1112, %v1113
        %v1115 = vrot.slane %v1106, 2
        %v1116 = vsel %vm640, %v1113, %v1115
        %v1117 = vrot.slane %v1107, 2
        %v1118 = vsel %vm640, %v1115, %v1117
        %v1123 = vmax.f32 %v1101, %v1114
        %v1124 = vmax.f32 %v1102, %v1116
        %v1125 = vmax.f32 %v1103, %v1118
        %v1126 = vmax.f32 %v1104, %v1117
        %s1127 = scalar_lea.vmem [#allocation2], 96
        %1128 = vst.msk [vmem:[%s1127] sm:$0xff] %vm656, %v1123
        %1129 = vst.msk [vmem:[%s1127 + $0x8] sm:$0xff] %vm656, %v1124
        %1130 = vst.msk [vmem:[%s1127 + $0x10] sm:$0xff] %vm656, %v1125
        %1131 = vst.msk [vmem:[%s1127 + $0x18] sm:$0x3] %vm660, %v1126
        %v1132 = vld [vmem:[%s420 + $0xd0] sm:$0xff]
        %v1133 = vld [vmem:[%s420 + $0xd8] sm:$0xff]
        %v1134 = vld [vmem:[%s420 + $0xe0] sm:$0xff]
        %v1135 = vld [vmem:[%s420 + $0xe8] sm:$0xff]
        %v1136 = vld [vmem:[%s420 + $0xf0] sm:$0xff]
        %v1137 = vld [vmem:[%s420 + $0xf8] sm:$0xff]
        %v1138 = vld [vmem:[%s420 + $0x100] sm:$0x33]
        %v1146 = vunpack.c.l.b16 %v1132
        %v1147 = vunpack.c.h.b16 %v1132
        %v1148 = vunpack.c.l.b16 %v1133
        %v1149 = vunpack.c.h.b16 %v1133
        %v1150 = vunpack.c.l.b16 %v1134
        %v1151 = vunpack.c.h.b16 %v1134
        %v1152 = vunpack.c.l.b16 %v1135
        %v1153 = vunpack.c.h.b16 %v1135
        %v1154 = vunpack.c.l.b16 %v1136
        %v1155 = vunpack.c.h.b16 %v1136
        %v1156 = vunpack.c.l.b16 %v1137
        %v1157 = vunpack.c.h.b16 %v1137
        %v1158 = vunpack.c.l.b16 %v1138
        %v1159 = vunpack.c.h.b16 %v1138
        %v1160 = vpack.c.b16 %v1148, %v1146
        %v1161 = vpack.c.b16 %v1149, %v1147
        %v1162 = vpack.c.b16 %v1152, %v1150
        %v1163 = vpack.c.b16 %v1153, %v1151
        %v1164 = vpack.c.b16 %v1156, %v1154
        %v1165 = vpack.c.b16 %v1157, %v1155
        %v1166 = vpack.c.b16 %v1158, %v1158
        %v1167 = vpack.c.b16 %v1159, %v1159
        %v1173 = vsel %vm545, %v1161, 0
        %v1176 = vsel %vm545, %v1163, 0
        %v1179 = vsel %vm545, %v1165, 0
        %v1182 = vsel %vm545, %v1167, 0
        %1184 = vmatprep.subr.bf16.mxu0 0
        %1185 = vmatpush1.bf16.msra.mxu0 %v533
        %1186 = vmatprep.subr.bf16.mxu0 0
        %1187 = vmatpush1.bf16.msra.mxu0 %v532
        %1188 = vmatprep.subr.bf16.mxu0 0
        %1189 = vmatpush1.bf16.msra.mxu0 %v531
        %1190 = vmatprep.subr.bf16.mxu0 0
        %1191 = vmatpush1.bf16.msra.mxu0 %v530
        %1192 = vmatprep.subr.bf16.mxu0 0
        %1193 = vmatpush1.bf16.msra.mxu0 %v529
        %1194 = vmatprep.subr.bf16.mxu0 0
        %1195 = vmatpush1.bf16.msra.mxu0 %v528
        %1196 = vmatprep.subr.bf16.mxu0 0
        %1197 = vmatpush1.bf16.msra.mxu0 %v527
        %1198 = vmatprep.subr.bf16.mxu0 0
        %1199 = vmatpush1.bf16.msra.mxu0 %v526
        %1200 = vmatprep.subr.bf16.mxu0 0
        %1201 = vmatpush2.bf16.msra.mxu0 0
        %1202 = vmatprep.subr.bf16.mxu0 0
        %1203 = vmatpush2.bf16.msra.mxu0 0
        %1204 = vmatprep.subr.bf16.mxu0 0
        %1205 = vmatpush2.bf16.msra.mxu0 0
        %1206 = vmatprep.subr.bf16.mxu0 0
        %1207 = vmatpush2.bf16.msra.mxu0 0
        %1208 = vmatprep.subr.bf16.mxu0 0
        %1209 = vmatpush2.bf16.msra.mxu0 0
        %1210 = vmatprep.subr.bf16.mxu0 0
        %1211 = vmatpush2.bf16.msra.mxu0 0
        %1212 = vmatprep.subr.bf16.mxu0 0
        %1213 = vmatpush2.bf16.msra.mxu0 %v563
        %1214 = vmatprep.subr.bf16.mxu0 0
        %1215 = vmatpush2.bf16.msra.mxu0 %v534
        %1216 = vmatprep.mubr.bf16.mxu0 %v1173
        %1217 = vmatmul.mubr.bf16.gmra.mxu0 %v1160
        %v1218 = vpop.f32.mrf.mxu0
        %v1219 = vadd.f32 %v453, %v1218
        %v1220 = vpop.f32.mrf.mxu0
        %v1221 = vpop.f32.mrf.mxu0
        %v1222 = vadd.f32 %v453, %v1221
        %v1223 = vpop.f32.mrf.mxu0
        %1224 = vmatprep.mubr.bf16.mxu0 %v1176
        %1225 = vmatmul.mubr.bf16.gmra.mxu0 %v1162
        %v1226 = vpop.f32.mrf.mxu0
        %v1227 = vadd.f32 %v453, %v1226
        %v1228 = vpop.f32.mrf.mxu0
        %v1229 = vpop.f32.mrf.mxu0
        %v1230 = vadd.f32 %v453, %v1229
        %v1231 = vpop.f32.mrf.mxu0
        %1232 = vmatprep.mubr.bf16.mxu0 %v1179
        %1233 = vmatmul.mubr.bf16.gmra.mxu0 %v1164
        %v1234 = vpop.f32.mrf.mxu0
        %v1235 = vadd.f32 %v453, %v1234
        %v1236 = vpop.f32.mrf.mxu0
        %v1237 = vpop.f32.mrf.mxu0
        %v1238 = vadd.f32 %v453, %v1237
        %v1239 = vpop.f32.mrf.mxu0
        %1240 = vmatprep.mubr.bf16.mxu0 %v1182
        %1241 = vmatmul.mubr.bf16.gmra.mxu0 %v1166
        %v1242 = vpop.f32.mrf.mxu0
        %v1243 = vadd.f32 %v453, %v1242
        %v1244 = vpop.f32.mrf.mxu0
        %v1245 = vpop.f32.mrf.mxu0
        %v1246 = vpop.f32.mrf.mxu0
        %1247 = vdwg.mxu0
        %v1248 = vmax.f32 %v1219, 0.0
        %v1249 = vmax.f32 %v1222, 0.0
        %v1250 = vmax.f32 %v1227, 0.0
        %v1251 = vmax.f32 %v1230, 0.0
        %v1252 = vmax.f32 %v1235, 0.0
        %v1253 = vmax.f32 %v1238, 0.0
        %v1254 = vmax.f32 %v1243, 0.0
        %v1259 = vrot.slane %v1251, 2
        %v1260 = vrot.slane %v1252, 2
        %v1261 = vsel %vm640, %v1259, %v1260
        %v1262 = vrot.slane %v1253, 2
        %v1263 = vsel %vm640, %v1260, %v1262
        %v1264 = vrot.slane %v1254, 2
        %v1265 = vsel %vm640, %v1262, %v1264
        %v1270 = vmax.f32 %v1248, %v1261
        %v1271 = vmax.f32 %v1249, %v1263
        %v1272 = vmax.f32 %v1250, %v1265
        %v1273 = vmax.f32 %v1251, %v1264
        %s1274 = scalar_lea.vmem [#allocation2], 128
        %1275 = vst.msk [vmem:[%s1274] sm:$0xff] %vm656, %v1270
        %1276 = vst.msk [vmem:[%s1274 + $0x8] sm:$0xff] %vm656, %v1271
        %1277 = vst.msk [vmem:[%s1274 + $0x10] sm:$0xff] %vm656, %v1272
        %1278 = vst.msk [vmem:[%s1274 + $0x18] sm:$0x3] %vm660, %v1273
        %v1279 = vld [vmem:[%s420 + $0x100] sm:$0xcc]
        %v1280 = vld [vmem:[%s420 + $0x108] sm:$0xff]
        %v1281 = vld [vmem:[%s420 + $0x110] sm:$0xff]
        %v1282 = vld [vmem:[%s420 + $0x118] sm:$0xff]
        %v1283 = vld [vmem:[%s420 + $0x120] sm:$0xff]
        %v1284 = vld [vmem:[%s420 + $0x128] sm:$0xff]
        %v1285 = vld [vmem:[%s420 + $0x130] sm:$0xff]
        %v1293 = vunpack.c.l.b16 %v1279
        %v1294 = vunpack.c.h.b16 %v1279
        %v1295 = vunpack.c.l.b16 %v1280
        %v1296 = vunpack.c.h.b16 %v1280
        %v1297 = vunpack.c.l.b16 %v1281
        %v1298 = vunpack.c.h.b16 %v1281
        %v1299 = vunpack.c.l.b16 %v1282
        %v1300 = vunpack.c.h.b16 %v1282
        %v1301 = vunpack.c.l.b16 %v1283
        %v1302 = vunpack.c.h.b16 %v1283
        %v1303 = vunpack.c.l.b16 %v1284
        %v1304 = vunpack.c.h.b16 %v1284
        %v1305 = vunpack.c.l.b16 %v1285
        %v1306 = vunpack.c.h.b16 %v1285
        %v1307 = vpack.c.b16 %v1295, %v1293
        %v1308 = vpack.c.b16 %v1296, %v1294
        %v1309 = vpack.c.b16 %v1299, %v1297
        %v1310 = vpack.c.b16 %v1300, %v1298
        %v1311 = vpack.c.b16 %v1303, %v1301
        %v1312 = vpack.c.b16 %v1304, %v1302
        %v1313 = vpack.c.b16 %v1305, %v1305
        %v1314 = vpack.c.b16 %v1306, %v1306
        %v1315 = vrot.slane %v1307, 2
        %v1316 = vrot.slane %v1309, 2
        %v1317 = vsel %vm698, %v1315, %v1316
        %v1318 = vrot.slane %v1308, 2
        %v1319 = vrot.slane %v1310, 2
        %v1320 = vsel %vm698, %v1318, %v1319
        %v1321 = vrot.slane %v1311, 2
        %v1322 = vsel %vm698, %v1316, %v1321
        %v1323 = vrot.slane %v1312, 2
        %v1324 = vsel %vm698, %v1319, %v1323
        %v1325 = vrot.slane %v1313, 2
        %v1326 = vsel %vm698, %v1321, %v1325
        %v1327 = vrot.slane %v1314, 2
        %v1328 = vsel %vm698, %v1323, %v1327
        %v1334 = vsel %vm545, %v1320, 0
        %v1337 = vsel %vm545, %v1324, 0
        %v1340 = vsel %vm545, %v1328, 0
        %v1343 = vsel %vm545, %v1327, 0
        %1345 = vmatprep.subr.bf16.mxu0 0
        %1346 = vmatpush1.bf16.msra.mxu0 %v533
        %1347 = vmatprep.subr.bf16.mxu0 0
        %1348 = vmatpush1.bf16.msra.mxu0 %v532
        %1349 = vmatprep.subr.bf16.mxu0 0
        %1350 = vmatpush1.bf16.msra.mxu0 %v531
        %1351 = vmatprep.subr.bf16.mxu0 0
        %1352 = vmatpush1.bf16.msra.mxu0 %v530
        %1353 = vmatprep.subr.bf16.mxu0 0
        %1354 = vmatpush1.bf16.msra.mxu0 %v529
        %1355 = vmatprep.subr.bf16.mxu0 0
        %1356 = vmatpush1.bf16.msra.mxu0 %v528
        %1357 = vmatprep.subr.bf16.mxu0 0
        %1358 = vmatpush1.bf16.msra.mxu0 %v527
        %1359 = vmatprep.subr.bf16.mxu0 0
        %1360 = vmatpush1.bf16.msra.mxu0 %v526
        %1361 = vmatprep.subr.bf16.mxu0 0
        %1362 = vmatpush2.bf16.msra.mxu0 0
        %1363 = vmatprep.subr.bf16.mxu0 0
        %1364 = vmatpush2.bf16.msra.mxu0 0
        %1365 = vmatprep.subr.bf16.mxu0 0
        %1366 = vmatpush2.bf16.msra.mxu0 0
        %1367 = vmatprep.subr.bf16.mxu0 0
        %1368 = vmatpush2.bf16.msra.mxu0 0
        %1369 = vmatprep.subr.bf16.mxu0 0
        %1370 = vmatpush2.bf16.msra.mxu0 0
        %1371 = vmatprep.subr.bf16.mxu0 0
        %1372 = vmatpush2.bf16.msra.mxu0 0
        %1373 = vmatprep.subr.bf16.mxu0 0
        %1374 = vmatpush2.bf16.msra.mxu0 %v563
        %1375 = vmatprep.subr.bf16.mxu0 0
        %1376 = vmatpush2.bf16.msra.mxu0 %v534
        %1377 = vmatprep.mubr.bf16.mxu0 %v1334
        %1378 = vmatmul.mubr.bf16.gmra.mxu0 %v1317
        %v1379 = vpop.f32.mrf.mxu0
        %v1380 = vadd.f32 %v453, %v1379
        %v1381 = vpop.f32.mrf.mxu0
        %v1382 = vpop.f32.mrf.mxu0
        %v1383 = vadd.f32 %v453, %v1382
        %v1384 = vpop.f32.mrf.mxu0
        %1385 = vmatprep.mubr.bf16.mxu0 %v1337
        %1386 = vmatmul.mubr.bf16.gmra.mxu0 %v1322
        %v1387 = vpop.f32.mrf.mxu0
        %v1388 = vadd.f32 %v453, %v1387
        %v1389 = vpop.f32.mrf.mxu0
        %v1390 = vpop.f32.mrf.mxu0
        %v1391 = vadd.f32 %v453, %v1390
        %v1392 = vpop.f32.mrf.mxu0
        %1393 = vmatprep.mubr.bf16.mxu0 %v1340
        %1394 = vmatmul.mubr.bf16.gmra.mxu0 %v1326
        %v1395 = vpop.f32.mrf.mxu0
        %v1396 = vadd.f32 %v453, %v1395
        %v1397 = vpop.f32.mrf.mxu0
        %v1398 = vpop.f32.mrf.mxu0
        %v1399 = vadd.f32 %v453, %v1398
        %v1400 = vpop.f32.mrf.mxu0
        %1401 = vmatprep.mubr.bf16.mxu0 %v1343
        %1402 = vmatmul.mubr.bf16.gmra.mxu0 %v1325
        %v1403 = vpop.f32.mrf.mxu0
        %v1404 = vadd.f32 %v453, %v1403
        %v1405 = vpop.f32.mrf.mxu0
        %v1406 = vpop.f32.mrf.mxu0
        %v1407 = vpop.f32.mrf.mxu0
        %1408 = vdwg.mxu0
        %v1409 = vmax.f32 %v1380, 0.0
        %v1410 = vmax.f32 %v1383, 0.0
        %v1411 = vmax.f32 %v1388, 0.0
        %v1412 = vmax.f32 %v1391, 0.0
        %v1413 = vmax.f32 %v1396, 0.0
        %v1414 = vmax.f32 %v1399, 0.0
        %v1415 = vmax.f32 %v1404, 0.0
        %v1420 = vrot.slane %v1412, 2
        %v1421 = vrot.slane %v1413, 2
        %v1422 = vsel %vm640, %v1420, %v1421
        %v1423 = vrot.slane %v1414, 2
        %v1424 = vsel %vm640, %v1421, %v1423
        %v1425 = vrot.slane %v1415, 2
        %v1426 = vsel %vm640, %v1423, %v1425
        %v1431 = vmax.f32 %v1409, %v1422
        %v1432 = vmax.f32 %v1410, %v1424
        %v1433 = vmax.f32 %v1411, %v1426
        %v1434 = vmax.f32 %v1412, %v1425
        %s1435 = scalar_lea.vmem [#allocation2], 160
        %1436 = vst.msk [vmem:[%s1435] sm:$0xff] %vm656, %v1431
        %1437 = vst.msk [vmem:[%s1435 + $0x8] sm:$0xff] %vm656, %v1432
        %1438 = vst.msk [vmem:[%s1435 + $0x10] sm:$0xff] %vm656, %v1433
        %1439 = vst.msk [vmem:[%s1435 + $0x18] sm:$0x3] %vm660, %v1434
        %v1440 = vld [vmem:[%s420 + $0x138] sm:$0xff]
        %v1441 = vld [vmem:[%s420 + $0x140] sm:$0xff]
        %v1442 = vld [vmem:[%s420 + $0x148] sm:$0xff]
        %v1443 = vld [vmem:[%s420 + $0x150] sm:$0xff]
        %v1444 = vld [vmem:[%s420 + $0x158] sm:$0xff]
        %v1445 = vld [vmem:[%s420 + $0x160] sm:$0xff]
        %v1446 = vld [vmem:[%s420 + $0x168] sm:$0x33]
        %v1454 = vunpack.c.l.b16 %v1440
        %v1455 = vunpack.c.h.b16 %v1440
        %v1456 = vunpack.c.l.b16 %v1441
        %v1457 = vunpack.c.h.b16 %v1441
        %v1458 = vunpack.c.l.b16 %v1442
        %v1459 = vunpack.c.h.b16 %v1442
        %v1460 = vunpack.c.l.b16 %v1443
        %v1461 = vunpack.c.h.b16 %v1443
        %v1462 = vunpack.c.l.b16 %v1444
        %v1463 = vunpack.c.h.b16 %v1444
        %v1464 = vunpack.c.l.b16 %v1445
        %v1465 = vunpack.c.h.b16 %v1445
        %v1466 = vunpack.c.l.b16 %v1446
        %v1467 = vunpack.c.h.b16 %v1446
        %v1468 = vpack.c.b16 %v1456, %v1454
        %v1469 = vpack.c.b16 %v1457, %v1455
        %v1470 = vpack.c.b16 %v1460, %v1458
        %v1471 = vpack.c.b16 %v1461, %v1459
        %v1472 = vpack.c.b16 %v1464, %v1462
        %v1473 = vpack.c.b16 %v1465, %v1463
        %v1474 = vpack.c.b16 %v1466, %v1466
        %v1475 = vpack.c.b16 %v1467, %v1467
        %v1481 = vsel %vm545, %v1469, 0
        %v1484 = vsel %vm545, %v1471, 0
        %v1487 = vsel %vm545, %v1473, 0
        %v1490 = vsel %vm545, %v1475, 0
        %1492 = vmatprep.subr.bf16.mxu0 0
        %1493 = vmatpush1.bf16.msra.mxu0 %v533
        %1494 = vmatprep.subr.bf16.mxu0 0
        %1495 = vmatpush1.bf16.msra.mxu0 %v532
        %1496 = vmatprep.subr.bf16.mxu0 0
        %1497 = vmatpush1.bf16.msra.mxu0 %v531
        %1498 = vmatprep.subr.bf16.mxu0 0
        %1499 = vmatpush1.bf16.msra.mxu0 %v530
        %1500 = vmatprep.subr.bf16.mxu0 0
        %1501 = vmatpush1.bf16.msra.mxu0 %v529
        %1502 = vmatprep.subr.bf16.mxu0 0
        %1503 = vmatpush1.bf16.msra.mxu0 %v528
        %1504 = vmatprep.subr.bf16.mxu0 0
        %1505 = vmatpush1.bf16.msra.mxu0 %v527
        %1506 = vmatprep.subr.bf16.mxu0 0
        %1507 = vmatpush1.bf16.msra.mxu0 %v526
        %1508 = vmatprep.subr.bf16.mxu0 0
        %1509 = vmatpush2.bf16.msra.mxu0 0
        %1510 = vmatprep.subr.bf16.mxu0 0
        %1511 = vmatpush2.bf16.msra.mxu0 0
        %1512 = vmatprep.subr.bf16.mxu0 0
        %1513 = vmatpush2.bf16.msra.mxu0 0
        %1514 = vmatprep.subr.bf16.mxu0 0
        %1515 = vmatpush2.bf16.msra.mxu0 0
        %1516 = vmatprep.subr.bf16.mxu0 0
        %1517 = vmatpush2.bf16.msra.mxu0 0
        %1518 = vmatprep.subr.bf16.mxu0 0
        %1519 = vmatpush2.bf16.msra.mxu0 0
        %1520 = vmatprep.subr.bf16.mxu0 0
        %1521 = vmatpush2.bf16.msra.mxu0 %v563
        %1522 = vmatprep.subr.bf16.mxu0 0
        %1523 = vmatpush2.bf16.msra.mxu0 %v534
        %1524 = vmatprep.mubr.bf16.mxu0 %v1481
        %1525 = vmatmul.mubr.bf16.gmra.mxu0 %v1468
        %v1526 = vpop.f32.mrf.mxu0
        %v1527 = vadd.f32 %v453, %v1526
        %v1528 = vpop.f32.mrf.mxu0
        %v1529 = vpop.f32.mrf.mxu0
        %v1530 = vadd.f32 %v453, %v1529
        %v1531 = vpop.f32.mrf.mxu0
        %1532 = vmatprep.mubr.bf16.mxu0 %v1484
        %1533 = vmatmul.mubr.bf16.gmra.mxu0 %v1470
        %v1534 = vpop.f32.mrf.mxu0
        %v1535 = vadd.f32 %v453, %v1534
        %v1536 = vpop.f32.mrf.mxu0
        %v1537 = vpop.f32.mrf.mxu0
        %v1538 = vadd.f32 %v453, %v1537
        %v1539 = vpop.f32.mrf.mxu0
        %1540 = vmatprep.mubr.bf16.mxu0 %v1487
        %1541 = vmatmul.mubr.bf16.gmra.mxu0 %v1472
        %v1542 = vpop.f32.mrf.mxu0
        %v1543 = vadd.f32 %v453, %v1542
        %v1544 = vpop.f32.mrf.mxu0
        %v1545 = vpop.f32.mrf.mxu0
        %v1546 = vadd.f32 %v453, %v1545
        %v1547 = vpop.f32.mrf.mxu0
        %1548 = vmatprep.mubr.bf16.mxu0 %v1490
        %1549 = vmatmul.mubr.bf16.gmra.mxu0 %v1474
        %v1550 = vpop.f32.mrf.mxu0
        %v1551 = vadd.f32 %v453, %v1550
        %v1552 = vpop.f32.mrf.mxu0
        %v1553 = vpop.f32.mrf.mxu0
        %v1554 = vpop.f32.mrf.mxu0
        %1555 = vdwg.mxu0
        %v1556 = vmax.f32 %v1527, 0.0
        %v1557 = vmax.f32 %v1530, 0.0
        %v1558 = vmax.f32 %v1535, 0.0
        %v1559 = vmax.f32 %v1538, 0.0
        %v1560 = vmax.f32 %v1543, 0.0
        %v1561 = vmax.f32 %v1546, 0.0
        %v1562 = vmax.f32 %v1551, 0.0
        %v1567 = vrot.slane %v1559, 2
        %v1568 = vrot.slane %v1560, 2
        %v1569 = vsel %vm640, %v1567, %v1568
        %v1570 = vrot.slane %v1561, 2
        %v1571 = vsel %vm640, %v1568, %v1570
        %v1572 = vrot.slane %v1562, 2
        %v1573 = vsel %vm640, %v1570, %v1572
        %v1578 = vmax.f32 %v1556, %v1569
        %v1579 = vmax.f32 %v1557, %v1571
        %v1580 = vmax.f32 %v1558, %v1573
        %v1581 = vmax.f32 %v1559, %v1572
        %s1582 = scalar_lea.vmem [#allocation2], 192
        %1583 = vst.msk [vmem:[%s1582] sm:$0xff] %vm656, %v1578
        %1584 = vst.msk [vmem:[%s1582 + $0x8] sm:$0xff] %vm656, %v1579
        %1585 = vst.msk [vmem:[%s1582 + $0x10] sm:$0xff] %vm656, %v1580
        %1586 = vst.msk [vmem:[%s1582 + $0x18] sm:$0x3] %vm660, %v1581
        %v1587 = vld [vmem:[%s420 + $0x168] sm:$0xcc]
        %v1588 = vld [vmem:[%s420 + $0x170] sm:$0xff]
        %v1589 = vld [vmem:[%s420 + $0x178] sm:$0xff]
        %v1590 = vld [vmem:[%s420 + $0x180] sm:$0xff]
        %v1591 = vld [vmem:[%s420 + $0x188] sm:$0xff]
        %v1592 = vld [vmem:[%s420 + $0x190] sm:$0xff]
        %v1593 = vld [vmem:[%s420 + $0x198] sm:$0xff]
        %v1601 = vunpack.c.l.b16 %v1587
        %v1602 = vunpack.c.h.b16 %v1587
        %v1603 = vunpack.c.l.b16 %v1588
        %v1604 = vunpack.c.h.b16 %v1588
        %v1605 = vunpack.c.l.b16 %v1589
        %v1606 = vunpack.c.h.b16 %v1589
        %v1607 = vunpack.c.l.b16 %v1590
        %v1608 = vunpack.c.h.b16 %v1590
        %v1609 = vunpack.c.l.b16 %v1591
        %v1610 = vunpack.c.h.b16 %v1591
        %v1611 = vunpack.c.l.b16 %v1592
        %v1612 = vunpack.c.h.b16 %v1592
        %v1613 = vunpack.c.l.b16 %v1593
        %v1614 = vunpack.c.h.b16 %v1593
        %v1615 = vpack.c.b16 %v1603, %v1601
        %v1616 = vpack.c.b16 %v1604, %v1602
        %v1617 = vpack.c.b16 %v1607, %v1605
        %v1618 = vpack.c.b16 %v1608, %v1606
        %v1619 = vpack.c.b16 %v1611, %v1609
        %v1620 = vpack.c.b16 %v1612, %v1610
        %v1621 = vpack.c.b16 %v1613, %v1613
        %v1622 = vpack.c.b16 %v1614, %v1614
        %v1623 = vrot.slane %v1615, 2
        %v1624 = vrot.slane %v1617, 2
        %v1625 = vsel %vm698, %v1623, %v1624
        %v1626 = vrot.slane %v1616, 2
        %v1627 = vrot.slane %v1618, 2
        %v1628 = vsel %vm698, %v1626, %v1627
        %v1629 = vrot.slane %v1619, 2
        %v1630 = vsel %vm698, %v1624, %v1629
        %v1631 = vrot.slane %v1620, 2
        %v1632 = vsel %vm698, %v1627, %v1631
        %v1633 = vrot.slane %v1621, 2
        %v1634 = vsel %vm698, %v1629, %v1633
        %v1635 = vrot.slane %v1622, 2
        %v1636 = vsel %vm698, %v1631, %v1635
        %v1642 = vsel %vm545, %v1628, 0
        %v1645 = vsel %vm545, %v1632, 0
        %v1648 = vsel %vm545, %v1636, 0
        %v1651 = vsel %vm545, %v1635, 0
        %1653 = vmatprep.subr.bf16.mxu0 0
        %1654 = vmatpush1.bf16.msra.mxu0 %v533
        %1655 = vmatprep.subr.bf16.mxu0 0
        %1656 = vmatpush1.bf16.msra.mxu0 %v532
        %1657 = vmatprep.subr.bf16.mxu0 0
        %1658 = vmatpush1.bf16.msra.mxu0 %v531
        %1659 = vmatprep.subr.bf16.mxu0 0
        %1660 = vmatpush1.bf16.msra.mxu0 %v530
        %1661 = vmatprep.subr.bf16.mxu0 0
        %1662 = vmatpush1.bf16.msra.mxu0 %v529
        %1663 = vmatprep.subr.bf16.mxu0 0
        %1664 = vmatpush1.bf16.msra.mxu0 %v528
        %1665 = vmatprep.subr.bf16.mxu0 0
        %1666 = vmatpush1.bf16.msra.mxu0 %v527
        %1667 = vmatprep.subr.bf16.mxu0 0
        %1668 = vmatpush1.bf16.msra.mxu0 %v526
        %1669 = vmatprep.subr.bf16.mxu0 0
        %1670 = vmatpush2.bf16.msra.mxu0 0
        %1671 = vmatprep.subr.bf16.mxu0 0
        %1672 = vmatpush2.bf16.msra.mxu0 0
        %1673 = vmatprep.subr.bf16.mxu0 0
        %1674 = vmatpush2.bf16.msra.mxu0 0
        %1675 = vmatprep.subr.bf16.mxu0 0
        %1676 = vmatpush2.bf16.msra.mxu0 0
        %1677 = vmatprep.subr.bf16.mxu0 0
        %1678 = vmatpush2.bf16.msra.mxu0 0
        %1679 = vmatprep.subr.bf16.mxu0 0
        %1680 = vmatpush2.bf16.msra.mxu0 0
        %1681 = vmatprep.subr.bf16.mxu0 0
        %1682 = vmatpush2.bf16.msra.mxu0 %v563
        %1683 = vmatprep.subr.bf16.mxu0 0
        %1684 = vmatpush2.bf16.msra.mxu0 %v534
        %1685 = vmatprep.mubr.bf16.mxu0 %v1642
        %1686 = vmatmul.mubr.bf16.gmra.mxu0 %v1625
        %v1687 = vpop.f32.mrf.mxu0
        %v1688 = vadd.f32 %v453, %v1687
        %v1689 = vpop.f32.mrf.mxu0
        %v1690 = vpop.f32.mrf.mxu0
        %v1691 = vadd.f32 %v453, %v1690
        %v1692 = vpop.f32.mrf.mxu0
        %1693 = vmatprep.mubr.bf16.mxu0 %v1645
        %1694 = vmatmul.mubr.bf16.gmra.mxu0 %v1630
        %v1695 = vpop.f32.mrf.mxu0
        %v1696 = vadd.f32 %v453, %v1695
        %v1697 = vpop.f32.mrf.mxu0
        %v1698 = vpop.f32.mrf.mxu0
        %v1699 = vadd.f32 %v453, %v1698
        %v1700 = vpop.f32.mrf.mxu0
        %1701 = vmatprep.mubr.bf16.mxu0 %v1648
        %1702 = vmatmul.mubr.bf16.gmra.mxu0 %v1634
        %v1703 = vpop.f32.mrf.mxu0
        %v1704 = vadd.f32 %v453, %v1703
        %v1705 = vpop.f32.mrf.mxu0
        %v1706 = vpop.f32.mrf.mxu0
        %v1707 = vadd.f32 %v453, %v1706
        %v1708 = vpop.f32.mrf.mxu0
        %1709 = vmatprep.mubr.bf16.mxu0 %v1651
        %1710 = vmatmul.mubr.bf16.gmra.mxu0 %v1633
        %v1711 = vpop.f32.mrf.mxu0
        %v1712 = vadd.f32 %v453, %v1711
        %v1713 = vpop.f32.mrf.mxu0
        %v1714 = vpop.f32.mrf.mxu0
        %v1715 = vpop.f32.mrf.mxu0
        %1716 = vdwg.mxu0
        %v1717 = vmax.f32 %v1688, 0.0
        %v1718 = vmax.f32 %v1691, 0.0
        %v1719 = vmax.f32 %v1696, 0.0
        %v1720 = vmax.f32 %v1699, 0.0
        %v1721 = vmax.f32 %v1704, 0.0
        %v1722 = vmax.f32 %v1707, 0.0
        %v1723 = vmax.f32 %v1712, 0.0
        %v1728 = vrot.slane %v1720, 2
        %v1729 = vrot.slane %v1721, 2
        %v1730 = vsel %vm640, %v1728, %v1729
        %v1731 = vrot.slane %v1722, 2
        %v1732 = vsel %vm640, %v1729, %v1731
        %v1733 = vrot.slane %v1723, 2
        %v1734 = vsel %vm640, %v1731, %v1733
        %v1739 = vmax.f32 %v1717, %v1730
        %v1740 = vmax.f32 %v1718, %v1732
        %v1741 = vmax.f32 %v1719, %v1734
        %v1742 = vmax.f32 %v1720, %v1733
        %s1743 = scalar_lea.vmem [#allocation2], 224
        %1744 = vst.msk [vmem:[%s1743] sm:$0xff] %vm656, %v1739
        %1745 = vst.msk [vmem:[%s1743 + $0x8] sm:$0xff] %vm656, %v1740
        %1746 = vst.msk [vmem:[%s1743 + $0x10] sm:$0xff] %vm656, %v1741
        %1747 = vst.msk [vmem:[%s1743 + $0x18] sm:$0x3] %vm660, %v1742
        %v1748 = vld [vmem:[%s420 + $0x1a0] sm:$0xff]
        %v1749 = vld [vmem:[%s420 + $0x1a8] sm:$0xff]
        %v1750 = vld [vmem:[%s420 + $0x1b0] sm:$0xff]
        %v1751 = vld [vmem:[%s420 + $0x1b8] sm:$0xff]
        %v1752 = vld [vmem:[%s420 + $0x1c0] sm:$0xff]
        %v1753 = vld [vmem:[%s420 + $0x1c8] sm:$0xff]
        %v1754 = vld [vmem:[%s420 + $0x1d0] sm:$0x33]
        %v1762 = vunpack.c.l.b16 %v1748
        %v1763 = vunpack.c.h.b16 %v1748
        %v1764 = vunpack.c.l.b16 %v1749
        %v1765 = vunpack.c.h.b16 %v1749
        %v1766 = vunpack.c.l.b16 %v1750
        %v1767 = vunpack.c.h.b16 %v1750
        %v1768 = vunpack.c.l.b16 %v1751
        %v1769 = vunpack.c.h.b16 %v1751
        %v1770 = vunpack.c.l.b16 %v1752
        %v1771 = vunpack.c.h.b16 %v1752
        %v1772 = vunpack.c.l.b16 %v1753
        %v1773 = vunpack.c.h.b16 %v1753
        %v1774 = vunpack.c.l.b16 %v1754
        %v1775 = vunpack.c.h.b16 %v1754
        %v1776 = vpack.c.b16 %v1764, %v1762
        %v1777 = vpack.c.b16 %v1765, %v1763
        %v1778 = vpack.c.b16 %v1768, %v1766
        %v1779 = vpack.c.b16 %v1769, %v1767
        %v1780 = vpack.c.b16 %v1772, %v1770
        %v1781 = vpack.c.b16 %v1773, %v1771
        %v1782 = vpack.c.b16 %v1774, %v1774
        %v1783 = vpack.c.b16 %v1775, %v1775
        %v1789 = vsel %vm545, %v1777, 0
        %v1792 = vsel %vm545, %v1779, 0
        %v1795 = vsel %vm545, %v1781, 0
        %v1798 = vsel %vm545, %v1783, 0
        %1800 = vmatprep.subr.bf16.mxu0 0
        %1801 = vmatpush1.bf16.msra.mxu0 %v533
        %1802 = vmatprep.subr.bf16.mxu0 0
        %1803 = vmatpush1.bf16.msra.mxu0 %v532
        %1804 = vmatprep.subr.bf16.mxu0 0
        %1805 = vmatpush1.bf16.msra.mxu0 %v531
        %1806 = vmatprep.subr.bf16.mxu0 0
        %1807 = vmatpush1.bf16.msra.mxu0 %v530
        %1808 = vmatprep.subr.bf16.mxu0 0
        %1809 = vmatpush1.bf16.msra.mxu0 %v529
        %1810 = vmatprep.subr.bf16.mxu0 0
        %1811 = vmatpush1.bf16.msra.mxu0 %v528
        %1812 = vmatprep.subr.bf16.mxu0 0
        %1813 = vmatpush1.bf16.msra.mxu0 %v527
        %1814 = vmatprep.subr.bf16.mxu0 0
        %1815 = vmatpush1.bf16.msra.mxu0 %v526
        %1816 = vmatprep.subr.bf16.mxu0 0
        %1817 = vmatpush2.bf16.msra.mxu0 0
        %1818 = vmatprep.subr.bf16.mxu0 0
        %1819 = vmatpush2.bf16.msra.mxu0 0
        %1820 = vmatprep.subr.bf16.mxu0 0
        %1821 = vmatpush2.bf16.msra.mxu0 0
        %1822 = vmatprep.subr.bf16.mxu0 0
        %1823 = vmatpush2.bf16.msra.mxu0 0
        %1824 = vmatprep.subr.bf16.mxu0 0
        %1825 = vmatpush2.bf16.msra.mxu0 0
        %1826 = vmatprep.subr.bf16.mxu0 0
        %1827 = vmatpush2.bf16.msra.mxu0 0
        %1828 = vmatprep.subr.bf16.mxu0 0
        %1829 = vmatpush2.bf16.msra.mxu0 %v563
        %1830 = vmatprep.subr.bf16.mxu0 0
        %1831 = vmatpush2.bf16.msra.mxu0 %v534
        %1832 = vmatprep.mubr.bf16.mxu0 %v1789
        %1833 = vmatmul.mubr.bf16.gmra.mxu0 %v1776
        %v1834 = vpop.f32.mrf.mxu0
        %v1835 = vadd.f32 %v453, %v1834
        %v1836 = vpop.f32.mrf.mxu0
        %v1837 = vpop.f32.mrf.mxu0
        %v1838 = vadd.f32 %v453, %v1837
        %v1839 = vpop.f32.mrf.mxu0
        %1840 = vmatprep.mubr.bf16.mxu0 %v1792
        %1841 = vmatmul.mubr.bf16.gmra.mxu0 %v1778
        %v1842 = vpop.f32.mrf.mxu0
        %v1843 = vadd.f32 %v453, %v1842
        %v1844 = vpop.f32.mrf.mxu0
        %v1845 = vpop.f32.mrf.mxu0
        %v1846 = vadd.f32 %v453, %v1845
        %v1847 = vpop.f32.mrf.mxu0
        %1848 = vmatprep.mubr.bf16.mxu0 %v1795
        %1849 = vmatmul.mubr.bf16.gmra.mxu0 %v1780
        %v1850 = vpop.f32.mrf.mxu0
        %v1851 = vadd.f32 %v453, %v1850
        %v1852 = vpop.f32.mrf.mxu0
        %v1853 = vpop.f32.mrf.mxu0
        %v1854 = vadd.f32 %v453, %v1853
        %v1855 = vpop.f32.mrf.mxu0
        %1856 = vmatprep.mubr.bf16.mxu0 %v1798
        %1857 = vmatmul.mubr.bf16.gmra.mxu0 %v1782
        %v1858 = vpop.f32.mrf.mxu0
        %v1859 = vadd.f32 %v453, %v1858
        %v1860 = vpop.f32.mrf.mxu0
        %v1861 = vpop.f32.mrf.mxu0
        %v1862 = vpop.f32.mrf.mxu0
        %1863 = vdwg.mxu0
        %v1864 = vmax.f32 %v1835, 0.0
        %v1865 = vmax.f32 %v1838, 0.0
        %v1866 = vmax.f32 %v1843, 0.0
        %v1867 = vmax.f32 %v1846, 0.0
        %v1868 = vmax.f32 %v1851, 0.0
        %v1869 = vmax.f32 %v1854, 0.0
        %v1870 = vmax.f32 %v1859, 0.0
        %v1875 = vrot.slane %v1867, 2
        %v1876 = vrot.slane %v1868, 2
        %v1877 = vsel %vm640, %v1875, %v1876
        %v1878 = vrot.slane %v1869, 2
        %v1879 = vsel %vm640, %v1876, %v1878
        %v1880 = vrot.slane %v1870, 2
        %v1881 = vsel %vm640, %v1878, %v1880
        %v1886 = vmax.f32 %v1864, %v1877
        %v1887 = vmax.f32 %v1865, %v1879
        %v1888 = vmax.f32 %v1866, %v1881
        %v1889 = vmax.f32 %v1867, %v1880
        %s1890 = scalar_lea.vmem [#allocation2], 256
        %1891 = vst.msk [vmem:[%s1890] sm:$0xff] %vm656, %v1886
        %1892 = vst.msk [vmem:[%s1890 + $0x8] sm:$0xff] %vm656, %v1887
        %1893 = vst.msk [vmem:[%s1890 + $0x10] sm:$0xff] %vm656, %v1888
        %1894 = vst.msk [vmem:[%s1890 + $0x18] sm:$0x3] %vm660, %v1889
        %v1895 = vld [vmem:[%s420 + $0x1d0] sm:$0xcc]
        %v1896 = vld [vmem:[%s420 + $0x1d8] sm:$0xff]
        %v1897 = vld [vmem:[%s420 + $0x1e0] sm:$0xff]
        %v1898 = vld [vmem:[%s420 + $0x1e8] sm:$0xff]
        %v1899 = vld [vmem:[%s420 + $0x1f0] sm:$0xff]
        %v1900 = vld [vmem:[%s420 + $0x1f8] sm:$0xff]
        %v1901 = vld [vmem:[%s420 + $0x200] sm:$0xff]
        %v1909 = vunpack.c.l.b16 %v1895
        %v1910 = vunpack.c.h.b16 %v1895
        %v1911 = vunpack.c.l.b16 %v1896
        %v1912 = vunpack.c.h.b16 %v1896
        %v1913 = vunpack.c.l.b16 %v1897
        %v1914 = vunpack.c.h.b16 %v1897
        %v1915 = vunpack.c.l.b16 %v1898
        %v1916 = vunpack.c.h.b16 %v1898
        %v1917 = vunpack.c.l.b16 %v1899
        %v1918 = vunpack.c.h.b16 %v1899
        %v1919 = vunpack.c.l.b16 %v1900
        %v1920 = vunpack.c.h.b16 %v1900
        %v1921 = vunpack.c.l.b16 %v1901
        %v1922 = vunpack.c.h.b16 %v1901
        %v1923 = vpack.c.b16 %v1911, %v1909
        %v1924 = vpack.c.b16 %v1912, %v1910
        %v1925 = vpack.c.b16 %v1915, %v1913
        %v1926 = vpack.c.b16 %v1916, %v1914
        %v1927 = vpack.c.b16 %v1919, %v1917
        %v1928 = vpack.c.b16 %v1920, %v1918
        %v1929 = vpack.c.b16 %v1921, %v1921
        %v1930 = vpack.c.b16 %v1922, %v1922
        %v1931 = vrot.slane %v1923, 2
        %v1932 = vrot.slane %v1925, 2
        %v1933 = vsel %vm698, %v1931, %v1932
        %v1934 = vrot.slane %v1924, 2
        %v1935 = vrot.slane %v1926, 2
        %v1936 = vsel %vm698, %v1934, %v1935
        %v1937 = vrot.slane %v1927, 2
        %v1938 = vsel %vm698, %v1932, %v1937
        %v1939 = vrot.slane %v1928, 2
        %v1940 = vsel %vm698, %v1935, %v1939
        %v1941 = vrot.slane %v1929, 2
        %v1942 = vsel %vm698, %v1937, %v1941
        %v1943 = vrot.slane %v1930, 2
        %v1944 = vsel %vm698, %v1939, %v1943
        %v1950 = vsel %vm545, %v1936, 0
        %v1953 = vsel %vm545, %v1940, 0
        %v1956 = vsel %vm545, %v1944, 0
        %v1959 = vsel %vm545, %v1943, 0
        %1961 = vmatprep.subr.bf16.mxu0 0
        %1962 = vmatpush1.bf16.msra.mxu0 %v533
        %1963 = vmatprep.subr.bf16.mxu0 0
        %1964 = vmatpush1.bf16.msra.mxu0 %v532
        %1965 = vmatprep.subr.bf16.mxu0 0
        %1966 = vmatpush1.bf16.msra.mxu0 %v531
        %1967 = vmatprep.subr.bf16.mxu0 0
        %1968 = vmatpush1.bf16.msra.mxu0 %v530
        %1969 = vmatprep.subr.bf16.mxu0 0
        %1970 = vmatpush1.bf16.msra.mxu0 %v529
        %1971 = vmatprep.subr.bf16.mxu0 0
        %1972 = vmatpush1.bf16.msra.mxu0 %v528
        %1973 = vmatprep.subr.bf16.mxu0 0
        %1974 = vmatpush1.bf16.msra.mxu0 %v527
        %1975 = vmatprep.subr.bf16.mxu0 0
        %1976 = vmatpush1.bf16.msra.mxu0 %v526
        %1977 = vmatprep.subr.bf16.mxu0 0
        %1978 = vmatpush2.bf16.msra.mxu0 0
        %1979 = vmatprep.subr.bf16.mxu0 0
        %1980 = vmatpush2.bf16.msra.mxu0 0
        %1981 = vmatprep.subr.bf16.mxu0 0
        %1982 = vmatpush2.bf16.msra.mxu0 0
        %1983 = vmatprep.subr.bf16.mxu0 0
        %1984 = vmatpush2.bf16.msra.mxu0 0
        %1985 = vmatprep.subr.bf16.mxu0 0
        %1986 = vmatpush2.bf16.msra.mxu0 0
        %1987 = vmatprep.subr.bf16.mxu0 0
        %1988 = vmatpush2.bf16.msra.mxu0 0
        %1989 = vmatprep.subr.bf16.mxu0 0
        %1990 = vmatpush2.bf16.msra.mxu0 %v563
        %1991 = vmatprep.subr.bf16.mxu0 0
        %1992 = vmatpush2.bf16.msra.mxu0 %v534
        %1993 = vmatprep.mubr.bf16.mxu0 %v1950
        %1994 = vmatmul.mubr.bf16.gmra.mxu0 %v1933
        %v1995 = vpop.f32.mrf.mxu0
        %v1996 = vadd.f32 %v453, %v1995
        %v1997 = vpop.f32.mrf.mxu0
        %v1998 = vpop.f32.mrf.mxu0
        %v1999 = vadd.f32 %v453, %v1998
        %v2000 = vpop.f32.mrf.mxu0
        %2001 = vmatprep.mubr.bf16.mxu0 %v1953
        %2002 = vmatmul.mubr.bf16.gmra.mxu0 %v1938
        %v2003 = vpop.f32.mrf.mxu0
        %v2004 = vadd.f32 %v453, %v2003
        %v2005 = vpop.f32.mrf.mxu0
        %v2006 = vpop.f32.mrf.mxu0
        %v2007 = vadd.f32 %v453, %v2006
        %v2008 = vpop.f32.mrf.mxu0
        %2009 = vmatprep.mubr.bf16.mxu0 %v1956
        %2010 = vmatmul.mubr.bf16.gmra.mxu0 %v1942
        %v2011 = vpop.f32.mrf.mxu0
        %v2012 = vadd.f32 %v453, %v2011
        %v2013 = vpop.f32.mrf.mxu0
        %v2014 = vpop.f32.mrf.mxu0
        %v2015 = vadd.f32 %v453, %v2014
        %v2016 = vpop.f32.mrf.mxu0
        %2017 = vmatprep.mubr.bf16.mxu0 %v1959
        %2018 = vmatmul.mubr.bf16.gmra.mxu0 %v1941
        %v2019 = vpop.f32.mrf.mxu0
        %v2020 = vadd.f32 %v453, %v2019
        %v2021 = vpop.f32.mrf.mxu0
        %v2022 = vpop.f32.mrf.mxu0
        %v2023 = vpop.f32.mrf.mxu0
        %2024 = vdwg.mxu0
        %v2025 = vmax.f32 %v1996, 0.0
        %v2026 = vmax.f32 %v1999, 0.0
        %v2027 = vmax.f32 %v2004, 0.0
        %v2028 = vmax.f32 %v2007, 0.0
        %v2029 = vmax.f32 %v2012, 0.0
        %v2030 = vmax.f32 %v2015, 0.0
        %v2031 = vmax.f32 %v2020, 0.0
        %v2036 = vrot.slane %v2028, 2
        %v2037 = vrot.slane %v2029, 2
        %v2038 = vsel %vm640, %v2036, %v2037
        %v2039 = vrot.slane %v2030, 2
        %v2040 = vsel %vm640, %v2037, %v2039
        %v2041 = vrot.slane %v2031, 2
        %v2042 = vsel %vm640, %v2039, %v2041
        %v2047 = vmax.f32 %v2025, %v2038
        %v2048 = vmax.f32 %v2026, %v2040
        %v2049 = vmax.f32 %v2027, %v2042
        %v2050 = vmax.f32 %v2028, %v2041
        %s2051 = scalar_lea.vmem [#allocation2], 288
        %2052 = vst.msk [vmem:[%s2051] sm:$0xff] %vm656, %v2047
        %2053 = vst.msk [vmem:[%s2051 + $0x8] sm:$0xff] %vm656, %v2048
        %2054 = vst.msk [vmem:[%s2051 + $0x10] sm:$0xff] %vm656, %v2049
        %2055 = vst.msk [vmem:[%s2051 + $0x18] sm:$0x3] %vm660, %v2050
        %v2056 = vld [vmem:[%s420 + $0x208] sm:$0xff]
        %v2057 = vld [vmem:[%s420 + $0x210] sm:$0xff]
        %v2058 = vld [vmem:[%s420 + $0x218] sm:$0xff]
        %v2059 = vld [vmem:[%s420 + $0x220] sm:$0xff]
        %v2060 = vld [vmem:[%s420 + $0x228] sm:$0xff]
        %v2061 = vld [vmem:[%s420 + $0x230] sm:$0xff]
        %v2062 = vld [vmem:[%s420 + $0x238] sm:$0x33]
        %v2070 = vunpack.c.l.b16 %v2056
        %v2071 = vunpack.c.h.b16 %v2056
        %v2072 = vunpack.c.l.b16 %v2057
        %v2073 = vunpack.c.h.b16 %v2057
        %v2074 = vunpack.c.l.b16 %v2058
        %v2075 = vunpack.c.h.b16 %v2058
        %v2076 = vunpack.c.l.b16 %v2059
        %v2077 = vunpack.c.h.b16 %v2059
        %v2078 = vunpack.c.l.b16 %v2060
        %v2079 = vunpack.c.h.b16 %v2060
        %v2080 = vunpack.c.l.b16 %v2061
        %v2081 = vunpack.c.h.b16 %v2061
        %v2082 = vunpack.c.l.b16 %v2062
        %v2083 = vunpack.c.h.b16 %v2062
        %v2084 = vpack.c.b16 %v2072, %v2070
        %v2085 = vpack.c.b16 %v2073, %v2071
        %v2086 = vpack.c.b16 %v2076, %v2074
        %v2087 = vpack.c.b16 %v2077, %v2075
        %v2088 = vpack.c.b16 %v2080, %v2078
        %v2089 = vpack.c.b16 %v2081, %v2079
        %v2090 = vpack.c.b16 %v2082, %v2082
        %v2091 = vpack.c.b16 %v2083, %v2083
        %v2097 = vsel %vm545, %v2085, 0
        %v2100 = vsel %vm545, %v2087, 0
        %v2103 = vsel %vm545, %v2089, 0
        %v2106 = vsel %vm545, %v2091, 0
        %2108 = vmatprep.subr.bf16.mxu0 0
        %2109 = vmatpush1.bf16.msra.mxu0 %v533
        %2110 = vmatprep.subr.bf16.mxu0 0
        %2111 = vmatpush1.bf16.msra.mxu0 %v532
        %2112 = vmatprep.subr.bf16.mxu0 0
        %2113 = vmatpush1.bf16.msra.mxu0 %v531
        %2114 = vmatprep.subr.bf16.mxu0 0
        %2115 = vmatpush1.bf16.msra.mxu0 %v530
        %2116 = vmatprep.subr.bf16.mxu0 0
        %2117 = vmatpush1.bf16.msra.mxu0 %v529
        %2118 = vmatprep.subr.bf16.mxu0 0
        %2119 = vmatpush1.bf16.msra.mxu0 %v528
        %2120 = vmatprep.subr.bf16.mxu0 0
        %2121 = vmatpush1.bf16.msra.mxu0 %v527
        %2122 = vmatprep.subr.bf16.mxu0 0
        %2123 = vmatpush1.bf16.msra.mxu0 %v526
        %2124 = vmatprep.subr.bf16.mxu0 0
        %2125 = vmatpush2.bf16.msra.mxu0 0
        %2126 = vmatprep.subr.bf16.mxu0 0
        %2127 = vmatpush2.bf16.msra.mxu0 0
        %2128 = vmatprep.subr.bf16.mxu0 0
        %2129 = vmatpush2.bf16.msra.mxu0 0
        %2130 = vmatprep.subr.bf16.mxu0 0
        %2131 = vmatpush2.bf16.msra.mxu0 0
        %2132 = vmatprep.subr.bf16.mxu0 0
        %2133 = vmatpush2.bf16.msra.mxu0 0
        %2134 = vmatprep.subr.bf16.mxu0 0
        %2135 = vmatpush2.bf16.msra.mxu0 0
        %2136 = vmatprep.subr.bf16.mxu0 0
        %2137 = vmatpush2.bf16.msra.mxu0 %v563
        %2138 = vmatprep.subr.bf16.mxu0 0
        %2139 = vmatpush2.bf16.msra.mxu0 %v534
        %2140 = vmatprep.mubr.bf16.mxu0 %v2097
        %2141 = vmatmul.mubr.bf16.gmra.mxu0 %v2084
        %v2142 = vpop.f32.mrf.mxu0
        %v2143 = vadd.f32 %v453, %v2142
        %v2144 = vpop.f32.mrf.mxu0
        %v2145 = vpop.f32.mrf.mxu0
        %v2146 = vadd.f32 %v453, %v2145
        %v2147 = vpop.f32.mrf.mxu0
        %2148 = vmatprep.mubr.bf16.mxu0 %v2100
        %2149 = vmatmul.mubr.bf16.gmra.mxu0 %v2086
        %v2150 = vpop.f32.mrf.mxu0
        %v2151 = vadd.f32 %v453, %v2150
        %v2152 = vpop.f32.mrf.mxu0
        %v2153 = vpop.f32.mrf.mxu0
        %v2154 = vadd.f32 %v453, %v2153
        %v2155 = vpop.f32.mrf.mxu0
        %2156 = vmatprep.mubr.bf16.mxu0 %v2103
        %2157 = vmatmul.mubr.bf16.gmra.mxu0 %v2088
        %v2158 = vpop.f32.mrf.mxu0
        %v2159 = vadd.f32 %v453, %v2158
        %v2160 = vpop.f32.mrf.mxu0
        %v2161 = vpop.f32.mrf.mxu0
        %v2162 = vadd.f32 %v453, %v2161
        %v2163 = vpop.f32.mrf.mxu0
        %2164 = vmatprep.mubr.bf16.mxu0 %v2106
        %2165 = vmatmul.mubr.bf16.gmra.mxu0 %v2090
        %v2166 = vpop.f32.mrf.mxu0
        %v2167 = vadd.f32 %v453, %v2166
        %v2168 = vpop.f32.mrf.mxu0
        %v2169 = vpop.f32.mrf.mxu0
        %v2170 = vpop.f32.mrf.mxu0
        %2171 = vdwg.mxu0
        %v2172 = vmax.f32 %v2143, 0.0
        %v2173 = vmax.f32 %v2146, 0.0
        %v2174 = vmax.f32 %v2151, 0.0
        %v2175 = vmax.f32 %v2154, 0.0
        %v2176 = vmax.f32 %v2159, 0.0
        %v2177 = vmax.f32 %v2162, 0.0
        %v2178 = vmax.f32 %v2167, 0.0
        %v2183 = vrot.slane %v2175, 2
        %v2184 = vrot.slane %v2176, 2
        %v2185 = vsel %vm640, %v2183, %v2184
        %v2186 = vrot.slane %v2177, 2
        %v2187 = vsel %vm640, %v2184, %v2186
        %v2188 = vrot.slane %v2178, 2
        %v2189 = vsel %vm640, %v2186, %v2188
        %v2194 = vmax.f32 %v2172, %v2185
        %v2195 = vmax.f32 %v2173, %v2187
        %v2196 = vmax.f32 %v2174, %v2189
        %v2197 = vmax.f32 %v2175, %v2188
        %s2198 = scalar_lea.vmem [#allocation2], 320
        %2199 = vst.msk [vmem:[%s2198] sm:$0xff] %vm656, %v2194
        %2200 = vst.msk [vmem:[%s2198 + $0x8] sm:$0xff] %vm656, %v2195
        %2201 = vst.msk [vmem:[%s2198 + $0x10] sm:$0xff] %vm656, %v2196
        %2202 = vst.msk [vmem:[%s2198 + $0x18] sm:$0x3] %vm660, %v2197
        %v2203 = vld [vmem:[%s420 + $0x238] sm:$0xcc]
        %v2204 = vld [vmem:[%s420 + $0x240] sm:$0xff]
        %v2205 = vld [vmem:[%s420 + $0x248] sm:$0xff]
        %v2206 = vld [vmem:[%s420 + $0x250] sm:$0xff]
        %v2207 = vld [vmem:[%s420 + $0x258] sm:$0xff]
        %v2208 = vld [vmem:[%s420 + $0x260] sm:$0xff]
        %v2209 = vld [vmem:[%s420 + $0x268] sm:$0xff]
        %v2217 = vunpack.c.l.b16 %v2203
        %v2218 = vunpack.c.h.b16 %v2203
        %v2219 = vunpack.c.l.b16 %v2204
        %v2220 = vunpack.c.h.b16 %v2204
        %v2221 = vunpack.c.l.b16 %v2205
        %v2222 = vunpack.c.h.b16 %v2205
        %v2223 = vunpack.c.l.b16 %v2206
        %v2224 = vunpack.c.h.b16 %v2206
        %v2225 = vunpack.c.l.b16 %v2207
        %v2226 = vunpack.c.h.b16 %v2207
        %v2227 = vunpack.c.l.b16 %v2208
        %v2228 = vunpack.c.h.b16 %v2208
        %v2229 = vunpack.c.l.b16 %v2209
        %v2230 = vunpack.c.h.b16 %v2209
        %v2231 = vpack.c.b16 %v2219, %v2217
        %v2232 = vpack.c.b16 %v2220, %v2218
        %v2233 = vpack.c.b16 %v2223, %v2221
        %v2234 = vpack.c.b16 %v2224, %v2222
        %v2235 = vpack.c.b16 %v2227, %v2225
        %v2236 = vpack.c.b16 %v2228, %v2226
        %v2237 = vpack.c.b16 %v2229, %v2229
        %v2238 = vpack.c.b16 %v2230, %v2230
        %v2239 = vrot.slane %v2231, 2
        %v2240 = vrot.slane %v2233, 2
        %v2241 = vsel %vm698, %v2239, %v2240
        %v2242 = vrot.slane %v2232, 2
        %v2243 = vrot.slane %v2234, 2
        %v2244 = vsel %vm698, %v2242, %v2243
        %v2245 = vrot.slane %v2235, 2
        %v2246 = vsel %vm698, %v2240, %v2245
        %v2247 = vrot.slane %v2236, 2
        %v2248 = vsel %vm698, %v2243, %v2247
        %v2249 = vrot.slane %v2237, 2
        %v2250 = vsel %vm698, %v2245, %v2249
        %v2251 = vrot.slane %v2238, 2
        %v2252 = vsel %vm698, %v2247, %v2251
        %v2258 = vsel %vm545, %v2244, 0
        %v2261 = vsel %vm545, %v2248, 0
        %v2264 = vsel %vm545, %v2252, 0
        %v2267 = vsel %vm545, %v2251, 0
        %2269 = vmatprep.subr.bf16.mxu0 0
        %2270 = vmatpush1.bf16.msra.mxu0 %v533
        %2271 = vmatprep.subr.bf16.mxu0 0
        %2272 = vmatpush1.bf16.msra.mxu0 %v532
        %2273 = vmatprep.subr.bf16.mxu0 0
        %2274 = vmatpush1.bf16.msra.mxu0 %v531
        %2275 = vmatprep.subr.bf16.mxu0 0
        %2276 = vmatpush1.bf16.msra.mxu0 %v530
        %2277 = vmatprep.subr.bf16.mxu0 0
        %2278 = vmatpush1.bf16.msra.mxu0 %v529
        %2279 = vmatprep.subr.bf16.mxu0 0
        %2280 = vmatpush1.bf16.msra.mxu0 %v528
        %2281 = vmatprep.subr.bf16.mxu0 0
        %2282 = vmatpush1.bf16.msra.mxu0 %v527
        %2283 = vmatprep.subr.bf16.mxu0 0
        %2284 = vmatpush1.bf16.msra.mxu0 %v526
        %2285 = vmatprep.subr.bf16.mxu0 0
        %2286 = vmatpush2.bf16.msra.mxu0 0
        %2287 = vmatprep.subr.bf16.mxu0 0
        %2288 = vmatpush2.bf16.msra.mxu0 0
        %2289 = vmatprep.subr.bf16.mxu0 0
        %2290 = vmatpush2.bf16.msra.mxu0 0
        %2291 = vmatprep.subr.bf16.mxu0 0
        %2292 = vmatpush2.bf16.msra.mxu0 0
        %2293 = vmatprep.subr.bf16.mxu0 0
        %2294 = vmatpush2.bf16.msra.mxu0 0
        %2295 = vmatprep.subr.bf16.mxu0 0
        %2296 = vmatpush2.bf16.msra.mxu0 0
        %2297 = vmatprep.subr.bf16.mxu0 0
        %2298 = vmatpush2.bf16.msra.mxu0 %v563
        %2299 = vmatprep.subr.bf16.mxu0 0
        %2300 = vmatpush2.bf16.msra.mxu0 %v534
        %2301 = vmatprep.mubr.bf16.mxu0 %v2258
        %2302 = vmatmul.mubr.bf16.gmra.mxu0 %v2241
        %v2303 = vpop.f32.mrf.mxu0
        %v2304 = vadd.f32 %v453, %v2303
        %v2305 = vpop.f32.mrf.mxu0
        %v2306 = vpop.f32.mrf.mxu0
        %v2307 = vadd.f32 %v453, %v2306
        %v2308 = vpop.f32.mrf.mxu0
        %2309 = vmatprep.mubr.bf16.mxu0 %v2261
        %2310 = vmatmul.mubr.bf16.gmra.mxu0 %v2246
        %v2311 = vpop.f32.mrf.mxu0
        %v2312 = vadd.f32 %v453, %v2311
        %v2313 = vpop.f32.mrf.mxu0
        %v2314 = vpop.f32.mrf.mxu0
        %v2315 = vadd.f32 %v453, %v2314
        %v2316 = vpop.f32.mrf.mxu0
        %2317 = vmatprep.mubr.bf16.mxu0 %v2264
        %2318 = vmatmul.mubr.bf16.gmra.mxu0 %v2250
        %v2319 = vpop.f32.mrf.mxu0
        %v2320 = vadd.f32 %v453, %v2319
        %v2321 = vpop.f32.mrf.mxu0
        %v2322 = vpop.f32.mrf.mxu0
        %v2323 = vadd.f32 %v453, %v2322
        %v2324 = vpop.f32.mrf.mxu0
        %2325 = vmatprep.mubr.bf16.mxu0 %v2267
        %2326 = vmatmul.mubr.bf16.gmra.mxu0 %v2249
        %v2327 = vpop.f32.mrf.mxu0
        %v2328 = vadd.f32 %v453, %v2327
        %v2329 = vpop.f32.mrf.mxu0
        %v2330 = vpop.f32.mrf.mxu0
        %v2331 = vpop.f32.mrf.mxu0
        %2332 = vdwg.mxu0
        %v2333 = vmax.f32 %v2304, 0.0
        %v2334 = vmax.f32 %v2307, 0.0
        %v2335 = vmax.f32 %v2312, 0.0
        %v2336 = vmax.f32 %v2315, 0.0
        %v2337 = vmax.f32 %v2320, 0.0
        %v2338 = vmax.f32 %v2323, 0.0
        %v2339 = vmax.f32 %v2328, 0.0
        %v2344 = vrot.slane %v2336, 2
        %v2345 = vrot.slane %v2337, 2
        %v2346 = vsel %vm640, %v2344, %v2345
        %v2347 = vrot.slane %v2338, 2
        %v2348 = vsel %vm640, %v2345, %v2347
        %v2349 = vrot.slane %v2339, 2
        %v2350 = vsel %vm640, %v2347, %v2349
        %v2355 = vmax.f32 %v2333, %v2346
        %v2356 = vmax.f32 %v2334, %v2348
        %v2357 = vmax.f32 %v2335, %v2350
        %v2358 = vmax.f32 %v2336, %v2349
        %s2359 = scalar_lea.vmem [#allocation2], 352
        %2360 = vst.msk [vmem:[%s2359] sm:$0xff] %vm656, %v2355
        %2361 = vst.msk [vmem:[%s2359 + $0x8] sm:$0xff] %vm656, %v2356
        %2362 = vst.msk [vmem:[%s2359 + $0x10] sm:$0xff] %vm656, %v2357
        %2363 = vst.msk [vmem:[%s2359 + $0x18] sm:$0x3] %vm660, %v2358
        %v2364 = vld [vmem:[%s420 + $0x270] sm:$0xff]
        %v2365 = vld [vmem:[%s420 + $0x278] sm:$0xff]
        %v2366 = vld [vmem:[%s420 + $0x280] sm:$0xff]
        %v2367 = vld [vmem:[%s420 + $0x288] sm:$0xff]
        %v2368 = vld [vmem:[%s420 + $0x290] sm:$0xff]
        %v2369 = vld [vmem:[%s420 + $0x298] sm:$0xff]
        %v2370 = vld [vmem:[%s420 + $0x2a0] sm:$0x33]
        %v2378 = vunpack.c.l.b16 %v2364
        %v2379 = vunpack.c.h.b16 %v2364
        %v2380 = vunpack.c.l.b16 %v2365
        %v2381 = vunpack.c.h.b16 %v2365
        %v2382 = vunpack.c.l.b16 %v2366
        %v2383 = vunpack.c.h.b16 %v2366
        %v2384 = vunpack.c.l.b16 %v2367
        %v2385 = vunpack.c.h.b16 %v2367
        %v2386 = vunpack.c.l.b16 %v2368
        %v2387 = vunpack.c.h.b16 %v2368
        %v2388 = vunpack.c.l.b16 %v2369
        %v2389 = vunpack.c.h.b16 %v2369
        %v2390 = vunpack.c.l.b16 %v2370
        %v2391 = vunpack.c.h.b16 %v2370
        %v2392 = vpack.c.b16 %v2380, %v2378
        %v2393 = vpack.c.b16 %v2381, %v2379
        %v2394 = vpack.c.b16 %v2384, %v2382
        %v2395 = vpack.c.b16 %v2385, %v2383
        %v2396 = vpack.c.b16 %v2388, %v2386
        %v2397 = vpack.c.b16 %v2389, %v2387
        %v2398 = vpack.c.b16 %v2390, %v2390
        %v2399 = vpack.c.b16 %v2391, %v2391
        %v2405 = vsel %vm545, %v2393, 0
        %v2408 = vsel %vm545, %v2395, 0
        %v2411 = vsel %vm545, %v2397, 0
        %v2414 = vsel %vm545, %v2399, 0
        %2416 = vmatprep.subr.bf16.mxu0 0
        %2417 = vmatpush1.bf16.msra.mxu0 %v533
        %2418 = vmatprep.subr.bf16.mxu0 0
        %2419 = vmatpush1.bf16.msra.mxu0 %v532
        %2420 = vmatprep.subr.bf16.mxu0 0
        %2421 = vmatpush1.bf16.msra.mxu0 %v531
        %2422 = vmatprep.subr.bf16.mxu0 0
        %2423 = vmatpush1.bf16.msra.mxu0 %v530
        %2424 = vmatprep.subr.bf16.mxu0 0
        %2425 = vmatpush1.bf16.msra.mxu0 %v529
        %2426 = vmatprep.subr.bf16.mxu0 0
        %2427 = vmatpush1.bf16.msra.mxu0 %v528
        %2428 = vmatprep.subr.bf16.mxu0 0
        %2429 = vmatpush1.bf16.msra.mxu0 %v527
        %2430 = vmatprep.subr.bf16.mxu0 0
        %2431 = vmatpush1.bf16.msra.mxu0 %v526
        %2432 = vmatprep.subr.bf16.mxu0 0
        %2433 = vmatpush2.bf16.msra.mxu0 0
        %2434 = vmatprep.subr.bf16.mxu0 0
        %2435 = vmatpush2.bf16.msra.mxu0 0
        %2436 = vmatprep.subr.bf16.mxu0 0
        %2437 = vmatpush2.bf16.msra.mxu0 0
        %2438 = vmatprep.subr.bf16.mxu0 0
        %2439 = vmatpush2.bf16.msra.mxu0 0
        %2440 = vmatprep.subr.bf16.mxu0 0
        %2441 = vmatpush2.bf16.msra.mxu0 0
        %2442 = vmatprep.subr.bf16.mxu0 0
        %2443 = vmatpush2.bf16.msra.mxu0 0
        %2444 = vmatprep.subr.bf16.mxu0 0
        %2445 = vmatpush2.bf16.msra.mxu0 %v563
        %2446 = vmatprep.subr.bf16.mxu0 0
        %2447 = vmatpush2.bf16.msra.mxu0 %v534
        %2448 = vmatprep.mubr.bf16.mxu0 %v2405
        %2449 = vmatmul.mubr.bf16.gmra.mxu0 %v2392
        %v2450 = vpop.f32.mrf.mxu0
        %v2451 = vadd.f32 %v453, %v2450
        %v2452 = vpop.f32.mrf.mxu0
        %v2453 = vpop.f32.mrf.mxu0
        %v2454 = vadd.f32 %v453, %v2453
        %v2455 = vpop.f32.mrf.mxu0
        %2456 = vmatprep.mubr.bf16.mxu0 %v2408
        %2457 = vmatmul.mubr.bf16.gmra.mxu0 %v2394
        %v2458 = vpop.f32.mrf.mxu0
        %v2459 = vadd.f32 %v453, %v2458
        %v2460 = vpop.f32.mrf.mxu0
        %v2461 = vpop.f32.mrf.mxu0
        %v2462 = vadd.f32 %v453, %v2461
        %v2463 = vpop.f32.mrf.mxu0
        %2464 = vmatprep.mubr.bf16.mxu0 %v2411
        %2465 = vmatmul.mubr.bf16.gmra.mxu0 %v2396
        %v2466 = vpop.f32.mrf.mxu0
        %v2467 = vadd.f32 %v453, %v2466
        %v2468 = vpop.f32.mrf.mxu0
        %v2469 = vpop.f32.mrf.mxu0
        %v2470 = vadd.f32 %v453, %v2469
        %v2471 = vpop.f32.mrf.mxu0
        %2472 = vmatprep.mubr.bf16.mxu0 %v2414
        %2473 = vmatmul.mubr.bf16.gmra.mxu0 %v2398
        %v2474 = vpop.f32.mrf.mxu0
        %v2475 = vadd.f32 %v453, %v2474
        %v2476 = vpop.f32.mrf.mxu0
        %v2477 = vpop.f32.mrf.mxu0
        %v2478 = vpop.f32.mrf.mxu0
        %2479 = vdwg.mxu0
        %v2480 = vmax.f32 %v2451, 0.0
        %v2481 = vmax.f32 %v2454, 0.0
        %v2482 = vmax.f32 %v2459, 0.0
        %v2483 = vmax.f32 %v2462, 0.0
        %v2484 = vmax.f32 %v2467, 0.0
        %v2485 = vmax.f32 %v2470, 0.0
        %v2486 = vmax.f32 %v2475, 0.0
        %v2491 = vrot.slane %v2483, 2
        %v2492 = vrot.slane %v2484, 2
        %v2493 = vsel %vm640, %v2491, %v2492
        %v2494 = vrot.slane %v2485, 2
        %v2495 = vsel %vm640, %v2492, %v2494
        %v2496 = vrot.slane %v2486, 2
        %v2497 = vsel %vm640, %v2494, %v2496
        %v2502 = vmax.f32 %v2480, %v2493
        %v2503 = vmax.f32 %v2481, %v2495
        %v2504 = vmax.f32 %v2482, %v2497
        %v2505 = vmax.f32 %v2483, %v2496
        %s2506 = scalar_lea.vmem [#allocation2], 384
        %2507 = vst.msk [vmem:[%s2506] sm:$0xff] %vm656, %v2502
        %2508 = vst.msk [vmem:[%s2506 + $0x8] sm:$0xff] %vm656, %v2503
        %2509 = vst.msk [vmem:[%s2506 + $0x10] sm:$0xff] %vm656, %v2504
        %2510 = vst.msk [vmem:[%s2506 + $0x18] sm:$0x3] %vm660, %v2505
        %v2511 = vld [vmem:[#allocation2] sm:$0x1]
        %v2512 = vld [vmem:[#allocation2 + $0x20] sm:$0x1]
        %v2513 = vld [vmem:[#allocation2 + $0x40] sm:$0x1]
        %v2514 = vld [vmem:[#allocation2 + $0x60] sm:$0x1]
        %v2515 = vld [vmem:[#allocation2 + $0x80] sm:$0x1]
        %v2516 = vld [vmem:[#allocation2 + $0xa0] sm:$0x1]
        %v2517 = vld [vmem:[#allocation2 + $0xc0] sm:$0x1]
        %v2518 = vld [vmem:[#allocation2 + $0xe0] sm:$0x1]
        %v2519 = vld [vmem:[#allocation2 + $0x100] sm:$0x1]
        %v2520 = vld [vmem:[#allocation2 + $0x120] sm:$0x1]
        %v2521 = vld [vmem:[#allocation2 + $0x140] sm:$0x1]
        %v2522 = vld [vmem:[#allocation2 + $0x160] sm:$0x1]
        %v2523 = vld [vmem:[#allocation2 + $0x180] sm:$0x1]
        %v2524 = vld [vmem:[#allocation2 + $0x1] sm:$0x1]
        %v2525 = vld [vmem:[#allocation2 + $0x21] sm:$0x1]
        %v2526 = vld [vmem:[#allocation2 + $0x41] sm:$0x1]
        %v2527 = vld [vmem:[#allocation2 + $0x61] sm:$0x1]
        %v2528 = vld [vmem:[#allocation2 + $0x81] sm:$0x1]
        %v2529 = vld [vmem:[#allocation2 + $0xa1] sm:$0x1]
        %v2530 = vld [vmem:[#allocation2 + $0xc1] sm:$0x1]
        %v2531 = vld [vmem:[#allocation2 + $0xe1] sm:$0x1]
        %v2532 = vld [vmem:[#allocation2 + $0x101] sm:$0x1]
        %v2533 = vld [vmem:[#allocation2 + $0x121] sm:$0x1]
        %v2534 = vld [vmem:[#allocation2 + $0x141] sm:$0x1]
        %v2535 = vld [vmem:[#allocation2 + $0x161] sm:$0x1]
        %v2536 = vld [vmem:[#allocation2 + $0x181] sm:$0x1]
        %v2537 = vmax.f32 %v2511, %v2524
        %v2538 = vmax.f32 %v2512, %v2525
        %v2539 = vmax.f32 %v2513, %v2526
        %v2540 = vmax.f32 %v2514, %v2527
        %v2541 = vmax.f32 %v2515, %v2528
        %v2542 = vmax.f32 %v2516, %v2529
        %v2543 = vmax.f32 %v2517, %v2530
        %v2544 = vmax.f32 %v2518, %v2531
        %v2545 = vmax.f32 %v2519, %v2532
        %v2546 = vmax.f32 %v2520, %v2533
        %v2547 = vmax.f32 %v2521, %v2534
        %v2548 = vmax.f32 %v2522, %v2535
        %v2549 = vmax.f32 %v2523, %v2536
        %v2550 = vpack.c.bf16 %v2537, %v2537
        %v2551 = vpack.c.bf16 %v2538, %v2538
        %v2552 = vpack.c.bf16 %v2539, %v2539
        %v2553 = vpack.c.bf16 %v2540, %v2540
        %v2554 = vpack.c.bf16 %v2541, %v2541
        %v2555 = vpack.c.bf16 %v2542, %v2542
        %v2556 = vpack.c.bf16 %v2543, %v2543
        %v2557 = vpack.c.bf16 %v2544, %v2544
        %v2558 = vpack.c.bf16 %v2545, %v2545
        %v2559 = vpack.c.bf16 %v2546, %v2546
        %v2560 = vpack.c.bf16 %v2547, %v2547
        %v2561 = vpack.c.bf16 %v2548, %v2548
        %v2562 = vpack.c.bf16 %v2549, %v2549
        %vm2563 = vcmask 253952
        %vm2564 = vsmask.f32 256
        %vm2565 = vmand %vm2563, %vm2564
        %v2566 = vld [vmem:[#allocation3] sm:$0x1]
        %v2567 = vsel %vm2565, %v2550, %v2566
        %2568 = vst [vmem:[#allocation3] sm:$0x1] %v2567
        %v2569 = vld [vmem:[#allocation3 + $0x8] sm:$0x1]
        %v2570 = vsel %vm2565, %v2551, %v2569
        %2571 = vst [vmem:[#allocation3 + $0x8] sm:$0x1] %v2570
        %v2572 = vld [vmem:[#allocation3 + $0x10] sm:$0x1]
        %v2573 = vsel %vm2565, %v2552, %v2572
        %2574 = vst [vmem:[#allocation3 + $0x10] sm:$0x1] %v2573
        %v2575 = vld [vmem:[#allocation3 + $0x18] sm:$0x1]
        %v2576 = vsel %vm2565, %v2553, %v2575
        %2577 = vst [vmem:[#allocation3 + $0x18] sm:$0x1] %v2576
        %v2578 = vld [vmem:[#allocation3 + $0x20] sm:$0x1]
        %v2579 = vsel %vm2565, %v2554, %v2578
        %2580 = vst [vmem:[#allocation3 + $0x20] sm:$0x1] %v2579
        %v2581 = vld [vmem:[#allocation3 + $0x28] sm:$0x1]
        %v2582 = vsel %vm2565, %v2555, %v2581
        %2583 = vst [vmem:[#allocation3 + $0x28] sm:$0x1] %v2582
        %v2584 = vld [vmem:[#allocation3 + $0x30] sm:$0x1]
        %v2585 = vsel %vm2565, %v2556, %v2584
        %2586 = vst [vmem:[#allocation3 + $0x30] sm:$0x1] %v2585
        %v2587 = vld [vmem:[#allocation3 + $0x38] sm:$0x1]
        %v2588 = vsel %vm2565, %v2557, %v2587
        %2589 = vst [vmem:[#allocation3 + $0x38] sm:$0x1] %v2588
        %v2590 = vld [vmem:[#allocation3 + $0x40] sm:$0x1]
        %v2591 = vsel %vm2565, %v2558, %v2590
        %2592 = vst [vmem:[#allocation3 + $0x40] sm:$0x1] %v2591
        %v2593 = vld [vmem:[#allocation3 + $0x48] sm:$0x1]
        %v2594 = vsel %vm2565, %v2559, %v2593
        %2595 = vst [vmem:[#allocation3 + $0x48] sm:$0x1] %v2594
        %v2596 = vld [vmem:[#allocation3 + $0x50] sm:$0x1]
        %v2597 = vsel %vm2565, %v2560, %v2596
        %2598 = vst [vmem:[#allocation3 + $0x50] sm:$0x1] %v2597
        %v2599 = vld [vmem:[#allocation3 + $0x58] sm:$0x1]
        %v2600 = vsel %vm2565, %v2561, %v2599
        %2601 = vst [vmem:[#allocation3 + $0x58] sm:$0x1] %v2600
        %v2602 = vld [vmem:[#allocation3 + $0x60] sm:$0x1]
        %v2603 = vsel %vm2565, %v2562, %v2602
        %2604 = vst [vmem:[#allocation3 + $0x60] sm:$0x1] %v2603
        %v2605 = vld [vmem:[#allocation2 + $0x2] sm:$0x1]
        %v2606 = vld [vmem:[#allocation2 + $0x22] sm:$0x1]
        %v2607 = vld [vmem:[#allocation2 + $0x42] sm:$0x1]
        %v2608 = vld [vmem:[#allocation2 + $0x62] sm:$0x1]
        %v2609 = vld [vmem:[#allocation2 + $0x82] sm:$0x1]
        %v2610 = vld [vmem:[#allocation2 + $0xa2] sm:$0x1]
        %v2611 = vld [vmem:[#allocation2 + $0xc2] sm:$0x1]
        %v2612 = vld [vmem:[#allocation2 + $0xe2] sm:$0x1]
        %v2613 = vld [vmem:[#allocation2 + $0x102] sm:$0x1]
        %v2614 = vld [vmem:[#allocation2 + $0x122] sm:$0x1]
        %v2615 = vld [vmem:[#allocation2 + $0x142] sm:$0x1]
        %v2616 = vld [vmem:[#allocation2 + $0x162] sm:$0x1]
        %v2617 = vld [vmem:[#allocation2 + $0x182] sm:$0x1]
        %v2618 = vld [vmem:[#allocation2 + $0x3] sm:$0x1]
        %v2619 = vld [vmem:[#allocation2 + $0x23] sm:$0x1]
        %v2620 = vld [vmem:[#allocation2 + $0x43] sm:$0x1]
        %v2621 = vld [vmem:[#allocation2 + $0x63] sm:$0x1]
        %v2622 = vld [vmem:[#allocation2 + $0x83] sm:$0x1]
        %v2623 = vld [vmem:[#allocation2 + $0xa3] sm:$0x1]
        %v2624 = vld [vmem:[#allocation2 + $0xc3] sm:$0x1]
        %v2625 = vld [vmem:[#allocation2 + $0xe3] sm:$0x1]
        %v2626 = vld [vmem:[#allocation2 + $0x103] sm:$0x1]
        %v2627 = vld [vmem:[#allocation2 + $0x123] sm:$0x1]
        %v2628 = vld [vmem:[#allocation2 + $0x143] sm:$0x1]
        %v2629 = vld [vmem:[#allocation2 + $0x163] sm:$0x1]
        %v2630 = vld [vmem:[#allocation2 + $0x183] sm:$0x1]
        %v2631 = vmax.f32 %v2605, %v2618
        %v2632 = vmax.f32 %v2606, %v2619
        %v2633 = vmax.f32 %v2607, %v2620
        %v2634 = vmax.f32 %v2608, %v2621
        %v2635 = vmax.f32 %v2609, %v2622
        %v2636 = vmax.f32 %v2610, %v2623
        %v2637 = vmax.f32 %v2611, %v2624
        %v2638 = vmax.f32 %v2612, %v2625
        %v2639 = vmax.f32 %v2613, %v2626
        %v2640 = vmax.f32 %v2614, %v2627
        %v2641 = vmax.f32 %v2615, %v2628
        %v2642 = vmax.f32 %v2616, %v2629
        %v2643 = vmax.f32 %v2617, %v2630
        %v2644 = vpack.c.bf16 %v2631, %v2631
        %v2645 = vpack.c.bf16 %v2632, %v2632
        %v2646 = vpack.c.bf16 %v2633, %v2633
        %v2647 = vpack.c.bf16 %v2634, %v2634
        %v2648 = vpack.c.bf16 %v2635, %v2635
        %v2649 = vpack.c.bf16 %v2636, %v2636
        %v2650 = vpack.c.bf16 %v2637, %v2637
        %v2651 = vpack.c.bf16 %v2638, %v2638
        %v2652 = vpack.c.bf16 %v2639, %v2639
        %v2653 = vpack.c.bf16 %v2640, %v2640
        %v2654 = vpack.c.bf16 %v2641, %v2641
        %v2655 = vpack.c.bf16 %v2642, %v2642
        %v2656 = vpack.c.bf16 %v2643, %v2643
        %v2670 = vunpack.c.l.b16 %v2644
        %v2671 = vunpack.c.l.b16 %v2645
        %v2672 = vunpack.c.l.b16 %v2646
        %v2673 = vunpack.c.l.b16 %v2647
        %v2674 = vunpack.c.l.b16 %v2648
        %v2675 = vunpack.c.l.b16 %v2649
        %v2676 = vunpack.c.l.b16 %v2650
        %v2677 = vunpack.c.l.b16 %v2651
        %v2678 = vunpack.c.l.b16 %v2652
        %v2679 = vunpack.c.l.b16 %v2653
        %v2680 = vunpack.c.l.b16 %v2654
        %v2681 = vunpack.c.l.b16 %v2655
        %v2682 = vunpack.c.l.b16 %v2656
        %v2683 = vpack.c.b16 %v2670, %v2670
        %v2684 = vpack.c.b16 %v2671, %v2671
        %v2685 = vpack.c.b16 %v2672, %v2672
        %v2686 = vpack.c.b16 %v2673, %v2673
        %v2687 = vpack.c.b16 %v2674, %v2674
        %v2688 = vpack.c.b16 %v2675, %v2675
        %v2689 = vpack.c.b16 %v2676, %v2676
        %v2690 = vpack.c.b16 %v2677, %v2677
        %v2691 = vpack.c.b16 %v2678, %v2678
        %v2692 = vpack.c.b16 %v2679, %v2679
        %v2693 = vpack.c.b16 %v2680, %v2680
        %v2694 = vpack.c.b16 %v2681, %v2681
        %v2695 = vpack.c.b16 %v2682, %v2682
        %v2697 = vshll.u32 %v2683, 16
        %v2700 = vshll.u32 %v2684, 16
        %v2703 = vshll.u32 %v2685, 16
        %v2706 = vshll.u32 %v2686, 16
        %v2709 = vshll.u32 %v2687, 16
        %v2712 = vshll.u32 %v2688, 16
        %v2715 = vshll.u32 %v2689, 16
        %v2718 = vshll.u32 %v2690, 16
        %v2721 = vshll.u32 %v2691, 16
        %v2724 = vshll.u32 %v2692, 16
        %v2727 = vshll.u32 %v2693, 16
        %v2730 = vshll.u32 %v2694, 16
        %v2733 = vshll.u32 %v2695, 16
        %vm2748 = vsmask.f32 7938
        %vm2749 = vmand %vm2563, %vm2748
        %v2750 = vld [vmem:[#allocation3] sm:$0x1]
        %v2751 = vsel %vm2749, %v2697, %v2750
        %2752 = vst [vmem:[#allocation3] sm:$0x1] %v2751
        %v2753 = vld [vmem:[#allocation3 + $0x8] sm:$0x1]
        %v2754 = vsel %vm2749, %v2700, %v2753
        %2755 = vst [vmem:[#allocation3 + $0x8] sm:$0x1] %v2754
        %v2756 = vld [vmem:[#allocation3 + $0x10] sm:$0x1]
        %v2757 = vsel %vm2749, %v2703, %v2756
        %2758 = vst [vmem:[#allocation3 + $0x10] sm:$0x1] %v2757
        %v2759 = vld [vmem:[#allocation3 + $0x18] sm:$0x1]
        %v2760 = vsel %vm2749, %v2706, %v2759
        %2761 = vst [vmem:[#allocation3 + $0x18] sm:$0x1] %v2760
        %v2762 = vld [vmem:[#allocation3 + $0x20] sm:$0x1]
        %v2763 = vsel %vm2749, %v2709, %v2762
        %2764 = vst [vmem:[#allocation3 + $0x20] sm:$0x1] %v2763
        %v2765 = vld [vmem:[#allocation3 + $0x28] sm:$0x1]
        %v2766 = vsel %vm2749, %v2712, %v2765
        %2767 = vst [vmem:[#allocation3 + $0x28] sm:$0x1] %v2766
        %v2768 = vld [vmem:[#allocation3 + $0x30] sm:$0x1]
        %v2769 = vsel %vm2749, %v2715, %v2768
        %2770 = vst [vmem:[#allocation3 + $0x30] sm:$0x1] %v2769
        %v2771 = vld [vmem:[#allocation3 + $0x38] sm:$0x1]
        %v2772 = vsel %vm2749, %v2718, %v2771
        %2773 = vst [vmem:[#allocation3 + $0x38] sm:$0x1] %v2772
        %v2774 = vld [vmem:[#allocation3 + $0x40] sm:$0x1]
        %v2775 = vsel %vm2749, %v2721, %v2774
        %2776 = vst [vmem:[#allocation3 + $0x40] sm:$0x1] %v2775
        %v2777 = vld [vmem:[#allocation3 + $0x48] sm:$0x1]
        %v2778 = vsel %vm2749, %v2724, %v2777
        %2779 = vst [vmem:[#allocation3 + $0x48] sm:$0x1] %v2778
        %v2780 = vld [vmem:[#allocation3 + $0x50] sm:$0x1]
        %v2781 = vsel %vm2749, %v2727, %v2780
        %2782 = vst [vmem:[#allocation3 + $0x50] sm:$0x1] %v2781
        %v2783 = vld [vmem:[#allocation3 + $0x58] sm:$0x1]
        %v2784 = vsel %vm2749, %v2730, %v2783
        %2785 = vst [vmem:[#allocation3 + $0x58] sm:$0x1] %v2784
        %v2786 = vld [vmem:[#allocation3 + $0x60] sm:$0x1]
        %v2787 = vsel %vm2749, %v2733, %v2786
        %2788 = vst [vmem:[#allocation3 + $0x60] sm:$0x1] %v2787
        %v2789 = vld [vmem:[#allocation2 + $0x4] sm:$0x1]
        %v2790 = vld [vmem:[#allocation2 + $0x24] sm:$0x1]
        %v2791 = vld [vmem:[#allocation2 + $0x44] sm:$0x1]
        %v2792 = vld [vmem:[#allocation2 + $0x64] sm:$0x1]
        %v2793 = vld [vmem:[#allocation2 + $0x84] sm:$0x1]
        %v2794 = vld [vmem:[#allocation2 + $0xa4] sm:$0x1]
        %v2795 = vld [vmem:[#allocation2 + $0xc4] sm:$0x1]
        %v2796 = vld [vmem:[#allocation2 + $0xe4] sm:$0x1]
        %v2797 = vld [vmem:[#allocation2 + $0x104] sm:$0x1]
        %v2798 = vld [vmem:[#allocation2 + $0x124] sm:$0x1]
        %v2799 = vld [vmem:[#allocation2 + $0x144] sm:$0x1]
        %v2800 = vld [vmem:[#allocation2 + $0x164] sm:$0x1]
        %v2801 = vld [vmem:[#allocation2 + $0x184] sm:$0x1]
        %v2802 = vld [vmem:[#allocation2 + $0x5] sm:$0x1]
        %v2803 = vld [vmem:[#allocation2 + $0x25] sm:$0x1]
        %v2804 = vld [vmem:[#allocation2 + $0x45] sm:$0x1]
        %v2805 = vld [vmem:[#allocation2 + $0x65] sm:$0x1]
        %v2806 = vld [vmem:[#allocation2 + $0x85] sm:$0x1]
        %v2807 = vld [vmem:[#allocation2 + $0xa5] sm:$0x1]
        %v2808 = vld [vmem:[#allocation2 + $0xc5] sm:$0x1]
        %v2809 = vld [vmem:[#allocation2 + $0xe5] sm:$0x1]
        %v2810 = vld [vmem:[#allocation2 + $0x105] sm:$0x1]
        %v2811 = vld [vmem:[#allocation2 + $0x125] sm:$0x1]
        %v2812 = vld [vmem:[#allocation2 + $0x145] sm:$0x1]
        %v2813 = vld [vmem:[#allocation2 + $0x165] sm:$0x1]
        %v2814 = vld [vmem:[#allocation2 + $0x185] sm:$0x1]
        %v2815 = vmax.f32 %v2789, %v2802
        %v2816 = vmax.f32 %v2790, %v2803
        %v2817 = vmax.f32 %v2791, %v2804
        %v2818 = vmax.f32 %v2792, %v2805
        %v2819 = vmax.f32 %v2793, %v2806
        %v2820 = vmax.f32 %v2794, %v2807
        %v2821 = vmax.f32 %v2795, %v2808
        %v2822 = vmax.f32 %v2796, %v2809
        %v2823 = vmax.f32 %v2797, %v2810
        %v2824 = vmax.f32 %v2798, %v2811
        %v2825 = vmax.f32 %v2799, %v2812
        %v2826 = vmax.f32 %v2800, %v2813
        %v2827 = vmax.f32 %v2801, %v2814
        %v2828 = vpack.c.bf16 %v2815, %v2815
        %v2829 = vpack.c.bf16 %v2816, %v2816
        %v2830 = vpack.c.bf16 %v2817, %v2817
        %v2831 = vpack.c.bf16 %v2818, %v2818
        %v2832 = vpack.c.bf16 %v2819, %v2819
        %v2833 = vpack.c.bf16 %v2820, %v2820
        %v2834 = vpack.c.bf16 %v2821, %v2821
        %v2835 = vpack.c.bf16 %v2822, %v2822
        %v2836 = vpack.c.bf16 %v2823, %v2823
        %v2837 = vpack.c.bf16 %v2824, %v2824
        %v2838 = vpack.c.bf16 %v2825, %v2825
        %v2839 = vpack.c.bf16 %v2826, %v2826
        %v2840 = vpack.c.bf16 %v2827, %v2827
        %v2854 = vunpack.c.l.b16 %v2828
        %v2855 = vunpack.c.l.b16 %v2829
        %v2856 = vunpack.c.l.b16 %v2830
        %v2857 = vunpack.c.l.b16 %v2831
        %v2858 = vunpack.c.l.b16 %v2832
        %v2859 = vunpack.c.l.b16 %v2833
        %v2860 = vunpack.c.l.b16 %v2834
        %v2861 = vunpack.c.l.b16 %v2835
        %v2862 = vunpack.c.l.b16 %v2836
        %v2863 = vunpack.c.l.b16 %v2837
        %v2864 = vunpack.c.l.b16 %v2838
        %v2865 = vunpack.c.l.b16 %v2839
        %v2866 = vunpack.c.l.b16 %v2840
        %v2867 = vpack.c.b16 %v2854, %v2854
        %v2868 = vpack.c.b16 %v2855, %v2855
        %v2869 = vpack.c.b16 %v2856, %v2856
        %v2870 = vpack.c.b16 %v2857, %v2857
        %v2871 = vpack.c.b16 %v2858, %v2858
        %v2872 = vpack.c.b16 %v2859, %v2859
        %v2873 = vpack.c.b16 %v2860, %v2860
        %v2874 = vpack.c.b16 %v2861, %v2861
        %v2875 = vpack.c.b16 %v2862, %v2862
        %v2876 = vpack.c.b16 %v2863, %v2863
        %v2877 = vpack.c.b16 %v2864, %v2864
        %v2878 = vpack.c.b16 %v2865, %v2865
        %v2879 = vpack.c.b16 %v2866, %v2866
        %v2880 = vrot.slane %v2867, 7
        %v2881 = vrot.slane %v2868, 7
        %v2882 = vrot.slane %v2869, 7
        %v2883 = vrot.slane %v2870, 7
        %v2884 = vrot.slane %v2871, 7
        %v2885 = vrot.slane %v2872, 7
        %v2886 = vrot.slane %v2873, 7
        %v2887 = vrot.slane %v2874, 7
        %v2888 = vrot.slane %v2875, 7
        %v2889 = vrot.slane %v2876, 7
        %v2890 = vrot.slane %v2877, 7
        %v2891 = vrot.slane %v2878, 7
        %v2892 = vrot.slane %v2879, 7
        %vm2906 = vcmask 254977
        %vm2907 = vsmask.f32 1280
        %vm2908 = vmand %vm2906, %vm2907
        %v2909 = vld [vmem:[#allocation3] sm:$0x2]
        %v2910 = vsel %vm2908, %v2880, %v2909
        %2911 = vst [vmem:[#allocation3] sm:$0x2] %v2910
        %v2912 = vld [vmem:[#allocation3 + $0x8] sm:$0x2]
        %v2913 = vsel %vm2908, %v2881, %v2912
        %2914 = vst [vmem:[#allocation3 + $0x8] sm:$0x2] %v2913
        %v2915 = vld [vmem:[#allocation3 + $0x10] sm:$0x2]
        %v2916 = vsel %vm2908, %v2882, %v2915
        %2917 = vst [vmem:[#allocation3 + $0x10] sm:$0x2] %v2916
        %v2918 = vld [vmem:[#allocation3 + $0x18] sm:$0x2]
        %v2919 = vsel %vm2908, %v2883, %v2918
        %2920 = vst [vmem:[#allocation3 + $0x18] sm:$0x2] %v2919
        %v2921 = vld [vmem:[#allocation3 + $0x20] sm:$0x2]
        %v2922 = vsel %vm2908, %v2884, %v2921
        %2923 = vst [vmem:[#allocation3 + $0x20] sm:$0x2] %v2922
        %v2924 = vld [vmem:[#allocation3 + $0x28] sm:$0x2]
        %v2925 = vsel %vm2908, %v2885, %v2924
        %2926 = vst [vmem:[#allocation3 + $0x28] sm:$0x2] %v2925
        %v2927 = vld [vmem:[#allocation3 + $0x30] sm:$0x2]
        %v2928 = vsel %vm2908, %v2886, %v2927
        %2929 = vst [vmem:[#allocation3 + $0x30] sm:$0x2] %v2928
        %v2930 = vld [vmem:[#allocation3 + $0x38] sm:$0x2]
        %v2931 = vsel %vm2908, %v2887, %v2930
        %2932 = vst [vmem:[#allocation3 + $0x38] sm:$0x2] %v2931
        %v2933 = vld [vmem:[#allocation3 + $0x40] sm:$0x2]
        %v2934 = vsel %vm2908, %v2888, %v2933
        %2935 = vst [vmem:[#allocation3 + $0x40] sm:$0x2] %v2934
        %v2936 = vld [vmem:[#allocation3 + $0x48] sm:$0x2]
        %v2937 = vsel %vm2908, %v2889, %v2936
        %2938 = vst [vmem:[#allocation3 + $0x48] sm:$0x2] %v2937
        %v2939 = vld [vmem:[#allocation3 + $0x50] sm:$0x2]
        %v2940 = vsel %vm2908, %v2890, %v2939
        %2941 = vst [vmem:[#allocation3 + $0x50] sm:$0x2] %v2940
        %v2942 = vld [vmem:[#allocation3 + $0x58] sm:$0x2]
        %v2943 = vsel %vm2908, %v2891, %v2942
        %2944 = vst [vmem:[#allocation3 + $0x58] sm:$0x2] %v2943
        %v2945 = vld [vmem:[#allocation3 + $0x60] sm:$0x2]
        %v2946 = vsel %vm2908, %v2892, %v2945
        %2947 = vst [vmem:[#allocation3 + $0x60] sm:$0x2] %v2946
        %v2948 = vld [vmem:[#allocation2 + $0x6] sm:$0x1]
        %v2949 = vld [vmem:[#allocation2 + $0x26] sm:$0x1]
        %v2950 = vld [vmem:[#allocation2 + $0x46] sm:$0x1]
        %v2951 = vld [vmem:[#allocation2 + $0x66] sm:$0x1]
        %v2952 = vld [vmem:[#allocation2 + $0x86] sm:$0x1]
        %v2953 = vld [vmem:[#allocation2 + $0xa6] sm:$0x1]
        %v2954 = vld [vmem:[#allocation2 + $0xc6] sm:$0x1]
        %v2955 = vld [vmem:[#allocation2 + $0xe6] sm:$0x1]
        %v2956 = vld [vmem:[#allocation2 + $0x106] sm:$0x1]
        %v2957 = vld [vmem:[#allocation2 + $0x126] sm:$0x1]
        %v2958 = vld [vmem:[#allocation2 + $0x146] sm:$0x1]
        %v2959 = vld [vmem:[#allocation2 + $0x166] sm:$0x1]
        %v2960 = vld [vmem:[#allocation2 + $0x186] sm:$0x1]
        %v2961 = vld [vmem:[#allocation2 + $0x7] sm:$0x1]
        %v2962 = vld [vmem:[#allocation2 + $0x27] sm:$0x1]
        %v2963 = vld [vmem:[#allocation2 + $0x47] sm:$0x1]
        %v2964 = vld [vmem:[#allocation2 + $0x67] sm:$0x1]
        %v2965 = vld [vmem:[#allocation2 + $0x87] sm:$0x1]
        %v2966 = vld [vmem:[#allocation2 + $0xa7] sm:$0x1]
        %v2967 = vld [vmem:[#allocation2 + $0xc7] sm:$0x1]
        %v2968 = vld [vmem:[#allocation2 + $0xe7] sm:$0x1]
        %v2969 = vld [vmem:[#allocation2 + $0x107] sm:$0x1]
        %v2970 = vld [vmem:[#allocation2 + $0x127] sm:$0x1]
        %v2971 = vld [vmem:[#allocation2 + $0x147] sm:$0x1]
        %v2972 = vld [vmem:[#allocation2 + $0x167] sm:$0x1]
        %v2973 = vld [vmem:[#allocation2 + $0x187] sm:$0x1]
        %v2974 = vmax.f32 %v2948, %v2961
        %v2975 = vmax.f32 %v2949, %v2962
        %v2976 = vmax.f32 %v2950, %v2963
        %v2977 = vmax.f32 %v2951, %v2964
        %v2978 = vmax.f32 %v2952, %v2965
        %v2979 = vmax.f32 %v2953, %v2966
        %v2980 = vmax.f32 %v2954, %v2967
        %v2981 = vmax.f32 %v2955, %v2968
        %v2982 = vmax.f32 %v2956, %v2969
        %v2983 = vmax.f32 %v2957, %v2970
        %v2984 = vmax.f32 %v2958, %v2971
        %v2985 = vmax.f32 %v2959, %v2972
        %v2986 = vmax.f32 %v2960, %v2973
        %v2987 = vpack.c.bf16 %v2974, %v2974
        %v2988 = vpack.c.bf16 %v2975, %v2975
        %v2989 = vpack.c.bf16 %v2976, %v2976
        %v2990 = vpack.c.bf16 %v2977, %v2977
        %v2991 = vpack.c.bf16 %v2978, %v2978
        %v2992 = vpack.c.bf16 %v2979, %v2979
        %v2993 = vpack.c.bf16 %v2980, %v2980
        %v2994 = vpack.c.bf16 %v2981, %v2981
        %v2995 = vpack.c.bf16 %v2982, %v2982
        %v2996 = vpack.c.bf16 %v2983, %v2983
        %v2997 = vpack.c.bf16 %v2984, %v2984
        %v2998 = vpack.c.bf16 %v2985, %v2985
        %v2999 = vpack.c.bf16 %v2986, %v2986
        %v3013 = vunpack.c.l.b16 %v2987
        %v3014 = vunpack.c.l.b16 %v2988
        %v3015 = vunpack.c.l.b16 %v2989
        %v3016 = vunpack.c.l.b16 %v2990
        %v3017 = vunpack.c.l.b16 %v2991
        %v3018 = vunpack.c.l.b16 %v2992
        %v3019 = vunpack.c.l.b16 %v2993
        %v3020 = vunpack.c.l.b16 %v2994
        %v3021 = vunpack.c.l.b16 %v2995
        %v3022 = vunpack.c.l.b16 %v2996
        %v3023 = vunpack.c.l.b16 %v2997
        %v3024 = vunpack.c.l.b16 %v2998
        %v3025 = vunpack.c.l.b16 %v2999
        %v3026 = vpack.c.b16 %v3013, %v3013
        %v3027 = vpack.c.b16 %v3014, %v3014
        %v3028 = vpack.c.b16 %v3015, %v3015
        %v3029 = vpack.c.b16 %v3016, %v3016
        %v3030 = vpack.c.b16 %v3017, %v3017
        %v3031 = vpack.c.b16 %v3018, %v3018
        %v3032 = vpack.c.b16 %v3019, %v3019
        %v3033 = vpack.c.b16 %v3020, %v3020
        %v3034 = vpack.c.b16 %v3021, %v3021
        %v3035 = vpack.c.b16 %v3022, %v3022
        %v3036 = vpack.c.b16 %v3023, %v3023
        %v3037 = vpack.c.b16 %v3024, %v3024
        %v3038 = vpack.c.b16 %v3025, %v3025
        %v3040 = vshll.u32 %v3026, 16
        %v3042 = vrot.slane %v3040, 7
        %v3044 = vshll.u32 %v3027, 16
        %v3046 = vrot.slane %v3044, 7
        %v3048 = vshll.u32 %v3028, 16
        %v3050 = vrot.slane %v3048, 7
        %v3052 = vshll.u32 %v3029, 16
        %v3054 = vrot.slane %v3052, 7
        %v3056 = vshll.u32 %v3030, 16
        %v3058 = vrot.slane %v3056, 7
        %v3060 = vshll.u32 %v3031, 16
        %v3062 = vrot.slane %v3060, 7
        %v3064 = vshll.u32 %v3032, 16
        %v3066 = vrot.slane %v3064, 7
        %v3068 = vshll.u32 %v3033, 16
        %v3070 = vrot.slane %v3068, 7
        %v3072 = vshll.u32 %v3034, 16
        %v3074 = vrot.slane %v3072, 7
        %v3076 = vshll.u32 %v3035, 16
        %v3078 = vrot.slane %v3076, 7
        %v3080 = vshll.u32 %v3036, 16
        %v3082 = vrot.slane %v3080, 7
        %v3084 = vshll.u32 %v3037, 16
        %v3086 = vrot.slane %v3084, 7
        %v3088 = vshll.u32 %v3038, 16
        %v3090 = vrot.slane %v3088, 7
        %vm3104 = vsmask.f32 7942
        %vm3105 = vmand %vm2906, %vm3104
        %v3106 = vld [vmem:[#allocation3] sm:$0x2]
        %v3107 = vsel %vm3105, %v3042, %v3106
        %3108 = vst [vmem:[#allocation3] sm:$0x2] %v3107
        %v3109 = vld [vmem:[#allocation3 + $0x8] sm:$0x2]
        %v3110 = vsel %vm3105, %v3046, %v3109
        %3111 = vst [vmem:[#allocation3 + $0x8] sm:$0x2] %v3110
        %v3112 = vld [vmem:[#allocation3 + $0x10] sm:$0x2]
        %v3113 = vsel %vm3105, %v3050, %v3112
        %3114 = vst [vmem:[#allocation3 + $0x10] sm:$0x2] %v3113
        %v3115 = vld [vmem:[#allocation3 + $0x18] sm:$0x2]
        %v3116 = vsel %vm3105, %v3054, %v3115
        %3117 = vst [vmem:[#allocation3 + $0x18] sm:$0x2] %v3116
        %v3118 = vld [vmem:[#allocation3 + $0x20] sm:$0x2]
        %v3119 = vsel %vm3105, %v3058, %v3118
        %3120 = vst [vmem:[#allocation3 + $0x20] sm:$0x2] %v3119
        %v3121 = vld [vmem:[#allocation3 + $0x28] sm:$0x2]
        %v3122 = vsel %vm3105, %v3062, %v3121
        %3123 = vst [vmem:[#allocation3 + $0x28] sm:$0x2] %v3122
        %v3124 = vld [vmem:[#allocation3 + $0x30] sm:$0x2]
        %v3125 = vsel %vm3105, %v3066, %v3124
        %3126 = vst [vmem:[#allocation3 + $0x30] sm:$0x2] %v3125
        %v3127 = vld [vmem:[#allocation3 + $0x38] sm:$0x2]
        %v3128 = vsel %vm3105, %v3070, %v3127
        %3129 = vst [vmem:[#allocation3 + $0x38] sm:$0x2] %v3128
        %v3130 = vld [vmem:[#allocation3 + $0x40] sm:$0x2]
        %v3131 = vsel %vm3105, %v3074, %v3130
        %3132 = vst [vmem:[#allocation3 + $0x40] sm:$0x2] %v3131
        %v3133 = vld [vmem:[#allocation3 + $0x48] sm:$0x2]
        %v3134 = vsel %vm3105, %v3078, %v3133
        %3135 = vst [vmem:[#allocation3 + $0x48] sm:$0x2] %v3134
        %v3136 = vld [vmem:[#allocation3 + $0x50] sm:$0x2]
        %v3137 = vsel %vm3105, %v3082, %v3136
        %3138 = vst [vmem:[#allocation3 + $0x50] sm:$0x2] %v3137
        %v3139 = vld [vmem:[#allocation3 + $0x58] sm:$0x2]
        %v3140 = vsel %vm3105, %v3086, %v3139
        %3141 = vst [vmem:[#allocation3 + $0x58] sm:$0x2] %v3140
        %v3142 = vld [vmem:[#allocation3 + $0x60] sm:$0x2]
        %v3143 = vsel %vm3105, %v3090, %v3142
        %3144 = vst [vmem:[#allocation3 + $0x60] sm:$0x2] %v3143
        %v3145 = vld [vmem:[#allocation2 + $0x8] sm:$0x1]
        %v3146 = vld [vmem:[#allocation2 + $0x28] sm:$0x1]
        %v3147 = vld [vmem:[#allocation2 + $0x48] sm:$0x1]
        %v3148 = vld [vmem:[#allocation2 + $0x68] sm:$0x1]
        %v3149 = vld [vmem:[#allocation2 + $0x88] sm:$0x1]
        %v3150 = vld [vmem:[#allocation2 + $0xa8] sm:$0x1]
        %v3151 = vld [vmem:[#allocation2 + $0xc8] sm:$0x1]
        %v3152 = vld [vmem:[#allocation2 + $0xe8] sm:$0x1]
        %v3153 = vld [vmem:[#allocation2 + $0x108] sm:$0x1]
        %v3154 = vld [vmem:[#allocation2 + $0x128] sm:$0x1]
        %v3155 = vld [vmem:[#allocation2 + $0x148] sm:$0x1]
        %v3156 = vld [vmem:[#allocation2 + $0x168] sm:$0x1]
        %v3157 = vld [vmem:[#allocation2 + $0x188] sm:$0x1]
        %v3158 = vld [vmem:[#allocation2 + $0x9] sm:$0x1]
        %v3159 = vld [vmem:[#allocation2 + $0x29] sm:$0x1]
        %v3160 = vld [vmem:[#allocation2 + $0x49] sm:$0x1]
        %v3161 = vld [vmem:[#allocation2 + $0x69] sm:$0x1]
        %v3162 = vld [vmem:[#allocation2 + $0x89] sm:$0x1]
        %v3163 = vld [vmem:[#allocation2 + $0xa9] sm:$0x1]
        %v3164 = vld [vmem:[#allocation2 + $0xc9] sm:$0x1]
        %v3165 = vld [vmem:[#allocation2 + $0xe9] sm:$0x1]
        %v3166 = vld [vmem:[#allocation2 + $0x109] sm:$0x1]
        %v3167 = vld [vmem:[#allocation2 + $0x129] sm:$0x1]
        %v3168 = vld [vmem:[#allocation2 + $0x149] sm:$0x1]
        %v3169 = vld [vmem:[#allocation2 + $0x169] sm:$0x1]
        %v3170 = vld [vmem:[#allocation2 + $0x189] sm:$0x1]
        %v3171 = vmax.f32 %v3145, %v3158
        %v3172 = vmax.f32 %v3146, %v3159
        %v3173 = vmax.f32 %v3147, %v3160
        %v3174 = vmax.f32 %v3148, %v3161
        %v3175 = vmax.f32 %v3149, %v3162
        %v3176 = vmax.f32 %v3150, %v3163
        %v3177 = vmax.f32 %v3151, %v3164
        %v3178 = vmax.f32 %v3152, %v3165
        %v3179 = vmax.f32 %v3153, %v3166
        %v3180 = vmax.f32 %v3154, %v3167
        %v3181 = vmax.f32 %v3155, %v3168
        %v3182 = vmax.f32 %v3156, %v3169
        %v3183 = vmax.f32 %v3157, %v3170
        %v3184 = vpack.c.bf16 %v3171, %v3171
        %v3185 = vpack.c.bf16 %v3172, %v3172
        %v3186 = vpack.c.bf16 %v3173, %v3173
        %v3187 = vpack.c.bf16 %v3174, %v3174
        %v3188 = vpack.c.bf16 %v3175, %v3175
        %v3189 = vpack.c.bf16 %v3176, %v3176
        %v3190 = vpack.c.bf16 %v3177, %v3177
        %v3191 = vpack.c.bf16 %v3178, %v3178
        %v3192 = vpack.c.bf16 %v3179, %v3179
        %v3193 = vpack.c.bf16 %v3180, %v3180
        %v3194 = vpack.c.bf16 %v3181, %v3181
        %v3195 = vpack.c.bf16 %v3182, %v3182
        %v3196 = vpack.c.bf16 %v3183, %v3183
        %v3210 = vunpack.c.l.b16 %v3184
        %v3211 = vunpack.c.l.b16 %v3185
        %v3212 = vunpack.c.l.b16 %v3186
        %v3213 = vunpack.c.l.b16 %v3187
        %v3214 = vunpack.c.l.b16 %v3188
        %v3215 = vunpack.c.l.b16 %v3189
        %v3216 = vunpack.c.l.b16 %v3190
        %v3217 = vunpack.c.l.b16 %v3191
        %v3218 = vunpack.c.l.b16 %v3192
        %v3219 = vunpack.c.l.b16 %v3193
        %v3220 = vunpack.c.l.b16 %v3194
        %v3221 = vunpack.c.l.b16 %v3195
        %v3222 = vunpack.c.l.b16 %v3196
        %v3223 = vpack.c.b16 %v3210, %v3210
        %v3224 = vpack.c.b16 %v3211, %v3211
        %v3225 = vpack.c.b16 %v3212, %v3212
        %v3226 = vpack.c.b16 %v3213, %v3213
        %v3227 = vpack.c.b16 %v3214, %v3214
        %v3228 = vpack.c.b16 %v3215, %v3215
        %v3229 = vpack.c.b16 %v3216, %v3216
        %v3230 = vpack.c.b16 %v3217, %v3217
        %v3231 = vpack.c.b16 %v3218, %v3218
        %v3232 = vpack.c.b16 %v3219, %v3219
        %v3233 = vpack.c.b16 %v3220, %v3220
        %v3234 = vpack.c.b16 %v3221, %v3221
        %v3235 = vpack.c.b16 %v3222, %v3222
        %v3236 = vrot.slane %v3223, 6
        %v3237 = vrot.slane %v3224, 6
        %v3238 = vrot.slane %v3225, 6
        %v3239 = vrot.slane %v3226, 6
        %v3240 = vrot.slane %v3227, 6
        %v3241 = vrot.slane %v3228, 6
        %v3242 = vrot.slane %v3229, 6
        %v3243 = vrot.slane %v3230, 6
        %v3244 = vrot.slane %v3231, 6
        %v3245 = vrot.slane %v3232, 6
        %v3246 = vrot.slane %v3233, 6
        %v3247 = vrot.slane %v3234, 6
        %v3248 = vrot.slane %v3235, 6
        %vm3262 = vcmask 256002
        %vm3263 = vsmask.f32 2304
        %vm3264 = vmand %vm3262, %vm3263
        %v3265 = vld [vmem:[#allocation3] sm:$0x4]
        %v3266 = vsel %vm3264, %v3236, %v3265
        %3267 = vst [vmem:[#allocation3] sm:$0x4] %v3266
        %v3268 = vld [vmem:[#allocation3 + $0x8] sm:$0x4]
        %v3269 = vsel %vm3264, %v3237, %v3268
        %3270 = vst [vmem:[#allocation3 + $0x8] sm:$0x4] %v3269
        %v3271 = vld [vmem:[#allocation3 + $0x10] sm:$0x4]
        %v3272 = vsel %vm3264, %v3238, %v3271
        %3273 = vst [vmem:[#allocation3 + $0x10] sm:$0x4] %v3272
        %v3274 = vld [vmem:[#allocation3 + $0x18] sm:$0x4]
        %v3275 = vsel %vm3264, %v3239, %v3274
        %3276 = vst [vmem:[#allocation3 + $0x18] sm:$0x4] %v3275
        %v3277 = vld [vmem:[#allocation3 + $0x20] sm:$0x4]
        %v3278 = vsel %vm3264, %v3240, %v3277
        %3279 = vst [vmem:[#allocation3 + $0x20] sm:$0x4] %v3278
        %v3280 = vld [vmem:[#allocation3 + $0x28] sm:$0x4]
        %v3281 = vsel %vm3264, %v3241, %v3280
        %3282 = vst [vmem:[#allocation3 + $0x28] sm:$0x4] %v3281
        %v3283 = vld [vmem:[#allocation3 + $0x30] sm:$0x4]
        %v3284 = vsel %vm3264, %v3242, %v3283
        %3285 = vst [vmem:[#allocation3 + $0x30] sm:$0x4] %v3284
        %v3286 = vld [vmem:[#allocation3 + $0x38] sm:$0x4]
        %v3287 = vsel %vm3264, %v3243, %v3286
        %3288 = vst [vmem:[#allocation3 + $0x38] sm:$0x4] %v3287
        %v3289 = vld [vmem:[#allocation3 + $0x40] sm:$0x4]
        %v3290 = vsel %vm3264, %v3244, %v3289
        %3291 = vst [vmem:[#allocation3 + $0x40] sm:$0x4] %v3290
        %v3292 = vld [vmem:[#allocation3 + $0x48] sm:$0x4]
        %v3293 = vsel %vm3264, %v3245, %v3292
        %3294 = vst [vmem:[#allocation3 + $0x48] sm:$0x4] %v3293
        %v3295 = vld [vmem:[#allocation3 + $0x50] sm:$0x4]
        %v3296 = vsel %vm3264, %v3246, %v3295
        %3297 = vst [vmem:[#allocation3 + $0x50] sm:$0x4] %v3296
        %v3298 = vld [vmem:[#allocation3 + $0x58] sm:$0x4]
        %v3299 = vsel %vm3264, %v3247, %v3298
        %3300 = vst [vmem:[#allocation3 + $0x58] sm:$0x4] %v3299
        %v3301 = vld [vmem:[#allocation3 + $0x60] sm:$0x4]
        %v3302 = vsel %vm3264, %v3248, %v3301
        %3303 = vst [vmem:[#allocation3 + $0x60] sm:$0x4] %v3302
        %v3304 = vld [vmem:[#allocation2 + $0xa] sm:$0x1]
        %v3305 = vld [vmem:[#allocation2 + $0x2a] sm:$0x1]
        %v3306 = vld [vmem:[#allocation2 + $0x4a] sm:$0x1]
        %v3307 = vld [vmem:[#allocation2 + $0x6a] sm:$0x1]
        %v3308 = vld [vmem:[#allocation2 + $0x8a] sm:$0x1]
        %v3309 = vld [vmem:[#allocation2 + $0xaa] sm:$0x1]
        %v3310 = vld [vmem:[#allocation2 + $0xca] sm:$0x1]
        %v3311 = vld [vmem:[#allocation2 + $0xea] sm:$0x1]
        %v3312 = vld [vmem:[#allocation2 + $0x10a] sm:$0x1]
        %v3313 = vld [vmem:[#allocation2 + $0x12a] sm:$0x1]
        %v3314 = vld [vmem:[#allocation2 + $0x14a] sm:$0x1]
        %v3315 = vld [vmem:[#allocation2 + $0x16a] sm:$0x1]
        %v3316 = vld [vmem:[#allocation2 + $0x18a] sm:$0x1]
        %v3317 = vld [vmem:[#allocation2 + $0xb] sm:$0x1]
        %v3318 = vld [vmem:[#allocation2 + $0x2b] sm:$0x1]
        %v3319 = vld [vmem:[#allocation2 + $0x4b] sm:$0x1]
        %v3320 = vld [vmem:[#allocation2 + $0x6b] sm:$0x1]
        %v3321 = vld [vmem:[#allocation2 + $0x8b] sm:$0x1]
        %v3322 = vld [vmem:[#allocation2 + $0xab] sm:$0x1]
        %v3323 = vld [vmem:[#allocation2 + $0xcb] sm:$0x1]
        %v3324 = vld [vmem:[#allocation2 + $0xeb] sm:$0x1]
        %v3325 = vld [vmem:[#allocation2 + $0x10b] sm:$0x1]
        %v3326 = vld [vmem:[#allocation2 + $0x12b] sm:$0x1]
        %v3327 = vld [vmem:[#allocation2 + $0x14b] sm:$0x1]
        %v3328 = vld [vmem:[#allocation2 + $0x16b] sm:$0x1]
        %v3329 = vld [vmem:[#allocation2 + $0x18b] sm:$0x1]
        %v3330 = vmax.f32 %v3304, %v3317
        %v3331 = vmax.f32 %v3305, %v3318
        %v3332 = vmax.f32 %v3306, %v3319
        %v3333 = vmax.f32 %v3307, %v3320
        %v3334 = vmax.f32 %v3308, %v3321
        %v3335 = vmax.f32 %v3309, %v3322
        %v3336 = vmax.f32 %v3310, %v3323
        %v3337 = vmax.f32 %v3311, %v3324
        %v3338 = vmax.f32 %v3312, %v3325
        %v3339 = vmax.f32 %v3313, %v3326
        %v3340 = vmax.f32 %v3314, %v3327
        %v3341 = vmax.f32 %v3315, %v3328
        %v3342 = vmax.f32 %v3316, %v3329
        %v3343 = vpack.c.bf16 %v3330, %v3330
        %v3344 = vpack.c.bf16 %v3331, %v3331
        %v3345 = vpack.c.bf16 %v3332, %v3332
        %v3346 = vpack.c.bf16 %v3333, %v3333
        %v3347 = vpack.c.bf16 %v3334, %v3334
        %v3348 = vpack.c.bf16 %v3335, %v3335
        %v3349 = vpack.c.bf16 %v3336, %v3336
        %v3350 = vpack.c.bf16 %v3337, %v3337
        %v3351 = vpack.c.bf16 %v3338, %v3338
        %v3352 = vpack.c.bf16 %v3339, %v3339
        %v3353 = vpack.c.bf16 %v3340, %v3340
        %v3354 = vpack.c.bf16 %v3341, %v3341
        %v3355 = vpack.c.bf16 %v3342, %v3342
        %v3369 = vunpack.c.l.b16 %v3343
        %v3370 = vunpack.c.l.b16 %v3344
        %v3371 = vunpack.c.l.b16 %v3345
        %v3372 = vunpack.c.l.b16 %v3346
        %v3373 = vunpack.c.l.b16 %v3347
        %v3374 = vunpack.c.l.b16 %v3348
        %v3375 = vunpack.c.l.b16 %v3349
        %v3376 = vunpack.c.l.b16 %v3350
        %v3377 = vunpack.c.l.b16 %v3351
        %v3378 = vunpack.c.l.b16 %v3352
        %v3379 = vunpack.c.l.b16 %v3353
        %v3380 = vunpack.c.l.b16 %v3354
        %v3381 = vunpack.c.l.b16 %v3355
        %v3382 = vpack.c.b16 %v3369, %v3369
        %v3383 = vpack.c.b16 %v3370, %v3370
        %v3384 = vpack.c.b16 %v3371, %v3371
        %v3385 = vpack.c.b16 %v3372, %v3372
        %v3386 = vpack.c.b16 %v3373, %v3373
        %v3387 = vpack.c.b16 %v3374, %v3374
        %v3388 = vpack.c.b16 %v3375, %v3375
        %v3389 = vpack.c.b16 %v3376, %v3376
        %v3390 = vpack.c.b16 %v3377, %v3377
        %v3391 = vpack.c.b16 %v3378, %v3378
        %v3392 = vpack.c.b16 %v3379, %v3379
        %v3393 = vpack.c.b16 %v3380, %v3380
        %v3394 = vpack.c.b16 %v3381, %v3381
        %v3396 = vshll.u32 %v3382, 16
        %v3398 = vrot.slane %v3396, 6
        %v3400 = vshll.u32 %v3383, 16
        %v3402 = vrot.slane %v3400, 6
        %v3404 = vshll.u32 %v3384, 16
        %v3406 = vrot.slane %v3404, 6
        %v3408 = vshll.u32 %v3385, 16
        %v3410 = vrot.slane %v3408, 6
        %v3412 = vshll.u32 %v3386, 16
        %v3414 = vrot.slane %v3412, 6
        %v3416 = vshll.u32 %v3387, 16
        %v3418 = vrot.slane %v3416, 6
        %v3420 = vshll.u32 %v3388, 16
        %v3422 = vrot.slane %v3420, 6
        %v3424 = vshll.u32 %v3389, 16
        %v3426 = vrot.slane %v3424, 6
        %v3428 = vshll.u32 %v3390, 16
        %v3430 = vrot.slane %v3428, 6
        %v3432 = vshll.u32 %v3391, 16
        %v3434 = vrot.slane %v3432, 6
        %v3436 = vshll.u32 %v3392, 16
        %v3438 = vrot.slane %v3436, 6
        %v3440 = vshll.u32 %v3393, 16
        %v3442 = vrot.slane %v3440, 6
        %v3444 = vshll.u32 %v3394, 16
        %v3446 = vrot.slane %v3444, 6
        %vm3460 = vsmask.f32 7946
        %vm3461 = vmand %vm3262, %vm3460
        %v3462 = vld [vmem:[#allocation3] sm:$0x4]
        %v3463 = vsel %vm3461, %v3398, %v3462
        %3464 = vst [vmem:[#allocation3] sm:$0x4] %v3463
        %v3465 = vld [vmem:[#allocation3 + $0x8] sm:$0x4]
        %v3466 = vsel %vm3461, %v3402, %v3465
        %3467 = vst [vmem:[#allocation3 + $0x8] sm:$0x4] %v3466
        %v3468 = vld [vmem:[#allocation3 + $0x10] sm:$0x4]
        %v3469 = vsel %vm3461, %v3406, %v3468
        %3470 = vst [vmem:[#allocation3 + $0x10] sm:$0x4] %v3469
        %v3471 = vld [vmem:[#allocation3 + $0x18] sm:$0x4]
        %v3472 = vsel %vm3461, %v3410, %v3471
        %3473 = vst [vmem:[#allocation3 + $0x18] sm:$0x4] %v3472
        %v3474 = vld [vmem:[#allocation3 + $0x20] sm:$0x4]
        %v3475 = vsel %vm3461, %v3414, %v3474
        %3476 = vst [vmem:[#allocation3 + $0x20] sm:$0x4] %v3475
        %v3477 = vld [vmem:[#allocation3 + $0x28] sm:$0x4]
        %v3478 = vsel %vm3461, %v3418, %v3477
        %3479 = vst [vmem:[#allocation3 + $0x28] sm:$0x4] %v3478
        %v3480 = vld [vmem:[#allocation3 + $0x30] sm:$0x4]
        %v3481 = vsel %vm3461, %v3422, %v3480
        %3482 = vst [vmem:[#allocation3 + $0x30] sm:$0x4] %v3481
        %v3483 = vld [vmem:[#allocation3 + $0x38] sm:$0x4]
        %v3484 = vsel %vm3461, %v3426, %v3483
        %3485 = vst [vmem:[#allocation3 + $0x38] sm:$0x4] %v3484
        %v3486 = vld [vmem:[#allocation3 + $0x40] sm:$0x4]
        %v3487 = vsel %vm3461, %v3430, %v3486
        %3488 = vst [vmem:[#allocation3 + $0x40] sm:$0x4] %v3487
        %v3489 = vld [vmem:[#allocation3 + $0x48] sm:$0x4]
        %v3490 = vsel %vm3461, %v3434, %v3489
        %3491 = vst [vmem:[#allocation3 + $0x48] sm:$0x4] %v3490
        %v3492 = vld [vmem:[#allocation3 + $0x50] sm:$0x4]
        %v3493 = vsel %vm3461, %v3438, %v3492
        %3494 = vst [vmem:[#allocation3 + $0x50] sm:$0x4] %v3493
        %v3495 = vld [vmem:[#allocation3 + $0x58] sm:$0x4]
        %v3496 = vsel %vm3461, %v3442, %v3495
        %3497 = vst [vmem:[#allocation3 + $0x58] sm:$0x4] %v3496
        %v3498 = vld [vmem:[#allocation3 + $0x60] sm:$0x4]
        %v3499 = vsel %vm3461, %v3446, %v3498
        %3500 = vst [vmem:[#allocation3 + $0x60] sm:$0x4] %v3499
        %v3501 = vld [vmem:[#allocation2 + $0xc] sm:$0x1]
        %v3502 = vld [vmem:[#allocation2 + $0x2c] sm:$0x1]
        %v3503 = vld [vmem:[#allocation2 + $0x4c] sm:$0x1]
        %v3504 = vld [vmem:[#allocation2 + $0x6c] sm:$0x1]
        %v3505 = vld [vmem:[#allocation2 + $0x8c] sm:$0x1]
        %v3506 = vld [vmem:[#allocation2 + $0xac] sm:$0x1]
        %v3507 = vld [vmem:[#allocation2 + $0xcc] sm:$0x1]
        %v3508 = vld [vmem:[#allocation2 + $0xec] sm:$0x1]
        %v3509 = vld [vmem:[#allocation2 + $0x10c] sm:$0x1]
        %v3510 = vld [vmem:[#allocation2 + $0x12c] sm:$0x1]
        %v3511 = vld [vmem:[#allocation2 + $0x14c] sm:$0x1]
        %v3512 = vld [vmem:[#allocation2 + $0x16c] sm:$0x1]
        %v3513 = vld [vmem:[#allocation2 + $0x18c] sm:$0x1]
        %v3514 = vld [vmem:[#allocation2 + $0xd] sm:$0x1]
        %v3515 = vld [vmem:[#allocation2 + $0x2d] sm:$0x1]
        %v3516 = vld [vmem:[#allocation2 + $0x4d] sm:$0x1]
        %v3517 = vld [vmem:[#allocation2 + $0x6d] sm:$0x1]
        %v3518 = vld [vmem:[#allocation2 + $0x8d] sm:$0x1]
        %v3519 = vld [vmem:[#allocation2 + $0xad] sm:$0x1]
        %v3520 = vld [vmem:[#allocation2 + $0xcd] sm:$0x1]
        %v3521 = vld [vmem:[#allocation2 + $0xed] sm:$0x1]
        %v3522 = vld [vmem:[#allocation2 + $0x10d] sm:$0x1]
        %v3523 = vld [vmem:[#allocation2 + $0x12d] sm:$0x1]
        %v3524 = vld [vmem:[#allocation2 + $0x14d] sm:$0x1]
        %v3525 = vld [vmem:[#allocation2 + $0x16d] sm:$0x1]
        %v3526 = vld [vmem:[#allocation2 + $0x18d] sm:$0x1]
        %v3527 = vmax.f32 %v3501, %v3514
        %v3528 = vmax.f32 %v3502, %v3515
        %v3529 = vmax.f32 %v3503, %v3516
        %v3530 = vmax.f32 %v3504, %v3517
        %v3531 = vmax.f32 %v3505, %v3518
        %v3532 = vmax.f32 %v3506, %v3519
        %v3533 = vmax.f32 %v3507, %v3520
        %v3534 = vmax.f32 %v3508, %v3521
        %v3535 = vmax.f32 %v3509, %v3522
        %v3536 = vmax.f32 %v3510, %v3523
        %v3537 = vmax.f32 %v3511, %v3524
        %v3538 = vmax.f32 %v3512, %v3525
        %v3539 = vmax.f32 %v3513, %v3526
        %v3540 = vpack.c.bf16 %v3527, %v3527
        %v3541 = vpack.c.bf16 %v3528, %v3528
        %v3542 = vpack.c.bf16 %v3529, %v3529
        %v3543 = vpack.c.bf16 %v3530, %v3530
        %v3544 = vpack.c.bf16 %v3531, %v3531
        %v3545 = vpack.c.bf16 %v3532, %v3532
        %v3546 = vpack.c.bf16 %v3533, %v3533
        %v3547 = vpack.c.bf16 %v3534, %v3534
        %v3548 = vpack.c.bf16 %v3535, %v3535
        %v3549 = vpack.c.bf16 %v3536, %v3536
        %v3550 = vpack.c.bf16 %v3537, %v3537
        %v3551 = vpack.c.bf16 %v3538, %v3538
        %v3552 = vpack.c.bf16 %v3539, %v3539
        %v3566 = vunpack.c.l.b16 %v3540
        %v3567 = vunpack.c.l.b16 %v3541
        %v3568 = vunpack.c.l.b16 %v3542
        %v3569 = vunpack.c.l.b16 %v3543
        %v3570 = vunpack.c.l.b16 %v3544
        %v3571 = vunpack.c.l.b16 %v3545
        %v3572 = vunpack.c.l.b16 %v3546
        %v3573 = vunpack.c.l.b16 %v3547
        %v3574 = vunpack.c.l.b16 %v3548
        %v3575 = vunpack.c.l.b16 %v3549
        %v3576 = vunpack.c.l.b16 %v3550
        %v3577 = vunpack.c.l.b16 %v3551
        %v3578 = vunpack.c.l.b16 %v3552
        %v3579 = vpack.c.b16 %v3566, %v3566
        %v3580 = vpack.c.b16 %v3567, %v3567
        %v3581 = vpack.c.b16 %v3568, %v3568
        %v3582 = vpack.c.b16 %v3569, %v3569
        %v3583 = vpack.c.b16 %v3570, %v3570
        %v3584 = vpack.c.b16 %v3571, %v3571
        %v3585 = vpack.c.b16 %v3572, %v3572
        %v3586 = vpack.c.b16 %v3573, %v3573
        %v3587 = vpack.c.b16 %v3574, %v3574
        %v3588 = vpack.c.b16 %v3575, %v3575
        %v3589 = vpack.c.b16 %v3576, %v3576
        %v3590 = vpack.c.b16 %v3577, %v3577
        %v3591 = vpack.c.b16 %v3578, %v3578
        %v3592 = vrot.slane %v3579, 5
        %v3593 = vrot.slane %v3580, 5
        %v3594 = vrot.slane %v3581, 5
        %v3595 = vrot.slane %v3582, 5
        %v3596 = vrot.slane %v3583, 5
        %v3597 = vrot.slane %v3584, 5
        %v3598 = vrot.slane %v3585, 5
        %v3599 = vrot.slane %v3586, 5
        %v3600 = vrot.slane %v3587, 5
        %v3601 = vrot.slane %v3588, 5
        %v3602 = vrot.slane %v3589, 5
        %v3603 = vrot.slane %v3590, 5
        %v3604 = vrot.slane %v3591, 5
        %vm3618 = vcmask 257027
        %vm3619 = vsmask.f32 3328
        %vm3620 = vmand %vm3618, %vm3619
        %v3621 = vld [vmem:[#allocation3] sm:$0x8]
        %v3622 = vsel %vm3620, %v3592, %v3621
        %3623 = vst [vmem:[#allocation3] sm:$0x8] %v3622
        %v3624 = vld [vmem:[#allocation3 + $0x8] sm:$0x8]
        %v3625 = vsel %vm3620, %v3593, %v3624
        %3626 = vst [vmem:[#allocation3 + $0x8] sm:$0x8] %v3625
        %v3627 = vld [vmem:[#allocation3 + $0x10] sm:$0x8]
        %v3628 = vsel %vm3620, %v3594, %v3627
        %3629 = vst [vmem:[#allocation3 + $0x10] sm:$0x8] %v3628
        %v3630 = vld [vmem:[#allocation3 + $0x18] sm:$0x8]
        %v3631 = vsel %vm3620, %v3595, %v3630
        %3632 = vst [vmem:[#allocation3 + $0x18] sm:$0x8] %v3631
        %v3633 = vld [vmem:[#allocation3 + $0x20] sm:$0x8]
        %v3634 = vsel %vm3620, %v3596, %v3633
        %3635 = vst [vmem:[#allocation3 + $0x20] sm:$0x8] %v3634
        %v3636 = vld [vmem:[#allocation3 + $0x28] sm:$0x8]
        %v3637 = vsel %vm3620, %v3597, %v3636
        %3638 = vst [vmem:[#allocation3 + $0x28] sm:$0x8] %v3637
        %v3639 = vld [vmem:[#allocation3 + $0x30] sm:$0x8]
        %v3640 = vsel %vm3620, %v3598, %v3639
        %3641 = vst [vmem:[#allocation3 + $0x30] sm:$0x8] %v3640
        %v3642 = vld [vmem:[#allocation3 + $0x38] sm:$0x8]
        %v3643 = vsel %vm3620, %v3599, %v3642
        %3644 = vst [vmem:[#allocation3 + $0x38] sm:$0x8] %v3643
        %v3645 = vld [vmem:[#allocation3 + $0x40] sm:$0x8]
        %v3646 = vsel %vm3620, %v3600, %v3645
        %3647 = vst [vmem:[#allocation3 + $0x40] sm:$0x8] %v3646
        %v3648 = vld [vmem:[#allocation3 + $0x48] sm:$0x8]
        %v3649 = vsel %vm3620, %v3601, %v3648
        %3650 = vst [vmem:[#allocation3 + $0x48] sm:$0x8] %v3649
        %v3651 = vld [vmem:[#allocation3 + $0x50] sm:$0x8]
        %v3652 = vsel %vm3620, %v3602, %v3651
        %3653 = vst [vmem:[#allocation3 + $0x50] sm:$0x8] %v3652
        %v3654 = vld [vmem:[#allocation3 + $0x58] sm:$0x8]
        %v3655 = vsel %vm3620, %v3603, %v3654
        %3656 = vst [vmem:[#allocation3 + $0x58] sm:$0x8] %v3655
        %v3657 = vld [vmem:[#allocation3 + $0x60] sm:$0x8]
        %v3658 = vsel %vm3620, %v3604, %v3657
        %3659 = vst [vmem:[#allocation3 + $0x60] sm:$0x8] %v3658
        %v3660 = vld [vmem:[#allocation2 + $0xe] sm:$0x1]
        %v3661 = vld [vmem:[#allocation2 + $0x2e] sm:$0x1]
        %v3662 = vld [vmem:[#allocation2 + $0x4e] sm:$0x1]
        %v3663 = vld [vmem:[#allocation2 + $0x6e] sm:$0x1]
        %v3664 = vld [vmem:[#allocation2 + $0x8e] sm:$0x1]
        %v3665 = vld [vmem:[#allocation2 + $0xae] sm:$0x1]
        %v3666 = vld [vmem:[#allocation2 + $0xce] sm:$0x1]
        %v3667 = vld [vmem:[#allocation2 + $0xee] sm:$0x1]
        %v3668 = vld [vmem:[#allocation2 + $0x10e] sm:$0x1]
        %v3669 = vld [vmem:[#allocation2 + $0x12e] sm:$0x1]
        %v3670 = vld [vmem:[#allocation2 + $0x14e] sm:$0x1]
        %v3671 = vld [vmem:[#allocation2 + $0x16e] sm:$0x1]
        %v3672 = vld [vmem:[#allocation2 + $0x18e] sm:$0x1]
        %v3673 = vld [vmem:[#allocation2 + $0xf] sm:$0x1]
        %v3674 = vld [vmem:[#allocation2 + $0x2f] sm:$0x1]
        %v3675 = vld [vmem:[#allocation2 + $0x4f] sm:$0x1]
        %v3676 = vld [vmem:[#allocation2 + $0x6f] sm:$0x1]
        %v3677 = vld [vmem:[#allocation2 + $0x8f] sm:$0x1]
        %v3678 = vld [vmem:[#allocation2 + $0xaf] sm:$0x1]
        %v3679 = vld [vmem:[#allocation2 + $0xcf] sm:$0x1]
        %v3680 = vld [vmem:[#allocation2 + $0xef] sm:$0x1]
        %v3681 = vld [vmem:[#allocation2 + $0x10f] sm:$0x1]
        %v3682 = vld [vmem:[#allocation2 + $0x12f] sm:$0x1]
        %v3683 = vld [vmem:[#allocation2 + $0x14f] sm:$0x1]
        %v3684 = vld [vmem:[#allocation2 + $0x16f] sm:$0x1]
        %v3685 = vld [vmem:[#allocation2 + $0x18f] sm:$0x1]
        %v3686 = vmax.f32 %v3660, %v3673
        %v3687 = vmax.f32 %v3661, %v3674
        %v3688 = vmax.f32 %v3662, %v3675
        %v3689 = vmax.f32 %v3663, %v3676
        %v3690 = vmax.f32 %v3664, %v3677
        %v3691 = vmax.f32 %v3665, %v3678
        %v3692 = vmax.f32 %v3666, %v3679
        %v3693 = vmax.f32 %v3667, %v3680
        %v3694 = vmax.f32 %v3668, %v3681
        %v3695 = vmax.f32 %v3669, %v3682
        %v3696 = vmax.f32 %v3670, %v3683
        %v3697 = vmax.f32 %v3671, %v3684
        %v3698 = vmax.f32 %v3672, %v3685
        %v3699 = vpack.c.bf16 %v3686, %v3686
        %v3700 = vpack.c.bf16 %v3687, %v3687
        %v3701 = vpack.c.bf16 %v3688, %v3688
        %v3702 = vpack.c.bf16 %v3689, %v3689
        %v3703 = vpack.c.bf16 %v3690, %v3690
        %v3704 = vpack.c.bf16 %v3691, %v3691
        %v3705 = vpack.c.bf16 %v3692, %v3692
        %v3706 = vpack.c.bf16 %v3693, %v3693
        %v3707 = vpack.c.bf16 %v3694, %v3694
        %v3708 = vpack.c.bf16 %v3695, %v3695
        %v3709 = vpack.c.bf16 %v3696, %v3696
        %v3710 = vpack.c.bf16 %v3697, %v3697
        %v3711 = vpack.c.bf16 %v3698, %v3698
        %v3725 = vunpack.c.l.b16 %v3699
        %v3726 = vunpack.c.l.b16 %v3700
        %v3727 = vunpack.c.l.b16 %v3701
        %v3728 = vunpack.c.l.b16 %v3702
        %v3729 = vunpack.c.l.b16 %v3703
        %v3730 = vunpack.c.l.b16 %v3704
        %v3731 = vunpack.c.l.b16 %v3705
        %v3732 = vunpack.c.l.b16 %v3706
        %v3733 = vunpack.c.l.b16 %v3707
        %v3734 = vunpack.c.l.b16 %v3708
        %v3735 = vunpack.c.l.b16 %v3709
        %v3736 = vunpack.c.l.b16 %v3710
        %v3737 = vunpack.c.l.b16 %v3711
        %v3738 = vpack.c.b16 %v3725, %v3725
        %v3739 = vpack.c.b16 %v3726, %v3726
        %v3740 = vpack.c.b16 %v3727, %v3727
        %v3741 = vpack.c.b16 %v3728, %v3728
        %v3742 = vpack.c.b16 %v3729, %v3729
        %v3743 = vpack.c.b16 %v3730, %v3730
        %v3744 = vpack.c.b16 %v3731, %v3731
        %v3745 = vpack.c.b16 %v3732, %v3732
        %v3746 = vpack.c.b16 %v3733, %v3733
        %v3747 = vpack.c.b16 %v3734, %v3734
        %v3748 = vpack.c.b16 %v3735, %v3735
        %v3749 = vpack.c.b16 %v3736, %v3736
        %v3750 = vpack.c.b16 %v3737, %v3737
        %v3752 = vshll.u32 %v3738, 16
        %v3754 = vrot.slane %v3752, 5
        %v3756 = vshll.u32 %v3739, 16
        %v3758 = vrot.slane %v3756, 5
        %v3760 = vshll.u32 %v3740, 16
        %v3762 = vrot.slane %v3760, 5
        %v3764 = vshll.u32 %v3741, 16
        %v3766 = vrot.slane %v3764, 5
        %v3768 = vshll.u32 %v3742, 16
        %v3770 = vrot.slane %v3768, 5
        %v3772 = vshll.u32 %v3743, 16
        %v3774 = vrot.slane %v3772, 5
        %v3776 = vshll.u32 %v3744, 16
        %v3778 = vrot.slane %v3776, 5
        %v3780 = vshll.u32 %v3745, 16
        %v3782 = vrot.slane %v3780, 5
        %v3784 = vshll.u32 %v3746, 16
        %v3786 = vrot.slane %v3784, 5
        %v3788 = vshll.u32 %v3747, 16
        %v3790 = vrot.slane %v3788, 5
        %v3792 = vshll.u32 %v3748, 16
        %v3794 = vrot.slane %v3792, 5
        %v3796 = vshll.u32 %v3749, 16
        %v3798 = vrot.slane %v3796, 5
        %v3800 = vshll.u32 %v3750, 16
        %v3802 = vrot.slane %v3800, 5
        %vm3816 = vsmask.f32 7950
        %vm3817 = vmand %vm3618, %vm3816
        %v3818 = vld [vmem:[#allocation3] sm:$0x8]
        %v3819 = vsel %vm3817, %v3754, %v3818
        %3820 = vst [vmem:[#allocation3] sm:$0x8] %v3819
        %v3821 = vld [vmem:[#allocation3 + $0x8] sm:$0x8]
        %v3822 = vsel %vm3817, %v3758, %v3821
        %3823 = vst [vmem:[#allocation3 + $0x8] sm:$0x8] %v3822
        %v3824 = vld [vmem:[#allocation3 + $0x10] sm:$0x8]
        %v3825 = vsel %vm3817, %v3762, %v3824
        %3826 = vst [vmem:[#allocation3 + $0x10] sm:$0x8] %v3825
        %v3827 = vld [vmem:[#allocation3 + $0x18] sm:$0x8]
        %v3828 = vsel %vm3817, %v3766, %v3827
        %3829 = vst [vmem:[#allocation3 + $0x18] sm:$0x8] %v3828
        %v3830 = vld [vmem:[#allocation3 + $0x20] sm:$0x8]
        %v3831 = vsel %vm3817, %v3770, %v3830
        %3832 = vst [vmem:[#allocation3 + $0x20] sm:$0x8] %v3831
        %v3833 = vld [vmem:[#allocation3 + $0x28] sm:$0x8]
        %v3834 = vsel %vm3817, %v3774, %v3833
        %3835 = vst [vmem:[#allocation3 + $0x28] sm:$0x8] %v3834
        %v3836 = vld [vmem:[#allocation3 + $0x30] sm:$0x8]
        %v3837 = vsel %vm3817, %v3778, %v3836
        %3838 = vst [vmem:[#allocation3 + $0x30] sm:$0x8] %v3837
        %v3839 = vld [vmem:[#allocation3 + $0x38] sm:$0x8]
        %v3840 = vsel %vm3817, %v3782, %v3839
        %3841 = vst [vmem:[#allocation3 + $0x38] sm:$0x8] %v3840
        %v3842 = vld [vmem:[#allocation3 + $0x40] sm:$0x8]
        %v3843 = vsel %vm3817, %v3786, %v3842
        %3844 = vst [vmem:[#allocation3 + $0x40] sm:$0x8] %v3843
        %v3845 = vld [vmem:[#allocation3 + $0x48] sm:$0x8]
        %v3846 = vsel %vm3817, %v3790, %v3845
        %3847 = vst [vmem:[#allocation3 + $0x48] sm:$0x8] %v3846
        %v3848 = vld [vmem:[#allocation3 + $0x50] sm:$0x8]
        %v3849 = vsel %vm3817, %v3794, %v3848
        %3850 = vst [vmem:[#allocation3 + $0x50] sm:$0x8] %v3849
        %v3851 = vld [vmem:[#allocation3 + $0x58] sm:$0x8]
        %v3852 = vsel %vm3817, %v3798, %v3851
        %3853 = vst [vmem:[#allocation3 + $0x58] sm:$0x8] %v3852
        %v3854 = vld [vmem:[#allocation3 + $0x60] sm:$0x8]
        %v3855 = vsel %vm3817, %v3802, %v3854
        %3856 = vst [vmem:[#allocation3 + $0x60] sm:$0x8] %v3855
        %v3857 = vld [vmem:[#allocation2 + $0x10] sm:$0x1]
        %v3858 = vld [vmem:[#allocation2 + $0x30] sm:$0x1]
        %v3859 = vld [vmem:[#allocation2 + $0x50] sm:$0x1]
        %v3860 = vld [vmem:[#allocation2 + $0x70] sm:$0x1]
        %v3861 = vld [vmem:[#allocation2 + $0x90] sm:$0x1]
        %v3862 = vld [vmem:[#allocation2 + $0xb0] sm:$0x1]
        %v3863 = vld [vmem:[#allocation2 + $0xd0] sm:$0x1]
        %v3864 = vld [vmem:[#allocation2 + $0xf0] sm:$0x1]
        %v3865 = vld [vmem:[#allocation2 + $0x110] sm:$0x1]
        %v3866 = vld [vmem:[#allocation2 + $0x130] sm:$0x1]
        %v3867 = vld [vmem:[#allocation2 + $0x150] sm:$0x1]
        %v3868 = vld [vmem:[#allocation2 + $0x170] sm:$0x1]
        %v3869 = vld [vmem:[#allocation2 + $0x190] sm:$0x1]
        %v3870 = vld [vmem:[#allocation2 + $0x11] sm:$0x1]
        %v3871 = vld [vmem:[#allocation2 + $0x31] sm:$0x1]
        %v3872 = vld [vmem:[#allocation2 + $0x51] sm:$0x1]
        %v3873 = vld [vmem:[#allocation2 + $0x71] sm:$0x1]
        %v3874 = vld [vmem:[#allocation2 + $0x91] sm:$0x1]
        %v3875 = vld [vmem:[#allocation2 + $0xb1] sm:$0x1]
        %v3876 = vld [vmem:[#allocation2 + $0xd1] sm:$0x1]
        %v3877 = vld [vmem:[#allocation2 + $0xf1] sm:$0x1]
        %v3878 = vld [vmem:[#allocation2 + $0x111] sm:$0x1]
        %v3879 = vld [vmem:[#allocation2 + $0x131] sm:$0x1]
        %v3880 = vld [vmem:[#allocation2 + $0x151] sm:$0x1]
        %v3881 = vld [vmem:[#allocation2 + $0x171] sm:$0x1]
        %v3882 = vld [vmem:[#allocation2 + $0x191] sm:$0x1]
        %v3883 = vmax.f32 %v3857, %v3870
        %v3884 = vmax.f32 %v3858, %v3871
        %v3885 = vmax.f32 %v3859, %v3872
        %v3886 = vmax.f32 %v3860, %v3873
        %v3887 = vmax.f32 %v3861, %v3874
        %v3888 = vmax.f32 %v3862, %v3875
        %v3889 = vmax.f32 %v3863, %v3876
        %v3890 = vmax.f32 %v3864, %v3877
        %v3891 = vmax.f32 %v3865, %v3878
        %v3892 = vmax.f32 %v3866, %v3879
        %v3893 = vmax.f32 %v3867, %v3880
        %v3894 = vmax.f32 %v3868, %v3881
        %v3895 = vmax.f32 %v3869, %v3882
        %v3896 = vpack.c.bf16 %v3883, %v3883
        %v3897 = vpack.c.bf16 %v3884, %v3884
        %v3898 = vpack.c.bf16 %v3885, %v3885
        %v3899 = vpack.c.bf16 %v3886, %v3886
        %v3900 = vpack.c.bf16 %v3887, %v3887
        %v3901 = vpack.c.bf16 %v3888, %v3888
        %v3902 = vpack.c.bf16 %v3889, %v3889
        %v3903 = vpack.c.bf16 %v3890, %v3890
        %v3904 = vpack.c.bf16 %v3891, %v3891
        %v3905 = vpack.c.bf16 %v3892, %v3892
        %v3906 = vpack.c.bf16 %v3893, %v3893
        %v3907 = vpack.c.bf16 %v3894, %v3894
        %v3908 = vpack.c.bf16 %v3895, %v3895
        %v3909 = vld [vmem:[#allocation3 + $0x4] sm:$0x1]
        %v3910 = vsel %vm2565, %v3896, %v3909
        %3911 = vst [vmem:[#allocation3 + $0x4] sm:$0x1] %v3910
        %v3912 = vld [vmem:[#allocation3 + $0xc] sm:$0x1]
        %v3913 = vsel %vm2565, %v3897, %v3912
        %3914 = vst [vmem:[#allocation3 + $0xc] sm:$0x1] %v3913
        %v3915 = vld [vmem:[#allocation3 + $0x14] sm:$0x1]
        %v3916 = vsel %vm2565, %v3898, %v3915
        %3917 = vst [vmem:[#allocation3 + $0x14] sm:$0x1] %v3916
        %v3918 = vld [vmem:[#allocation3 + $0x1c] sm:$0x1]
        %v3919 = vsel %vm2565, %v3899, %v3918
        %3920 = vst [vmem:[#allocation3 + $0x1c] sm:$0x1] %v3919
        %v3921 = vld [vmem:[#allocation3 + $0x24] sm:$0x1]
        %v3922 = vsel %vm2565, %v3900, %v3921
        %3923 = vst [vmem:[#allocation3 + $0x24] sm:$0x1] %v3922
        %v3924 = vld [vmem:[#allocation3 + $0x2c] sm:$0x1]
        %v3925 = vsel %vm2565, %v3901, %v3924
        %3926 = vst [vmem:[#allocation3 + $0x2c] sm:$0x1] %v3925
        %v3927 = vld [vmem:[#allocation3 + $0x34] sm:$0x1]
        %v3928 = vsel %vm2565, %v3902, %v3927
        %3929 = vst [vmem:[#allocation3 + $0x34] sm:$0x1] %v3928
        %v3930 = vld [vmem:[#allocation3 + $0x3c] sm:$0x1]
        %v3931 = vsel %vm2565, %v3903, %v3930
        %3932 = vst [vmem:[#allocation3 + $0x3c] sm:$0x1] %v3931
        %v3933 = vld [vmem:[#allocation3 + $0x44] sm:$0x1]
        %v3934 = vsel %vm2565, %v3904, %v3933
        %3935 = vst [vmem:[#allocation3 + $0x44] sm:$0x1] %v3934
        %v3936 = vld [vmem:[#allocation3 + $0x4c] sm:$0x1]
        %v3937 = vsel %vm2565, %v3905, %v3936
        %3938 = vst [vmem:[#allocation3 + $0x4c] sm:$0x1] %v3937
        %v3939 = vld [vmem:[#allocation3 + $0x54] sm:$0x1]
        %v3940 = vsel %vm2565, %v3906, %v3939
        %3941 = vst [vmem:[#allocation3 + $0x54] sm:$0x1] %v3940
        %v3942 = vld [vmem:[#allocation3 + $0x5c] sm:$0x1]
        %v3943 = vsel %vm2565, %v3907, %v3942
        %3944 = vst [vmem:[#allocation3 + $0x5c] sm:$0x1] %v3943
        %v3945 = vld [vmem:[#allocation3 + $0x64] sm:$0x1]
        %v3946 = vsel %vm2565, %v3908, %v3945
        %3947 = vst [vmem:[#allocation3 + $0x64] sm:$0x1] %v3946
        %v3948 = vld [vmem:[#allocation2 + $0x12] sm:$0x1]
        %v3949 = vld [vmem:[#allocation2 + $0x32] sm:$0x1]
        %v3950 = vld [vmem:[#allocation2 + $0x52] sm:$0x1]
        %v3951 = vld [vmem:[#allocation2 + $0x72] sm:$0x1]
        %v3952 = vld [vmem:[#allocation2 + $0x92] sm:$0x1]
        %v3953 = vld [vmem:[#allocation2 + $0xb2] sm:$0x1]
        %v3954 = vld [vmem:[#allocation2 + $0xd2] sm:$0x1]
        %v3955 = vld [vmem:[#allocation2 + $0xf2] sm:$0x1]
        %v3956 = vld [vmem:[#allocation2 + $0x112] sm:$0x1]
        %v3957 = vld [vmem:[#allocation2 + $0x132] sm:$0x1]
        %v3958 = vld [vmem:[#allocation2 + $0x152] sm:$0x1]
        %v3959 = vld [vmem:[#allocation2 + $0x172] sm:$0x1]
        %v3960 = vld [vmem:[#allocation2 + $0x192] sm:$0x1]
        %v3961 = vld [vmem:[#allocation2 + $0x13] sm:$0x1]
        %v3962 = vld [vmem:[#allocation2 + $0x33] sm:$0x1]
        %v3963 = vld [vmem:[#allocation2 + $0x53] sm:$0x1]
        %v3964 = vld [vmem:[#allocation2 + $0x73] sm:$0x1]
        %v3965 = vld [vmem:[#allocation2 + $0x93] sm:$0x1]
        %v3966 = vld [vmem:[#allocation2 + $0xb3] sm:$0x1]
        %v3967 = vld [vmem:[#allocation2 + $0xd3] sm:$0x1]
        %v3968 = vld [vmem:[#allocation2 + $0xf3] sm:$0x1]
        %v3969 = vld [vmem:[#allocation2 + $0x113] sm:$0x1]
        %v3970 = vld [vmem:[#allocation2 + $0x133] sm:$0x1]
        %v3971 = vld [vmem:[#allocation2 + $0x153] sm:$0x1]
        %v3972 = vld [vmem:[#allocation2 + $0x173] sm:$0x1]
        %v3973 = vld [vmem:[#allocation2 + $0x193] sm:$0x1]
        %v3974 = vmax.f32 %v3948, %v3961
        %v3975 = vmax.f32 %v3949, %v3962
        %v3976 = vmax.f32 %v3950, %v3963
        %v3977 = vmax.f32 %v3951, %v3964
        %v3978 = vmax.f32 %v3952, %v3965
        %v3979 = vmax.f32 %v3953, %v3966
        %v3980 = vmax.f32 %v3954, %v3967
        %v3981 = vmax.f32 %v3955, %v3968
        %v3982 = vmax.f32 %v3956, %v3969
        %v3983 = vmax.f32 %v3957, %v3970
        %v3984 = vmax.f32 %v3958, %v3971
        %v3985 = vmax.f32 %v3959, %v3972
        %v3986 = vmax.f32 %v3960, %v3973
        %v3987 = vpack.c.bf16 %v3974, %v3974
        %v3988 = vpack.c.bf16 %v3975, %v3975
        %v3989 = vpack.c.bf16 %v3976, %v3976
        %v3990 = vpack.c.bf16 %v3977, %v3977
        %v3991 = vpack.c.bf16 %v3978, %v3978
        %v3992 = vpack.c.bf16 %v3979, %v3979
        %v3993 = vpack.c.bf16 %v3980, %v3980
        %v3994 = vpack.c.bf16 %v3981, %v3981
        %v3995 = vpack.c.bf16 %v3982, %v3982
        %v3996 = vpack.c.bf16 %v3983, %v3983
        %v3997 = vpack.c.bf16 %v3984, %v3984
        %v3998 = vpack.c.bf16 %v3985, %v3985
        %v3999 = vpack.c.bf16 %v3986, %v3986
        %v4013 = vunpack.c.l.b16 %v3987
        %v4014 = vunpack.c.l.b16 %v3988
        %v4015 = vunpack.c.l.b16 %v3989
        %v4016 = vunpack.c.l.b16 %v3990
        %v4017 = vunpack.c.l.b16 %v3991
        %v4018 = vunpack.c.l.b16 %v3992
        %v4019 = vunpack.c.l.b16 %v3993
        %v4020 = vunpack.c.l.b16 %v3994
        %v4021 = vunpack.c.l.b16 %v3995
        %v4022 = vunpack.c.l.b16 %v3996
        %v4023 = vunpack.c.l.b16 %v3997
        %v4024 = vunpack.c.l.b16 %v3998
        %v4025 = vunpack.c.l.b16 %v3999
        %v4026 = vpack.c.b16 %v4013, %v4013
        %v4027 = vpack.c.b16 %v4014, %v4014
        %v4028 = vpack.c.b16 %v4015, %v4015
        %v4029 = vpack.c.b16 %v4016, %v4016
        %v4030 = vpack.c.b16 %v4017, %v4017
        %v4031 = vpack.c.b16 %v4018, %v4018
        %v4032 = vpack.c.b16 %v4019, %v4019
        %v4033 = vpack.c.b16 %v4020, %v4020
        %v4034 = vpack.c.b16 %v4021, %v4021
        %v4035 = vpack.c.b16 %v4022, %v4022
        %v4036 = vpack.c.b16 %v4023, %v4023
        %v4037 = vpack.c.b16 %v4024, %v4024
        %v4038 = vpack.c.b16 %v4025, %v4025
        %v4040 = vshll.u32 %v4026, 16
        %v4043 = vshll.u32 %v4027, 16
        %v4046 = vshll.u32 %v4028, 16
        %v4049 = vshll.u32 %v4029, 16
        %v4052 = vshll.u32 %v4030, 16
        %v4055 = vshll.u32 %v4031, 16
        %v4058 = vshll.u32 %v4032, 16
        %v4061 = vshll.u32 %v4033, 16
        %v4064 = vshll.u32 %v4034, 16
        %v4067 = vshll.u32 %v4035, 16
        %v4070 = vshll.u32 %v4036, 16
        %v4073 = vshll.u32 %v4037, 16
        %v4076 = vshll.u32 %v4038, 16
        %v4091 = vld [vmem:[#allocation3 + $0x4] sm:$0x1]
        %v4092 = vsel %vm2749, %v4040, %v4091
        %4093 = vst [vmem:[#allocation3 + $0x4] sm:$0x1] %v4092
        %v4094 = vld [vmem:[#allocation3 + $0xc] sm:$0x1]
        %v4095 = vsel %vm2749, %v4043, %v4094
        %4096 = vst [vmem:[#allocation3 + $0xc] sm:$0x1] %v4095
        %v4097 = vld [vmem:[#allocation3 + $0x14] sm:$0x1]
        %v4098 = vsel %vm2749, %v4046, %v4097
        %4099 = vst [vmem:[#allocation3 + $0x14] sm:$0x1] %v4098
        %v4100 = vld [vmem:[#allocation3 + $0x1c] sm:$0x1]
        %v4101 = vsel %vm2749, %v4049, %v4100
        %4102 = vst [vmem:[#allocation3 + $0x1c] sm:$0x1] %v4101
        %v4103 = vld [vmem:[#allocation3 + $0x24] sm:$0x1]
        %v4104 = vsel %vm2749, %v4052, %v4103
        %4105 = vst [vmem:[#allocation3 + $0x24] sm:$0x1] %v4104
        %v4106 = vld [vmem:[#allocation3 + $0x2c] sm:$0x1]
        %v4107 = vsel %vm2749, %v4055, %v4106
        %4108 = vst [vmem:[#allocation3 + $0x2c] sm:$0x1] %v4107
        %v4109 = vld [vmem:[#allocation3 + $0x34] sm:$0x1]
        %v4110 = vsel %vm2749, %v4058, %v4109
        %4111 = vst [vmem:[#allocation3 + $0x34] sm:$0x1] %v4110
        %v4112 = vld [vmem:[#allocation3 + $0x3c] sm:$0x1]
        %v4113 = vsel %vm2749, %v4061, %v4112
        %4114 = vst [vmem:[#allocation3 + $0x3c] sm:$0x1] %v4113
        %v4115 = vld [vmem:[#allocation3 + $0x44] sm:$0x1]
        %v4116 = vsel %vm2749, %v4064, %v4115
        %4117 = vst [vmem:[#allocation3 + $0x44] sm:$0x1] %v4116
        %v4118 = vld [vmem:[#allocation3 + $0x4c] sm:$0x1]
        %v4119 = vsel %vm2749, %v4067, %v4118
        %4120 = vst [vmem:[#allocation3 + $0x4c] sm:$0x1] %v4119
        %v4121 = vld [vmem:[#allocation3 + $0x54] sm:$0x1]
        %v4122 = vsel %vm2749, %v4070, %v4121
        %4123 = vst [vmem:[#allocation3 + $0x54] sm:$0x1] %v4122
        %v4124 = vld [vmem:[#allocation3 + $0x5c] sm:$0x1]
        %v4125 = vsel %vm2749, %v4073, %v4124
        %4126 = vst [vmem:[#allocation3 + $0x5c] sm:$0x1] %v4125
        %v4127 = vld [vmem:[#allocation3 + $0x64] sm:$0x1]
        %v4128 = vsel %vm2749, %v4076, %v4127
        %4129 = vst [vmem:[#allocation3 + $0x64] sm:$0x1] %v4128
        %v4130 = vld [vmem:[#allocation2 + $0x14] sm:$0x1]
        %v4131 = vld [vmem:[#allocation2 + $0x34] sm:$0x1]
        %v4132 = vld [vmem:[#allocation2 + $0x54] sm:$0x1]
        %v4133 = vld [vmem:[#allocation2 + $0x74] sm:$0x1]
        %v4134 = vld [vmem:[#allocation2 + $0x94] sm:$0x1]
        %v4135 = vld [vmem:[#allocation2 + $0xb4] sm:$0x1]
        %v4136 = vld [vmem:[#allocation2 + $0xd4] sm:$0x1]
        %v4137 = vld [vmem:[#allocation2 + $0xf4] sm:$0x1]
        %v4138 = vld [vmem:[#allocation2 + $0x114] sm:$0x1]
        %v4139 = vld [vmem:[#allocation2 + $0x134] sm:$0x1]
        %v4140 = vld [vmem:[#allocation2 + $0x154] sm:$0x1]
        %v4141 = vld [vmem:[#allocation2 + $0x174] sm:$0x1]
        %v4142 = vld [vmem:[#allocation2 + $0x194] sm:$0x1]
        %v4143 = vld [vmem:[#allocation2 + $0x15] sm:$0x1]
        %v4144 = vld [vmem:[#allocation2 + $0x35] sm:$0x1]
        %v4145 = vld [vmem:[#allocation2 + $0x55] sm:$0x1]
        %v4146 = vld [vmem:[#allocation2 + $0x75] sm:$0x1]
        %v4147 = vld [vmem:[#allocation2 + $0x95] sm:$0x1]
        %v4148 = vld [vmem:[#allocation2 + $0xb5] sm:$0x1]
        %v4149 = vld [vmem:[#allocation2 + $0xd5] sm:$0x1]
        %v4150 = vld [vmem:[#allocation2 + $0xf5] sm:$0x1]
        %v4151 = vld [vmem:[#allocation2 + $0x115] sm:$0x1]
        %v4152 = vld [vmem:[#allocation2 + $0x135] sm:$0x1]
        %v4153 = vld [vmem:[#allocation2 + $0x155] sm:$0x1]
        %v4154 = vld [vmem:[#allocation2 + $0x175] sm:$0x1]
        %v4155 = vld [vmem:[#allocation2 + $0x195] sm:$0x1]
        %v4156 = vmax.f32 %v4130, %v4143
        %v4157 = vmax.f32 %v4131, %v4144
        %v4158 = vmax.f32 %v4132, %v4145
        %v4159 = vmax.f32 %v4133, %v4146
        %v4160 = vmax.f32 %v4134, %v4147
        %v4161 = vmax.f32 %v4135, %v4148
        %v4162 = vmax.f32 %v4136, %v4149
        %v4163 = vmax.f32 %v4137, %v4150
        %v4164 = vmax.f32 %v4138, %v4151
        %v4165 = vmax.f32 %v4139, %v4152
        %v4166 = vmax.f32 %v4140, %v4153
        %v4167 = vmax.f32 %v4141, %v4154
        %v4168 = vmax.f32 %v4142, %v4155
        %v4169 = vpack.c.bf16 %v4156, %v4156
        %v4170 = vpack.c.bf16 %v4157, %v4157
        %v4171 = vpack.c.bf16 %v4158, %v4158
        %v4172 = vpack.c.bf16 %v4159, %v4159
        %v4173 = vpack.c.bf16 %v4160, %v4160
        %v4174 = vpack.c.bf16 %v4161, %v4161
        %v4175 = vpack.c.bf16 %v4162, %v4162
        %v4176 = vpack.c.bf16 %v4163, %v4163
        %v4177 = vpack.c.bf16 %v4164, %v4164
        %v4178 = vpack.c.bf16 %v4165, %v4165
        %v4179 = vpack.c.bf16 %v4166, %v4166
        %v4180 = vpack.c.bf16 %v4167, %v4167
        %v4181 = vpack.c.bf16 %v4168, %v4168
        %v4195 = vunpack.c.l.b16 %v4169
        %v4196 = vunpack.c.l.b16 %v4170
        %v4197 = vunpack.c.l.b16 %v4171
        %v4198 = vunpack.c.l.b16 %v4172
        %v4199 = vunpack.c.l.b16 %v4173
        %v4200 = vunpack.c.l.b16 %v4174
        %v4201 = vunpack.c.l.b16 %v4175
        %v4202 = vunpack.c.l.b16 %v4176
        %v4203 = vunpack.c.l.b16 %v4177
        %v4204 = vunpack.c.l.b16 %v4178
        %v4205 = vunpack.c.l.b16 %v4179
        %v4206 = vunpack.c.l.b16 %v4180
        %v4207 = vunpack.c.l.b16 %v4181
        %v4208 = vpack.c.b16 %v4195, %v4195
        %v4209 = vpack.c.b16 %v4196, %v4196
        %v4210 = vpack.c.b16 %v4197, %v4197
        %v4211 = vpack.c.b16 %v4198, %v4198
        %v4212 = vpack.c.b16 %v4199, %v4199
        %v4213 = vpack.c.b16 %v4200, %v4200
        %v4214 = vpack.c.b16 %v4201, %v4201
        %v4215 = vpack.c.b16 %v4202, %v4202
        %v4216 = vpack.c.b16 %v4203, %v4203
        %v4217 = vpack.c.b16 %v4204, %v4204
        %v4218 = vpack.c.b16 %v4205, %v4205
        %v4219 = vpack.c.b16 %v4206, %v4206
        %v4220 = vpack.c.b16 %v4207, %v4207
        %v4221 = vrot.slane %v4208, 7
        %v4222 = vrot.slane %v4209, 7
        %v4223 = vrot.slane %v4210, 7
        %v4224 = vrot.slane %v4211, 7
        %v4225 = vrot.slane %v4212, 7
        %v4226 = vrot.slane %v4213, 7
        %v4227 = vrot.slane %v4214, 7
        %v4228 = vrot.slane %v4215, 7
        %v4229 = vrot.slane %v4216, 7
        %v4230 = vrot.slane %v4217, 7
        %v4231 = vrot.slane %v4218, 7
        %v4232 = vrot.slane %v4219, 7
        %v4233 = vrot.slane %v4220, 7
        %v4247 = vld [vmem:[#allocation3 + $0x4] sm:$0x2]
        %v4248 = vsel %vm2908, %v4221, %v4247
        %4249 = vst [vmem:[#allocation3 + $0x4] sm:$0x2] %v4248
        %v4250 = vld [vmem:[#allocation3 + $0xc] sm:$0x2]
        %v4251 = vsel %vm2908, %v4222, %v4250
        %4252 = vst [vmem:[#allocation3 + $0xc] sm:$0x2] %v4251
        %v4253 = vld [vmem:[#allocation3 + $0x14] sm:$0x2]
        %v4254 = vsel %vm2908, %v4223, %v4253
        %4255 = vst [vmem:[#allocation3 + $0x14] sm:$0x2] %v4254
        %v4256 = vld [vmem:[#allocation3 + $0x1c] sm:$0x2]
        %v4257 = vsel %vm2908, %v4224, %v4256
        %4258 = vst [vmem:[#allocation3 + $0x1c] sm:$0x2] %v4257
        %v4259 = vld [vmem:[#allocation3 + $0x24] sm:$0x2]
        %v4260 = vsel %vm2908, %v4225, %v4259
        %4261 = vst [vmem:[#allocation3 + $0x24] sm:$0x2] %v4260
        %v4262 = vld [vmem:[#allocation3 + $0x2c] sm:$0x2]
        %v4263 = vsel %vm2908, %v4226, %v4262
        %4264 = vst [vmem:[#allocation3 + $0x2c] sm:$0x2] %v4263
        %v4265 = vld [vmem:[#allocation3 + $0x34] sm:$0x2]
        %v4266 = vsel %vm2908, %v4227, %v4265
        %4267 = vst [vmem:[#allocation3 + $0x34] sm:$0x2] %v4266
        %v4268 = vld [vmem:[#allocation3 + $0x3c] sm:$0x2]
        %v4269 = vsel %vm2908, %v4228, %v4268
        %4270 = vst [vmem:[#allocation3 + $0x3c] sm:$0x2] %v4269
        %v4271 = vld [vmem:[#allocation3 + $0x44] sm:$0x2]
        %v4272 = vsel %vm2908, %v4229, %v4271
        %4273 = vst [vmem:[#allocation3 + $0x44] sm:$0x2] %v4272
        %v4274 = vld [vmem:[#allocation3 + $0x4c] sm:$0x2]
        %v4275 = vsel %vm2908, %v4230, %v4274
        %4276 = vst [vmem:[#allocation3 + $0x4c] sm:$0x2] %v4275
        %v4277 = vld [vmem:[#allocation3 + $0x54] sm:$0x2]
        %v4278 = vsel %vm2908, %v4231, %v4277
        %4279 = vst [vmem:[#allocation3 + $0x54] sm:$0x2] %v4278
        %v4280 = vld [vmem:[#allocation3 + $0x5c] sm:$0x2]
        %v4281 = vsel %vm2908, %v4232, %v4280
        %4282 = vst [vmem:[#allocation3 + $0x5c] sm:$0x2] %v4281
        %v4283 = vld [vmem:[#allocation3 + $0x64] sm:$0x2]
        %v4284 = vsel %vm2908, %v4233, %v4283
        %4285 = vst [vmem:[#allocation3 + $0x64] sm:$0x2] %v4284
        %v4286 = vld [vmem:[#allocation2 + $0x16] sm:$0x1]
        %v4287 = vld [vmem:[#allocation2 + $0x36] sm:$0x1]
        %v4288 = vld [vmem:[#allocation2 + $0x56] sm:$0x1]
        %v4289 = vld [vmem:[#allocation2 + $0x76] sm:$0x1]
        %v4290 = vld [vmem:[#allocation2 + $0x96] sm:$0x1]
        %v4291 = vld [vmem:[#allocation2 + $0xb6] sm:$0x1]
        %v4292 = vld [vmem:[#allocation2 + $0xd6] sm:$0x1]
        %v4293 = vld [vmem:[#allocation2 + $0xf6] sm:$0x1]
        %v4294 = vld [vmem:[#allocation2 + $0x116] sm:$0x1]
        %v4295 = vld [vmem:[#allocation2 + $0x136] sm:$0x1]
        %v4296 = vld [vmem:[#allocation2 + $0x156] sm:$0x1]
        %v4297 = vld [vmem:[#allocation2 + $0x176] sm:$0x1]
        %v4298 = vld [vmem:[#allocation2 + $0x196] sm:$0x1]
        %v4299 = vld [vmem:[#allocation2 + $0x17] sm:$0x1]
        %v4300 = vld [vmem:[#allocation2 + $0x37] sm:$0x1]
        %v4301 = vld [vmem:[#allocation2 + $0x57] sm:$0x1]
        %v4302 = vld [vmem:[#allocation2 + $0x77] sm:$0x1]
        %v4303 = vld [vmem:[#allocation2 + $0x97] sm:$0x1]
        %v4304 = vld [vmem:[#allocation2 + $0xb7] sm:$0x1]
        %v4305 = vld [vmem:[#allocation2 + $0xd7] sm:$0x1]
        %v4306 = vld [vmem:[#allocation2 + $0xf7] sm:$0x1]
        %v4307 = vld [vmem:[#allocation2 + $0x117] sm:$0x1]
        %v4308 = vld [vmem:[#allocation2 + $0x137] sm:$0x1]
        %v4309 = vld [vmem:[#allocation2 + $0x157] sm:$0x1]
        %v4310 = vld [vmem:[#allocation2 + $0x177] sm:$0x1]
        %v4311 = vld [vmem:[#allocation2 + $0x197] sm:$0x1]
        %v4312 = vmax.f32 %v4286, %v4299
        %v4313 = vmax.f32 %v4287, %v4300
        %v4314 = vmax.f32 %v4288, %v4301
        %v4315 = vmax.f32 %v4289, %v4302
        %v4316 = vmax.f32 %v4290, %v4303
        %v4317 = vmax.f32 %v4291, %v4304
        %v4318 = vmax.f32 %v4292, %v4305
        %v4319 = vmax.f32 %v4293, %v4306
        %v4320 = vmax.f32 %v4294, %v4307
        %v4321 = vmax.f32 %v4295, %v4308
        %v4322 = vmax.f32 %v4296, %v4309
        %v4323 = vmax.f32 %v4297, %v4310
        %v4324 = vmax.f32 %v4298, %v4311
        %v4325 = vpack.c.bf16 %v4312, %v4312
        %v4326 = vpack.c.bf16 %v4313, %v4313
        %v4327 = vpack.c.bf16 %v4314, %v4314
        %v4328 = vpack.c.bf16 %v4315, %v4315
        %v4329 = vpack.c.bf16 %v4316, %v4316
        %v4330 = vpack.c.bf16 %v4317, %v4317
        %v4331 = vpack.c.bf16 %v4318, %v4318
        %v4332 = vpack.c.bf16 %v4319, %v4319
        %v4333 = vpack.c.bf16 %v4320, %v4320
        %v4334 = vpack.c.bf16 %v4321, %v4321
        %v4335 = vpack.c.bf16 %v4322, %v4322
        %v4336 = vpack.c.bf16 %v4323, %v4323
        %v4337 = vpack.c.bf16 %v4324, %v4324
        %v4351 = vunpack.c.l.b16 %v4325
        %v4352 = vunpack.c.l.b16 %v4326
        %v4353 = vunpack.c.l.b16 %v4327
        %v4354 = vunpack.c.l.b16 %v4328
        %v4355 = vunpack.c.l.b16 %v4329
        %v4356 = vunpack.c.l.b16 %v4330
        %v4357 = vunpack.c.l.b16 %v4331
        %v4358 = vunpack.c.l.b16 %v4332
        %v4359 = vunpack.c.l.b16 %v4333
        %v4360 = vunpack.c.l.b16 %v4334
        %v4361 = vunpack.c.l.b16 %v4335
        %v4362 = vunpack.c.l.b16 %v4336
        %v4363 = vunpack.c.l.b16 %v4337
        %v4364 = vpack.c.b16 %v4351, %v4351
        %v4365 = vpack.c.b16 %v4352, %v4352
        %v4366 = vpack.c.b16 %v4353, %v4353
        %v4367 = vpack.c.b16 %v4354, %v4354
        %v4368 = vpack.c.b16 %v4355, %v4355
        %v4369 = vpack.c.b16 %v4356, %v4356
        %v4370 = vpack.c.b16 %v4357, %v4357
        %v4371 = vpack.c.b16 %v4358, %v4358
        %v4372 = vpack.c.b16 %v4359, %v4359
        %v4373 = vpack.c.b16 %v4360, %v4360
        %v4374 = vpack.c.b16 %v4361, %v4361
        %v4375 = vpack.c.b16 %v4362, %v4362
        %v4376 = vpack.c.b16 %v4363, %v4363
        %v4378 = vshll.u32 %v4364, 16
        %v4380 = vrot.slane %v4378, 7
        %v4382 = vshll.u32 %v4365, 16
        %v4384 = vrot.slane %v4382, 7
        %v4386 = vshll.u32 %v4366, 16
        %v4388 = vrot.slane %v4386, 7
        %v4390 = vshll.u32 %v4367, 16
        %v4392 = vrot.slane %v4390, 7
        %v4394 = vshll.u32 %v4368, 16
        %v4396 = vrot.slane %v4394, 7
        %v4398 = vshll.u32 %v4369, 16
        %v4400 = vrot.slane %v4398, 7
        %v4402 = vshll.u32 %v4370, 16
        %v4404 = vrot.slane %v4402, 7
        %v4406 = vshll.u32 %v4371, 16
        %v4408 = vrot.slane %v4406, 7
        %v4410 = vshll.u32 %v4372, 16
        %v4412 = vrot.slane %v4410, 7
        %v4414 = vshll.u32 %v4373, 16
        %v4416 = vrot.slane %v4414, 7
        %v4418 = vshll.u32 %v4374, 16
        %v4420 = vrot.slane %v4418, 7
        %v4422 = vshll.u32 %v4375, 16
        %v4424 = vrot.slane %v4422, 7
        %v4426 = vshll.u32 %v4376, 16
        %v4428 = vrot.slane %v4426, 7
        %v4442 = vld [vmem:[#allocation3 + $0x4] sm:$0x2]
        %v4443 = vsel %vm3105, %v4380, %v4442
        %4444 = vst [vmem:[#allocation3 + $0x4] sm:$0x2] %v4443
        %v4445 = vld [vmem:[#allocation3 + $0xc] sm:$0x2]
        %v4446 = vsel %vm3105, %v4384, %v4445
        %4447 = vst [vmem:[#allocation3 + $0xc] sm:$0x2] %v4446
        %v4448 = vld [vmem:[#allocation3 + $0x14] sm:$0x2]
        %v4449 = vsel %vm3105, %v4388, %v4448
        %4450 = vst [vmem:[#allocation3 + $0x14] sm:$0x2] %v4449
        %v4451 = vld [vmem:[#allocation3 + $0x1c] sm:$0x2]
        %v4452 = vsel %vm3105, %v4392, %v4451
        %4453 = vst [vmem:[#allocation3 + $0x1c] sm:$0x2] %v4452
        %v4454 = vld [vmem:[#allocation3 + $0x24] sm:$0x2]
        %v4455 = vsel %vm3105, %v4396, %v4454
        %4456 = vst [vmem:[#allocation3 + $0x24] sm:$0x2] %v4455
        %v4457 = vld [vmem:[#allocation3 + $0x2c] sm:$0x2]
        %v4458 = vsel %vm3105, %v4400, %v4457
        %4459 = vst [vmem:[#allocation3 + $0x2c] sm:$0x2] %v4458
        %v4460 = vld [vmem:[#allocation3 + $0x34] sm:$0x2]
        %v4461 = vsel %vm3105, %v4404, %v4460
        %4462 = vst [vmem:[#allocation3 + $0x34] sm:$0x2] %v4461
        %v4463 = vld [vmem:[#allocation3 + $0x3c] sm:$0x2]
        %v4464 = vsel %vm3105, %v4408, %v4463
        %4465 = vst [vmem:[#allocation3 + $0x3c] sm:$0x2] %v4464
        %v4466 = vld [vmem:[#allocation3 + $0x44] sm:$0x2]
        %v4467 = vsel %vm3105, %v4412, %v4466
        %4468 = vst [vmem:[#allocation3 + $0x44] sm:$0x2] %v4467
        %v4469 = vld [vmem:[#allocation3 + $0x4c] sm:$0x2]
        %v4470 = vsel %vm3105, %v4416, %v4469
        %4471 = vst [vmem:[#allocation3 + $0x4c] sm:$0x2] %v4470
        %v4472 = vld [vmem:[#allocation3 + $0x54] sm:$0x2]
        %v4473 = vsel %vm3105, %v4420, %v4472
        %4474 = vst [vmem:[#allocation3 + $0x54] sm:$0x2] %v4473
        %v4475 = vld [vmem:[#allocation3 + $0x5c] sm:$0x2]
        %v4476 = vsel %vm3105, %v4424, %v4475
        %4477 = vst [vmem:[#allocation3 + $0x5c] sm:$0x2] %v4476
        %v4478 = vld [vmem:[#allocation3 + $0x64] sm:$0x2]
        %v4479 = vsel %vm3105, %v4428, %v4478
        %4480 = vst [vmem:[#allocation3 + $0x64] sm:$0x2] %v4479
        %v4481 = vld [vmem:[#allocation2 + $0x18] sm:$0x1]
        %v4482 = vld [vmem:[#allocation2 + $0x38] sm:$0x1]
        %v4483 = vld [vmem:[#allocation2 + $0x58] sm:$0x1]
        %v4484 = vld [vmem:[#allocation2 + $0x78] sm:$0x1]
        %v4485 = vld [vmem:[#allocation2 + $0x98] sm:$0x1]
        %v4486 = vld [vmem:[#allocation2 + $0xb8] sm:$0x1]
        %v4487 = vld [vmem:[#allocation2 + $0xd8] sm:$0x1]
        %v4488 = vld [vmem:[#allocation2 + $0xf8] sm:$0x1]
        %v4489 = vld [vmem:[#allocation2 + $0x118] sm:$0x1]
        %v4490 = vld [vmem:[#allocation2 + $0x138] sm:$0x1]
        %v4491 = vld [vmem:[#allocation2 + $0x158] sm:$0x1]
        %v4492 = vld [vmem:[#allocation2 + $0x178] sm:$0x1]
        %v4493 = vld [vmem:[#allocation2 + $0x198] sm:$0x1]
        %v4494 = vld [vmem:[#allocation2 + $0x19] sm:$0x1]
        %v4495 = vld [vmem:[#allocation2 + $0x39] sm:$0x1]
        %v4496 = vld [vmem:[#allocation2 + $0x59] sm:$0x1]
        %v4497 = vld [vmem:[#allocation2 + $0x79] sm:$0x1]
        %v4498 = vld [vmem:[#allocation2 + $0x99] sm:$0x1]
        %v4499 = vld [vmem:[#allocation2 + $0xb9] sm:$0x1]
        %v4500 = vld [vmem:[#allocation2 + $0xd9] sm:$0x1]
        %v4501 = vld [vmem:[#allocation2 + $0xf9] sm:$0x1]
        %v4502 = vld [vmem:[#allocation2 + $0x119] sm:$0x1]
        %v4503 = vld [vmem:[#allocation2 + $0x139] sm:$0x1]
        %v4504 = vld [vmem:[#allocation2 + $0x159] sm:$0x1]
        %v4505 = vld [vmem:[#allocation2 + $0x179] sm:$0x1]
        %v4506 = vld [vmem:[#allocation2 + $0x199] sm:$0x1]
        %v4507 = vmax.f32 %v4481, %v4494
        %v4508 = vmax.f32 %v4482, %v4495
        %v4509 = vmax.f32 %v4483, %v4496
        %v4510 = vmax.f32 %v4484, %v4497
        %v4511 = vmax.f32 %v4485, %v4498
        %v4512 = vmax.f32 %v4486, %v4499
        %v4513 = vmax.f32 %v4487, %v4500
        %v4514 = vmax.f32 %v4488, %v4501
        %v4515 = vmax.f32 %v4489, %v4502
        %v4516 = vmax.f32 %v4490, %v4503
        %v4517 = vmax.f32 %v4491, %v4504
        %v4518 = vmax.f32 %v4492, %v4505
        %v4519 = vmax.f32 %v4493, %v4506
        %v4520 = vpack.c.bf16 %v4507, %v4507
        %v4521 = vpack.c.bf16 %v4508, %v4508
        %v4522 = vpack.c.bf16 %v4509, %v4509
        %v4523 = vpack.c.bf16 %v4510, %v4510
        %v4524 = vpack.c.bf16 %v4511, %v4511
        %v4525 = vpack.c.bf16 %v4512, %v4512
        %v4526 = vpack.c.bf16 %v4513, %v4513
        %v4527 = vpack.c.bf16 %v4514, %v4514
        %v4528 = vpack.c.bf16 %v4515, %v4515
        %v4529 = vpack.c.bf16 %v4516, %v4516
        %v4530 = vpack.c.bf16 %v4517, %v4517
        %v4531 = vpack.c.bf16 %v4518, %v4518
        %v4532 = vpack.c.bf16 %v4519, %v4519
        %v4546 = vunpack.c.l.b16 %v4520
        %v4547 = vunpack.c.l.b16 %v4521
        %v4548 = vunpack.c.l.b16 %v4522
        %v4549 = vunpack.c.l.b16 %v4523
        %v4550 = vunpack.c.l.b16 %v4524
        %v4551 = vunpack.c.l.b16 %v4525
        %v4552 = vunpack.c.l.b16 %v4526
        %v4553 = vunpack.c.l.b16 %v4527
        %v4554 = vunpack.c.l.b16 %v4528
        %v4555 = vunpack.c.l.b16 %v4529
        %v4556 = vunpack.c.l.b16 %v4530
        %v4557 = vunpack.c.l.b16 %v4531
        %v4558 = vunpack.c.l.b16 %v4532
        %v4559 = vpack.c.b16 %v4546, %v4546
        %v4560 = vpack.c.b16 %v4547, %v4547
        %v4561 = vpack.c.b16 %v4548, %v4548
        %v4562 = vpack.c.b16 %v4549, %v4549
        %v4563 = vpack.c.b16 %v4550, %v4550
        %v4564 = vpack.c.b16 %v4551, %v4551
        %v4565 = vpack.c.b16 %v4552, %v4552
        %v4566 = vpack.c.b16 %v4553, %v4553
        %v4567 = vpack.c.b16 %v4554, %v4554
        %v4568 = vpack.c.b16 %v4555, %v4555
        %v4569 = vpack.c.b16 %v4556, %v4556
        %v4570 = vpack.c.b16 %v4557, %v4557
        %v4571 = vpack.c.b16 %v4558, %v4558
        %v4572 = vrot.slane %v4559, 6
        %v4573 = vrot.slane %v4560, 6
        %v4574 = vrot.slane %v4561, 6
        %v4575 = vrot.slane %v4562, 6
        %v4576 = vrot.slane %v4563, 6
        %v4577 = vrot.slane %v4564, 6
        %v4578 = vrot.slane %v4565, 6
        %v4579 = vrot.slane %v4566, 6
        %v4580 = vrot.slane %v4567, 6
        %v4581 = vrot.slane %v4568, 6
        %v4582 = vrot.slane %v4569, 6
        %v4583 = vrot.slane %v4570, 6
        %v4584 = vrot.slane %v4571, 6
        %v4598 = vld [vmem:[#allocation3 + $0x4] sm:$0x4]
        %v4599 = vsel %vm3264, %v4572, %v4598
        %4600 = vst [vmem:[#allocation3 + $0x4] sm:$0x4] %v4599
        %v4601 = vld [vmem:[#allocation3 + $0xc] sm:$0x4]
        %v4602 = vsel %vm3264, %v4573, %v4601
        %4603 = vst [vmem:[#allocation3 + $0xc] sm:$0x4] %v4602
        %v4604 = vld [vmem:[#allocation3 + $0x14] sm:$0x4]
        %v4605 = vsel %vm3264, %v4574, %v4604
        %4606 = vst [vmem:[#allocation3 + $0x14] sm:$0x4] %v4605
        %v4607 = vld [vmem:[#allocation3 + $0x1c] sm:$0x4]
        %v4608 = vsel %vm3264, %v4575, %v4607
        %4609 = vst [vmem:[#allocation3 + $0x1c] sm:$0x4] %v4608
        %v4610 = vld [vmem:[#allocation3 + $0x24] sm:$0x4]
        %v4611 = vsel %vm3264, %v4576, %v4610
        %4612 = vst [vmem:[#allocation3 + $0x24] sm:$0x4] %v4611
        %v4613 = vld [vmem:[#allocation3 + $0x2c] sm:$0x4]
        %v4614 = vsel %vm3264, %v4577, %v4613
        %4615 = vst [vmem:[#allocation3 + $0x2c] sm:$0x4] %v4614
        %v4616 = vld [vmem:[#allocation3 + $0x34] sm:$0x4]
        %v4617 = vsel %vm3264, %v4578, %v4616
        %4618 = vst [vmem:[#allocation3 + $0x34] sm:$0x4] %v4617
        %v4619 = vld [vmem:[#allocation3 + $0x3c] sm:$0x4]
        %v4620 = vsel %vm3264, %v4579, %v4619
        %4621 = vst [vmem:[#allocation3 + $0x3c] sm:$0x4] %v4620
        %v4622 = vld [vmem:[#allocation3 + $0x44] sm:$0x4]
        %v4623 = vsel %vm3264, %v4580, %v4622
        %4624 = vst [vmem:[#allocation3 + $0x44] sm:$0x4] %v4623
        %v4625 = vld [vmem:[#allocation3 + $0x4c] sm:$0x4]
        %v4626 = vsel %vm3264, %v4581, %v4625
        %4627 = vst [vmem:[#allocation3 + $0x4c] sm:$0x4] %v4626
        %v4628 = vld [vmem:[#allocation3 + $0x54] sm:$0x4]
        %v4629 = vsel %vm3264, %v4582, %v4628
        %4630 = vst [vmem:[#allocation3 + $0x54] sm:$0x4] %v4629
        %v4631 = vld [vmem:[#allocation3 + $0x5c] sm:$0x4]
        %v4632 = vsel %vm3264, %v4583, %v4631
        %4633 = vst [vmem:[#allocation3 + $0x5c] sm:$0x4] %v4632
        %v4634 = vld [vmem:[#allocation3 + $0x64] sm:$0x4]
        %v4635 = vsel %vm3264, %v4584, %v4634
        %4636 = vst [vmem:[#allocation3 + $0x64] sm:$0x4] %v4635
        %v4637 = vld [vmem:[#allocation3] sm:$0xf]
        %v4638 = vld [vmem:[#allocation3 + $0x4] sm:$0x3]
        %v4639 = vld [vmem:[#allocation3 + $0x8] sm:$0xf]
        %v4640 = vld [vmem:[#allocation3 + $0xc] sm:$0x3]
        %v4641 = vld [vmem:[#allocation3 + $0x10] sm:$0xf]
        %v4642 = vld [vmem:[#allocation3 + $0x14] sm:$0x3]
        %v4643 = vld [vmem:[#allocation3 + $0x18] sm:$0xf]
        %v4644 = vld [vmem:[#allocation3 + $0x1c] sm:$0x3]
        %v4645 = vld [vmem:[#allocation3 + $0x20] sm:$0xf]
        %v4646 = vld [vmem:[#allocation3 + $0x24] sm:$0x3]
        %v4647 = vld [vmem:[#allocation3 + $0x28] sm:$0xf]
        %v4648 = vld [vmem:[#allocation3 + $0x2c] sm:$0x3]
        %v4649 = vld [vmem:[#allocation3 + $0x30] sm:$0xf]
        %v4650 = vld [vmem:[#allocation3 + $0x34] sm:$0x3]
        %v4651 = vld [vmem:[#allocation3 + $0x38] sm:$0xf]
        %v4652 = vld [vmem:[#allocation3 + $0x3c] sm:$0x3]
        %v4653 = vld [vmem:[#allocation3 + $0x40] sm:$0xf]
        %v4654 = vld [vmem:[#allocation3 + $0x44] sm:$0x3]
        %v4655 = vld [vmem:[#allocation3 + $0x48] sm:$0xf]
        %v4656 = vld [vmem:[#allocation3 + $0x4c] sm:$0x3]
        %v4657 = vld [vmem:[#allocation3 + $0x50] sm:$0xf]
        %v4658 = vld [vmem:[#allocation3 + $0x54] sm:$0x3]
        %vm4659 = vcmask 257024
        %4660 = vst.msk [vmem:[#allocation4] sm:$0xf] %vm4659, %v4637
        %vm4661 = vcmask 254976
        %vm4662 = vmand %vm4661, %vm2907
        %v4663 = vld [vmem:[#allocation4 + $0xc] sm:$0x3]
        %v4664 = vsel %vm4662, %v4638, %v4663
        %4665 = vst [vmem:[#allocation4 + $0xc] sm:$0x3] %v4664
        %4666 = vst.msk [vmem:[#allocation4 + $0x18] sm:$0xf] %vm4659, %v4639
        %v4667 = vld [vmem:[#allocation4 + $0x24] sm:$0x3]
        %v4668 = vsel %vm4662, %v4640, %v4667
        %4669 = vst [vmem:[#allocation4 + $0x24] sm:$0x3] %v4668
        %4670 = vst.msk [vmem:[#allocation4 + $0x30] sm:$0xf] %vm4659, %v4641
        %v4671 = vld [vmem:[#allocation4 + $0x3c] sm:$0x3]
        %v4672 = vsel %vm4662, %v4642, %v4671
        %4673 = vst [vmem:[#allocation4 + $0x3c] sm:$0x3] %v4672
        %4674 = vst.msk [vmem:[#allocation4 + $0x48] sm:$0xf] %vm4659, %v4643
        %v4675 = vld [vmem:[#allocation4 + $0x54] sm:$0x3]
        %v4676 = vsel %vm4662, %v4644, %v4675
        %4677 = vst [vmem:[#allocation4 + $0x54] sm:$0x3] %v4676
        %4678 = vst.msk [vmem:[#allocation4 + $0x60] sm:$0xf] %vm4659, %v4645
        %v4679 = vld [vmem:[#allocation4 + $0x6c] sm:$0x3]
        %v4680 = vsel %vm4662, %v4646, %v4679
        %4681 = vst [vmem:[#allocation4 + $0x6c] sm:$0x3] %v4680
        %4682 = vst.msk [vmem:[#allocation4 + $0x78] sm:$0xf] %vm4659, %v4647
        %v4683 = vld [vmem:[#allocation4 + $0x84] sm:$0x3]
        %v4684 = vsel %vm4662, %v4648, %v4683
        %4685 = vst [vmem:[#allocation4 + $0x84] sm:$0x3] %v4684
        %4686 = vst.msk [vmem:[#allocation4 + $0x90] sm:$0xf] %vm4659, %v4649
        %v4687 = vld [vmem:[#allocation4 + $0x9c] sm:$0x3]
        %v4688 = vsel %vm4662, %v4650, %v4687
        %4689 = vst [vmem:[#allocation4 + $0x9c] sm:$0x3] %v4688
        %4690 = vst.msk [vmem:[#allocation4 + $0xa8] sm:$0xf] %vm4659, %v4651
        %v4691 = vld [vmem:[#allocation4 + $0xb4] sm:$0x3]
        %v4692 = vsel %vm4662, %v4652, %v4691
        %4693 = vst [vmem:[#allocation4 + $0xb4] sm:$0x3] %v4692
        %4694 = vst.msk [vmem:[#allocation4 + $0xc0] sm:$0xf] %vm4659, %v4653
        %v4695 = vld [vmem:[#allocation4 + $0xcc] sm:$0x3]
        %v4696 = vsel %vm4662, %v4654, %v4695
        %4697 = vst [vmem:[#allocation4 + $0xcc] sm:$0x3] %v4696
        %4698 = vst.msk [vmem:[#allocation4 + $0xd8] sm:$0xf] %vm4659, %v4655
        %v4699 = vld [vmem:[#allocation4 + $0xe4] sm:$0x3]
        %v4700 = vsel %vm4662, %v4656, %v4699
        %4701 = vst [vmem:[#allocation4 + $0xe4] sm:$0x3] %v4700
        %4702 = vst.msk [vmem:[#allocation4 + $0xf0] sm:$0xf] %vm4659, %v4657
        %v4703 = vld [vmem:[#allocation4 + $0xfc] sm:$0x3]
        %v4704 = vsel %vm4662, %v4658, %v4703
        %4705 = vst [vmem:[#allocation4 + $0xfc] sm:$0x3] %v4704
        %v4706 = vld [vmem:[#allocation3] sm:$0xf]
        %v4707 = vld [vmem:[#allocation3 + $0x4] sm:$0x3]
        %v4708 = vld [vmem:[#allocation3 + $0x8] sm:$0xf]
        %v4709 = vld [vmem:[#allocation3 + $0xc] sm:$0x3]
        %v4710 = vld [vmem:[#allocation3 + $0x10] sm:$0xf]
        %v4711 = vld [vmem:[#allocation3 + $0x14] sm:$0x3]
        %v4712 = vld [vmem:[#allocation3 + $0x18] sm:$0xf]
        %v4713 = vld [vmem:[#allocation3 + $0x1c] sm:$0x3]
        %v4714 = vld [vmem:[#allocation3 + $0x20] sm:$0xf]
        %v4715 = vld [vmem:[#allocation3 + $0x24] sm:$0x3]
        %v4716 = vld [vmem:[#allocation3 + $0x28] sm:$0xf]
        %v4717 = vld [vmem:[#allocation3 + $0x2c] sm:$0x3]
        %v4718 = vld [vmem:[#allocation3 + $0x30] sm:$0xf]
        %v4719 = vld [vmem:[#allocation3 + $0x34] sm:$0x3]
        %v4720 = vld [vmem:[#allocation3 + $0x38] sm:$0xf]
        %v4721 = vld [vmem:[#allocation3 + $0x3c] sm:$0x3]
        %v4722 = vld [vmem:[#allocation3 + $0x40] sm:$0xf]
        %v4723 = vld [vmem:[#allocation3 + $0x44] sm:$0x3]
        %v4724 = vld [vmem:[#allocation3 + $0x48] sm:$0xf]
        %v4725 = vld [vmem:[#allocation3 + $0x4c] sm:$0x3]
        %v4726 = vld [vmem:[#allocation3 + $0x50] sm:$0xf]
        %v4727 = vld [vmem:[#allocation3 + $0x54] sm:$0x3]
        %vm4728 = vsmask.f32 7440
        %vm4729 = vmor %vm3619, %vm4728
        %v4731 = vshrl.u32 %v4706, 16
        %v4733 = vrot.slane %v4731, 4
        %v4734 = vshll.u32 %v4706, 16
        %v4736 = vrot.slane %v4734, 5
        %v4737 = vor.u32 %v4733, %v4736
        %v4738 = vrot.slane %v4737, 4
        %v4740 = vshll.u32 %v4707, 16
        %v4742 = vrot.slane %v4740, 5
        %v4743 = vsel %vm4729, %v4738, %v4742
        %v4744 = vshrl.u32 %v4707, 16
        %v4746 = vrot.slane %v4744, 4
        %v4747 = vor.u32 %v4746, %v4742
        %v4748 = vrot.slane %v4747, 4
        %v4750 = vshrl.u32 %v4708, 16
        %v4752 = vrot.slane %v4750, 4
        %v4753 = vshll.u32 %v4708, 16
        %v4755 = vrot.slane %v4753, 5
        %v4756 = vor.u32 %v4752, %v4755
        %v4757 = vrot.slane %v4756, 4
        %v4759 = vshll.u32 %v4709, 16
        %v4761 = vrot.slane %v4759, 5
        %v4762 = vsel %vm4729, %v4757, %v4761
        %v4763 = vshrl.u32 %v4709, 16
        %v4765 = vrot.slane %v4763, 4
        %v4766 = vor.u32 %v4765, %v4761
        %v4767 = vrot.slane %v4766, 4
        %v4769 = vshrl.u32 %v4710, 16
        %v4771 = vrot.slane %v4769, 4
        %v4772 = vshll.u32 %v4710, 16
        %v4774 = vrot.slane %v4772, 5
        %v4775 = vor.u32 %v4771, %v4774
        %v4776 = vrot.slane %v4775, 4
        %v4778 = vshll.u32 %v4711, 16
        %v4780 = vrot.slane %v4778, 5
        %v4781 = vsel %vm4729, %v4776, %v4780
        %v4782 = vshrl.u32 %v4711, 16
        %v4784 = vrot.slane %v4782, 4
        %v4785 = vor.u32 %v4784, %v4780
        %v4786 = vrot.slane %v4785, 4
        %v4788 = vshrl.u32 %v4712, 16
        %v4790 = vrot.slane %v4788, 4
        %v4791 = vshll.u32 %v4712, 16
        %v4793 = vrot.slane %v4791, 5
        %v4794 = vor.u32 %v4790, %v4793
        %v4795 = vrot.slane %v4794, 4
        %v4797 = vshll.u32 %v4713, 16
        %v4799 = vrot.slane %v4797, 5
        %v4800 = vsel %vm4729, %v4795, %v4799
        %v4801 = vshrl.u32 %v4713, 16
        %v4803 = vrot.slane %v4801, 4
        %v4804 = vor.u32 %v4803, %v4799
        %v4805 = vrot.slane %v4804, 4
        %v4807 = vshrl.u32 %v4714, 16
        %v4809 = vrot.slane %v4807, 4
        %v4810 = vshll.u32 %v4714, 16
        %v4812 = vrot.slane %v4810, 5
        %v4813 = vor.u32 %v4809, %v4812
        %v4814 = vrot.slane %v4813, 4
        %v4816 = vshll.u32 %v4715, 16
        %v4818 = vrot.slane %v4816, 5
        %v4819 = vsel %vm4729, %v4814, %v4818
        %v4820 = vshrl.u32 %v4715, 16
        %v4822 = vrot.slane %v4820, 4
        %v4823 = vor.u32 %v4822, %v4818
        %v4824 = vrot.slane %v4823, 4
        %v4826 = vshrl.u32 %v4716, 16
        %v4828 = vrot.slane %v4826, 4
        %v4829 = vshll.u32 %v4716, 16
        %v4831 = vrot.slane %v4829, 5
        %v4832 = vor.u32 %v4828, %v4831
        %v4833 = vrot.slane %v4832, 4
        %v4835 = vshll.u32 %v4717, 16
        %v4837 = vrot.slane %v4835, 5
        %v4838 = vsel %vm4729, %v4833, %v4837
        %v4839 = vshrl.u32 %v4717, 16
        %v4841 = vrot.slane %v4839, 4
        %v4842 = vor.u32 %v4841, %v4837
        %v4843 = vrot.slane %v4842, 4
        %v4845 = vshrl.u32 %v4718, 16
        %v4847 = vrot.slane %v4845, 4
        %v4848 = vshll.u32 %v4718, 16
        %v4850 = vrot.slane %v4848, 5
        %v4851 = vor.u32 %v4847, %v4850
        %v4852 = vrot.slane %v4851, 4
        %v4854 = vshll.u32 %v4719, 16
        %v4856 = vrot.slane %v4854, 5
        %v4857 = vsel %vm4729, %v4852, %v4856
        %v4858 = vshrl.u32 %v4719, 16
        %v4860 = vrot.slane %v4858, 4
        %v4861 = vor.u32 %v4860, %v4856
        %v4862 = vrot.slane %v4861, 4
        %v4864 = vshrl.u32 %v4720, 16
        %v4866 = vrot.slane %v4864, 4
        %v4867 = vshll.u32 %v4720, 16
        %v4869 = vrot.slane %v4867, 5
        %v4870 = vor.u32 %v4866, %v4869
        %v4871 = vrot.slane %v4870, 4
        %v4873 = vshll.u32 %v4721, 16
        %v4875 = vrot.slane %v4873, 5
        %v4876 = vsel %vm4729, %v4871, %v4875
        %v4877 = vshrl.u32 %v4721, 16
        %v4879 = vrot.slane %v4877, 4
        %v4880 = vor.u32 %v4879, %v4875
        %v4881 = vrot.slane %v4880, 4
        %v4883 = vshrl.u32 %v4722, 16
        %v4885 = vrot.slane %v4883, 4
        %v4886 = vshll.u32 %v4722, 16
        %v4888 = vrot.slane %v4886, 5
        %v4889 = vor.u32 %v4885, %v4888
        %v4890 = vrot.slane %v4889, 4
        %v4892 = vshll.u32 %v4723, 16
        %v4894 = vrot.slane %v4892, 5
        %v4895 = vsel %vm4729, %v4890, %v4894
        %v4896 = vshrl.u32 %v4723, 16
        %v4898 = vrot.slane %v4896, 4
        %v4899 = vor.u32 %v4898, %v4894
        %v4900 = vrot.slane %v4899, 4
        %v4902 = vshrl.u32 %v4724, 16
        %v4904 = vrot.slane %v4902, 4
        %v4905 = vshll.u32 %v4724, 16
        %v4907 = vrot.slane %v4905, 5
        %v4908 = vor.u32 %v4904, %v4907
        %v4909 = vrot.slane %v4908, 4
        %v4911 = vshll.u32 %v4725, 16
        %v4913 = vrot.slane %v4911, 5
        %v4914 = vsel %vm4729, %v4909, %v4913
        %v4915 = vshrl.u32 %v4725, 16
        %v4917 = vrot.slane %v4915, 4
        %v4918 = vor.u32 %v4917, %v4913
        %v4919 = vrot.slane %v4918, 4
        %v4921 = vshrl.u32 %v4726, 16
        %v4923 = vrot.slane %v4921, 4
        %v4924 = vshll.u32 %v4726, 16
        %v4926 = vrot.slane %v4924, 5
        %v4927 = vor.u32 %v4923, %v4926
        %v4928 = vrot.slane %v4927, 4
        %v4930 = vshll.u32 %v4727, 16
        %v4932 = vrot.slane %v4930, 5
        %v4933 = vsel %vm4729, %v4928, %v4932
        %v4934 = vshrl.u32 %v4727, 16
        %v4936 = vrot.slane %v4934, 4
        %v4937 = vor.u32 %v4936, %v4932
        %v4938 = vrot.slane %v4937, 4
        %4939 = vrot.lane.b32.xlu0 %v4743, 32
        %v4940 = vpop.permute.xlu0 %4939
        %4941 = vrot.lane.b32.xlu0 %v4748, 32
        %v4942 = vpop.permute.xlu0 %4941
        %4943 = vrot.lane.b32.xlu0 %v4762, 32
        %v4944 = vpop.permute.xlu0 %4943
        %4945 = vrot.lane.b32.xlu0 %v4767, 32
        %v4946 = vpop.permute.xlu0 %4945
        %4947 = vrot.lane.b32.xlu0 %v4781, 32
        %v4948 = vpop.permute.xlu0 %4947
        %4949 = vrot.lane.b32.xlu0 %v4786, 32
        %v4950 = vpop.permute.xlu0 %4949
        %4951 = vrot.lane.b32.xlu0 %v4800, 32
        %v4952 = vpop.permute.xlu0 %4951
        %4953 = vrot.lane.b32.xlu0 %v4805, 32
        %v4954 = vpop.permute.xlu0 %4953
        %4955 = vrot.lane.b32.xlu0 %v4819, 32
        %v4956 = vpop.permute.xlu0 %4955
        %4957 = vrot.lane.b32.xlu0 %v4824, 32
        %v4958 = vpop.permute.xlu0 %4957
        %4959 = vrot.lane.b32.xlu0 %v4838, 32
        %v4960 = vpop.permute.xlu0 %4959
        %4961 = vrot.lane.b32.xlu0 %v4843, 32
        %v4962 = vpop.permute.xlu0 %4961
        %4963 = vrot.lane.b32.xlu0 %v4857, 32
        %v4964 = vpop.permute.xlu0 %4963
        %4965 = vrot.lane.b32.xlu0 %v4862, 32
        %v4966 = vpop.permute.xlu0 %4965
        %4967 = vrot.lane.b32.xlu0 %v4876, 32
        %v4968 = vpop.permute.xlu0 %4967
        %4969 = vrot.lane.b32.xlu0 %v4881, 32
        %v4970 = vpop.permute.xlu0 %4969
        %4971 = vrot.lane.b32.xlu0 %v4895, 32
        %v4972 = vpop.permute.xlu0 %4971
        %4973 = vrot.lane.b32.xlu0 %v4900, 32
        %v4974 = vpop.permute.xlu0 %4973
        %4975 = vrot.lane.b32.xlu0 %v4914, 32
        %v4976 = vpop.permute.xlu0 %4975
        %4977 = vrot.lane.b32.xlu0 %v4919, 32
        %v4978 = vpop.permute.xlu0 %4977
        %4979 = vrot.lane.b32.xlu0 %v4933, 32
        %v4980 = vpop.permute.xlu0 %4979
        %4981 = vrot.lane.b32.xlu0 %v4938, 32
        %v4982 = vpop.permute.xlu0 %4981
        %vm5005 = vcmask 519424
        %5006 = vst.msk [vmem:[#allocation4] sm:$0xf] %vm5005, %v4940
        %vm5007 = vcmask 517376
        %vm5008 = vmand %vm5007, %vm2907
        %v5009 = vld [vmem:[#allocation4 + $0xc] sm:$0x3]
        %v5010 = vsel %vm5008, %v4942, %v5009
        %5011 = vst [vmem:[#allocation4 + $0xc] sm:$0x3] %v5010
        %5012 = vst.msk [vmem:[#allocation4 + $0x18] sm:$0xf] %vm5005, %v4944
        %v5013 = vld [vmem:[#allocation4 + $0x24] sm:$0x3]
        %v5014 = vsel %vm5008, %v4946, %v5013
        %5015 = vst [vmem:[#allocation4 + $0x24] sm:$0x3] %v5014
        %5016 = vst.msk [vmem:[#allocation4 + $0x30] sm:$0xf] %vm5005, %v4948
        %v5017 = vld [vmem:[#allocation4 + $0x3c] sm:$0x3]
        %v5018 = vsel %vm5008, %v4950, %v5017
        %5019 = vst [vmem:[#allocation4 + $0x3c] sm:$0x3] %v5018
        %5020 = vst.msk [vmem:[#allocation4 + $0x48] sm:$0xf] %vm5005, %v4952
        %v5021 = vld [vmem:[#allocation4 + $0x54] sm:$0x3]
        %v5022 = vsel %vm5008, %v4954, %v5021
        %5023 = vst [vmem:[#allocation4 + $0x54] sm:$0x3] %v5022
        %5024 = vst.msk [vmem:[#allocation4 + $0x60] sm:$0xf] %vm5005, %v4956
        %v5025 = vld [vmem:[#allocation4 + $0x6c] sm:$0x3]
        %v5026 = vsel %vm5008, %v4958, %v5025
        %5027 = vst [vmem:[#allocation4 + $0x6c] sm:$0x3] %v5026
        %5028 = vst.msk [vmem:[#allocation4 + $0x78] sm:$0xf] %vm5005, %v4960
        %v5029 = vld [vmem:[#allocation4 + $0x84] sm:$0x3]
        %v5030 = vsel %vm5008, %v4962, %v5029
        %5031 = vst [vmem:[#allocation4 + $0x84] sm:$0x3] %v5030
        %5032 = vst.msk [vmem:[#allocation4 + $0x90] sm:$0xf] %vm5005, %v4964
        %v5033 = vld [vmem:[#allocation4 + $0x9c] sm:$0x3]
        %v5034 = vsel %vm5008, %v4966, %v5033
        %5035 = vst [vmem:[#allocation4 + $0x9c] sm:$0x3] %v5034
        %5036 = vst.msk [vmem:[#allocation4 + $0xa8] sm:$0xf] %vm5005, %v4968
        %v5037 = vld [vmem:[#allocation4 + $0xb4] sm:$0x3]
        %v5038 = vsel %vm5008, %v4970, %v5037
        %5039 = vst [vmem:[#allocation4 + $0xb4] sm:$0x3] %v5038
        %5040 = vst.msk [vmem:[#allocation4 + $0xc0] sm:$0xf] %vm5005, %v4972
        %v5041 = vld [vmem:[#allocation4 + $0xcc] sm:$0x3]
        %v5042 = vsel %vm5008, %v4974, %v5041
        %5043 = vst [vmem:[#allocation4 + $0xcc] sm:$0x3] %v5042
        %5044 = vst.msk [vmem:[#allocation4 + $0xd8] sm:$0xf] %vm5005, %v4976
        %v5045 = vld [vmem:[#allocation4 + $0xe4] sm:$0x3]
        %v5046 = vsel %vm5008, %v4978, %v5045
        %5047 = vst [vmem:[#allocation4 + $0xe4] sm:$0x3] %v5046
        %5048 = vst.msk [vmem:[#allocation4 + $0xf0] sm:$0xf] %vm5005, %v4980
        %v5049 = vld [vmem:[#allocation4 + $0xfc] sm:$0x3]
        %v5050 = vsel %vm5008, %v4982, %v5049
        %5051 = vst [vmem:[#allocation4 + $0xfc] sm:$0x3] %v5050
        %v5052 = vld [vmem:[#allocation3] sm:$0xe]
        %v5053 = vld [vmem:[#allocation3 + $0x4] sm:$0x7]
        %v5054 = vld [vmem:[#allocation3 + $0x8] sm:$0xe]
        %v5055 = vld [vmem:[#allocation3 + $0xc] sm:$0x7]
        %v5056 = vld [vmem:[#allocation3 + $0x10] sm:$0xe]
        %v5057 = vld [vmem:[#allocation3 + $0x14] sm:$0x7]
        %v5058 = vld [vmem:[#allocation3 + $0x18] sm:$0xe]
        %v5059 = vld [vmem:[#allocation3 + $0x1c] sm:$0x7]
        %v5060 = vld [vmem:[#allocation3 + $0x20] sm:$0xe]
        %v5061 = vld [vmem:[#allocation3 + $0x24] sm:$0x7]
        %v5062 = vld [vmem:[#allocation3 + $0x28] sm:$0xe]
        %v5063 = vld [vmem:[#allocation3 + $0x2c] sm:$0x7]
        %v5064 = vld [vmem:[#allocation3 + $0x30] sm:$0xe]
        %v5065 = vld [vmem:[#allocation3 + $0x34] sm:$0x7]
        %v5066 = vld [vmem:[#allocation3 + $0x38] sm:$0xe]
        %v5067 = vld [vmem:[#allocation3 + $0x3c] sm:$0x7]
        %v5068 = vld [vmem:[#allocation3 + $0x40] sm:$0xe]
        %v5069 = vld [vmem:[#allocation3 + $0x44] sm:$0x7]
        %v5070 = vld [vmem:[#allocation3 + $0x48] sm:$0xe]
        %v5071 = vld [vmem:[#allocation3 + $0x4c] sm:$0x7]
        %v5072 = vld [vmem:[#allocation3 + $0x50] sm:$0xe]
        %v5073 = vld [vmem:[#allocation3 + $0x54] sm:$0x7]
        %vm5096 = vcmask 1042432
        %vm5097 = vcmask 1046532
        %vm5098 = vmor %vm5096, %vm5097
        %v5099 = vrot.slane %v5052, 5
        %v5100 = vrot.slane %v5099, 4
        %v5101 = vrot.slane %v5053, 5
        %v5102 = vsel %vm5098, %v5100, %v5101
        %v5103 = vrot.slane %v5101, 4
        %v5104 = vrot.slane %v5054, 5
        %v5105 = vrot.slane %v5104, 4
        %v5106 = vrot.slane %v5055, 5
        %v5107 = vsel %vm5098, %v5105, %v5106
        %v5108 = vrot.slane %v5106, 4
        %v5109 = vrot.slane %v5056, 5
        %v5110 = vrot.slane %v5109, 4
        %v5111 = vrot.slane %v5057, 5
        %v5112 = vsel %vm5098, %v5110, %v5111
        %v5113 = vrot.slane %v5111, 4
        %v5114 = vrot.slane %v5058, 5
        %v5115 = vrot.slane %v5114, 4
        %v5116 = vrot.slane %v5059, 5
        %v5117 = vsel %vm5098, %v5115, %v5116
        %v5118 = vrot.slane %v5116, 4
        %v5119 = vrot.slane %v5060, 5
        %v5120 = vrot.slane %v5119, 4
        %v5121 = vrot.slane %v5061, 5
        %v5122 = vsel %vm5098, %v5120, %v5121
        %v5123 = vrot.slane %v5121, 4
        %v5124 = vrot.slane %v5062, 5
        %v5125 = vrot.slane %v5124, 4
        %v5126 = vrot.slane %v5063, 5
        %v5127 = vsel %vm5098, %v5125, %v5126
        %v5128 = vrot.slane %v5126, 4
        %v5129 = vrot.slane %v5064, 5
        %v5130 = vrot.slane %v5129, 4
        %v5131 = vrot.slane %v5065, 5
        %v5132 = vsel %vm5098, %v5130, %v5131
        %v5133 = vrot.slane %v5131, 4
        %v5134 = vrot.slane %v5066, 5
        %v5135 = vrot.slane %v5134, 4
        %v5136 = vrot.slane %v5067, 5
        %v5137 = vsel %vm5098, %v5135, %v5136
        %v5138 = vrot.slane %v5136, 4
        %v5139 = vrot.slane %v5068, 5
        %v5140 = vrot.slane %v5139, 4
        %v5141 = vrot.slane %v5069, 5
        %v5142 = vsel %vm5098, %v5140, %v5141
        %v5143 = vrot.slane %v5141, 4
        %v5144 = vrot.slane %v5070, 5
        %v5145 = vrot.slane %v5144, 4
        %v5146 = vrot.slane %v5071, 5
        %v5147 = vsel %vm5098, %v5145, %v5146
        %v5148 = vrot.slane %v5146, 4
        %v5149 = vrot.slane %v5072, 5
        %v5150 = vrot.slane %v5149, 4
        %v5151 = vrot.slane %v5073, 5
        %v5152 = vsel %vm5098, %v5150, %v5151
        %v5153 = vrot.slane %v5151, 4
        %5154 = vrot.lane.b32.xlu0 %v5102, 64
        %v5155 = vpop.permute.xlu0 %5154
        %5156 = vrot.lane.b32.xlu0 %v5103, 64
        %v5157 = vpop.permute.xlu0 %5156
        %5158 = vrot.lane.b32.xlu0 %v5107, 64
        %v5159 = vpop.permute.xlu0 %5158
        %5160 = vrot.lane.b32.xlu0 %v5108, 64
        %v5161 = vpop.permute.xlu0 %5160
        %5162 = vrot.lane.b32.xlu0 %v5112, 64
        %v5163 = vpop.permute.xlu0 %5162
        %5164 = vrot.lane.b32.xlu0 %v5113, 64
        %v5165 = vpop.permute.xlu0 %5164
        %5166 = vrot.lane.b32.xlu0 %v5117, 64
        %v5167 = vpop.permute.xlu0 %5166
        %5168 = vrot.lane.b32.xlu0 %v5118, 64
        %v5169 = vpop.permute.xlu0 %5168
        %5170 = vrot.lane.b32.xlu0 %v5122, 64
        %v5171 = vpop.permute.xlu0 %5170
        %5172 = vrot.lane.b32.xlu0 %v5123, 64
        %v5173 = vpop.permute.xlu0 %5172
        %5174 = vrot.lane.b32.xlu0 %v5127, 64
        %v5175 = vpop.permute.xlu0 %5174
        %5176 = vrot.lane.b32.xlu0 %v5128, 64
        %v5177 = vpop.permute.xlu0 %5176
        %5178 = vrot.lane.b32.xlu0 %v5132, 64
        %v5179 = vpop.permute.xlu0 %5178
        %5180 = vrot.lane.b32.xlu0 %v5133, 64
        %v5181 = vpop.permute.xlu0 %5180
        %5182 = vrot.lane.b32.xlu0 %v5137, 64
        %v5183 = vpop.permute.xlu0 %5182
        %5184 = vrot.lane.b32.xlu0 %v5138, 64
        %v5185 = vpop.permute.xlu0 %5184
        %5186 = vrot.lane.b32.xlu0 %v5142, 64
        %v5187 = vpop.permute.xlu0 %5186
        %5188 = vrot.lane.b32.xlu0 %v5143, 64
        %v5189 = vpop.permute.xlu0 %5188
        %5190 = vrot.lane.b32.xlu0 %v5147, 64
        %v5191 = vpop.permute.xlu0 %5190
        %5192 = vrot.lane.b32.xlu0 %v5148, 64
        %v5193 = vpop.permute.xlu0 %5192
        %5194 = vrot.lane.b32.xlu0 %v5152, 64
        %v5195 = vpop.permute.xlu0 %5194
        %5196 = vrot.lane.b32.xlu0 %v5153, 64
        %v5197 = vpop.permute.xlu0 %5196
        %vm5220 = vcmask 781824
        %5221 = vst.msk [vmem:[#allocation4] sm:$0xf] %vm5220, %v5155
        %vm5222 = vcmask 779776
        %vm5223 = vmand %vm5222, %vm2907
        %v5224 = vld [vmem:[#allocation4 + $0xc] sm:$0x3]
        %v5225 = vsel %vm5223, %v5157, %v5224
        %5226 = vst [vmem:[#allocation4 + $0xc] sm:$0x3] %v5225
        %5227 = vst.msk [vmem:[#allocation4 + $0x18] sm:$0xf] %vm5220, %v5159
        %v5228 = vld [vmem:[#allocation4 + $0x24] sm:$0x3]
        %v5229 = vsel %vm5223, %v5161, %v5228
        %5230 = vst [vmem:[#allocation4 + $0x24] sm:$0x3] %v5229
        %5231 = vst.msk [vmem:[#allocation4 + $0x30] sm:$0xf] %vm5220, %v5163
        %v5232 = vld [vmem:[#allocation4 + $0x3c] sm:$0x3]
        %v5233 = vsel %vm5223, %v5165, %v5232
        %5234 = vst [vmem:[#allocation4 + $0x3c] sm:$0x3] %v5233
        %5235 = vst.msk [vmem:[#allocation4 + $0x48] sm:$0xf] %vm5220, %v5167
        %v5236 = vld [vmem:[#allocation4 + $0x54] sm:$0x3]
        %v5237 = vsel %vm5223, %v5169, %v5236
        %5238 = vst [vmem:[#allocation4 + $0x54] sm:$0x3] %v5237
        %5239 = vst.msk [vmem:[#allocation4 + $0x60] sm:$0xf] %vm5220, %v5171
        %v5240 = vld [vmem:[#allocation4 + $0x6c] sm:$0x3]
        %v5241 = vsel %vm5223, %v5173, %v5240
        %5242 = vst [vmem:[#allocation4 + $0x6c] sm:$0x3] %v5241
        %5243 = vst.msk [vmem:[#allocation4 + $0x78] sm:$0xf] %vm5220, %v5175
        %v5244 = vld [vmem:[#allocation4 + $0x84] sm:$0x3]
        %v5245 = vsel %vm5223, %v5177, %v5244
        %5246 = vst [vmem:[#allocation4 + $0x84] sm:$0x3] %v5245
        %5247 = vst.msk [vmem:[#allocation4 + $0x90] sm:$0xf] %vm5220, %v5179
        %v5248 = vld [vmem:[#allocation4 + $0x9c] sm:$0x3]
        %v5249 = vsel %vm5223, %v5181, %v5248
        %5250 = vst [vmem:[#allocation4 + $0x9c] sm:$0x3] %v5249
        %5251 = vst.msk [vmem:[#allocation4 + $0xa8] sm:$0xf] %vm5220, %v5183
        %v5252 = vld [vmem:[#allocation4 + $0xb4] sm:$0x3]
        %v5253 = vsel %vm5223, %v5185, %v5252
        %5254 = vst [vmem:[#allocation4 + $0xb4] sm:$0x3] %v5253
        %5255 = vst.msk [vmem:[#allocation4 + $0xc0] sm:$0xf] %vm5220, %v5187
        %v5256 = vld [vmem:[#allocation4 + $0xcc] sm:$0x3]
        %v5257 = vsel %vm5223, %v5189, %v5256
        %5258 = vst [vmem:[#allocation4 + $0xcc] sm:$0x3] %v5257
        %5259 = vst.msk [vmem:[#allocation4 + $0xd8] sm:$0xf] %vm5220, %v5191
        %v5260 = vld [vmem:[#allocation4 + $0xe4] sm:$0x3]
        %v5261 = vsel %vm5223, %v5193, %v5260
        %5262 = vst [vmem:[#allocation4 + $0xe4] sm:$0x3] %v5261
        %5263 = vst.msk [vmem:[#allocation4 + $0xf0] sm:$0xf] %vm5220, %v5195
        %v5264 = vld [vmem:[#allocation4 + $0xfc] sm:$0x3]
        %v5265 = vsel %vm5223, %v5197, %v5264
        %5266 = vst [vmem:[#allocation4 + $0xfc] sm:$0x3] %v5265
        %s5267 = scalar_lea.vmem [#allocation3], 8
        %v5268 = vld [vmem:[%s5267] sm:$0xf]
        %v5269 = vld [vmem:[%s5267 + $0x4] sm:$0x3]
        %v5270 = vld [vmem:[%s5267 + $0x8] sm:$0xf]
        %v5271 = vld [vmem:[%s5267 + $0xc] sm:$0x3]
        %v5272 = vld [vmem:[%s5267 + $0x10] sm:$0xf]
        %v5273 = vld [vmem:[%s5267 + $0x14] sm:$0x3]
        %v5274 = vld [vmem:[%s5267 + $0x18] sm:$0xf]
        %v5275 = vld [vmem:[%s5267 + $0x1c] sm:$0x3]
        %v5276 = vld [vmem:[%s5267 + $0x20] sm:$0xf]
        %v5277 = vld [vmem:[%s5267 + $0x24] sm:$0x3]
        %v5278 = vld [vmem:[%s5267 + $0x28] sm:$0xf]
        %v5279 = vld [vmem:[%s5267 + $0x2c] sm:$0x3]
        %v5280 = vld [vmem:[%s5267 + $0x30] sm:$0xf]
        %v5281 = vld [vmem:[%s5267 + $0x34] sm:$0x3]
        %v5282 = vld [vmem:[%s5267 + $0x38] sm:$0xf]
        %v5283 = vld [vmem:[%s5267 + $0x3c] sm:$0x3]
        %v5284 = vld [vmem:[%s5267 + $0x40] sm:$0xf]
        %v5285 = vld [vmem:[%s5267 + $0x44] sm:$0x3]
        %v5286 = vld [vmem:[%s5267 + $0x48] sm:$0xf]
        %v5287 = vld [vmem:[%s5267 + $0x4c] sm:$0x3]
        %v5288 = vld [vmem:[%s5267 + $0x50] sm:$0xf]
        %v5289 = vld [vmem:[%s5267 + $0x54] sm:$0x3]
        %5312 = vrot.lane.b32.xlu0 %v5268, 96
        %v5313 = vpop.permute.xlu0 %5312
        %5314 = vrot.lane.b32.xlu0 %v5269, 96
        %v5315 = vpop.permute.xlu0 %5314
        %5316 = vrot.lane.b32.xlu0 %v5270, 96
        %v5317 = vpop.permute.xlu0 %5316
        %5318 = vrot.lane.b32.xlu0 %v5271, 96
        %v5319 = vpop.permute.xlu0 %5318
        %5320 = vrot.lane.b32.xlu0 %v5272, 96
        %v5321 = vpop.permute.xlu0 %5320
        %5322 = vrot.lane.b32.xlu0 %v5273, 96
        %v5323 = vpop.permute.xlu0 %5322
        %5324 = vrot.lane.b32.xlu0 %v5274, 96
        %v5325 = vpop.permute.xlu0 %5324
        %5326 = vrot.lane.b32.xlu0 %v5275, 96
        %v5327 = vpop.permute.xlu0 %5326
        %5328 = vrot.lane.b32.xlu0 %v5276, 96
        %v5329 = vpop.permute.xlu0 %5328
        %5330 = vrot.lane.b32.xlu0 %v5277, 96
        %v5331 = vpop.permute.xlu0 %5330
        %5332 = vrot.lane.b32.xlu0 %v5278, 96
        %v5333 = vpop.permute.xlu0 %5332
        %5334 = vrot.lane.b32.xlu0 %v5279, 96
        %v5335 = vpop.permute.xlu0 %5334
        %5336 = vrot.lane.b32.xlu0 %v5280, 96
        %v5337 = vpop.permute.xlu0 %5336
        %5338 = vrot.lane.b32.xlu0 %v5281, 96
        %v5339 = vpop.permute.xlu0 %5338
        %5340 = vrot.lane.b32.xlu0 %v5282, 96
        %v5341 = vpop.permute.xlu0 %5340
        %5342 = vrot.lane.b32.xlu0 %v5283, 96
        %v5343 = vpop.permute.xlu0 %5342
        %5344 = vrot.lane.b32.xlu0 %v5284, 96
        %v5345 = vpop.permute.xlu0 %5344
        %5346 = vrot.lane.b32.xlu0 %v5285, 96
        %v5347 = vpop.permute.xlu0 %5346
        %5348 = vrot.lane.b32.xlu0 %v5286, 96
        %v5349 = vpop.permute.xlu0 %5348
        %5350 = vrot.lane.b32.xlu0 %v5287, 96
        %v5351 = vpop.permute.xlu0 %5350
        %5352 = vrot.lane.b32.xlu0 %v5288, 96
        %v5353 = vpop.permute.xlu0 %5352
        %5354 = vrot.lane.b32.xlu0 %v5289, 96
        %v5355 = vpop.permute.xlu0 %5354
        %vm5378 = vcmask 1044224
        %5379 = vst.msk [vmem:[#allocation4] sm:$0xf] %vm5378, %v5313
        %vm5380 = vcmask 1042176
        %vm5381 = vmand %vm5380, %vm2907
        %v5382 = vld [vmem:[#allocation4 + $0xc] sm:$0x3]
        %v5383 = vsel %vm5381, %v5315, %v5382
        %5384 = vst [vmem:[#allocation4 + $0xc] sm:$0x3] %v5383
        %5385 = vst.msk [vmem:[#allocation4 + $0x18] sm:$0xf] %vm5378, %v5317
        %v5386 = vld [vmem:[#allocation4 + $0x24] sm:$0x3]
        %v5387 = vsel %vm5381, %v5319, %v5386
        %5388 = vst [vmem:[#allocation4 + $0x24] sm:$0x3] %v5387
        %5389 = vst.msk [vmem:[#allocation4 + $0x30] sm:$0xf] %vm5378, %v5321
        %v5390 = vld [vmem:[#allocation4 + $0x3c] sm:$0x3]
        %v5391 = vsel %vm5381, %v5323, %v5390
        %5392 = vst [vmem:[#allocation4 + $0x3c] sm:$0x3] %v5391
        %5393 = vst.msk [vmem:[#allocation4 + $0x48] sm:$0xf] %vm5378, %v5325
        %v5394 = vld [vmem:[#allocation4 + $0x54] sm:$0x3]
        %v5395 = vsel %vm5381, %v5327, %v5394
        %5396 = vst [vmem:[#allocation4 + $0x54] sm:$0x3] %v5395
        %5397 = vst.msk [vmem:[#allocation4 + $0x60] sm:$0xf] %vm5378, %v5329
        %v5398 = vld [vmem:[#allocation4 + $0x6c] sm:$0x3]
        %v5399 = vsel %vm5381, %v5331, %v5398
        %5400 = vst [vmem:[#allocation4 + $0x6c] sm:$0x3] %v5399
        %5401 = vst.msk [vmem:[#allocation4 + $0x78] sm:$0xf] %vm5378, %v5333
        %v5402 = vld [vmem:[#allocation4 + $0x84] sm:$0x3]
        %v5403 = vsel %vm5381, %v5335, %v5402
        %5404 = vst [vmem:[#allocation4 + $0x84] sm:$0x3] %v5403
        %5405 = vst.msk [vmem:[#allocation4 + $0x90] sm:$0xf] %vm5378, %v5337
        %v5406 = vld [vmem:[#allocation4 + $0x9c] sm:$0x3]
        %v5407 = vsel %vm5381, %v5339, %v5406
        %5408 = vst [vmem:[#allocation4 + $0x9c] sm:$0x3] %v5407
        %5409 = vst.msk [vmem:[#allocation4 + $0xa8] sm:$0xf] %vm5378, %v5341
        %v5410 = vld [vmem:[#allocation4 + $0xb4] sm:$0x3]
        %v5411 = vsel %vm5381, %v5343, %v5410
        %5412 = vst [vmem:[#allocation4 + $0xb4] sm:$0x3] %v5411
        %5413 = vst.msk [vmem:[#allocation4 + $0xc0] sm:$0xf] %vm5378, %v5345
        %v5414 = vld [vmem:[#allocation4 + $0xcc] sm:$0x3]
        %v5415 = vsel %vm5381, %v5347, %v5414
        %5416 = vst [vmem:[#allocation4 + $0xcc] sm:$0x3] %v5415
        %5417 = vst.msk [vmem:[#allocation4 + $0xd8] sm:$0xf] %vm5378, %v5349
        %v5418 = vld [vmem:[#allocation4 + $0xe4] sm:$0x3]
        %v5419 = vsel %vm5381, %v5351, %v5418
        %5420 = vst [vmem:[#allocation4 + $0xe4] sm:$0x3] %v5419
        %5421 = vst.msk [vmem:[#allocation4 + $0xf0] sm:$0xf] %vm5378, %v5353
        %v5422 = vld [vmem:[#allocation4 + $0xfc] sm:$0x3]
        %v5423 = vsel %vm5381, %v5355, %v5422
        %5424 = vst [vmem:[#allocation4 + $0xfc] sm:$0x3] %v5423
        %v5425 = vld [vmem:[%s5267] sm:$0xf]
        %v5426 = vld [vmem:[%s5267 + $0x4] sm:$0x3]
        %v5427 = vld [vmem:[%s5267 + $0x8] sm:$0xf]
        %v5428 = vld [vmem:[%s5267 + $0xc] sm:$0x3]
        %v5429 = vld [vmem:[%s5267 + $0x10] sm:$0xf]
        %v5430 = vld [vmem:[%s5267 + $0x14] sm:$0x3]
        %v5431 = vld [vmem:[%s5267 + $0x18] sm:$0xf]
        %v5432 = vld [vmem:[%s5267 + $0x1c] sm:$0x3]
        %v5433 = vld [vmem:[%s5267 + $0x20] sm:$0xf]
        %v5434 = vld [vmem:[%s5267 + $0x24] sm:$0x3]
        %v5435 = vld [vmem:[%s5267 + $0x28] sm:$0xf]
        %v5436 = vld [vmem:[%s5267 + $0x2c] sm:$0x3]
        %v5437 = vld [vmem:[%s5267 + $0x30] sm:$0xf]
        %v5438 = vld [vmem:[%s5267 + $0x34] sm:$0x3]
        %v5439 = vld [vmem:[%s5267 + $0x38] sm:$0xf]
        %v5440 = vld [vmem:[%s5267 + $0x3c] sm:$0x3]
        %v5441 = vld [vmem:[%s5267 + $0x40] sm:$0xf]
        %v5442 = vld [vmem:[%s5267 + $0x44] sm:$0x3]
        %v5443 = vld [vmem:[%s5267 + $0x48] sm:$0xf]
        %v5444 = vld [vmem:[%s5267 + $0x4c] sm:$0x3]
        %v5445 = vld [vmem:[%s5267 + $0x50] sm:$0xf]
        %v5446 = vld [vmem:[%s5267 + $0x54] sm:$0x3]
        %v5448 = vshrl.u32 %v5425, 16
        %v5450 = vrot.slane %v5448, 4
        %v5451 = vshll.u32 %v5425, 16
        %v5453 = vrot.slane %v5451, 5
        %v5454 = vor.u32 %v5450, %v5453
        %v5455 = vrot.slane %v5454, 4
        %v5457 = vshll.u32 %v5426, 16
        %v5459 = vrot.slane %v5457, 5
        %v5460 = vsel %vm4729, %v5455, %v5459
        %v5461 = vshrl.u32 %v5426, 16
        %v5463 = vrot.slane %v5461, 4
        %v5464 = vor.u32 %v5463, %v5459
        %v5465 = vrot.slane %v5464, 4
        %v5467 = vshrl.u32 %v5427, 16
        %v5469 = vrot.slane %v5467, 4
        %v5470 = vshll.u32 %v5427, 16
        %v5472 = vrot.slane %v5470, 5
        %v5473 = vor.u32 %v5469, %v5472
        %v5474 = vrot.slane %v5473, 4
        %v5476 = vshll.u32 %v5428, 16
        %v5478 = vrot.slane %v5476, 5
        %v5479 = vsel %vm4729, %v5474, %v5478
        %v5480 = vshrl.u32 %v5428, 16
        %v5482 = vrot.slane %v5480, 4
        %v5483 = vor.u32 %v5482, %v5478
        %v5484 = vrot.slane %v5483, 4
        %v5486 = vshrl.u32 %v5429, 16
        %v5488 = vrot.slane %v5486, 4
        %v5489 = vshll.u32 %v5429, 16
        %v5491 = vrot.slane %v5489, 5
        %v5492 = vor.u32 %v5488, %v5491
        %v5493 = vrot.slane %v5492, 4
        %v5495 = vshll.u32 %v5430, 16
        %v5497 = vrot.slane %v5495, 5
        %v5498 = vsel %vm4729, %v5493, %v5497
        %v5499 = vshrl.u32 %v5430, 16
        %v5501 = vrot.slane %v5499, 4
        %v5502 = vor.u32 %v5501, %v5497
        %v5503 = vrot.slane %v5502, 4
        %v5505 = vshrl.u32 %v5431, 16
        %v5507 = vrot.slane %v5505, 4
        %v5508 = vshll.u32 %v5431, 16
        %v5510 = vrot.slane %v5508, 5
        %v5511 = vor.u32 %v5507, %v5510
        %v5512 = vrot.slane %v5511, 4
        %v5514 = vshll.u32 %v5432, 16
        %v5516 = vrot.slane %v5514, 5
        %v5517 = vsel %vm4729, %v5512, %v5516
        %v5518 = vshrl.u32 %v5432, 16
        %v5520 = vrot.slane %v5518, 4
        %v5521 = vor.u32 %v5520, %v5516
        %v5522 = vrot.slane %v5521, 4
        %v5524 = vshrl.u32 %v5433, 16
        %v5526 = vrot.slane %v5524, 4
        %v5527 = vshll.u32 %v5433, 16
        %v5529 = vrot.slane %v5527, 5
        %v5530 = vor.u32 %v5526, %v5529
        %v5531 = vrot.slane %v5530, 4
        %v5533 = vshll.u32 %v5434, 16
        %v5535 = vrot.slane %v5533, 5
        %v5536 = vsel %vm4729, %v5531, %v5535
        %v5537 = vshrl.u32 %v5434, 16
        %v5539 = vrot.slane %v5537, 4
        %v5540 = vor.u32 %v5539, %v5535
        %v5541 = vrot.slane %v5540, 4
        %v5543 = vshrl.u32 %v5435, 16
        %v5545 = vrot.slane %v5543, 4
        %v5546 = vshll.u32 %v5435, 16
        %v5548 = vrot.slane %v5546, 5
        %v5549 = vor.u32 %v5545, %v5548
        %v5550 = vrot.slane %v5549, 4
        %v5552 = vshll.u32 %v5436, 16
        %v5554 = vrot.slane %v5552, 5
        %v5555 = vsel %vm4729, %v5550, %v5554
        %v5556 = vshrl.u32 %v5436, 16
        %v5558 = vrot.slane %v5556, 4
        %v5559 = vor.u32 %v5558, %v5554
        %v5560 = vrot.slane %v5559, 4
        %v5562 = vshrl.u32 %v5437, 16
        %v5564 = vrot.slane %v5562, 4
        %v5565 = vshll.u32 %v5437, 16
        %v5567 = vrot.slane %v5565, 5
        %v5568 = vor.u32 %v5564, %v5567
        %v5569 = vrot.slane %v5568, 4
        %v5571 = vshll.u32 %v5438, 16
        %v5573 = vrot.slane %v5571, 5
        %v5574 = vsel %vm4729, %v5569, %v5573
        %v5575 = vshrl.u32 %v5438, 16
        %v5577 = vrot.slane %v5575, 4
        %v5578 = vor.u32 %v5577, %v5573
        %v5579 = vrot.slane %v5578, 4
        %v5581 = vshrl.u32 %v5439, 16
        %v5583 = vrot.slane %v5581, 4
        %v5584 = vshll.u32 %v5439, 16
        %v5586 = vrot.slane %v5584, 5
        %v5587 = vor.u32 %v5583, %v5586
        %v5588 = vrot.slane %v5587, 4
        %v5590 = vshll.u32 %v5440, 16
        %v5592 = vrot.slane %v5590, 5
        %v5593 = vsel %vm4729, %v5588, %v5592
        %v5594 = vshrl.u32 %v5440, 16
        %v5596 = vrot.slane %v5594, 4
        %v5597 = vor.u32 %v5596, %v5592
        %v5598 = vrot.slane %v5597, 4
        %v5600 = vshrl.u32 %v5441, 16
        %v5602 = vrot.slane %v5600, 4
        %v5603 = vshll.u32 %v5441, 16
        %v5605 = vrot.slane %v5603, 5
        %v5606 = vor.u32 %v5602, %v5605
        %v5607 = vrot.slane %v5606, 4
        %v5609 = vshll.u32 %v5442, 16
        %v5611 = vrot.slane %v5609, 5
        %v5612 = vsel %vm4729, %v5607, %v5611
        %v5613 = vshrl.u32 %v5442, 16
        %v5615 = vrot.slane %v5613, 4
        %v5616 = vor.u32 %v5615, %v5611
        %v5617 = vrot.slane %v5616, 4
        %v5619 = vshrl.u32 %v5443, 16
        %v5621 = vrot.slane %v5619, 4
        %v5622 = vshll.u32 %v5443, 16
        %v5624 = vrot.slane %v5622, 5
        %v5625 = vor.u32 %v5621, %v5624
        %v5626 = vrot.slane %v5625, 4
        %v5628 = vshll.u32 %v5444, 16
        %v5630 = vrot.slane %v5628, 5
        %v5631 = vsel %vm4729, %v5626, %v5630
        %v5632 = vshrl.u32 %v5444, 16
        %v5634 = vrot.slane %v5632, 4
        %v5635 = vor.u32 %v5634, %v5630
        %v5636 = vrot.slane %v5635, 4
        %v5638 = vshrl.u32 %v5445, 16
        %v5640 = vrot.slane %v5638, 4
        %v5641 = vshll.u32 %v5445, 16
        %v5643 = vrot.slane %v5641, 5
        %v5644 = vor.u32 %v5640, %v5643
        %v5645 = vrot.slane %v5644, 4
        %v5647 = vshll.u32 %v5446, 16
        %v5649 = vrot.slane %v5647, 5
        %v5650 = vsel %vm4729, %v5645, %v5649
        %v5651 = vshrl.u32 %v5446, 16
        %v5653 = vrot.slane %v5651, 4
        %v5654 = vor.u32 %v5653, %v5649
        %v5655 = vrot.slane %v5654, 4
        %5678 = vst.msk [vmem:[#allocation4 + $0x4] sm:$0xf] %vm4659, %v5460
        %v5679 = vld [vmem:[#allocation4 + $0x10] sm:$0x3]
        %v5680 = vsel %vm4662, %v5465, %v5679
        %5681 = vst [vmem:[#allocation4 + $0x10] sm:$0x3] %v5680
        %5682 = vst.msk [vmem:[#allocation4 + $0x1c] sm:$0xf] %vm4659, %v5479
        %v5683 = vld [vmem:[#allocation4 + $0x28] sm:$0x3]
        %v5684 = vsel %vm4662, %v5484, %v5683
        %5685 = vst [vmem:[#allocation4 + $0x28] sm:$0x3] %v5684
        %5686 = vst.msk [vmem:[#allocation4 + $0x34] sm:$0xf] %vm4659, %v5498
        %v5687 = vld [vmem:[#allocation4 + $0x40] sm:$0x3]
        %v5688 = vsel %vm4662, %v5503, %v5687
        %5689 = vst [vmem:[#allocation4 + $0x40] sm:$0x3] %v5688
        %5690 = vst.msk [vmem:[#allocation4 + $0x4c] sm:$0xf] %vm4659, %v5517
        %v5691 = vld [vmem:[#allocation4 + $0x58] sm:$0x3]
        %v5692 = vsel %vm4662, %v5522, %v5691
        %5693 = vst [vmem:[#allocation4 + $0x58] sm:$0x3] %v5692
        %5694 = vst.msk [vmem:[#allocation4 + $0x64] sm:$0xf] %vm4659, %v5536
        %v5695 = vld [vmem:[#allocation4 + $0x70] sm:$0x3]
        %v5696 = vsel %vm4662, %v5541, %v5695
        %5697 = vst [vmem:[#allocation4 + $0x70] sm:$0x3] %v5696
        %5698 = vst.msk [vmem:[#allocation4 + $0x7c] sm:$0xf] %vm4659, %v5555
        %v5699 = vld [vmem:[#allocation4 + $0x88] sm:$0x3]
        %v5700 = vsel %vm4662, %v5560, %v5699
        %5701 = vst [vmem:[#allocation4 + $0x88] sm:$0x3] %v5700
        %5702 = vst.msk [vmem:[#allocation4 + $0x94] sm:$0xf] %vm4659, %v5574
        %v5703 = vld [vmem:[#allocation4 + $0xa0] sm:$0x3]
        %v5704 = vsel %vm4662, %v5579, %v5703
        %5705 = vst [vmem:[#allocation4 + $0xa0] sm:$0x3] %v5704
        %5706 = vst.msk [vmem:[#allocation4 + $0xac] sm:$0xf] %vm4659, %v5593
        %v5707 = vld [vmem:[#allocation4 + $0xb8] sm:$0x3]
        %v5708 = vsel %vm4662, %v5598, %v5707
        %5709 = vst [vmem:[#allocation4 + $0xb8] sm:$0x3] %v5708
        %5710 = vst.msk [vmem:[#allocation4 + $0xc4] sm:$0xf] %vm4659, %v5612
        %v5711 = vld [vmem:[#allocation4 + $0xd0] sm:$0x3]
        %v5712 = vsel %vm4662, %v5617, %v5711
        %5713 = vst [vmem:[#allocation4 + $0xd0] sm:$0x3] %v5712
        %5714 = vst.msk [vmem:[#allocation4 + $0xdc] sm:$0xf] %vm4659, %v5631
        %v5715 = vld [vmem:[#allocation4 + $0xe8] sm:$0x3]
        %v5716 = vsel %vm4662, %v5636, %v5715
        %5717 = vst [vmem:[#allocation4 + $0xe8] sm:$0x3] %v5716
        %5718 = vst.msk [vmem:[#allocation4 + $0xf4] sm:$0xf] %vm4659, %v5650
        %v5719 = vld [vmem:[#allocation4 + $0x100] sm:$0x3]
        %v5720 = vsel %vm4662, %v5655, %v5719
        %5721 = vst [vmem:[#allocation4 + $0x100] sm:$0x3] %v5720
        %v5722 = vld [vmem:[%s5267] sm:$0xe]
        %v5723 = vld [vmem:[%s5267 + $0x4] sm:$0x7]
        %v5724 = vld [vmem:[%s5267 + $0x8] sm:$0xe]
        %v5725 = vld [vmem:[%s5267 + $0xc] sm:$0x7]
        %v5726 = vld [vmem:[%s5267 + $0x10] sm:$0xe]
        %v5727 = vld [vmem:[%s5267 + $0x14] sm:$0x7]
        %v5728 = vld [vmem:[%s5267 + $0x18] sm:$0xe]
        %v5729 = vld [vmem:[%s5267 + $0x1c] sm:$0x7]
        %v5730 = vld [vmem:[%s5267 + $0x20] sm:$0xe]
        %v5731 = vld [vmem:[%s5267 + $0x24] sm:$0x7]
        %v5732 = vld [vmem:[%s5267 + $0x28] sm:$0xe]
        %v5733 = vld [vmem:[%s5267 + $0x2c] sm:$0x7]
        %v5734 = vld [vmem:[%s5267 + $0x30] sm:$0xe]
        %v5735 = vld [vmem:[%s5267 + $0x34] sm:$0x7]
        %v5736 = vld [vmem:[%s5267 + $0x38] sm:$0xe]
        %v5737 = vld [vmem:[%s5267 + $0x3c] sm:$0x7]
        %v5738 = vld [vmem:[%s5267 + $0x40] sm:$0xe]
        %v5739 = vld [vmem:[%s5267 + $0x44] sm:$0x7]
        %v5740 = vld [vmem:[%s5267 + $0x48] sm:$0xe]
        %v5741 = vld [vmem:[%s5267 + $0x4c] sm:$0x7]
        %v5742 = vld [vmem:[%s5267 + $0x50] sm:$0xe]
        %v5743 = vld [vmem:[%s5267 + $0x54] sm:$0x7]
        %v5766 = vrot.slane %v5722, 5
        %v5767 = vrot.slane %v5766, 4
        %v5768 = vrot.slane %v5723, 5
        %v5769 = vsel %vm5098, %v5767, %v5768
        %v5770 = vrot.slane %v5768, 4
        %v5771 = vrot.slane %v5724, 5
        %v5772 = vrot.slane %v5771, 4
        %v5773 = vrot.slane %v5725, 5
        %v5774 = vsel %vm5098, %v5772, %v5773
        %v5775 = vrot.slane %v5773, 4
        %v5776 = vrot.slane %v5726, 5
        %v5777 = vrot.slane %v5776, 4
        %v5778 = vrot.slane %v5727, 5
        %v5779 = vsel %vm5098, %v5777, %v5778
        %v5780 = vrot.slane %v5778, 4
        %v5781 = vrot.slane %v5728, 5
        %v5782 = vrot.slane %v5781, 4
        %v5783 = vrot.slane %v5729, 5
        %v5784 = vsel %vm5098, %v5782, %v5783
        %v5785 = vrot.slane %v5783, 4
        %v5786 = vrot.slane %v5730, 5
        %v5787 = vrot.slane %v5786, 4
        %v5788 = vrot.slane %v5731, 5
        %v5789 = vsel %vm5098, %v5787, %v5788
        %v5790 = vrot.slane %v5788, 4
        %v5791 = vrot.slane %v5732, 5
        %v5792 = vrot.slane %v5791, 4
        %v5793 = vrot.slane %v5733, 5
        %v5794 = vsel %vm5098, %v5792, %v5793
        %v5795 = vrot.slane %v5793, 4
        %v5796 = vrot.slane %v5734, 5
        %v5797 = vrot.slane %v5796, 4
        %v5798 = vrot.slane %v5735, 5
        %v5799 = vsel %vm5098, %v5797, %v5798
        %v5800 = vrot.slane %v5798, 4
        %v5801 = vrot.slane %v5736, 5
        %v5802 = vrot.slane %v5801, 4
        %v5803 = vrot.slane %v5737, 5
        %v5804 = vsel %vm5098, %v5802, %v5803
        %v5805 = vrot.slane %v5803, 4
        %v5806 = vrot.slane %v5738, 5
        %v5807 = vrot.slane %v5806, 4
        %v5808 = vrot.slane %v5739, 5
        %v5809 = vsel %vm5098, %v5807, %v5808
        %v5810 = vrot.slane %v5808, 4
        %v5811 = vrot.slane %v5740, 5
        %v5812 = vrot.slane %v5811, 4
        %v5813 = vrot.slane %v5741, 5
        %v5814 = vsel %vm5098, %v5812, %v5813
        %v5815 = vrot.slane %v5813, 4
        %v5816 = vrot.slane %v5742, 5
        %v5817 = vrot.slane %v5816, 4
        %v5818 = vrot.slane %v5743, 5
        %v5819 = vsel %vm5098, %v5817, %v5818
        %v5820 = vrot.slane %v5818, 4
        %5821 = vrot.lane.b32.xlu0 %v5769, 32
        %v5822 = vpop.permute.xlu0 %5821
        %5823 = vrot.lane.b32.xlu0 %v5770, 32
        %v5824 = vpop.permute.xlu0 %5823
        %5825 = vrot.lane.b32.xlu0 %v5774, 32
        %v5826 = vpop.permute.xlu0 %5825
        %5827 = vrot.lane.b32.xlu0 %v5775, 32
        %v5828 = vpop.permute.xlu0 %5827
        %5829 = vrot.lane.b32.xlu0 %v5779, 32
        %v5830 = vpop.permute.xlu0 %5829
        %5831 = vrot.lane.b32.xlu0 %v5780, 32
        %v5832 = vpop.permute.xlu0 %5831
        %5833 = vrot.lane.b32.xlu0 %v5784, 32
        %v5834 = vpop.permute.xlu0 %5833
        %5835 = vrot.lane.b32.xlu0 %v5785, 32
        %v5836 = vpop.permute.xlu0 %5835
        %5837 = vrot.lane.b32.xlu0 %v5789, 32
        %v5838 = vpop.permute.xlu0 %5837
        %5839 = vrot.lane.b32.xlu0 %v5790, 32
        %v5840 = vpop.permute.xlu0 %5839
        %5841 = vrot.lane.b32.xlu0 %v5794, 32
        %v5842 = vpop.permute.xlu0 %5841
        %5843 = vrot.lane.b32.xlu0 %v5795, 32
        %v5844 = vpop.permute.xlu0 %5843
        %5845 = vrot.lane.b32.xlu0 %v5799, 32
        %v5846 = vpop.permute.xlu0 %5845
        %5847 = vrot.lane.b32.xlu0 %v5800, 32
        %v5848 = vpop.permute.xlu0 %5847
        %5849 = vrot.lane.b32.xlu0 %v5804, 32
        %v5850 = vpop.permute.xlu0 %5849
        %5851 = vrot.lane.b32.xlu0 %v5805, 32
        %v5852 = vpop.permute.xlu0 %5851
        %5853 = vrot.lane.b32.xlu0 %v5809, 32
        %v5854 = vpop.permute.xlu0 %5853
        %5855 = vrot.lane.b32.xlu0 %v5810, 32
        %v5856 = vpop.permute.xlu0 %5855
        %5857 = vrot.lane.b32.xlu0 %v5814, 32
        %v5858 = vpop.permute.xlu0 %5857
        %5859 = vrot.lane.b32.xlu0 %v5815, 32
        %v5860 = vpop.permute.xlu0 %5859
        %5861 = vrot.lane.b32.xlu0 %v5819, 32
        %v5862 = vpop.permute.xlu0 %5861
        %5863 = vrot.lane.b32.xlu0 %v5820, 32
        %v5864 = vpop.permute.xlu0 %5863
        %5887 = vst.msk [vmem:[#allocation4 + $0x4] sm:$0xf] %vm5005, %v5822
        %v5888 = vld [vmem:[#allocation4 + $0x10] sm:$0x3]
        %v5889 = vsel %vm5008, %v5824, %v5888
        %5890 = vst [vmem:[#allocation4 + $0x10] sm:$0x3] %v5889
        %5891 = vst.msk [vmem:[#allocation4 + $0x1c] sm:$0xf] %vm5005, %v5826
        %v5892 = vld [vmem:[#allocation4 + $0x28] sm:$0x3]
        %v5893 = vsel %vm5008, %v5828, %v5892
        %5894 = vst [vmem:[#allocation4 + $0x28] sm:$0x3] %v5893
        %5895 = vst.msk [vmem:[#allocation4 + $0x34] sm:$0xf] %vm5005, %v5830
        %v5896 = vld [vmem:[#allocation4 + $0x40] sm:$0x3]
        %v5897 = vsel %vm5008, %v5832, %v5896
        %5898 = vst [vmem:[#allocation4 + $0x40] sm:$0x3] %v5897
        %5899 = vst.msk [vmem:[#allocation4 + $0x4c] sm:$0xf] %vm5005, %v5834
        %v5900 = vld [vmem:[#allocation4 + $0x58] sm:$0x3]
        %v5901 = vsel %vm5008, %v5836, %v5900
        %5902 = vst [vmem:[#allocation4 + $0x58] sm:$0x3] %v5901
        %5903 = vst.msk [vmem:[#allocation4 + $0x64] sm:$0xf] %vm5005, %v5838
        %v5904 = vld [vmem:[#allocation4 + $0x70] sm:$0x3]
        %v5905 = vsel %vm5008, %v5840, %v5904
        %5906 = vst [vmem:[#allocation4 + $0x70] sm:$0x3] %v5905
        %5907 = vst.msk [vmem:[#allocation4 + $0x7c] sm:$0xf] %vm5005, %v5842
        %v5908 = vld [vmem:[#allocation4 + $0x88] sm:$0x3]
        %v5909 = vsel %vm5008, %v5844, %v5908
        %5910 = vst [vmem:[#allocation4 + $0x88] sm:$0x3] %v5909
        %5911 = vst.msk [vmem:[#allocation4 + $0x94] sm:$0xf] %vm5005, %v5846
        %v5912 = vld [vmem:[#allocation4 + $0xa0] sm:$0x3]
        %v5913 = vsel %vm5008, %v5848, %v5912
        %5914 = vst [vmem:[#allocation4 + $0xa0] sm:$0x3] %v5913
        %5915 = vst.msk [vmem:[#allocation4 + $0xac] sm:$0xf] %vm5005, %v5850
        %v5916 = vld [vmem:[#allocation4 + $0xb8] sm:$0x3]
        %v5917 = vsel %vm5008, %v5852, %v5916
        %5918 = vst [vmem:[#allocation4 + $0xb8] sm:$0x3] %v5917
        %5919 = vst.msk [vmem:[#allocation4 + $0xc4] sm:$0xf] %vm5005, %v5854
        %v5920 = vld [vmem:[#allocation4 + $0xd0] sm:$0x3]
        %v5921 = vsel %vm5008, %v5856, %v5920
        %5922 = vst [vmem:[#allocation4 + $0xd0] sm:$0x3] %v5921
        %5923 = vst.msk [vmem:[#allocation4 + $0xdc] sm:$0xf] %vm5005, %v5858
        %v5924 = vld [vmem:[#allocation4 + $0xe8] sm:$0x3]
        %v5925 = vsel %vm5008, %v5860, %v5924
        %5926 = vst [vmem:[#allocation4 + $0xe8] sm:$0x3] %v5925
        %5927 = vst.msk [vmem:[#allocation4 + $0xf4] sm:$0xf] %vm5005, %v5862
        %v5928 = vld [vmem:[#allocation4 + $0x100] sm:$0x3]
        %v5929 = vsel %vm5008, %v5864, %v5928
        %5930 = vst [vmem:[#allocation4 + $0x100] sm:$0x3] %v5929
        %s5931 = scalar_lea.vmem [#allocation3], 16
        %v5932 = vld [vmem:[%s5931] sm:$0xf]
        %v5933 = vld [vmem:[%s5931 + $0x4] sm:$0x3]
        %v5934 = vld [vmem:[%s5931 + $0x8] sm:$0xf]
        %v5935 = vld [vmem:[%s5931 + $0xc] sm:$0x3]
        %v5936 = vld [vmem:[%s5931 + $0x10] sm:$0xf]
        %v5937 = vld [vmem:[%s5931 + $0x14] sm:$0x3]
        %v5938 = vld [vmem:[%s5931 + $0x18] sm:$0xf]
        %v5939 = vld [vmem:[%s5931 + $0x1c] sm:$0x3]
        %v5940 = vld [vmem:[%s5931 + $0x20] sm:$0xf]
        %v5941 = vld [vmem:[%s5931 + $0x24] sm:$0x3]
        %v5942 = vld [vmem:[%s5931 + $0x28] sm:$0xf]
        %v5943 = vld [vmem:[%s5931 + $0x2c] sm:$0x3]
        %v5944 = vld [vmem:[%s5931 + $0x30] sm:$0xf]
        %v5945 = vld [vmem:[%s5931 + $0x34] sm:$0x3]
        %v5946 = vld [vmem:[%s5931 + $0x38] sm:$0xf]
        %v5947 = vld [vmem:[%s5931 + $0x3c] sm:$0x3]
        %v5948 = vld [vmem:[%s5931 + $0x40] sm:$0xf]
        %v5949 = vld [vmem:[%s5931 + $0x44] sm:$0x3]
        %v5950 = vld [vmem:[%s5931 + $0x48] sm:$0xf]
        %v5951 = vld [vmem:[%s5931 + $0x4c] sm:$0x3]
        %v5952 = vld [vmem:[%s5931 + $0x50] sm:$0xf]
        %v5953 = vld [vmem:[%s5931 + $0x54] sm:$0x3]
        %5976 = vrot.lane.b32.xlu0 %v5932, 64
        %v5977 = vpop.permute.xlu0 %5976
        %5978 = vrot.lane.b32.xlu0 %v5933, 64
        %v5979 = vpop.permute.xlu0 %5978
        %5980 = vrot.lane.b32.xlu0 %v5934, 64
        %v5981 = vpop.permute.xlu0 %5980
        %5982 = vrot.lane.b32.xlu0 %v5935, 64
        %v5983 = vpop.permute.xlu0 %5982
        %5984 = vrot.lane.b32.xlu0 %v5936, 64
        %v5985 = vpop.permute.xlu0 %5984
        %5986 = vrot.lane.b32.xlu0 %v5937, 64
        %v5987 = vpop.permute.xlu0 %5986
        %5988 = vrot.lane.b32.xlu0 %v5938, 64
        %v5989 = vpop.permute.xlu0 %5988
        %5990 = vrot.lane.b32.xlu0 %v5939, 64
        %v5991 = vpop.permute.xlu0 %5990
        %5992 = vrot.lane.b32.xlu0 %v5940, 64
        %v5993 = vpop.permute.xlu0 %5992
        %5994 = vrot.lane.b32.xlu0 %v5941, 64
        %v5995 = vpop.permute.xlu0 %5994
        %5996 = vrot.lane.b32.xlu0 %v5942, 64
        %v5997 = vpop.permute.xlu0 %5996
        %5998 = vrot.lane.b32.xlu0 %v5943, 64
        %v5999 = vpop.permute.xlu0 %5998
        %6000 = vrot.lane.b32.xlu0 %v5944, 64
        %v6001 = vpop.permute.xlu0 %6000
        %6002 = vrot.lane.b32.xlu0 %v5945, 64
        %v6003 = vpop.permute.xlu0 %6002
        %6004 = vrot.lane.b32.xlu0 %v5946, 64
        %v6005 = vpop.permute.xlu0 %6004
        %6006 = vrot.lane.b32.xlu0 %v5947, 64
        %v6007 = vpop.permute.xlu0 %6006
        %6008 = vrot.lane.b32.xlu0 %v5948, 64
        %v6009 = vpop.permute.xlu0 %6008
        %6010 = vrot.lane.b32.xlu0 %v5949, 64
        %v6011 = vpop.permute.xlu0 %6010
        %6012 = vrot.lane.b32.xlu0 %v5950, 64
        %v6013 = vpop.permute.xlu0 %6012
        %6014 = vrot.lane.b32.xlu0 %v5951, 64
        %v6015 = vpop.permute.xlu0 %6014
        %6016 = vrot.lane.b32.xlu0 %v5952, 64
        %v6017 = vpop.permute.xlu0 %6016
        %6018 = vrot.lane.b32.xlu0 %v5953, 64
        %v6019 = vpop.permute.xlu0 %6018
        %6042 = vst.msk [vmem:[#allocation4 + $0x4] sm:$0xf] %vm5220, %v5977
        %v6043 = vld [vmem:[#allocation4 + $0x10] sm:$0x3]
        %v6044 = vsel %vm5223, %v5979, %v6043
        %6045 = vst [vmem:[#allocation4 + $0x10] sm:$0x3] %v6044
        %6046 = vst.msk [vmem:[#allocation4 + $0x1c] sm:$0xf] %vm5220, %v5981
        %v6047 = vld [vmem:[#allocation4 + $0x28] sm:$0x3]
        %v6048 = vsel %vm5223, %v5983, %v6047
        %6049 = vst [vmem:[#allocation4 + $0x28] sm:$0x3] %v6048
        %6050 = vst.msk [vmem:[#allocation4 + $0x34] sm:$0xf] %vm5220, %v5985
        %v6051 = vld [vmem:[#allocation4 + $0x40] sm:$0x3]
        %v6052 = vsel %vm5223, %v5987, %v6051
        %6053 = vst [vmem:[#allocation4 + $0x40] sm:$0x3] %v6052
        %6054 = vst.msk [vmem:[#allocation4 + $0x4c] sm:$0xf] %vm5220, %v5989
        %v6055 = vld [vmem:[#allocation4 + $0x58] sm:$0x3]
        %v6056 = vsel %vm5223, %v5991, %v6055
        %6057 = vst [vmem:[#allocation4 + $0x58] sm:$0x3] %v6056
        %6058 = vst.msk [vmem:[#allocation4 + $0x64] sm:$0xf] %vm5220, %v5993
        %v6059 = vld [vmem:[#allocation4 + $0x70] sm:$0x3]
        %v6060 = vsel %vm5223, %v5995, %v6059
        %6061 = vst [vmem:[#allocation4 + $0x70] sm:$0x3] %v6060
        %6062 = vst.msk [vmem:[#allocation4 + $0x7c] sm:$0xf] %vm5220, %v5997
        %v6063 = vld [vmem:[#allocation4 + $0x88] sm:$0x3]
        %v6064 = vsel %vm5223, %v5999, %v6063
        %6065 = vst [vmem:[#allocation4 + $0x88] sm:$0x3] %v6064
        %6066 = vst.msk [vmem:[#allocation4 + $0x94] sm:$0xf] %vm5220, %v6001
        %v6067 = vld [vmem:[#allocation4 + $0xa0] sm:$0x3]
        %v6068 = vsel %vm5223, %v6003, %v6067
        %6069 = vst [vmem:[#allocation4 + $0xa0] sm:$0x3] %v6068
        %6070 = vst.msk [vmem:[#allocation4 + $0xac] sm:$0xf] %vm5220, %v6005
        %v6071 = vld [vmem:[#allocation4 + $0xb8] sm:$0x3]
        %v6072 = vsel %vm5223, %v6007, %v6071
        %6073 = vst [vmem:[#allocation4 + $0xb8] sm:$0x3] %v6072
        %6074 = vst.msk [vmem:[#allocation4 + $0xc4] sm:$0xf] %vm5220, %v6009
        %v6075 = vld [vmem:[#allocation4 + $0xd0] sm:$0x3]
        %v6076 = vsel %vm5223, %v6011, %v6075
        %6077 = vst [vmem:[#allocation4 + $0xd0] sm:$0x3] %v6076
        %6078 = vst.msk [vmem:[#allocation4 + $0xdc] sm:$0xf] %vm5220, %v6013
        %v6079 = vld [vmem:[#allocation4 + $0xe8] sm:$0x3]
        %v6080 = vsel %vm5223, %v6015, %v6079
        %6081 = vst [vmem:[#allocation4 + $0xe8] sm:$0x3] %v6080
        %6082 = vst.msk [vmem:[#allocation4 + $0xf4] sm:$0xf] %vm5220, %v6017
        %v6083 = vld [vmem:[#allocation4 + $0x100] sm:$0x3]
        %v6084 = vsel %vm5223, %v6019, %v6083
        %6085 = vst [vmem:[#allocation4 + $0x100] sm:$0x3] %v6084
        %v6086 = vld [vmem:[%s5931] sm:$0xf]
        %v6087 = vld [vmem:[%s5931 + $0x4] sm:$0x3]
        %v6088 = vld [vmem:[%s5931 + $0x8] sm:$0xf]
        %v6089 = vld [vmem:[%s5931 + $0xc] sm:$0x3]
        %v6090 = vld [vmem:[%s5931 + $0x10] sm:$0xf]
        %v6091 = vld [vmem:[%s5931 + $0x14] sm:$0x3]
        %v6092 = vld [vmem:[%s5931 + $0x18] sm:$0xf]
        %v6093 = vld [vmem:[%s5931 + $0x1c] sm:$0x3]
        %v6094 = vld [vmem:[%s5931 + $0x20] sm:$0xf]
        %v6095 = vld [vmem:[%s5931 + $0x24] sm:$0x3]
        %v6096 = vld [vmem:[%s5931 + $0x28] sm:$0xf]
        %v6097 = vld [vmem:[%s5931 + $0x2c] sm:$0x3]
        %v6098 = vld [vmem:[%s5931 + $0x30] sm:$0xf]
        %v6099 = vld [vmem:[%s5931 + $0x34] sm:$0x3]
        %v6100 = vld [vmem:[%s5931 + $0x38] sm:$0xf]
        %v6101 = vld [vmem:[%s5931 + $0x3c] sm:$0x3]
        %v6102 = vld [vmem:[%s5931 + $0x40] sm:$0xf]
        %v6103 = vld [vmem:[%s5931 + $0x44] sm:$0x3]
        %v6104 = vld [vmem:[%s5931 + $0x48] sm:$0xf]
        %v6105 = vld [vmem:[%s5931 + $0x4c] sm:$0x3]
        %v6106 = vld [vmem:[%s5931 + $0x50] sm:$0xf]
        %v6107 = vld [vmem:[%s5931 + $0x54] sm:$0x3]
        %v6109 = vshrl.u32 %v6086, 16
        %v6111 = vrot.slane %v6109, 4
        %v6112 = vshll.u32 %v6086, 16
        %v6114 = vrot.slane %v6112, 5
        %v6115 = vor.u32 %v6111, %v6114
        %v6116 = vrot.slane %v6115, 4
        %v6118 = vshll.u32 %v6087, 16
        %v6120 = vrot.slane %v6118, 5
        %v6121 = vsel %vm4729, %v6116, %v6120
        %v6122 = vshrl.u32 %v6087, 16
        %v6124 = vrot.slane %v6122, 4
        %v6125 = vor.u32 %v6124, %v6120
        %v6126 = vrot.slane %v6125, 4
        %v6128 = vshrl.u32 %v6088, 16
        %v6130 = vrot.slane %v6128, 4
        %v6131 = vshll.u32 %v6088, 16
        %v6133 = vrot.slane %v6131, 5
        %v6134 = vor.u32 %v6130, %v6133
        %v6135 = vrot.slane %v6134, 4
        %v6137 = vshll.u32 %v6089, 16
        %v6139 = vrot.slane %v6137, 5
        %v6140 = vsel %vm4729, %v6135, %v6139
        %v6141 = vshrl.u32 %v6089, 16
        %v6143 = vrot.slane %v6141, 4
        %v6144 = vor.u32 %v6143, %v6139
        %v6145 = vrot.slane %v6144, 4
        %v6147 = vshrl.u32 %v6090, 16
        %v6149 = vrot.slane %v6147, 4
        %v6150 = vshll.u32 %v6090, 16
        %v6152 = vrot.slane %v6150, 5
        %v6153 = vor.u32 %v6149, %v6152
        %v6154 = vrot.slane %v6153, 4
        %v6156 = vshll.u32 %v6091, 16
        %v6158 = vrot.slane %v6156, 5
        %v6159 = vsel %vm4729, %v6154, %v6158
        %v6160 = vshrl.u32 %v6091, 16
        %v6162 = vrot.slane %v6160, 4
        %v6163 = vor.u32 %v6162, %v6158
        %v6164 = vrot.slane %v6163, 4
        %v6166 = vshrl.u32 %v6092, 16
        %v6168 = vrot.slane %v6166, 4
        %v6169 = vshll.u32 %v6092, 16
        %v6171 = vrot.slane %v6169, 5
        %v6172 = vor.u32 %v6168, %v6171
        %v6173 = vrot.slane %v6172, 4
        %v6175 = vshll.u32 %v6093, 16
        %v6177 = vrot.slane %v6175, 5
        %v6178 = vsel %vm4729, %v6173, %v6177
        %v6179 = vshrl.u32 %v6093, 16
        %v6181 = vrot.slane %v6179, 4
        %v6182 = vor.u32 %v6181, %v6177
        %v6183 = vrot.slane %v6182, 4
        %v6185 = vshrl.u32 %v6094, 16
        %v6187 = vrot.slane %v6185, 4
        %v6188 = vshll.u32 %v6094, 16
        %v6190 = vrot.slane %v6188, 5
        %v6191 = vor.u32 %v6187, %v6190
        %v6192 = vrot.slane %v6191, 4
        %v6194 = vshll.u32 %v6095, 16
        %v6196 = vrot.slane %v6194, 5
        %v6197 = vsel %vm4729, %v6192, %v6196
        %v6198 = vshrl.u32 %v6095, 16
        %v6200 = vrot.slane %v6198, 4
        %v6201 = vor.u32 %v6200, %v6196
        %v6202 = vrot.slane %v6201, 4
        %v6204 = vshrl.u32 %v6096, 16
        %v6206 = vrot.slane %v6204, 4
        %v6207 = vshll.u32 %v6096, 16
        %v6209 = vrot.slane %v6207, 5
        %v6210 = vor.u32 %v6206, %v6209
        %v6211 = vrot.slane %v6210, 4
        %v6213 = vshll.u32 %v6097, 16
        %v6215 = vrot.slane %v6213, 5
        %v6216 = vsel %vm4729, %v6211, %v6215
        %v6217 = vshrl.u32 %v6097, 16
        %v6219 = vrot.slane %v6217, 4
        %v6220 = vor.u32 %v6219, %v6215
        %v6221 = vrot.slane %v6220, 4
        %v6223 = vshrl.u32 %v6098, 16
        %v6225 = vrot.slane %v6223, 4
        %v6226 = vshll.u32 %v6098, 16
        %v6228 = vrot.slane %v6226, 5
        %v6229 = vor.u32 %v6225, %v6228
        %v6230 = vrot.slane %v6229, 4
        %v6232 = vshll.u32 %v6099, 16
        %v6234 = vrot.slane %v6232, 5
        %v6235 = vsel %vm4729, %v6230, %v6234
        %v6236 = vshrl.u32 %v6099, 16
        %v6238 = vrot.slane %v6236, 4
        %v6239 = vor.u32 %v6238, %v6234
        %v6240 = vrot.slane %v6239, 4
        %v6242 = vshrl.u32 %v6100, 16
        %v6244 = vrot.slane %v6242, 4
        %v6245 = vshll.u32 %v6100, 16
        %v6247 = vrot.slane %v6245, 5
        %v6248 = vor.u32 %v6244, %v6247
        %v6249 = vrot.slane %v6248, 4
        %v6251 = vshll.u32 %v6101, 16
        %v6253 = vrot.slane %v6251, 5
        %v6254 = vsel %vm4729, %v6249, %v6253
        %v6255 = vshrl.u32 %v6101, 16
        %v6257 = vrot.slane %v6255, 4
        %v6258 = vor.u32 %v6257, %v6253
        %v6259 = vrot.slane %v6258, 4
        %v6261 = vshrl.u32 %v6102, 16
        %v6263 = vrot.slane %v6261, 4
        %v6264 = vshll.u32 %v6102, 16
        %v6266 = vrot.slane %v6264, 5
        %v6267 = vor.u32 %v6263, %v6266
        %v6268 = vrot.slane %v6267, 4
        %v6270 = vshll.u32 %v6103, 16
        %v6272 = vrot.slane %v6270, 5
        %v6273 = vsel %vm4729, %v6268, %v6272
        %v6274 = vshrl.u32 %v6103, 16
        %v6276 = vrot.slane %v6274, 4
        %v6277 = vor.u32 %v6276, %v6272
        %v6278 = vrot.slane %v6277, 4
        %v6280 = vshrl.u32 %v6104, 16
        %v6282 = vrot.slane %v6280, 4
        %v6283 = vshll.u32 %v6104, 16
        %v6285 = vrot.slane %v6283, 5
        %v6286 = vor.u32 %v6282, %v6285
        %v6287 = vrot.slane %v6286, 4
        %v6289 = vshll.u32 %v6105, 16
        %v6291 = vrot.slane %v6289, 5
        %v6292 = vsel %vm4729, %v6287, %v6291
        %v6293 = vshrl.u32 %v6105, 16
        %v6295 = vrot.slane %v6293, 4
        %v6296 = vor.u32 %v6295, %v6291
        %v6297 = vrot.slane %v6296, 4
        %v6299 = vshrl.u32 %v6106, 16
        %v6301 = vrot.slane %v6299, 4
        %v6302 = vshll.u32 %v6106, 16
        %v6304 = vrot.slane %v6302, 5
        %v6305 = vor.u32 %v6301, %v6304
        %v6306 = vrot.slane %v6305, 4
        %v6308 = vshll.u32 %v6107, 16
        %v6310 = vrot.slane %v6308, 5
        %v6311 = vsel %vm4729, %v6306, %v6310
        %v6312 = vshrl.u32 %v6107, 16
        %v6314 = vrot.slane %v6312, 4
        %v6315 = vor.u32 %v6314, %v6310
        %v6316 = vrot.slane %v6315, 4
        %6317 = vrot.lane.b32.xlu0 %v6121, 96
        %v6318 = vpop.permute.xlu0 %6317
        %6319 = vrot.lane.b32.xlu0 %v6126, 96
        %v6320 = vpop.permute.xlu0 %6319
        %6321 = vrot.lane.b32.xlu0 %v6140, 96
        %v6322 = vpop.permute.xlu0 %6321
        %6323 = vrot.lane.b32.xlu0 %v6145, 96
        %v6324 = vpop.permute.xlu0 %6323
        %6325 = vrot.lane.b32.xlu0 %v6159, 96
        %v6326 = vpop.permute.xlu0 %6325
        %6327 = vrot.lane.b32.xlu0 %v6164, 96
        %v6328 = vpop.permute.xlu0 %6327
        %6329 = vrot.lane.b32.xlu0 %v6178, 96
        %v6330 = vpop.permute.xlu0 %6329
        %6331 = vrot.lane.b32.xlu0 %v6183, 96
        %v6332 = vpop.permute.xlu0 %6331
        %6333 = vrot.lane.b32.xlu0 %v6197, 96
        %v6334 = vpop.permute.xlu0 %6333
        %6335 = vrot.lane.b32.xlu0 %v6202, 96
        %v6336 = vpop.permute.xlu0 %6335
        %6337 = vrot.lane.b32.xlu0 %v6216, 96
        %v6338 = vpop.permute.xlu0 %6337
        %6339 = vrot.lane.b32.xlu0 %v6221, 96
        %v6340 = vpop.permute.xlu0 %6339
        %6341 = vrot.lane.b32.xlu0 %v6235, 96
        %v6342 = vpop.permute.xlu0 %6341
        %6343 = vrot.lane.b32.xlu0 %v6240, 96
        %v6344 = vpop.permute.xlu0 %6343
        %6345 = vrot.lane.b32.xlu0 %v6254, 96
        %v6346 = vpop.permute.xlu0 %6345
        %6347 = vrot.lane.b32.xlu0 %v6259, 96
        %v6348 = vpop.permute.xlu0 %6347
        %6349 = vrot.lane.b32.xlu0 %v6273, 96
        %v6350 = vpop.permute.xlu0 %6349
        %6351 = vrot.lane.b32.xlu0 %v6278, 96
        %v6352 = vpop.permute.xlu0 %6351
        %6353 = vrot.lane.b32.xlu0 %v6292, 96
        %v6354 = vpop.permute.xlu0 %6353
        %6355 = vrot.lane.b32.xlu0 %v6297, 96
        %v6356 = vpop.permute.xlu0 %6355
        %6357 = vrot.lane.b32.xlu0 %v6311, 96
        %v6358 = vpop.permute.xlu0 %6357
        %6359 = vrot.lane.b32.xlu0 %v6316, 96
        %v6360 = vpop.permute.xlu0 %6359
        %6383 = vst.msk [vmem:[#allocation4 + $0x4] sm:$0xf] %vm5378, %v6318
        %v6384 = vld [vmem:[#allocation4 + $0x10] sm:$0x3]
        %v6385 = vsel %vm5381, %v6320, %v6384
        %6386 = vst [vmem:[#allocation4 + $0x10] sm:$0x3] %v6385
        %6387 = vst.msk [vmem:[#allocation4 + $0x1c] sm:$0xf] %vm5378, %v6322
        %v6388 = vld [vmem:[#allocation4 + $0x28] sm:$0x3]
        %v6389 = vsel %vm5381, %v6324, %v6388
        %6390 = vst [vmem:[#allocation4 + $0x28] sm:$0x3] %v6389
        %6391 = vst.msk [vmem:[#allocation4 + $0x34] sm:$0xf] %vm5378, %v6326
        %v6392 = vld [vmem:[#allocation4 + $0x40] sm:$0x3]
        %v6393 = vsel %vm5381, %v6328, %v6392
        %6394 = vst [vmem:[#allocation4 + $0x40] sm:$0x3] %v6393
        %6395 = vst.msk [vmem:[#allocation4 + $0x4c] sm:$0xf] %vm5378, %v6330
        %v6396 = vld [vmem:[#allocation4 + $0x58] sm:$0x3]
        %v6397 = vsel %vm5381, %v6332, %v6396
        %6398 = vst [vmem:[#allocation4 + $0x58] sm:$0x3] %v6397
        %6399 = vst.msk [vmem:[#allocation4 + $0x64] sm:$0xf] %vm5378, %v6334
        %v6400 = vld [vmem:[#allocation4 + $0x70] sm:$0x3]
        %v6401 = vsel %vm5381, %v6336, %v6400
        %6402 = vst [vmem:[#allocation4 + $0x70] sm:$0x3] %v6401
        %6403 = vst.msk [vmem:[#allocation4 + $0x7c] sm:$0xf] %vm5378, %v6338
        %v6404 = vld [vmem:[#allocation4 + $0x88] sm:$0x3]
        %v6405 = vsel %vm5381, %v6340, %v6404
        %6406 = vst [vmem:[#allocation4 + $0x88] sm:$0x3] %v6405
        %6407 = vst.msk [vmem:[#allocation4 + $0x94] sm:$0xf] %vm5378, %v6342
        %v6408 = vld [vmem:[#allocation4 + $0xa0] sm:$0x3]
        %v6409 = vsel %vm5381, %v6344, %v6408
        %6410 = vst [vmem:[#allocation4 + $0xa0] sm:$0x3] %v6409
        %6411 = vst.msk [vmem:[#allocation4 + $0xac] sm:$0xf] %vm5378, %v6346
        %v6412 = vld [vmem:[#allocation4 + $0xb8] sm:$0x3]
        %v6413 = vsel %vm5381, %v6348, %v6412
        %6414 = vst [vmem:[#allocation4 + $0xb8] sm:$0x3] %v6413
        %6415 = vst.msk [vmem:[#allocation4 + $0xc4] sm:$0xf] %vm5378, %v6350
        %v6416 = vld [vmem:[#allocation4 + $0xd0] sm:$0x3]
        %v6417 = vsel %vm5381, %v6352, %v6416
        %6418 = vst [vmem:[#allocation4 + $0xd0] sm:$0x3] %v6417
        %6419 = vst.msk [vmem:[#allocation4 + $0xdc] sm:$0xf] %vm5378, %v6354
        %v6420 = vld [vmem:[#allocation4 + $0xe8] sm:$0x3]
        %v6421 = vsel %vm5381, %v6356, %v6420
        %6422 = vst [vmem:[#allocation4 + $0xe8] sm:$0x3] %v6421
        %6423 = vst.msk [vmem:[#allocation4 + $0xf4] sm:$0xf] %vm5378, %v6358
        %v6424 = vld [vmem:[#allocation4 + $0x100] sm:$0x3]
        %v6425 = vsel %vm5381, %v6360, %v6424
        %6426 = vst [vmem:[#allocation4 + $0x100] sm:$0x3] %v6425
        %v6427 = vld [vmem:[%s5931] sm:$0xe]
        %v6428 = vld [vmem:[%s5931 + $0x4] sm:$0x7]
        %v6429 = vld [vmem:[%s5931 + $0x8] sm:$0xe]
        %v6430 = vld [vmem:[%s5931 + $0xc] sm:$0x7]
        %v6431 = vld [vmem:[%s5931 + $0x10] sm:$0xe]
        %v6432 = vld [vmem:[%s5931 + $0x14] sm:$0x7]
        %v6433 = vld [vmem:[%s5931 + $0x18] sm:$0xe]
        %v6434 = vld [vmem:[%s5931 + $0x1c] sm:$0x7]
        %v6435 = vld [vmem:[%s5931 + $0x20] sm:$0xe]
        %v6436 = vld [vmem:[%s5931 + $0x24] sm:$0x7]
        %v6437 = vld [vmem:[%s5931 + $0x28] sm:$0xe]
        %v6438 = vld [vmem:[%s5931 + $0x2c] sm:$0x7]
        %v6439 = vld [vmem:[%s5931 + $0x30] sm:$0xe]
        %v6440 = vld [vmem:[%s5931 + $0x34] sm:$0x7]
        %v6441 = vld [vmem:[%s5931 + $0x38] sm:$0xe]
        %v6442 = vld [vmem:[%s5931 + $0x3c] sm:$0x7]
        %v6443 = vld [vmem:[%s5931 + $0x40] sm:$0xe]
        %v6444 = vld [vmem:[%s5931 + $0x44] sm:$0x7]
        %v6445 = vld [vmem:[%s5931 + $0x48] sm:$0xe]
        %v6446 = vld [vmem:[%s5931 + $0x4c] sm:$0x7]
        %v6447 = vld [vmem:[%s5931 + $0x50] sm:$0xe]
        %v6448 = vld [vmem:[%s5931 + $0x54] sm:$0x7]
        %v6471 = vrot.slane %v6427, 5
        %v6472 = vrot.slane %v6471, 4
        %v6473 = vrot.slane %v6428, 5
        %v6474 = vsel %vm5098, %v6472, %v6473
        %v6475 = vrot.slane %v6473, 4
        %v6476 = vrot.slane %v6429, 5
        %v6477 = vrot.slane %v6476, 4
        %v6478 = vrot.slane %v6430, 5
        %v6479 = vsel %vm5098, %v6477, %v6478
        %v6480 = vrot.slane %v6478, 4
        %v6481 = vrot.slane %v6431, 5
        %v6482 = vrot.slane %v6481, 4
        %v6483 = vrot.slane %v6432, 5
        %v6484 = vsel %vm5098, %v6482, %v6483
        %v6485 = vrot.slane %v6483, 4
        %v6486 = vrot.slane %v6433, 5
        %v6487 = vrot.slane %v6486, 4
        %v6488 = vrot.slane %v6434, 5
        %v6489 = vsel %vm5098, %v6487, %v6488
        %v6490 = vrot.slane %v6488, 4
        %v6491 = vrot.slane %v6435, 5
        %v6492 = vrot.slane %v6491, 4
        %v6493 = vrot.slane %v6436, 5
        %v6494 = vsel %vm5098, %v6492, %v6493
        %v6495 = vrot.slane %v6493, 4
        %v6496 = vrot.slane %v6437, 5
        %v6497 = vrot.slane %v6496, 4
        %v6498 = vrot.slane %v6438, 5
        %v6499 = vsel %vm5098, %v6497, %v6498
        %v6500 = vrot.slane %v6498, 4
        %v6501 = vrot.slane %v6439, 5
        %v6502 = vrot.slane %v6501, 4
        %v6503 = vrot.slane %v6440, 5
        %v6504 = vsel %vm5098, %v6502, %v6503
        %v6505 = vrot.slane %v6503, 4
        %v6506 = vrot.slane %v6441, 5
        %v6507 = vrot.slane %v6506, 4
        %v6508 = vrot.slane %v6442, 5
        %v6509 = vsel %vm5098, %v6507, %v6508
        %v6510 = vrot.slane %v6508, 4
        %v6511 = vrot.slane %v6443, 5
        %v6512 = vrot.slane %v6511, 4
        %v6513 = vrot.slane %v6444, 5
        %v6514 = vsel %vm5098, %v6512, %v6513
        %v6515 = vrot.slane %v6513, 4
        %v6516 = vrot.slane %v6445, 5
        %v6517 = vrot.slane %v6516, 4
        %v6518 = vrot.slane %v6446, 5
        %v6519 = vsel %vm5098, %v6517, %v6518
        %v6520 = vrot.slane %v6518, 4
        %v6521 = vrot.slane %v6447, 5
        %v6522 = vrot.slane %v6521, 4
        %v6523 = vrot.slane %v6448, 5
        %v6524 = vsel %vm5098, %v6522, %v6523
        %v6525 = vrot.slane %v6523, 4
        %6548 = vst.msk [vmem:[#allocation4 + $0x8] sm:$0xf] %vm4659, %v6474
        %v6549 = vld [vmem:[#allocation4 + $0x14] sm:$0x3]
        %v6550 = vsel %vm4662, %v6475, %v6549
        %6551 = vst [vmem:[#allocation4 + $0x14] sm:$0x3] %v6550
        %6552 = vst.msk [vmem:[#allocation4 + $0x20] sm:$0xf] %vm4659, %v6479
        %v6553 = vld [vmem:[#allocation4 + $0x2c] sm:$0x3]
        %v6554 = vsel %vm4662, %v6480, %v6553
        %6555 = vst [vmem:[#allocation4 + $0x2c] sm:$0x3] %v6554
        %6556 = vst.msk [vmem:[#allocation4 + $0x38] sm:$0xf] %vm4659, %v6484
        %v6557 = vld [vmem:[#allocation4 + $0x44] sm:$0x3]
        %v6558 = vsel %vm4662, %v6485, %v6557
        %6559 = vst [vmem:[#allocation4 + $0x44] sm:$0x3] %v6558
        %6560 = vst.msk [vmem:[#allocation4 + $0x50] sm:$0xf] %vm4659, %v6489
        %v6561 = vld [vmem:[#allocation4 + $0x5c] sm:$0x3]
        %v6562 = vsel %vm4662, %v6490, %v6561
        %6563 = vst [vmem:[#allocation4 + $0x5c] sm:$0x3] %v6562
        %6564 = vst.msk [vmem:[#allocation4 + $0x68] sm:$0xf] %vm4659, %v6494
        %v6565 = vld [vmem:[#allocation4 + $0x74] sm:$0x3]
        %v6566 = vsel %vm4662, %v6495, %v6565
        %6567 = vst [vmem:[#allocation4 + $0x74] sm:$0x3] %v6566
        %6568 = vst.msk [vmem:[#allocation4 + $0x80] sm:$0xf] %vm4659, %v6499
        %v6569 = vld [vmem:[#allocation4 + $0x8c] sm:$0x3]
        %v6570 = vsel %vm4662, %v6500, %v6569
        %6571 = vst [vmem:[#allocation4 + $0x8c] sm:$0x3] %v6570
        %6572 = vst.msk [vmem:[#allocation4 + $0x98] sm:$0xf] %vm4659, %v6504
        %v6573 = vld [vmem:[#allocation4 + $0xa4] sm:$0x3]
        %v6574 = vsel %vm4662, %v6505, %v6573
        %6575 = vst [vmem:[#allocation4 + $0xa4] sm:$0x3] %v6574
        %6576 = vst.msk [vmem:[#allocation4 + $0xb0] sm:$0xf] %vm4659, %v6509
        %v6577 = vld [vmem:[#allocation4 + $0xbc] sm:$0x3]
        %v6578 = vsel %vm4662, %v6510, %v6577
        %6579 = vst [vmem:[#allocation4 + $0xbc] sm:$0x3] %v6578
        %6580 = vst.msk [vmem:[#allocation4 + $0xc8] sm:$0xf] %vm4659, %v6514
        %v6581 = vld [vmem:[#allocation4 + $0xd4] sm:$0x3]
        %v6582 = vsel %vm4662, %v6515, %v6581
        %6583 = vst [vmem:[#allocation4 + $0xd4] sm:$0x3] %v6582
        %6584 = vst.msk [vmem:[#allocation4 + $0xe0] sm:$0xf] %vm4659, %v6519
        %v6585 = vld [vmem:[#allocation4 + $0xec] sm:$0x3]
        %v6586 = vsel %vm4662, %v6520, %v6585
        %6587 = vst [vmem:[#allocation4 + $0xec] sm:$0x3] %v6586
        %6588 = vst.msk [vmem:[#allocation4 + $0xf8] sm:$0xf] %vm4659, %v6524
        %v6589 = vld [vmem:[#allocation4 + $0x104] sm:$0x3]
        %v6590 = vsel %vm4662, %v6525, %v6589
        %6591 = vst [vmem:[#allocation4 + $0x104] sm:$0x3] %v6590
        %v6592 = vld [vmem:[%s3] sm:$0xf]
        %v6593 = vld [vmem:[%s3 + $0x4] sm:$0xf]
        %v6594 = vld [vmem:[%s3 + $0x8] sm:$0xf]
        %v6595 = vld [vmem:[%s3 + $0xc] sm:$0xf]
        %v6596 = vld [vmem:[%s3 + $0x10] sm:$0xf]
        %v6597 = vld [vmem:[%s3 + $0x14] sm:$0xf]
        %v6598 = vld [vmem:[%s3 + $0x18] sm:$0xf]
        %v6599 = vld [vmem:[%s3 + $0x1c] sm:$0xf]
        %v6600 = vld [vmem:[%s3 + $0x20] sm:$0xf]
        %v6601 = vld [vmem:[%s3 + $0x24] sm:$0xf]
        %v6602 = vld [vmem:[%s3 + $0x28] sm:$0xf]
        %v6603 = vld [vmem:[%s3 + $0x2c] sm:$0xf]
        %v6604 = vld [vmem:[%s3 + $0x30] sm:$0xf]
        %v6605 = vld [vmem:[%s3 + $0x34] sm:$0xf]
        %v6606 = vld [vmem:[%s3 + $0x38] sm:$0xf]
        %v6607 = vld [vmem:[%s3 + $0x3c] sm:$0xf]
        %v6608 = vld [vmem:[%s3 + $0x40] sm:$0xf]
        %v6609 = vld [vmem:[%s3 + $0x44] sm:$0xf]
        %v6610 = vld [vmem:[%s3 + $0x48] sm:$0xf]
        %v6611 = vld [vmem:[%s3 + $0x4c] sm:$0xf]
        %v6612 = vld [vmem:[%s3 + $0x50] sm:$0xf]
        %v6613 = vld [vmem:[%s3 + $0x54] sm:$0xf]
        %v6614 = vld [vmem:[%s3 + $0x58] sm:$0xf]
        %v6615 = vld [vmem:[%s3 + $0x5c] sm:$0xf]
        %v6616 = vld [vmem:[%s3 + $0x60] sm:$0xf]
        %v6617 = vld [vmem:[%s3 + $0x64] sm:$0xf]
        %v6618 = vld [vmem:[%s3 + $0x68] sm:$0xf]
        %v6619 = vld [vmem:[%s3 + $0x6c] sm:$0xf]
        %v6620 = vld [vmem:[%s3 + $0x70] sm:$0xf]
        %v6621 = vld [vmem:[%s3 + $0x74] sm:$0xf]
        %v6622 = vld [vmem:[%s3 + $0x78] sm:$0xf]
        %v6623 = vld [vmem:[%s3 + $0x7c] sm:$0xf]
        %v6624 = vld [vmem:[%s3 + $0x80] sm:$0xf]
        %v6625 = vld [vmem:[%s3 + $0x84] sm:$0xf]
        %v6626 = vld [vmem:[%s3 + $0x88] sm:$0xf]
        %v6627 = vld [vmem:[%s3 + $0x8c] sm:$0xf]
        %v6628 = vld [vmem:[%s4] sm:$0x1]
        %v6629 = vld [vmem:[#allocation4] sm:$0xff]
        %v6630 = vld [vmem:[#allocation4 + $0x8] sm:$0xf]
        %v6631 = vld [vmem:[#allocation4 + $0xc] sm:$0x33]
        %v6632 = vld [vmem:[#allocation4 + $0x14] sm:$0x3]
        %v6634 = vlaneseq
        %v6635 = vshrl.u32 %v6634, 7
        %v6636 = vsub.s32 0, %v6635
        %v6637 = vrot.slane %v6628, %v6636
        %v6643 = vunpack.c.l.b16 %v6629
        %v6644 = vunpack.c.h.b16 %v6629
        %v6645 = vunpack.c.l.b16 %v6630
        %v6646 = vunpack.c.l.b16 %v6631
        %v6647 = vunpack.c.h.b16 %v6631
        %v6648 = vunpack.c.l.b16 %v6632
        %v6649 = vpack.c.b16 %v6646, %v6643
        %v6650 = vpack.c.b16 %v6647, %v6644
        %v6651 = vpack.c.b16 %v6648, %v6645
        %v6690 = vunpack.c.l.b16 %v6592
        %v6691 = vunpack.c.l.b16 %v6593
        %v6692 = vunpack.c.l.b16 %v6594
        %v6693 = vunpack.c.l.b16 %v6595
        %v6694 = vunpack.c.l.b16 %v6596
        %v6695 = vunpack.c.l.b16 %v6597
        %v6696 = vunpack.c.l.b16 %v6598
        %v6697 = vunpack.c.l.b16 %v6599
        %v6698 = vunpack.c.l.b16 %v6600
        %v6699 = vunpack.c.l.b16 %v6601
        %v6700 = vunpack.c.l.b16 %v6602
        %v6701 = vunpack.c.l.b16 %v6603
        %v6702 = vunpack.c.l.b16 %v6604
        %v6703 = vunpack.c.l.b16 %v6605
        %v6704 = vunpack.c.l.b16 %v6606
        %v6705 = vunpack.c.l.b16 %v6607
        %v6706 = vunpack.c.l.b16 %v6608
        %v6707 = vunpack.c.l.b16 %v6609
        %v6708 = vunpack.c.l.b16 %v6610
        %v6709 = vunpack.c.l.b16 %v6611
        %v6710 = vunpack.c.l.b16 %v6612
        %v6711 = vunpack.c.l.b16 %v6613
        %v6712 = vunpack.c.l.b16 %v6614
        %v6713 = vunpack.c.l.b16 %v6615
        %v6714 = vunpack.c.l.b16 %v6616
        %v6715 = vunpack.c.l.b16 %v6617
        %v6716 = vunpack.c.l.b16 %v6618
        %v6717 = vunpack.c.l.b16 %v6619
        %v6718 = vunpack.c.l.b16 %v6620
        %v6719 = vunpack.c.l.b16 %v6621
        %v6720 = vunpack.c.l.b16 %v6622
        %v6721 = vunpack.c.l.b16 %v6623
        %v6722 = vunpack.c.l.b16 %v6624
        %v6723 = vunpack.c.l.b16 %v6625
        %v6724 = vunpack.c.l.b16 %v6626
        %v6725 = vunpack.c.l.b16 %v6627
        %v6726 = vpack.c.b16 %v6691, %v6690
        %v6727 = vpack.c.b16 %v6693, %v6692
        %v6728 = vpack.c.b16 %v6695, %v6694
        %v6729 = vpack.c.b16 %v6697, %v6696
        %v6730 = vpack.c.b16 %v6699, %v6698
        %v6731 = vpack.c.b16 %v6701, %v6700
        %v6732 = vpack.c.b16 %v6703, %v6702
        %v6733 = vpack.c.b16 %v6705, %v6704
        %v6734 = vpack.c.b16 %v6707, %v6706
        %v6735 = vpack.c.b16 %v6709, %v6708
        %v6736 = vpack.c.b16 %v6711, %v6710
        %v6737 = vpack.c.b16 %v6713, %v6712
        %v6738 = vpack.c.b16 %v6715, %v6714
        %v6739 = vpack.c.b16 %v6717, %v6716
        %v6740 = vpack.c.b16 %v6719, %v6718
        %v6741 = vpack.c.b16 %v6721, %v6720
        %v6742 = vpack.c.b16 %v6723, %v6722
        %v6743 = vpack.c.b16 %v6725, %v6724
        %v6763 = vsel %vm656, %v6651, 0
        %6765 = vmatprep.subr.bf16.mxu0 0
        %6766 = vmatpush1.bf16.msra.mxu0 %v6733
        %6767 = vmatprep.subr.bf16.mxu0 0
        %6768 = vmatpush1.bf16.msra.mxu0 %v6732
        %6769 = vmatprep.subr.bf16.mxu0 0
        %6770 = vmatpush1.bf16.msra.mxu0 %v6731
        %6771 = vmatprep.subr.bf16.mxu0 0
        %6772 = vmatpush1.bf16.msra.mxu0 %v6730
        %6773 = vmatprep.subr.bf16.mxu0 0
        %6774 = vmatpush1.bf16.msra.mxu0 %v6729
        %6775 = vmatprep.subr.bf16.mxu0 0
        %6776 = vmatpush1.bf16.msra.mxu0 %v6728
        %6777 = vmatprep.subr.bf16.mxu0 0
        %6778 = vmatpush1.bf16.msra.mxu0 %v6727
        %6779 = vmatprep.subr.bf16.mxu0 0
        %6780 = vmatpush1.bf16.msra.mxu0 %v6726
        %6781 = vmatprep.subr.bf16.mxu0 0
        %6782 = vmatpush2.bf16.msra.mxu0 %v6741
        %6783 = vmatprep.subr.bf16.mxu0 0
        %6784 = vmatpush2.bf16.msra.mxu0 %v6740
        %6785 = vmatprep.subr.bf16.mxu0 0
        %6786 = vmatpush2.bf16.msra.mxu0 %v6739
        %6787 = vmatprep.subr.bf16.mxu0 0
        %6788 = vmatpush2.bf16.msra.mxu0 %v6738
        %6789 = vmatprep.subr.bf16.mxu0 0
        %6790 = vmatpush2.bf16.msra.mxu0 %v6737
        %6791 = vmatprep.subr.bf16.mxu0 0
        %6792 = vmatpush2.bf16.msra.mxu0 %v6736
        %6793 = vmatprep.subr.bf16.mxu0 0
        %6794 = vmatpush2.bf16.msra.mxu0 %v6735
        %6795 = vmatprep.subr.bf16.mxu0 0
        %6796 = vmatpush2.bf16.msra.mxu0 %v6734
        %6797 = vmatprep.mubr.bf16.mxu0 %v6650
        %6798 = vmatmul.mubr.bf16.gmra.mxu0 %v6649
        %v6799 = vpop.f32.mrf.mxu0
        %v6800 = vadd.f32 %v6637, %v6799
        %v6801 = vpop.f32.mrf.mxu0
        %v6802 = vpop.f32.mrf.mxu0
        %v6803 = vadd.f32 %v6637, %v6802
        %v6804 = vpop.f32.mrf.mxu0
        %6805 = vdwg.mxu0
        %6806 = vmatprep.subr.bf16.mxu0 0
        %6807 = vmatpush1.bf16.msra.mxu0 0
        %6808 = vmatprep.subr.bf16.mxu0 0
        %6809 = vmatpush1.bf16.msra.mxu0 0
        %6810 = vmatprep.subr.bf16.mxu0 0
        %6811 = vmatpush1.bf16.msra.mxu0 0
        %6812 = vmatprep.subr.bf16.mxu0 0
        %6813 = vmatpush1.bf16.msra.mxu0 0
        %6814 = vmatprep.subr.bf16.mxu0 0
        %6815 = vmatpush1.bf16.msra.mxu0 0
        %6816 = vmatprep.subr.bf16.mxu0 0
        %6817 = vmatpush1.bf16.msra.mxu0 0
        %6818 = vmatprep.subr.bf16.mxu0 0
        %6819 = vmatpush1.bf16.msra.mxu0 %v6743
        %6820 = vmatprep.subr.bf16.mxu0 0
        %6821 = vmatpush1.bf16.msra.mxu0 %v6742
        %6822 = vmatprep.subr.bf16.mxu0 0
        %6823 = vmatpush2.bf16.msra.mxu0 0
        %6824 = vmatprep.subr.bf16.mxu0 0
        %6825 = vmatpush2.bf16.msra.mxu0 0
        %6826 = vmatprep.subr.bf16.mxu0 0
        %6827 = vmatpush2.bf16.msra.mxu0 0
        %6828 = vmatprep.subr.bf16.mxu0 0
        %6829 = vmatpush2.bf16.msra.mxu0 0
        %6830 = vmatprep.subr.bf16.mxu0 0
        %6831 = vmatpush2.bf16.msra.mxu0 0
        %6832 = vmatprep.subr.bf16.mxu0 0
        %6833 = vmatpush2.bf16.msra.mxu0 0
        %6834 = vmatprep.subr.bf16.mxu0 0
        %6835 = vmatpush2.bf16.msra.mxu0 0
        %6836 = vmatprep.subr.bf16.mxu0 0
        %6837 = vmatpush2.bf16.msra.mxu0 0
        %6838 = vmatprep.mubr.bf16.mxu0 0
        %6839 = vmatmul.mubr.bf16.gmra.mxu0 %v6763
        %v6840 = vpop.f32.mrf.mxu0
        %v6841 = vadd.f32 %v6800, %v6840
        %v6842 = vpop.f32.mrf.mxu0
        %v6843 = vpop.f32.mrf.mxu0
        %v6844 = vadd.f32 %v6803, %v6843
        %v6845 = vpop.f32.mrf.mxu0
        %6846 = vdwg.mxu0
        %v6847 = vmax.f32 %v6841, 0.0
        %v6848 = vmax.f32 %v6844, 0.0
        %s6849 = scalar_lea.vmem [#allocation4], 24
        %v6850 = vld [vmem:[%s6849] sm:$0xff]
        %v6851 = vld [vmem:[%s6849 + $0x8] sm:$0xf]
        %v6852 = vld [vmem:[%s6849 + $0xc] sm:$0x33]
        %v6853 = vld [vmem:[%s6849 + $0x14] sm:$0x3]
        %v6858 = vunpack.c.l.b16 %v6850
        %v6859 = vunpack.c.h.b16 %v6850
        %v6860 = vunpack.c.l.b16 %v6851
        %v6861 = vunpack.c.l.b16 %v6852
        %v6862 = vunpack.c.h.b16 %v6852
        %v6863 = vunpack.c.l.b16 %v6853
        %v6864 = vpack.c.b16 %v6861, %v6858
        %v6865 = vpack.c.b16 %v6862, %v6859
        %v6866 = vpack.c.b16 %v6863, %v6860
        %v6870 = vsel %vm656, %v6866, 0
        %6872 = vmatprep.subr.bf16.mxu0 0
        %6873 = vmatpush1.bf16.msra.mxu0 %v6733
        %6874 = vmatprep.subr.bf16.mxu0 0
        %6875 = vmatpush1.bf16.msra.mxu0 %v6732
        %6876 = vmatprep.subr.bf16.mxu0 0
        %6877 = vmatpush1.bf16.msra.mxu0 %v6731
        %6878 = vmatprep.subr.bf16.mxu0 0
        %6879 = vmatpush1.bf16.msra.mxu0 %v6730
        %6880 = vmatprep.subr.bf16.mxu0 0
        %6881 = vmatpush1.bf16.msra.mxu0 %v6729
        %6882 = vmatprep.subr.bf16.mxu0 0
        %6883 = vmatpush1.bf16.msra.mxu0 %v6728
        %6884 = vmatprep.subr.bf16.mxu0 0
        %6885 = vmatpush1.bf16.msra.mxu0 %v6727
        %6886 = vmatprep.subr.bf16.mxu0 0
        %6887 = vmatpush1.bf16.msra.mxu0 %v6726
        %6888 = vmatprep.subr.bf16.mxu0 0
        %6889 = vmatpush2.bf16.msra.mxu0 %v6741
        %6890 = vmatprep.subr.bf16.mxu0 0
        %6891 = vmatpush2.bf16.msra.mxu0 %v6740
        %6892 = vmatprep.subr.bf16.mxu0 0
        %6893 = vmatpush2.bf16.msra.mxu0 %v6739
        %6894 = vmatprep.subr.bf16.mxu0 0
        %6895 = vmatpush2.bf16.msra.mxu0 %v6738
        %6896 = vmatprep.subr.bf16.mxu0 0
        %6897 = vmatpush2.bf16.msra.mxu0 %v6737
        %6898 = vmatprep.subr.bf16.mxu0 0
        %6899 = vmatpush2.bf16.msra.mxu0 %v6736
        %6900 = vmatprep.subr.bf16.mxu0 0
        %6901 = vmatpush2.bf16.msra.mxu0 %v6735
        %6902 = vmatprep.subr.bf16.mxu0 0
        %6903 = vmatpush2.bf16.msra.mxu0 %v6734
        %6904 = vmatprep.mubr.bf16.mxu0 %v6865
        %6905 = vmatmul.mubr.bf16.gmra.mxu0 %v6864
        %v6906 = vpop.f32.mrf.mxu0
        %v6907 = vadd.f32 %v6637, %v6906
        %v6908 = vpop.f32.mrf.mxu0
        %v6909 = vpop.f32.mrf.mxu0
        %v6910 = vadd.f32 %v6637, %v6909
        %v6911 = vpop.f32.mrf.mxu0
        %6912 = vdwg.mxu0
        %6913 = vmatprep.subr.bf16.mxu0 0
        %6914 = vmatpush1.bf16.msra.mxu0 0
        %6915 = vmatprep.subr.bf16.mxu0 0
        %6916 = vmatpush1.bf16.msra.mxu0 0
        %6917 = vmatprep.subr.bf16.mxu0 0
        %6918 = vmatpush1.bf16.msra.mxu0 0
        %6919 = vmatprep.subr.bf16.mxu0 0
        %6920 = vmatpush1.bf16.msra.mxu0 0
        %6921 = vmatprep.subr.bf16.mxu0 0
        %6922 = vmatpush1.bf16.msra.mxu0 0
        %6923 = vmatprep.subr.bf16.mxu0 0
        %6924 = vmatpush1.bf16.msra.mxu0 0
        %6925 = vmatprep.subr.bf16.mxu0 0
        %6926 = vmatpush1.bf16.msra.mxu0 %v6743
        %6927 = vmatprep.subr.bf16.mxu0 0
        %6928 = vmatpush1.bf16.msra.mxu0 %v6742
        %6929 = vmatprep.subr.bf16.mxu0 0
        %6930 = vmatpush2.bf16.msra.mxu0 0
        %6931 = vmatprep.subr.bf16.mxu0 0
        %6932 = vmatpush2.bf16.msra.mxu0 0
        %6933 = vmatprep.subr.bf16.mxu0 0
        %6934 = vmatpush2.bf16.msra.mxu0 0
        %6935 = vmatprep.subr.bf16.mxu0 0
        %6936 = vmatpush2.bf16.msra.mxu0 0
        %6937 = vmatprep.subr.bf16.mxu0 0
        %6938 = vmatpush2.bf16.msra.mxu0 0
        %6939 = vmatprep.subr.bf16.mxu0 0
        %6940 = vmatpush2.bf16.msra.mxu0 0
        %6941 = vmatprep.subr.bf16.mxu0 0
        %6942 = vmatpush2.bf16.msra.mxu0 0
        %6943 = vmatprep.subr.bf16.mxu0 0
        %6944 = vmatpush2.bf16.msra.mxu0 0
        %6945 = vmatprep.mubr.bf16.mxu0 0
        %6946 = vmatmul.mubr.bf16.gmra.mxu0 %v6870
        %v6947 = vpop.f32.mrf.mxu0
        %v6948 = vadd.f32 %v6907, %v6947
        %v6949 = vpop.f32.mrf.mxu0
        %v6950 = vpop.f32.mrf.mxu0
        %v6951 = vadd.f32 %v6910, %v6950
        %v6952 = vpop.f32.mrf.mxu0
        %6953 = vdwg.mxu0
        %v6954 = vmax.f32 %v6948, 0.0
        %v6955 = vmax.f32 %v6951, 0.0
        %v6956 = vmax.f32 %v6847, %v6954
        %v6957 = vmax.f32 %v6848, %v6955
        %vm6958 = vcmask 523264
        %6959 = vst.msk [vmem:[#allocation5] sm:$0xff] %vm6958, %v6956
        %vm6960 = vcmask 518144
        %6961 = vst.msk [vmem:[#allocation5 + $0x8] sm:$0x7] %vm6960, %v6957
        %s6962 = scalar_lea.vmem [#allocation4], 48
        %v6963 = vld [vmem:[%s6962] sm:$0xff]
        %v6964 = vld [vmem:[%s6962 + $0x8] sm:$0xf]
        %v6965 = vld [vmem:[%s6962 + $0xc] sm:$0x33]
        %v6966 = vld [vmem:[%s6962 + $0x14] sm:$0x3]
        %v6971 = vunpack.c.l.b16 %v6963
        %v6972 = vunpack.c.h.b16 %v6963
        %v6973 = vunpack.c.l.b16 %v6964
        %v6974 = vunpack.c.l.b16 %v6965
        %v6975 = vunpack.c.h.b16 %v6965
        %v6976 = vunpack.c.l.b16 %v6966
        %v6977 = vpack.c.b16 %v6974, %v6971
        %v6978 = vpack.c.b16 %v6975, %v6972
        %v6979 = vpack.c.b16 %v6976, %v6973
        %v6983 = vsel %vm656, %v6979, 0
        %6985 = vmatprep.subr.bf16.mxu0 0
        %6986 = vmatpush1.bf16.msra.mxu0 %v6733
        %6987 = vmatprep.subr.bf16.mxu0 0
        %6988 = vmatpush1.bf16.msra.mxu0 %v6732
        %6989 = vmatprep.subr.bf16.mxu0 0
        %6990 = vmatpush1.bf16.msra.mxu0 %v6731
        %6991 = vmatprep.subr.bf16.mxu0 0
        %6992 = vmatpush1.bf16.msra.mxu0 %v6730
        %6993 = vmatprep.subr.bf16.mxu0 0
        %6994 = vmatpush1.bf16.msra.mxu0 %v6729
        %6995 = vmatprep.subr.bf16.mxu0 0
        %6996 = vmatpush1.bf16.msra.mxu0 %v6728
        %6997 = vmatprep.subr.bf16.mxu0 0
        %6998 = vmatpush1.bf16.msra.mxu0 %v6727
        %6999 = vmatprep.subr.bf16.mxu0 0
        %7000 = vmatpush1.bf16.msra.mxu0 %v6726
        %7001 = vmatprep.subr.bf16.mxu0 0
        %7002 = vmatpush2.bf16.msra.mxu0 %v6741
        %7003 = vmatprep.subr.bf16.mxu0 0
        %7004 = vmatpush2.bf16.msra.mxu0 %v6740
        %7005 = vmatprep.subr.bf16.mxu0 0
        %7006 = vmatpush2.bf16.msra.mxu0 %v6739
        %7007 = vmatprep.subr.bf16.mxu0 0
        %7008 = vmatpush2.bf16.msra.mxu0 %v6738
        %7009 = vmatprep.subr.bf16.mxu0 0
        %7010 = vmatpush2.bf16.msra.mxu0 %v6737
        %7011 = vmatprep.subr.bf16.mxu0 0
        %7012 = vmatpush2.bf16.msra.mxu0 %v6736
        %7013 = vmatprep.subr.bf16.mxu0 0
        %7014 = vmatpush2.bf16.msra.mxu0 %v6735
        %7015 = vmatprep.subr.bf16.mxu0 0
        %7016 = vmatpush2.bf16.msra.mxu0 %v6734
        %7017 = vmatprep.mubr.bf16.mxu0 %v6978
        %7018 = vmatmul.mubr.bf16.gmra.mxu0 %v6977
        %v7019 = vpop.f32.mrf.mxu0
        %v7020 = vadd.f32 %v6637, %v7019
        %v7021 = vpop.f32.mrf.mxu0
        %v7022 = vpop.f32.mrf.mxu0
        %v7023 = vadd.f32 %v6637, %v7022
        %v7024 = vpop.f32.mrf.mxu0
        %7025 = vdwg.mxu0
        %7026 = vmatprep.subr.bf16.mxu0 0
        %7027 = vmatpush1.bf16.msra.mxu0 0
        %7028 = vmatprep.subr.bf16.mxu0 0
        %7029 = vmatpush1.bf16.msra.mxu0 0
        %7030 = vmatprep.subr.bf16.mxu0 0
        %7031 = vmatpush1.bf16.msra.mxu0 0
        %7032 = vmatprep.subr.bf16.mxu0 0
        %7033 = vmatpush1.bf16.msra.mxu0 0
        %7034 = vmatprep.subr.bf16.mxu0 0
        %7035 = vmatpush1.bf16.msra.mxu0 0
        %7036 = vmatprep.subr.bf16.mxu0 0
        %7037 = vmatpush1.bf16.msra.mxu0 0
        %7038 = vmatprep.subr.bf16.mxu0 0
        %7039 = vmatpush1.bf16.msra.mxu0 %v6743
        %7040 = vmatprep.subr.bf16.mxu0 0
        %7041 = vmatpush1.bf16.msra.mxu0 %v6742
        %7042 = vmatprep.subr.bf16.mxu0 0
        %7043 = vmatpush2.bf16.msra.mxu0 0
        %7044 = vmatprep.subr.bf16.mxu0 0
        %7045 = vmatpush2.bf16.msra.mxu0 0
        %7046 = vmatprep.subr.bf16.mxu0 0
        %7047 = vmatpush2.bf16.msra.mxu0 0
        %7048 = vmatprep.subr.bf16.mxu0 0
        %7049 = vmatpush2.bf16.msra.mxu0 0
        %7050 = vmatprep.subr.bf16.mxu0 0
        %7051 = vmatpush2.bf16.msra.mxu0 0
        %7052 = vmatprep.subr.bf16.mxu0 0
        %7053 = vmatpush2.bf16.msra.mxu0 0
        %7054 = vmatprep.subr.bf16.mxu0 0
        %7055 = vmatpush2.bf16.msra.mxu0 0
        %7056 = vmatprep.subr.bf16.mxu0 0
        %7057 = vmatpush2.bf16.msra.mxu0 0
        %7058 = vmatprep.mubr.bf16.mxu0 0
        %7059 = vmatmul.mubr.bf16.gmra.mxu0 %v6983
        %v7060 = vpop.f32.mrf.mxu0
        %v7061 = vadd.f32 %v7020, %v7060
        %v7062 = vpop.f32.mrf.mxu0
        %v7063 = vpop.f32.mrf.mxu0
        %v7064 = vadd.f32 %v7023, %v7063
        %v7065 = vpop.f32.mrf.mxu0
        %7066 = vdwg.mxu0
        %v7067 = vmax.f32 %v7061, 0.0
        %v7068 = vmax.f32 %v7064, 0.0
        %s7069 = scalar_lea.vmem [#allocation4], 72
        %v7070 = vld [vmem:[%s7069] sm:$0xff]
        %v7071 = vld [vmem:[%s7069 + $0x8] sm:$0xf]
        %v7072 = vld [vmem:[%s7069 + $0xc] sm:$0x33]
        %v7073 = vld [vmem:[%s7069 + $0x14] sm:$0x3]
        %v7078 = vunpack.c.l.b16 %v7070
        %v7079 = vunpack.c.h.b16 %v7070
        %v7080 = vunpack.c.l.b16 %v7071
        %v7081 = vunpack.c.l.b16 %v7072
        %v7082 = vunpack.c.h.b16 %v7072
        %v7083 = vunpack.c.l.b16 %v7073
        %v7084 = vpack.c.b16 %v7081, %v7078
        %v7085 = vpack.c.b16 %v7082, %v7079
        %v7086 = vpack.c.b16 %v7083, %v7080
        %v7090 = vsel %vm656, %v7086, 0
        %7092 = vmatprep.subr.bf16.mxu0 0
        %7093 = vmatpush1.bf16.msra.mxu0 %v6733
        %7094 = vmatprep.subr.bf16.mxu0 0
        %7095 = vmatpush1.bf16.msra.mxu0 %v6732
        %7096 = vmatprep.subr.bf16.mxu0 0
        %7097 = vmatpush1.bf16.msra.mxu0 %v6731
        %7098 = vmatprep.subr.bf16.mxu0 0
        %7099 = vmatpush1.bf16.msra.mxu0 %v6730
        %7100 = vmatprep.subr.bf16.mxu0 0
        %7101 = vmatpush1.bf16.msra.mxu0 %v6729
        %7102 = vmatprep.subr.bf16.mxu0 0
        %7103 = vmatpush1.bf16.msra.mxu0 %v6728
        %7104 = vmatprep.subr.bf16.mxu0 0
        %7105 = vmatpush1.bf16.msra.mxu0 %v6727
        %7106 = vmatprep.subr.bf16.mxu0 0
        %7107 = vmatpush1.bf16.msra.mxu0 %v6726
        %7108 = vmatprep.subr.bf16.mxu0 0
        %7109 = vmatpush2.bf16.msra.mxu0 %v6741
        %7110 = vmatprep.subr.bf16.mxu0 0
        %7111 = vmatpush2.bf16.msra.mxu0 %v6740
        %7112 = vmatprep.subr.bf16.mxu0 0
        %7113 = vmatpush2.bf16.msra.mxu0 %v6739
        %7114 = vmatprep.subr.bf16.mxu0 0
        %7115 = vmatpush2.bf16.msra.mxu0 %v6738
        %7116 = vmatprep.subr.bf16.mxu0 0
        %7117 = vmatpush2.bf16.msra.mxu0 %v6737
        %7118 = vmatprep.subr.bf16.mxu0 0
        %7119 = vmatpush2.bf16.msra.mxu0 %v6736
        %7120 = vmatprep.subr.bf16.mxu0 0
        %7121 = vmatpush2.bf16.msra.mxu0 %v6735
        %7122 = vmatprep.subr.bf16.mxu0 0
        %7123 = vmatpush2.bf16.msra.mxu0 %v6734
        %7124 = vmatprep.mubr.bf16.mxu0 %v7085
        %7125 = vmatmul.mubr.bf16.gmra.mxu0 %v7084
        %v7126 = vpop.f32.mrf.mxu0
        %v7127 = vadd.f32 %v6637, %v7126
        %v7128 = vpop.f32.mrf.mxu0
        %v7129 = vpop.f32.mrf.mxu0
        %v7130 = vadd.f32 %v6637, %v7129
        %v7131 = vpop.f32.mrf.mxu0
        %7132 = vdwg.mxu0
        %7133 = vmatprep.subr.bf16.mxu0 0
        %7134 = vmatpush1.bf16.msra.mxu0 0
        %7135 = vmatprep.subr.bf16.mxu0 0
        %7136 = vmatpush1.bf16.msra.mxu0 0
        %7137 = vmatprep.subr.bf16.mxu0 0
        %7138 = vmatpush1.bf16.msra.mxu0 0
        %7139 = vmatprep.subr.bf16.mxu0 0
        %7140 = vmatpush1.bf16.msra.mxu0 0
        %7141 = vmatprep.subr.bf16.mxu0 0
        %7142 = vmatpush1.bf16.msra.mxu0 0
        %7143 = vmatprep.subr.bf16.mxu0 0
        %7144 = vmatpush1.bf16.msra.mxu0 0
        %7145 = vmatprep.subr.bf16.mxu0 0
        %7146 = vmatpush1.bf16.msra.mxu0 %v6743
        %7147 = vmatprep.subr.bf16.mxu0 0
        %7148 = vmatpush1.bf16.msra.mxu0 %v6742
        %7149 = vmatprep.subr.bf16.mxu0 0
        %7150 = vmatpush2.bf16.msra.mxu0 0
        %7151 = vmatprep.subr.bf16.mxu0 0
        %7152 = vmatpush2.bf16.msra.mxu0 0
        %7153 = vmatprep.subr.bf16.mxu0 0
        %7154 = vmatpush2.bf16.msra.mxu0 0
        %7155 = vmatprep.subr.bf16.mxu0 0
        %7156 = vmatpush2.bf16.msra.mxu0 0
        %7157 = vmatprep.subr.bf16.mxu0 0
        %7158 = vmatpush2.bf16.msra.mxu0 0
        %7159 = vmatprep.subr.bf16.mxu0 0
        %7160 = vmatpush2.bf16.msra.mxu0 0
        %7161 = vmatprep.subr.bf16.mxu0 0
        %7162 = vmatpush2.bf16.msra.mxu0 0
        %7163 = vmatprep.subr.bf16.mxu0 0
        %7164 = vmatpush2.bf16.msra.mxu0 0
        %7165 = vmatprep.mubr.bf16.mxu0 0
        %7166 = vmatmul.mubr.bf16.gmra.mxu0 %v7090
        %v7167 = vpop.f32.mrf.mxu0
        %v7168 = vadd.f32 %v7127, %v7167
        %v7169 = vpop.f32.mrf.mxu0
        %v7170 = vpop.f32.mrf.mxu0
        %v7171 = vadd.f32 %v7130, %v7170
        %v7172 = vpop.f32.mrf.mxu0
        %7173 = vdwg.mxu0
        %v7174 = vmax.f32 %v7168, 0.0
        %v7175 = vmax.f32 %v7171, 0.0
        %v7176 = vmax.f32 %v7067, %v7174
        %v7177 = vmax.f32 %v7068, %v7175
        %s7178 = scalar_lea.vmem [#allocation5], 16
        %7179 = vst.msk [vmem:[%s7178] sm:$0xff] %vm6958, %v7176
        %7180 = vst.msk [vmem:[%s7178 + $0x8] sm:$0x7] %vm6960, %v7177
        %s7181 = scalar_lea.vmem [#allocation4], 96
        %v7182 = vld [vmem:[%s7181] sm:$0xff]
        %v7183 = vld [vmem:[%s7181 + $0x8] sm:$0xf]
        %v7184 = vld [vmem:[%s7181 + $0xc] sm:$0x33]
        %v7185 = vld [vmem:[%s7181 + $0x14] sm:$0x3]
        %v7190 = vunpack.c.l.b16 %v7182
        %v7191 = vunpack.c.h.b16 %v7182
        %v7192 = vunpack.c.l.b16 %v7183
        %v7193 = vunpack.c.l.b16 %v7184
        %v7194 = vunpack.c.h.b16 %v7184
        %v7195 = vunpack.c.l.b16 %v7185
        %v7196 = vpack.c.b16 %v7193, %v7190
        %v7197 = vpack.c.b16 %v7194, %v7191
        %v7198 = vpack.c.b16 %v7195, %v7192
        %v7202 = vsel %vm656, %v7198, 0
        %7204 = vmatprep.subr.bf16.mxu0 0
        %7205 = vmatpush1.bf16.msra.mxu0 %v6733
        %7206 = vmatprep.subr.bf16.mxu0 0
        %7207 = vmatpush1.bf16.msra.mxu0 %v6732
        %7208 = vmatprep.subr.bf16.mxu0 0
        %7209 = vmatpush1.bf16.msra.mxu0 %v6731
        %7210 = vmatprep.subr.bf16.mxu0 0
        %7211 = vmatpush1.bf16.msra.mxu0 %v6730
        %7212 = vmatprep.subr.bf16.mxu0 0
        %7213 = vmatpush1.bf16.msra.mxu0 %v6729
        %7214 = vmatprep.subr.bf16.mxu0 0
        %7215 = vmatpush1.bf16.msra.mxu0 %v6728
        %7216 = vmatprep.subr.bf16.mxu0 0
        %7217 = vmatpush1.bf16.msra.mxu0 %v6727
        %7218 = vmatprep.subr.bf16.mxu0 0
        %7219 = vmatpush1.bf16.msra.mxu0 %v6726
        %7220 = vmatprep.subr.bf16.mxu0 0
        %7221 = vmatpush2.bf16.msra.mxu0 %v6741
        %7222 = vmatprep.subr.bf16.mxu0 0
        %7223 = vmatpush2.bf16.msra.mxu0 %v6740
        %7224 = vmatprep.subr.bf16.mxu0 0
        %7225 = vmatpush2.bf16.msra.mxu0 %v6739
        %7226 = vmatprep.subr.bf16.mxu0 0
        %7227 = vmatpush2.bf16.msra.mxu0 %v6738
        %7228 = vmatprep.subr.bf16.mxu0 0
        %7229 = vmatpush2.bf16.msra.mxu0 %v6737
        %7230 = vmatprep.subr.bf16.mxu0 0
        %7231 = vmatpush2.bf16.msra.mxu0 %v6736
        %7232 = vmatprep.subr.bf16.mxu0 0
        %7233 = vmatpush2.bf16.msra.mxu0 %v6735
        %7234 = vmatprep.subr.bf16.mxu0 0
        %7235 = vmatpush2.bf16.msra.mxu0 %v6734
        %7236 = vmatprep.mubr.bf16.mxu0 %v7197
        %7237 = vmatmul.mubr.bf16.gmra.mxu0 %v7196
        %v7238 = vpop.f32.mrf.mxu0
        %v7239 = vadd.f32 %v6637, %v7238
        %v7240 = vpop.f32.mrf.mxu0
        %v7241 = vpop.f32.mrf.mxu0
        %v7242 = vadd.f32 %v6637, %v7241
        %v7243 = vpop.f32.mrf.mxu0
        %7244 = vdwg.mxu0
        %7245 = vmatprep.subr.bf16.mxu0 0
        %7246 = vmatpush1.bf16.msra.mxu0 0
        %7247 = vmatprep.subr.bf16.mxu0 0
        %7248 = vmatpush1.bf16.msra.mxu0 0
        %7249 = vmatprep.subr.bf16.mxu0 0
        %7250 = vmatpush1.bf16.msra.mxu0 0
        %7251 = vmatprep.subr.bf16.mxu0 0
        %7252 = vmatpush1.bf16.msra.mxu0 0
        %7253 = vmatprep.subr.bf16.mxu0 0
        %7254 = vmatpush1.bf16.msra.mxu0 0
        %7255 = vmatprep.subr.bf16.mxu0 0
        %7256 = vmatpush1.bf16.msra.mxu0 0
        %7257 = vmatprep.subr.bf16.mxu0 0
        %7258 = vmatpush1.bf16.msra.mxu0 %v6743
        %7259 = vmatprep.subr.bf16.mxu0 0
        %7260 = vmatpush1.bf16.msra.mxu0 %v6742
        %7261 = vmatprep.subr.bf16.mxu0 0
        %7262 = vmatpush2.bf16.msra.mxu0 0
        %7263 = vmatprep.subr.bf16.mxu0 0
        %7264 = vmatpush2.bf16.msra.mxu0 0
        %7265 = vmatprep.subr.bf16.mxu0 0
        %7266 = vmatpush2.bf16.msra.mxu0 0
        %7267 = vmatprep.subr.bf16.mxu0 0
        %7268 = vmatpush2.bf16.msra.mxu0 0
        %7269 = vmatprep.subr.bf16.mxu0 0
        %7270 = vmatpush2.bf16.msra.mxu0 0
        %7271 = vmatprep.subr.bf16.mxu0 0
        %7272 = vmatpush2.bf16.msra.mxu0 0
        %7273 = vmatprep.subr.bf16.mxu0 0
        %7274 = vmatpush2.bf16.msra.mxu0 0
        %7275 = vmatprep.subr.bf16.mxu0 0
        %7276 = vmatpush2.bf16.msra.mxu0 0
        %7277 = vmatprep.mubr.bf16.mxu0 0
        %7278 = vmatmul.mubr.bf16.gmra.mxu0 %v7202
        %v7279 = vpop.f32.mrf.mxu0
        %v7280 = vadd.f32 %v7239, %v7279
        %v7281 = vpop.f32.mrf.mxu0
        %v7282 = vpop.f32.mrf.mxu0
        %v7283 = vadd.f32 %v7242, %v7282
        %v7284 = vpop.f32.mrf.mxu0
        %7285 = vdwg.mxu0
        %v7286 = vmax.f32 %v7280, 0.0
        %v7287 = vmax.f32 %v7283, 0.0
        %s7288 = scalar_lea.vmem [#allocation4], 120
        %v7289 = vld [vmem:[%s7288] sm:$0xff]
        %v7290 = vld [vmem:[%s7288 + $0x8] sm:$0xf]
        %v7291 = vld [vmem:[%s7288 + $0xc] sm:$0x33]
        %v7292 = vld [vmem:[%s7288 + $0x14] sm:$0x3]
        %v7297 = vunpack.c.l.b16 %v7289
        %v7298 = vunpack.c.h.b16 %v7289
        %v7299 = vunpack.c.l.b16 %v7290
        %v7300 = vunpack.c.l.b16 %v7291
        %v7301 = vunpack.c.h.b16 %v7291
        %v7302 = vunpack.c.l.b16 %v7292
        %v7303 = vpack.c.b16 %v7300, %v7297
        %v7304 = vpack.c.b16 %v7301, %v7298
        %v7305 = vpack.c.b16 %v7302, %v7299
        %v7309 = vsel %vm656, %v7305, 0
        %7311 = vmatprep.subr.bf16.mxu0 0
        %7312 = vmatpush1.bf16.msra.mxu0 %v6733
        %7313 = vmatprep.subr.bf16.mxu0 0
        %7314 = vmatpush1.bf16.msra.mxu0 %v6732
        %7315 = vmatprep.subr.bf16.mxu0 0
        %7316 = vmatpush1.bf16.msra.mxu0 %v6731
        %7317 = vmatprep.subr.bf16.mxu0 0
        %7318 = vmatpush1.bf16.msra.mxu0 %v6730
        %7319 = vmatprep.subr.bf16.mxu0 0
        %7320 = vmatpush1.bf16.msra.mxu0 %v6729
        %7321 = vmatprep.subr.bf16.mxu0 0
        %7322 = vmatpush1.bf16.msra.mxu0 %v6728
        %7323 = vmatprep.subr.bf16.mxu0 0
        %7324 = vmatpush1.bf16.msra.mxu0 %v6727
        %7325 = vmatprep.subr.bf16.mxu0 0
        %7326 = vmatpush1.bf16.msra.mxu0 %v6726
        %7327 = vmatprep.subr.bf16.mxu0 0
        %7328 = vmatpush2.bf16.msra.mxu0 %v6741
        %7329 = vmatprep.subr.bf16.mxu0 0
        %7330 = vmatpush2.bf16.msra.mxu0 %v6740
        %7331 = vmatprep.subr.bf16.mxu0 0
        %7332 = vmatpush2.bf16.msra.mxu0 %v6739
        %7333 = vmatprep.subr.bf16.mxu0 0
        %7334 = vmatpush2.bf16.msra.mxu0 %v6738
        %7335 = vmatprep.subr.bf16.mxu0 0
        %7336 = vmatpush2.bf16.msra.mxu0 %v6737
        %7337 = vmatprep.subr.bf16.mxu0 0
        %7338 = vmatpush2.bf16.msra.mxu0 %v6736
        %7339 = vmatprep.subr.bf16.mxu0 0
        %7340 = vmatpush2.bf16.msra.mxu0 %v6735
        %7341 = vmatprep.subr.bf16.mxu0 0
        %7342 = vmatpush2.bf16.msra.mxu0 %v6734
        %7343 = vmatprep.mubr.bf16.mxu0 %v7304
        %7344 = vmatmul.mubr.bf16.gmra.mxu0 %v7303
        %v7345 = vpop.f32.mrf.mxu0
        %v7346 = vadd.f32 %v6637, %v7345
        %v7347 = vpop.f32.mrf.mxu0
        %v7348 = vpop.f32.mrf.mxu0
        %v7349 = vadd.f32 %v6637, %v7348
        %v7350 = vpop.f32.mrf.mxu0
        %7351 = vdwg.mxu0
        %7352 = vmatprep.subr.bf16.mxu0 0
        %7353 = vmatpush1.bf16.msra.mxu0 0
        %7354 = vmatprep.subr.bf16.mxu0 0
        %7355 = vmatpush1.bf16.msra.mxu0 0
        %7356 = vmatprep.subr.bf16.mxu0 0
        %7357 = vmatpush1.bf16.msra.mxu0 0
        %7358 = vmatprep.subr.bf16.mxu0 0
        %7359 = vmatpush1.bf16.msra.mxu0 0
        %7360 = vmatprep.subr.bf16.mxu0 0
        %7361 = vmatpush1.bf16.msra.mxu0 0
        %7362 = vmatprep.subr.bf16.mxu0 0
        %7363 = vmatpush1.bf16.msra.mxu0 0
        %7364 = vmatprep.subr.bf16.mxu0 0
        %7365 = vmatpush1.bf16.msra.mxu0 %v6743
        %7366 = vmatprep.subr.bf16.mxu0 0
        %7367 = vmatpush1.bf16.msra.mxu0 %v6742
        %7368 = vmatprep.subr.bf16.mxu0 0
        %7369 = vmatpush2.bf16.msra.mxu0 0
        %7370 = vmatprep.subr.bf16.mxu0 0
        %7371 = vmatpush2.bf16.msra.mxu0 0
        %7372 = vmatprep.subr.bf16.mxu0 0
        %7373 = vmatpush2.bf16.msra.mxu0 0
        %7374 = vmatprep.subr.bf16.mxu0 0
        %7375 = vmatpush2.bf16.msra.mxu0 0
        %7376 = vmatprep.subr.bf16.mxu0 0
        %7377 = vmatpush2.bf16.msra.mxu0 0
        %7378 = vmatprep.subr.bf16.mxu0 0
        %7379 = vmatpush2.bf16.msra.mxu0 0
        %7380 = vmatprep.subr.bf16.mxu0 0
        %7381 = vmatpush2.bf16.msra.mxu0 0
        %7382 = vmatprep.subr.bf16.mxu0 0
        %7383 = vmatpush2.bf16.msra.mxu0 0
        %7384 = vmatprep.mubr.bf16.mxu0 0
        %7385 = vmatmul.mubr.bf16.gmra.mxu0 %v7309
        %v7386 = vpop.f32.mrf.mxu0
        %v7387 = vadd.f32 %v7346, %v7386
        %v7388 = vpop.f32.mrf.mxu0
        %v7389 = vpop.f32.mrf.mxu0
        %v7390 = vadd.f32 %v7349, %v7389
        %v7391 = vpop.f32.mrf.mxu0
        %7392 = vdwg.mxu0
        %v7393 = vmax.f32 %v7387, 0.0
        %v7394 = vmax.f32 %v7390, 0.0
        %v7395 = vmax.f32 %v7286, %v7393
        %v7396 = vmax.f32 %v7287, %v7394
        %s7397 = scalar_lea.vmem [#allocation5], 32
        %7398 = vst.msk [vmem:[%s7397] sm:$0xff] %vm6958, %v7395
        %7399 = vst.msk [vmem:[%s7397 + $0x8] sm:$0x7] %vm6960, %v7396
        %s7400 = scalar_lea.vmem [#allocation4], 144
        %v7401 = vld [vmem:[%s7400] sm:$0xff]
        %v7402 = vld [vmem:[%s7400 + $0x8] sm:$0xf]
        %v7403 = vld [vmem:[%s7400 + $0xc] sm:$0x33]
        %v7404 = vld [vmem:[%s7400 + $0x14] sm:$0x3]
        %v7409 = vunpack.c.l.b16 %v7401
        %v7410 = vunpack.c.h.b16 %v7401
        %v7411 = vunpack.c.l.b16 %v7402
        %v7412 = vunpack.c.l.b16 %v7403
        %v7413 = vunpack.c.h.b16 %v7403
        %v7414 = vunpack.c.l.b16 %v7404
        %v7415 = vpack.c.b16 %v7412, %v7409
        %v7416 = vpack.c.b16 %v7413, %v7410
        %v7417 = vpack.c.b16 %v7414, %v7411
        %v7421 = vsel %vm656, %v7417, 0
        %7423 = vmatprep.subr.bf16.mxu0 0
        %7424 = vmatpush1.bf16.msra.mxu0 %v6733
        %7425 = vmatprep.subr.bf16.mxu0 0
        %7426 = vmatpush1.bf16.msra.mxu0 %v6732
        %7427 = vmatprep.subr.bf16.mxu0 0
        %7428 = vmatpush1.bf16.msra.mxu0 %v6731
        %7429 = vmatprep.subr.bf16.mxu0 0
        %7430 = vmatpush1.bf16.msra.mxu0 %v6730
        %7431 = vmatprep.subr.bf16.mxu0 0
        %7432 = vmatpush1.bf16.msra.mxu0 %v6729
        %7433 = vmatprep.subr.bf16.mxu0 0
        %7434 = vmatpush1.bf16.msra.mxu0 %v6728
        %7435 = vmatprep.subr.bf16.mxu0 0
        %7436 = vmatpush1.bf16.msra.mxu0 %v6727
        %7437 = vmatprep.subr.bf16.mxu0 0
        %7438 = vmatpush1.bf16.msra.mxu0 %v6726
        %7439 = vmatprep.subr.bf16.mxu0 0
        %7440 = vmatpush2.bf16.msra.mxu0 %v6741
        %7441 = vmatprep.subr.bf16.mxu0 0
        %7442 = vmatpush2.bf16.msra.mxu0 %v6740
        %7443 = vmatprep.subr.bf16.mxu0 0
        %7444 = vmatpush2.bf16.msra.mxu0 %v6739
        %7445 = vmatprep.subr.bf16.mxu0 0
        %7446 = vmatpush2.bf16.msra.mxu0 %v6738
        %7447 = vmatprep.subr.bf16.mxu0 0
        %7448 = vmatpush2.bf16.msra.mxu0 %v6737
        %7449 = vmatprep.subr.bf16.mxu0 0
        %7450 = vmatpush2.bf16.msra.mxu0 %v6736
        %7451 = vmatprep.subr.bf16.mxu0 0
        %7452 = vmatpush2.bf16.msra.mxu0 %v6735
        %7453 = vmatprep.subr.bf16.mxu0 0
        %7454 = vmatpush2.bf16.msra.mxu0 %v6734
        %7455 = vmatprep.mubr.bf16.mxu0 %v7416
        %7456 = vmatmul.mubr.bf16.gmra.mxu0 %v7415
        %v7457 = vpop.f32.mrf.mxu0
        %v7458 = vadd.f32 %v6637, %v7457
        %v7459 = vpop.f32.mrf.mxu0
        %v7460 = vpop.f32.mrf.mxu0
        %v7461 = vadd.f32 %v6637, %v7460
        %v7462 = vpop.f32.mrf.mxu0
        %7463 = vdwg.mxu0
        %7464 = vmatprep.subr.bf16.mxu0 0
        %7465 = vmatpush1.bf16.msra.mxu0 0
        %7466 = vmatprep.subr.bf16.mxu0 0
        %7467 = vmatpush1.bf16.msra.mxu0 0
        %7468 = vmatprep.subr.bf16.mxu0 0
        %7469 = vmatpush1.bf16.msra.mxu0 0
        %7470 = vmatprep.subr.bf16.mxu0 0
        %7471 = vmatpush1.bf16.msra.mxu0 0
        %7472 = vmatprep.subr.bf16.mxu0 0
        %7473 = vmatpush1.bf16.msra.mxu0 0
        %7474 = vmatprep.subr.bf16.mxu0 0
        %7475 = vmatpush1.bf16.msra.mxu0 0
        %7476 = vmatprep.subr.bf16.mxu0 0
        %7477 = vmatpush1.bf16.msra.mxu0 %v6743
        %7478 = vmatprep.subr.bf16.mxu0 0
        %7479 = vmatpush1.bf16.msra.mxu0 %v6742
        %7480 = vmatprep.subr.bf16.mxu0 0
        %7481 = vmatpush2.bf16.msra.mxu0 0
        %7482 = vmatprep.subr.bf16.mxu0 0
        %7483 = vmatpush2.bf16.msra.mxu0 0
        %7484 = vmatprep.subr.bf16.mxu0 0
        %7485 = vmatpush2.bf16.msra.mxu0 0
        %7486 = vmatprep.subr.bf16.mxu0 0
        %7487 = vmatpush2.bf16.msra.mxu0 0
        %7488 = vmatprep.subr.bf16.mxu0 0
        %7489 = vmatpush2.bf16.msra.mxu0 0
        %7490 = vmatprep.subr.bf16.mxu0 0
        %7491 = vmatpush2.bf16.msra.mxu0 0
        %7492 = vmatprep.subr.bf16.mxu0 0
        %7493 = vmatpush2.bf16.msra.mxu0 0
        %7494 = vmatprep.subr.bf16.mxu0 0
        %7495 = vmatpush2.bf16.msra.mxu0 0
        %7496 = vmatprep.mubr.bf16.mxu0 0
        %7497 = vmatmul.mubr.bf16.gmra.mxu0 %v7421
        %v7498 = vpop.f32.mrf.mxu0
        %v7499 = vadd.f32 %v7458, %v7498
        %v7500 = vpop.f32.mrf.mxu0
        %v7501 = vpop.f32.mrf.mxu0
        %v7502 = vadd.f32 %v7461, %v7501
        %v7503 = vpop.f32.mrf.mxu0
        %7504 = vdwg.mxu0
        %v7505 = vmax.f32 %v7499, 0.0
        %v7506 = vmax.f32 %v7502, 0.0
        %s7507 = scalar_lea.vmem [#allocation4], 168
        %v7508 = vld [vmem:[%s7507] sm:$0xff]
        %v7509 = vld [vmem:[%s7507 + $0x8] sm:$0xf]
        %v7510 = vld [vmem:[%s7507 + $0xc] sm:$0x33]
        %v7511 = vld [vmem:[%s7507 + $0x14] sm:$0x3]
        %v7516 = vunpack.c.l.b16 %v7508
        %v7517 = vunpack.c.h.b16 %v7508
        %v7518 = vunpack.c.l.b16 %v7509
        %v7519 = vunpack.c.l.b16 %v7510
        %v7520 = vunpack.c.h.b16 %v7510
        %v7521 = vunpack.c.l.b16 %v7511
        %v7522 = vpack.c.b16 %v7519, %v7516
        %v7523 = vpack.c.b16 %v7520, %v7517
        %v7524 = vpack.c.b16 %v7521, %v7518
        %v7528 = vsel %vm656, %v7524, 0
        %7530 = vmatprep.subr.bf16.mxu0 0
        %7531 = vmatpush1.bf16.msra.mxu0 %v6733
        %7532 = vmatprep.subr.bf16.mxu0 0
        %7533 = vmatpush1.bf16.msra.mxu0 %v6732
        %7534 = vmatprep.subr.bf16.mxu0 0
        %7535 = vmatpush1.bf16.msra.mxu0 %v6731
        %7536 = vmatprep.subr.bf16.mxu0 0
        %7537 = vmatpush1.bf16.msra.mxu0 %v6730
        %7538 = vmatprep.subr.bf16.mxu0 0
        %7539 = vmatpush1.bf16.msra.mxu0 %v6729
        %7540 = vmatprep.subr.bf16.mxu0 0
        %7541 = vmatpush1.bf16.msra.mxu0 %v6728
        %7542 = vmatprep.subr.bf16.mxu0 0
        %7543 = vmatpush1.bf16.msra.mxu0 %v6727
        %7544 = vmatprep.subr.bf16.mxu0 0
        %7545 = vmatpush1.bf16.msra.mxu0 %v6726
        %7546 = vmatprep.subr.bf16.mxu0 0
        %7547 = vmatpush2.bf16.msra.mxu0 %v6741
        %7548 = vmatprep.subr.bf16.mxu0 0
        %7549 = vmatpush2.bf16.msra.mxu0 %v6740
        %7550 = vmatprep.subr.bf16.mxu0 0
        %7551 = vmatpush2.bf16.msra.mxu0 %v6739
        %7552 = vmatprep.subr.bf16.mxu0 0
        %7553 = vmatpush2.bf16.msra.mxu0 %v6738
        %7554 = vmatprep.subr.bf16.mxu0 0
        %7555 = vmatpush2.bf16.msra.mxu0 %v6737
        %7556 = vmatprep.subr.bf16.mxu0 0
        %7557 = vmatpush2.bf16.msra.mxu0 %v6736
        %7558 = vmatprep.subr.bf16.mxu0 0
        %7559 = vmatpush2.bf16.msra.mxu0 %v6735
        %7560 = vmatprep.subr.bf16.mxu0 0
        %7561 = vmatpush2.bf16.msra.mxu0 %v6734
        %7562 = vmatprep.mubr.bf16.mxu0 %v7523
        %7563 = vmatmul.mubr.bf16.gmra.mxu0 %v7522
        %v7564 = vpop.f32.mrf.mxu0
        %v7565 = vadd.f32 %v6637, %v7564
        %v7566 = vpop.f32.mrf.mxu0
        %v7567 = vpop.f32.mrf.mxu0
        %v7568 = vadd.f32 %v6637, %v7567
        %v7569 = vpop.f32.mrf.mxu0
        %7570 = vdwg.mxu0
        %7571 = vmatprep.subr.bf16.mxu0 0
        %7572 = vmatpush1.bf16.msra.mxu0 0
        %7573 = vmatprep.subr.bf16.mxu0 0
        %7574 = vmatpush1.bf16.msra.mxu0 0
        %7575 = vmatprep.subr.bf16.mxu0 0
        %7576 = vmatpush1.bf16.msra.mxu0 0
        %7577 = vmatprep.subr.bf16.mxu0 0
        %7578 = vmatpush1.bf16.msra.mxu0 0
        %7579 = vmatprep.subr.bf16.mxu0 0
        %7580 = vmatpush1.bf16.msra.mxu0 0
        %7581 = vmatprep.subr.bf16.mxu0 0
        %7582 = vmatpush1.bf16.msra.mxu0 0
        %7583 = vmatprep.subr.bf16.mxu0 0
        %7584 = vmatpush1.bf16.msra.mxu0 %v6743
        %7585 = vmatprep.subr.bf16.mxu0 0
        %7586 = vmatpush1.bf16.msra.mxu0 %v6742
        %7587 = vmatprep.subr.bf16.mxu0 0
        %7588 = vmatpush2.bf16.msra.mxu0 0
        %7589 = vmatprep.subr.bf16.mxu0 0
        %7590 = vmatpush2.bf16.msra.mxu0 0
        %7591 = vmatprep.subr.bf16.mxu0 0
        %7592 = vmatpush2.bf16.msra.mxu0 0
        %7593 = vmatprep.subr.bf16.mxu0 0
        %7594 = vmatpush2.bf16.msra.mxu0 0
        %7595 = vmatprep.subr.bf16.mxu0 0
        %7596 = vmatpush2.bf16.msra.mxu0 0
        %7597 = vmatprep.subr.bf16.mxu0 0
        %7598 = vmatpush2.bf16.msra.mxu0 0
        %7599 = vmatprep.subr.bf16.mxu0 0
        %7600 = vmatpush2.bf16.msra.mxu0 0
        %7601 = vmatprep.subr.bf16.mxu0 0
        %7602 = vmatpush2.bf16.msra.mxu0 0
        %7603 = vmatprep.mubr.bf16.mxu0 0
        %7604 = vmatmul.mubr.bf16.gmra.mxu0 %v7528
        %v7605 = vpop.f32.mrf.mxu0
        %v7606 = vadd.f32 %v7565, %v7605
        %v7607 = vpop.f32.mrf.mxu0
        %v7608 = vpop.f32.mrf.mxu0
        %v7609 = vadd.f32 %v7568, %v7608
        %v7610 = vpop.f32.mrf.mxu0
        %7611 = vdwg.mxu0
        %v7612 = vmax.f32 %v7606, 0.0
        %v7613 = vmax.f32 %v7609, 0.0
        %v7614 = vmax.f32 %v7505, %v7612
        %v7615 = vmax.f32 %v7506, %v7613
        %s7616 = scalar_lea.vmem [#allocation5], 48
        %7617 = vst.msk [vmem:[%s7616] sm:$0xff] %vm6958, %v7614
        %7618 = vst.msk [vmem:[%s7616 + $0x8] sm:$0x7] %vm6960, %v7615
        %s7619 = scalar_lea.vmem [#allocation4], 192
        %v7620 = vld [vmem:[%s7619] sm:$0xff]
        %v7621 = vld [vmem:[%s7619 + $0x8] sm:$0xf]
        %v7622 = vld [vmem:[%s7619 + $0xc] sm:$0x33]
        %v7623 = vld [vmem:[%s7619 + $0x14] sm:$0x3]
        %v7628 = vunpack.c.l.b16 %v7620
        %v7629 = vunpack.c.h.b16 %v7620
        %v7630 = vunpack.c.l.b16 %v7621
        %v7631 = vunpack.c.l.b16 %v7622
        %v7632 = vunpack.c.h.b16 %v7622
        %v7633 = vunpack.c.l.b16 %v7623
        %v7634 = vpack.c.b16 %v7631, %v7628
        %v7635 = vpack.c.b16 %v7632, %v7629
        %v7636 = vpack.c.b16 %v7633, %v7630
        %v7640 = vsel %vm656, %v7636, 0
        %7642 = vmatprep.subr.bf16.mxu0 0
        %7643 = vmatpush1.bf16.msra.mxu0 %v6733
        %7644 = vmatprep.subr.bf16.mxu0 0
        %7645 = vmatpush1.bf16.msra.mxu0 %v6732
        %7646 = vmatprep.subr.bf16.mxu0 0
        %7647 = vmatpush1.bf16.msra.mxu0 %v6731
        %7648 = vmatprep.subr.bf16.mxu0 0
        %7649 = vmatpush1.bf16.msra.mxu0 %v6730
        %7650 = vmatprep.subr.bf16.mxu0 0
        %7651 = vmatpush1.bf16.msra.mxu0 %v6729
        %7652 = vmatprep.subr.bf16.mxu0 0
        %7653 = vmatpush1.bf16.msra.mxu0 %v6728
        %7654 = vmatprep.subr.bf16.mxu0 0
        %7655 = vmatpush1.bf16.msra.mxu0 %v6727
        %7656 = vmatprep.subr.bf16.mxu0 0
        %7657 = vmatpush1.bf16.msra.mxu0 %v6726
        %7658 = vmatprep.subr.bf16.mxu0 0
        %7659 = vmatpush2.bf16.msra.mxu0 %v6741
        %7660 = vmatprep.subr.bf16.mxu0 0
        %7661 = vmatpush2.bf16.msra.mxu0 %v6740
        %7662 = vmatprep.subr.bf16.mxu0 0
        %7663 = vmatpush2.bf16.msra.mxu0 %v6739
        %7664 = vmatprep.subr.bf16.mxu0 0
        %7665 = vmatpush2.bf16.msra.mxu0 %v6738
        %7666 = vmatprep.subr.bf16.mxu0 0
        %7667 = vmatpush2.bf16.msra.mxu0 %v6737
        %7668 = vmatprep.subr.bf16.mxu0 0
        %7669 = vmatpush2.bf16.msra.mxu0 %v6736
        %7670 = vmatprep.subr.bf16.mxu0 0
        %7671 = vmatpush2.bf16.msra.mxu0 %v6735
        %7672 = vmatprep.subr.bf16.mxu0 0
        %7673 = vmatpush2.bf16.msra.mxu0 %v6734
        %7674 = vmatprep.mubr.bf16.mxu0 %v7635
        %7675 = vmatmul.mubr.bf16.gmra.mxu0 %v7634
        %v7676 = vpop.f32.mrf.mxu0
        %v7677 = vadd.f32 %v6637, %v7676
        %v7678 = vpop.f32.mrf.mxu0
        %v7679 = vpop.f32.mrf.mxu0
        %v7680 = vadd.f32 %v6637, %v7679
        %v7681 = vpop.f32.mrf.mxu0
        %7682 = vdwg.mxu0
        %7683 = vmatprep.subr.bf16.mxu0 0
        %7684 = vmatpush1.bf16.msra.mxu0 0
        %7685 = vmatprep.subr.bf16.mxu0 0
        %7686 = vmatpush1.bf16.msra.mxu0 0
        %7687 = vmatprep.subr.bf16.mxu0 0
        %7688 = vmatpush1.bf16.msra.mxu0 0
        %7689 = vmatprep.subr.bf16.mxu0 0
        %7690 = vmatpush1.bf16.msra.mxu0 0
        %7691 = vmatprep.subr.bf16.mxu0 0
        %7692 = vmatpush1.bf16.msra.mxu0 0
        %7693 = vmatprep.subr.bf16.mxu0 0
        %7694 = vmatpush1.bf16.msra.mxu0 0
        %7695 = vmatprep.subr.bf16.mxu0 0
        %7696 = vmatpush1.bf16.msra.mxu0 %v6743
        %7697 = vmatprep.subr.bf16.mxu0 0
        %7698 = vmatpush1.bf16.msra.mxu0 %v6742
        %7699 = vmatprep.subr.bf16.mxu0 0
        %7700 = vmatpush2.bf16.msra.mxu0 0
        %7701 = vmatprep.subr.bf16.mxu0 0
        %7702 = vmatpush2.bf16.msra.mxu0 0
        %7703 = vmatprep.subr.bf16.mxu0 0
        %7704 = vmatpush2.bf16.msra.mxu0 0
        %7705 = vmatprep.subr.bf16.mxu0 0
        %7706 = vmatpush2.bf16.msra.mxu0 0
        %7707 = vmatprep.subr.bf16.mxu0 0
        %7708 = vmatpush2.bf16.msra.mxu0 0
        %7709 = vmatprep.subr.bf16.mxu0 0
        %7710 = vmatpush2.bf16.msra.mxu0 0
        %7711 = vmatprep.subr.bf16.mxu0 0
        %7712 = vmatpush2.bf16.msra.mxu0 0
        %7713 = vmatprep.subr.bf16.mxu0 0
        %7714 = vmatpush2.bf16.msra.mxu0 0
        %7715 = vmatprep.mubr.bf16.mxu0 0
        %7716 = vmatmul.mubr.bf16.gmra.mxu0 %v7640
        %v7717 = vpop.f32.mrf.mxu0
        %v7718 = vadd.f32 %v7677, %v7717
        %v7719 = vpop.f32.mrf.mxu0
        %v7720 = vpop.f32.mrf.mxu0
        %v7721 = vadd.f32 %v7680, %v7720
        %v7722 = vpop.f32.mrf.mxu0
        %7723 = vdwg.mxu0
        %v7724 = vmax.f32 %v7718, 0.0
        %v7725 = vmax.f32 %v7721, 0.0
        %s7726 = scalar_lea.vmem [#allocation4], 216
        %v7727 = vld [vmem:[%s7726] sm:$0xff]
        %v7728 = vld [vmem:[%s7726 + $0x8] sm:$0xf]
        %v7729 = vld [vmem:[%s7726 + $0xc] sm:$0x33]
        %v7730 = vld [vmem:[%s7726 + $0x14] sm:$0x3]
        %v7735 = vunpack.c.l.b16 %v7727
        %v7736 = vunpack.c.h.b16 %v7727
        %v7737 = vunpack.c.l.b16 %v7728
        %v7738 = vunpack.c.l.b16 %v7729
        %v7739 = vunpack.c.h.b16 %v7729
        %v7740 = vunpack.c.l.b16 %v7730
        %v7741 = vpack.c.b16 %v7738, %v7735
        %v7742 = vpack.c.b16 %v7739, %v7736
        %v7743 = vpack.c.b16 %v7740, %v7737
        %v7747 = vsel %vm656, %v7743, 0
        %7749 = vmatprep.subr.bf16.mxu0 0
        %7750 = vmatpush1.bf16.msra.mxu0 %v6733
        %7751 = vmatprep.subr.bf16.mxu0 0
        %7752 = vmatpush1.bf16.msra.mxu0 %v6732
        %7753 = vmatprep.subr.bf16.mxu0 0
        %7754 = vmatpush1.bf16.msra.mxu0 %v6731
        %7755 = vmatprep.subr.bf16.mxu0 0
        %7756 = vmatpush1.bf16.msra.mxu0 %v6730
        %7757 = vmatprep.subr.bf16.mxu0 0
        %7758 = vmatpush1.bf16.msra.mxu0 %v6729
        %7759 = vmatprep.subr.bf16.mxu0 0
        %7760 = vmatpush1.bf16.msra.mxu0 %v6728
        %7761 = vmatprep.subr.bf16.mxu0 0
        %7762 = vmatpush1.bf16.msra.mxu0 %v6727
        %7763 = vmatprep.subr.bf16.mxu0 0
        %7764 = vmatpush1.bf16.msra.mxu0 %v6726
        %7765 = vmatprep.subr.bf16.mxu0 0
        %7766 = vmatpush2.bf16.msra.mxu0 %v6741
        %7767 = vmatprep.subr.bf16.mxu0 0
        %7768 = vmatpush2.bf16.msra.mxu0 %v6740
        %7769 = vmatprep.subr.bf16.mxu0 0
        %7770 = vmatpush2.bf16.msra.mxu0 %v6739
        %7771 = vmatprep.subr.bf16.mxu0 0
        %7772 = vmatpush2.bf16.msra.mxu0 %v6738
        %7773 = vmatprep.subr.bf16.mxu0 0
        %7774 = vmatpush2.bf16.msra.mxu0 %v6737
        %7775 = vmatprep.subr.bf16.mxu0 0
        %7776 = vmatpush2.bf16.msra.mxu0 %v6736
        %7777 = vmatprep.subr.bf16.mxu0 0
        %7778 = vmatpush2.bf16.msra.mxu0 %v6735
        %7779 = vmatprep.subr.bf16.mxu0 0
        %7780 = vmatpush2.bf16.msra.mxu0 %v6734
        %7781 = vmatprep.mubr.bf16.mxu0 %v7742
        %7782 = vmatmul.mubr.bf16.gmra.mxu0 %v7741
        %v7783 = vpop.f32.mrf.mxu0
        %v7784 = vadd.f32 %v6637, %v7783
        %v7785 = vpop.f32.mrf.mxu0
        %v7786 = vpop.f32.mrf.mxu0
        %v7787 = vadd.f32 %v6637, %v7786
        %v7788 = vpop.f32.mrf.mxu0
        %7789 = vdwg.mxu0
        %7790 = vmatprep.subr.bf16.mxu0 0
        %7791 = vmatpush1.bf16.msra.mxu0 0
        %7792 = vmatprep.subr.bf16.mxu0 0
        %7793 = vmatpush1.bf16.msra.mxu0 0
        %7794 = vmatprep.subr.bf16.mxu0 0
        %7795 = vmatpush1.bf16.msra.mxu0 0
        %7796 = vmatprep.subr.bf16.mxu0 0
        %7797 = vmatpush1.bf16.msra.mxu0 0
        %7798 = vmatprep.subr.bf16.mxu0 0
        %7799 = vmatpush1.bf16.msra.mxu0 0
        %7800 = vmatprep.subr.bf16.mxu0 0
        %7801 = vmatpush1.bf16.msra.mxu0 0
        %7802 = vmatprep.subr.bf16.mxu0 0
        %7803 = vmatpush1.bf16.msra.mxu0 %v6743
        %7804 = vmatprep.subr.bf16.mxu0 0
        %7805 = vmatpush1.bf16.msra.mxu0 %v6742
        %7806 = vmatprep.subr.bf16.mxu0 0
        %7807 = vmatpush2.bf16.msra.mxu0 0
        %7808 = vmatprep.subr.bf16.mxu0 0
        %7809 = vmatpush2.bf16.msra.mxu0 0
        %7810 = vmatprep.subr.bf16.mxu0 0
        %7811 = vmatpush2.bf16.msra.mxu0 0
        %7812 = vmatprep.subr.bf16.mxu0 0
        %7813 = vmatpush2.bf16.msra.mxu0 0
        %7814 = vmatprep.subr.bf16.mxu0 0
        %7815 = vmatpush2.bf16.msra.mxu0 0
        %7816 = vmatprep.subr.bf16.mxu0 0
        %7817 = vmatpush2.bf16.msra.mxu0 0
        %7818 = vmatprep.subr.bf16.mxu0 0
        %7819 = vmatpush2.bf16.msra.mxu0 0
        %7820 = vmatprep.subr.bf16.mxu0 0
        %7821 = vmatpush2.bf16.msra.mxu0 0
        %7822 = vmatprep.mubr.bf16.mxu0 0
        %7823 = vmatmul.mubr.bf16.gmra.mxu0 %v7747
        %v7824 = vpop.f32.mrf.mxu0
        %v7825 = vadd.f32 %v7784, %v7824
        %v7826 = vpop.f32.mrf.mxu0
        %v7827 = vpop.f32.mrf.mxu0
        %v7828 = vadd.f32 %v7787, %v7827
        %v7829 = vpop.f32.mrf.mxu0
        %7830 = vdwg.mxu0
        %v7831 = vmax.f32 %v7825, 0.0
        %v7832 = vmax.f32 %v7828, 0.0
        %v7833 = vmax.f32 %v7724, %v7831
        %v7834 = vmax.f32 %v7725, %v7832
        %s7835 = scalar_lea.vmem [#allocation5], 64
        %7836 = vst.msk [vmem:[%s7835] sm:$0xff] %vm6958, %v7833
        %7837 = vst.msk [vmem:[%s7835 + $0x8] sm:$0x7] %vm6960, %v7834
        %v7838 = vld [vmem:[#allocation5] sm:$0x1]
        %v7839 = vld [vmem:[#allocation5 + $0x10] sm:$0x1]
        %v7840 = vld [vmem:[#allocation5 + $0x20] sm:$0x1]
        %v7841 = vld [vmem:[#allocation5 + $0x30] sm:$0x1]
        %v7842 = vld [vmem:[#allocation5 + $0x40] sm:$0x1]
        %v7843 = vld [vmem:[#allocation5 + $0x1] sm:$0x1]
        %v7844 = vld [vmem:[#allocation5 + $0x11] sm:$0x1]
        %v7845 = vld [vmem:[#allocation5 + $0x21] sm:$0x1]
        %v7846 = vld [vmem:[#allocation5 + $0x31] sm:$0x1]
        %v7847 = vld [vmem:[#allocation5 + $0x41] sm:$0x1]
        %v7848 = vmax.f32 %v7838, %v7843
        %v7849 = vmax.f32 %v7839, %v7844
        %v7850 = vmax.f32 %v7840, %v7845
        %v7851 = vmax.f32 %v7841, %v7846
        %v7852 = vmax.f32 %v7842, %v7847
        %v7853 = vpack.c.bf16 %v7848, %v7848
        %v7854 = vpack.c.bf16 %v7849, %v7849
        %v7855 = vpack.c.bf16 %v7850, %v7850
        %v7856 = vpack.c.bf16 %v7851, %v7851
        %v7857 = vpack.c.bf16 %v7852, %v7852
        %vm7858 = vcmask 516096
        %vm7859 = vmand %vm7858, %vm2564
        %v7860 = vld [vmem:[#allocation6] sm:$0x1]
        %v7861 = vsel %vm7859, %v7853, %v7860
        %7862 = vst [vmem:[#allocation6] sm:$0x1] %v7861
        %v7863 = vld [vmem:[#allocation6 + $0x4] sm:$0x1]
        %v7864 = vsel %vm7859, %v7854, %v7863
        %7865 = vst [vmem:[#allocation6 + $0x4] sm:$0x1] %v7864
        %v7866 = vld [vmem:[#allocation6 + $0x8] sm:$0x1]
        %v7867 = vsel %vm7859, %v7855, %v7866
        %7868 = vst [vmem:[#allocation6 + $0x8] sm:$0x1] %v7867
        %v7869 = vld [vmem:[#allocation6 + $0xc] sm:$0x1]
        %v7870 = vsel %vm7859, %v7856, %v7869
        %7871 = vst [vmem:[#allocation6 + $0xc] sm:$0x1] %v7870
        %v7872 = vld [vmem:[#allocation6 + $0x10] sm:$0x1]
        %v7873 = vsel %vm7859, %v7857, %v7872
        %7874 = vst [vmem:[#allocation6 + $0x10] sm:$0x1] %v7873
        %v7875 = vld [vmem:[#allocation5 + $0x2] sm:$0x1]
        %v7876 = vld [vmem:[#allocation5 + $0x12] sm:$0x1]
        %v7877 = vld [vmem:[#allocation5 + $0x22] sm:$0x1]
        %v7878 = vld [vmem:[#allocation5 + $0x32] sm:$0x1]
        %v7879 = vld [vmem:[#allocation5 + $0x42] sm:$0x1]
        %v7880 = vld [vmem:[#allocation5 + $0x3] sm:$0x1]
        %v7881 = vld [vmem:[#allocation5 + $0x13] sm:$0x1]
        %v7882 = vld [vmem:[#allocation5 + $0x23] sm:$0x1]
        %v7883 = vld [vmem:[#allocation5 + $0x33] sm:$0x1]
        %v7884 = vld [vmem:[#allocation5 + $0x43] sm:$0x1]
        %v7885 = vmax.f32 %v7875, %v7880
        %v7886 = vmax.f32 %v7876, %v7881
        %v7887 = vmax.f32 %v7877, %v7882
        %v7888 = vmax.f32 %v7878, %v7883
        %v7889 = vmax.f32 %v7879, %v7884
        %v7890 = vpack.c.bf16 %v7885, %v7885
        %v7891 = vpack.c.bf16 %v7886, %v7886
        %v7892 = vpack.c.bf16 %v7887, %v7887
        %v7893 = vpack.c.bf16 %v7888, %v7888
        %v7894 = vpack.c.bf16 %v7889, %v7889
        %v7900 = vunpack.c.l.b16 %v7890
        %v7901 = vunpack.c.l.b16 %v7891
        %v7902 = vunpack.c.l.b16 %v7892
        %v7903 = vunpack.c.l.b16 %v7893
        %v7904 = vunpack.c.l.b16 %v7894
        %v7905 = vpack.c.b16 %v7900, %v7900
        %v7906 = vpack.c.b16 %v7901, %v7901
        %v7907 = vpack.c.b16 %v7902, %v7902
        %v7908 = vpack.c.b16 %v7903, %v7903
        %v7909 = vpack.c.b16 %v7904, %v7904
        %v7911 = vshll.u32 %v7905, 16
        %v7914 = vshll.u32 %v7906, 16
        %v7917 = vshll.u32 %v7907, 16
        %v7920 = vshll.u32 %v7908, 16
        %v7923 = vshll.u32 %v7909, 16
        %vm7930 = vmand %vm7858, %vm2748
        %v7931 = vld [vmem:[#allocation6] sm:$0x1]
        %v7932 = vsel %vm7930, %v7911, %v7931
        %7933 = vst [vmem:[#allocation6] sm:$0x1] %v7932
        %v7934 = vld [vmem:[#allocation6 + $0x4] sm:$0x1]
        %v7935 = vsel %vm7930, %v7914, %v7934
        %7936 = vst [vmem:[#allocation6 + $0x4] sm:$0x1] %v7935
        %v7937 = vld [vmem:[#allocation6 + $0x8] sm:$0x1]
        %v7938 = vsel %vm7930, %v7917, %v7937
        %7939 = vst [vmem:[#allocation6 + $0x8] sm:$0x1] %v7938
        %v7940 = vld [vmem:[#allocation6 + $0xc] sm:$0x1]
        %v7941 = vsel %vm7930, %v7920, %v7940
        %7942 = vst [vmem:[#allocation6 + $0xc] sm:$0x1] %v7941
        %v7943 = vld [vmem:[#allocation6 + $0x10] sm:$0x1]
        %v7944 = vsel %vm7930, %v7923, %v7943
        %7945 = vst [vmem:[#allocation6 + $0x10] sm:$0x1] %v7944
        %v7946 = vld [vmem:[#allocation5 + $0x4] sm:$0x1]
        %v7947 = vld [vmem:[#allocation5 + $0x14] sm:$0x1]
        %v7948 = vld [vmem:[#allocation5 + $0x24] sm:$0x1]
        %v7949 = vld [vmem:[#allocation5 + $0x34] sm:$0x1]
        %v7950 = vld [vmem:[#allocation5 + $0x44] sm:$0x1]
        %v7951 = vld [vmem:[#allocation5 + $0x5] sm:$0x1]
        %v7952 = vld [vmem:[#allocation5 + $0x15] sm:$0x1]
        %v7953 = vld [vmem:[#allocation5 + $0x25] sm:$0x1]
        %v7954 = vld [vmem:[#allocation5 + $0x35] sm:$0x1]
        %v7955 = vld [vmem:[#allocation5 + $0x45] sm:$0x1]
        %v7956 = vmax.f32 %v7946, %v7951
        %v7957 = vmax.f32 %v7947, %v7952
        %v7958 = vmax.f32 %v7948, %v7953
        %v7959 = vmax.f32 %v7949, %v7954
        %v7960 = vmax.f32 %v7950, %v7955
        %v7961 = vpack.c.bf16 %v7956, %v7956
        %v7962 = vpack.c.bf16 %v7957, %v7957
        %v7963 = vpack.c.bf16 %v7958, %v7958
        %v7964 = vpack.c.bf16 %v7959, %v7959
        %v7965 = vpack.c.bf16 %v7960, %v7960
        %v7971 = vunpack.c.l.b16 %v7961
        %v7972 = vunpack.c.l.b16 %v7962
        %v7973 = vunpack.c.l.b16 %v7963
        %v7974 = vunpack.c.l.b16 %v7964
        %v7975 = vunpack.c.l.b16 %v7965
        %v7976 = vpack.c.b16 %v7971, %v7971
        %v7977 = vpack.c.b16 %v7972, %v7972
        %v7978 = vpack.c.b16 %v7973, %v7973
        %v7979 = vpack.c.b16 %v7974, %v7974
        %v7980 = vpack.c.b16 %v7975, %v7975
        %v7981 = vrot.slane %v7976, 7
        %v7982 = vrot.slane %v7977, 7
        %v7983 = vrot.slane %v7978, 7
        %v7984 = vrot.slane %v7979, 7
        %v7985 = vrot.slane %v7980, 7
        %vm7991 = vcmask 517121
        %vm7992 = vmand %vm7991, %vm2907
        %v7993 = vld [vmem:[#allocation6] sm:$0x2]
        %v7994 = vsel %vm7992, %v7981, %v7993
        %7995 = vst [vmem:[#allocation6] sm:$0x2] %v7994
        %v7996 = vld [vmem:[#allocation6 + $0x4] sm:$0x2]
        %v7997 = vsel %vm7992, %v7982, %v7996
        %7998 = vst [vmem:[#allocation6 + $0x4] sm:$0x2] %v7997
        %v7999 = vld [vmem:[#allocation6 + $0x8] sm:$0x2]
        %v8000 = vsel %vm7992, %v7983, %v7999
        %8001 = vst [vmem:[#allocation6 + $0x8] sm:$0x2] %v8000
        %v8002 = vld [vmem:[#allocation6 + $0xc] sm:$0x2]
        %v8003 = vsel %vm7992, %v7984, %v8002
        %8004 = vst [vmem:[#allocation6 + $0xc] sm:$0x2] %v8003
        %v8005 = vld [vmem:[#allocation6 + $0x10] sm:$0x2]
        %v8006 = vsel %vm7992, %v7985, %v8005
        %8007 = vst [vmem:[#allocation6 + $0x10] sm:$0x2] %v8006
        %v8008 = vld [vmem:[#allocation5 + $0x6] sm:$0x1]
        %v8009 = vld [vmem:[#allocation5 + $0x16] sm:$0x1]
        %v8010 = vld [vmem:[#allocation5 + $0x26] sm:$0x1]
        %v8011 = vld [vmem:[#allocation5 + $0x36] sm:$0x1]
        %v8012 = vld [vmem:[#allocation5 + $0x46] sm:$0x1]
        %v8013 = vld [vmem:[#allocation5 + $0x7] sm:$0x1]
        %v8014 = vld [vmem:[#allocation5 + $0x17] sm:$0x1]
        %v8015 = vld [vmem:[#allocation5 + $0x27] sm:$0x1]
        %v8016 = vld [vmem:[#allocation5 + $0x37] sm:$0x1]
        %v8017 = vld [vmem:[#allocation5 + $0x47] sm:$0x1]
        %v8018 = vmax.f32 %v8008, %v8013
        %v8019 = vmax.f32 %v8009, %v8014
        %v8020 = vmax.f32 %v8010, %v8015
        %v8021 = vmax.f32 %v8011, %v8016
        %v8022 = vmax.f32 %v8012, %v8017
        %v8023 = vpack.c.bf16 %v8018, %v8018
        %v8024 = vpack.c.bf16 %v8019, %v8019
        %v8025 = vpack.c.bf16 %v8020, %v8020
        %v8026 = vpack.c.bf16 %v8021, %v8021
        %v8027 = vpack.c.bf16 %v8022, %v8022
        %v8033 = vunpack.c.l.b16 %v8023
        %v8034 = vunpack.c.l.b16 %v8024
        %v8035 = vunpack.c.l.b16 %v8025
        %v8036 = vunpack.c.l.b16 %v8026
        %v8037 = vunpack.c.l.b16 %v8027
        %v8038 = vpack.c.b16 %v8033, %v8033
        %v8039 = vpack.c.b16 %v8034, %v8034
        %v8040 = vpack.c.b16 %v8035, %v8035
        %v8041 = vpack.c.b16 %v8036, %v8036
        %v8042 = vpack.c.b16 %v8037, %v8037
        %v8044 = vshll.u32 %v8038, 16
        %v8046 = vrot.slane %v8044, 7
        %v8048 = vshll.u32 %v8039, 16
        %v8050 = vrot.slane %v8048, 7
        %v8052 = vshll.u32 %v8040, 16
        %v8054 = vrot.slane %v8052, 7
        %v8056 = vshll.u32 %v8041, 16
        %v8058 = vrot.slane %v8056, 7
        %v8060 = vshll.u32 %v8042, 16
        %v8062 = vrot.slane %v8060, 7
        %vm8068 = vmand %vm7991, %vm3104
        %v8069 = vld [vmem:[#allocation6] sm:$0x2]
        %v8070 = vsel %vm8068, %v8046, %v8069
        %8071 = vst [vmem:[#allocation6] sm:$0x2] %v8070
        %v8072 = vld [vmem:[#allocation6 + $0x4] sm:$0x2]
        %v8073 = vsel %vm8068, %v8050, %v8072
        %8074 = vst [vmem:[#allocation6 + $0x4] sm:$0x2] %v8073
        %v8075 = vld [vmem:[#allocation6 + $0x8] sm:$0x2]
        %v8076 = vsel %vm8068, %v8054, %v8075
        %8077 = vst [vmem:[#allocation6 + $0x8] sm:$0x2] %v8076
        %v8078 = vld [vmem:[#allocation6 + $0xc] sm:$0x2]
        %v8079 = vsel %vm8068, %v8058, %v8078
        %8080 = vst [vmem:[#allocation6 + $0xc] sm:$0x2] %v8079
        %v8081 = vld [vmem:[#allocation6 + $0x10] sm:$0x2]
        %v8082 = vsel %vm8068, %v8062, %v8081
        %8083 = vst [vmem:[#allocation6 + $0x10] sm:$0x2] %v8082
        %v8084 = vld [vmem:[#allocation5 + $0x8] sm:$0x1]
        %v8085 = vld [vmem:[#allocation5 + $0x18] sm:$0x1]
        %v8086 = vld [vmem:[#allocation5 + $0x28] sm:$0x1]
        %v8087 = vld [vmem:[#allocation5 + $0x38] sm:$0x1]
        %v8088 = vld [vmem:[#allocation5 + $0x48] sm:$0x1]
        %v8089 = vld [vmem:[#allocation5 + $0x9] sm:$0x1]
        %v8090 = vld [vmem:[#allocation5 + $0x19] sm:$0x1]
        %v8091 = vld [vmem:[#allocation5 + $0x29] sm:$0x1]
        %v8092 = vld [vmem:[#allocation5 + $0x39] sm:$0x1]
        %v8093 = vld [vmem:[#allocation5 + $0x49] sm:$0x1]
        %v8094 = vmax.f32 %v8084, %v8089
        %v8095 = vmax.f32 %v8085, %v8090
        %v8096 = vmax.f32 %v8086, %v8091
        %v8097 = vmax.f32 %v8087, %v8092
        %v8098 = vmax.f32 %v8088, %v8093
        %v8099 = vpack.c.bf16 %v8094, %v8094
        %v8100 = vpack.c.bf16 %v8095, %v8095
        %v8101 = vpack.c.bf16 %v8096, %v8096
        %v8102 = vpack.c.bf16 %v8097, %v8097
        %v8103 = vpack.c.bf16 %v8098, %v8098
        %v8109 = vunpack.c.l.b16 %v8099
        %v8110 = vunpack.c.l.b16 %v8100
        %v8111 = vunpack.c.l.b16 %v8101
        %v8112 = vunpack.c.l.b16 %v8102
        %v8113 = vunpack.c.l.b16 %v8103
        %v8114 = vpack.c.b16 %v8109, %v8109
        %v8115 = vpack.c.b16 %v8110, %v8110
        %v8116 = vpack.c.b16 %v8111, %v8111
        %v8117 = vpack.c.b16 %v8112, %v8112
        %v8118 = vpack.c.b16 %v8113, %v8113
        %v8119 = vrot.slane %v8114, 6
        %v8120 = vrot.slane %v8115, 6
        %v8121 = vrot.slane %v8116, 6
        %v8122 = vrot.slane %v8117, 6
        %v8123 = vrot.slane %v8118, 6
        %vm8129 = vcmask 518146
        %vm8130 = vmand %vm8129, %vm3263
        %v8131 = vld [vmem:[#allocation6] sm:$0x4]
        %v8132 = vsel %vm8130, %v8119, %v8131
        %8133 = vst [vmem:[#allocation6] sm:$0x4] %v8132
        %v8134 = vld [vmem:[#allocation6 + $0x4] sm:$0x4]
        %v8135 = vsel %vm8130, %v8120, %v8134
        %8136 = vst [vmem:[#allocation6 + $0x4] sm:$0x4] %v8135
        %v8137 = vld [vmem:[#allocation6 + $0x8] sm:$0x4]
        %v8138 = vsel %vm8130, %v8121, %v8137
        %8139 = vst [vmem:[#allocation6 + $0x8] sm:$0x4] %v8138
        %v8140 = vld [vmem:[#allocation6 + $0xc] sm:$0x4]
        %v8141 = vsel %vm8130, %v8122, %v8140
        %8142 = vst [vmem:[#allocation6 + $0xc] sm:$0x4] %v8141
        %v8143 = vld [vmem:[#allocation6 + $0x10] sm:$0x4]
        %v8144 = vsel %vm8130, %v8123, %v8143
        %8145 = vst [vmem:[#allocation6 + $0x10] sm:$0x4] %v8144
        %v8146 = vld [vmem:[#allocation6] sm:$0x3]
        %v8147 = vld [vmem:[#allocation6 + $0x4] sm:$0x3]
        %v8148 = vld [vmem:[#allocation6 + $0x8] sm:$0x3]
        %vm8149 = vcmask 517120
        %vm8150 = vmand %vm8149, %vm2907
        %v8151 = vld [vmem:[#allocation7] sm:$0x3]
        %v8152 = vsel %vm8150, %v8146, %v8151
        %8153 = vst [vmem:[#allocation7] sm:$0x3] %v8152
        %v8154 = vld [vmem:[#allocation7 + $0xa] sm:$0x3]
        %v8155 = vsel %vm8150, %v8147, %v8154
        %8156 = vst [vmem:[#allocation7 + $0xa] sm:$0x3] %v8155
        %v8157 = vld [vmem:[#allocation7 + $0x14] sm:$0x3]
        %v8158 = vsel %vm8150, %v8148, %v8157
        %8159 = vst [vmem:[#allocation7 + $0x14] sm:$0x3] %v8158
        %v8160 = vld [vmem:[#allocation6] sm:$0x3]
        %v8161 = vld [vmem:[#allocation6 + $0x4] sm:$0x3]
        %v8162 = vld [vmem:[#allocation6 + $0x8] sm:$0x3]
        %v8167 = vunpack.c.l.s4 1983009808
        %v8168 = vunpack.c.0.s8 %v8167
        %v8169 = vlaneseq
        %v8170 = vshrl.u32 %v8169, 7
        %v8171 = vsub.s32 %v8168, %v8170
        %v8172 = vrot.slane %v8160, %v8171
        %v8174 = vunpack.c.l.s4 1983009808
        %v8175 = vunpack.c.0.s8 %v8174
        %v8176 = vlaneseq
        %v8177 = vshrl.u32 %v8176, 7
        %v8178 = vsub.s32 %v8175, %v8177
        %v8179 = vrot.slane %v8161, %v8178
        %v8181 = vunpack.c.l.s4 1983009808
        %v8182 = vunpack.c.0.s8 %v8181
        %v8183 = vlaneseq
        %v8184 = vshrl.u32 %v8183, 7
        %v8185 = vsub.s32 %v8182, %v8184
        %v8186 = vrot.slane %v8162, %v8185
        %v8188 = vshrl.u32 %v8172, 16
        %v8190 = vrot.slane %v8188, 6
        %v8191 = vshll.u32 %v8172, 16
        %v8193 = vrot.slane %v8191, 7
        %v8194 = vor.u32 %v8190, %v8193
        %v8195 = vrot.slane %v8194, 2
        %v8197 = vshrl.u32 %v8179, 16
        %v8199 = vrot.slane %v8197, 6
        %v8200 = vshll.u32 %v8179, 16
        %v8202 = vrot.slane %v8200, 7
        %v8203 = vor.u32 %v8199, %v8202
        %v8204 = vrot.slane %v8203, 2
        %v8206 = vshrl.u32 %v8186, 16
        %v8208 = vrot.slane %v8206, 6
        %v8209 = vshll.u32 %v8186, 16
        %v8211 = vrot.slane %v8209, 7
        %v8212 = vor.u32 %v8208, %v8211
        %v8213 = vrot.slane %v8212, 2
        %8214 = vrot.lane.b32.xlu0 %v8195, 64
        %v8215 = vpop.permute.xlu0 %8214
        %8216 = vrot.lane.b32.xlu0 %v8204, 64
        %v8217 = vpop.permute.xlu0 %8216
        %8218 = vrot.lane.b32.xlu0 %v8213, 64
        %v8219 = vpop.permute.xlu0 %8218
        %vm8223 = vcmask 1041920
        %vm8224 = vmand %vm8223, %vm2907
        %v8225 = vld [vmem:[#allocation7] sm:$0x3]
        %v8226 = vsel %vm8224, %v8215, %v8225
        %8227 = vst [vmem:[#allocation7] sm:$0x3] %v8226
        %v8228 = vld [vmem:[#allocation7 + $0xa] sm:$0x3]
        %v8229 = vsel %vm8224, %v8217, %v8228
        %8230 = vst [vmem:[#allocation7 + $0xa] sm:$0x3] %v8229
        %v8231 = vld [vmem:[#allocation7 + $0x14] sm:$0x3]
        %v8232 = vsel %vm8224, %v8219, %v8231
        %8233 = vst [vmem:[#allocation7 + $0x14] sm:$0x3] %v8232
        %v8234 = vld [vmem:[#allocation6] sm:$0x6]
        %v8235 = vld [vmem:[#allocation6 + $0x4] sm:$0x6]
        %v8236 = vld [vmem:[#allocation6 + $0x8] sm:$0x6]
        %v8241 = vunpack.c.l.s4 1983009808
        %v8242 = vunpack.c.0.s8 %v8241
        %v8243 = vlaneseq
        %v8244 = vshrl.u32 %v8243, 7
        %v8245 = vsub.s32 %v8242, %v8244
        %v8246 = vrot.slane %v8234, %v8245
        %v8247 = vcombine.high %v8246, %v8246
        %v8249 = vunpack.c.l.s4 1983009808
        %v8250 = vunpack.c.0.s8 %v8249
        %v8251 = vlaneseq
        %v8252 = vshrl.u32 %v8251, 7
        %v8253 = vsub.s32 %v8250, %v8252
        %v8254 = vrot.slane %v8235, %v8253
        %v8255 = vcombine.high %v8254, %v8254
        %v8257 = vunpack.c.l.s4 1983009808
        %v8258 = vunpack.c.0.s8 %v8257
        %v8259 = vlaneseq
        %v8260 = vshrl.u32 %v8259, 7
        %v8261 = vsub.s32 %v8258, %v8260
        %v8262 = vrot.slane %v8236, %v8261
        %v8263 = vcombine.high %v8262, %v8262
        %vm8264 = vcmask 1040384
        %vm8265 = vcmask 1042434
        %vm8266 = vmor %vm8264, %vm8265
        %vm8267 = vcmask 1044484
        %vm8268 = vmor %vm8266, %vm8267
        %vm8269 = vcmask 1046534
        %vm8270 = vmor %vm8268, %vm8269
        %v8271 = vrot.slane %v8246, 7
        %v8272 = vrot.slane %v8271, 2
        %v8273 = vrot.slane %v8247, 7
        %v8274 = vsel %vm8270, %v8272, %v8273
        %v8275 = vrot.slane %v8254, 7
        %v8276 = vrot.slane %v8275, 2
        %v8277 = vrot.slane %v8255, 7
        %v8278 = vsel %vm8270, %v8276, %v8277
        %v8279 = vrot.slane %v8262, 7
        %v8280 = vrot.slane %v8279, 2
        %v8281 = vrot.slane %v8263, 7
        %v8282 = vsel %vm8270, %v8280, %v8281
        %v8286 = vld [vmem:[#allocation7 + $0x2] sm:$0x3]
        %v8287 = vsel %vm8150, %v8274, %v8286
        %8288 = vst [vmem:[#allocation7 + $0x2] sm:$0x3] %v8287
        %v8289 = vld [vmem:[#allocation7 + $0xc] sm:$0x3]
        %v8290 = vsel %vm8150, %v8278, %v8289
        %8291 = vst [vmem:[#allocation7 + $0xc] sm:$0x3] %v8290
        %v8292 = vld [vmem:[#allocation7 + $0x16] sm:$0x3]
        %v8293 = vsel %vm8150, %v8282, %v8292
        %8294 = vst [vmem:[#allocation7 + $0x16] sm:$0x3] %v8293
        %s8295 = scalar_lea.vmem [#allocation6], 4
        %v8296 = vld [vmem:[%s8295] sm:$0x3]
        %v8297 = vld [vmem:[%s8295 + $0x4] sm:$0x3]
        %v8298 = vld [vmem:[%s8295 + $0x8] sm:$0x3]
        %v8303 = vunpack.c.l.s4 1983009808
        %v8304 = vunpack.c.0.s8 %v8303
        %v8305 = vlaneseq
        %v8306 = vshrl.u32 %v8305, 7
        %v8307 = vsub.s32 %v8304, %v8306
        %v8308 = vrot.slane %v8296, %v8307
        %v8310 = vunpack.c.l.s4 1983009808
        %v8311 = vunpack.c.0.s8 %v8310
        %v8312 = vlaneseq
        %v8313 = vshrl.u32 %v8312, 7
        %v8314 = vsub.s32 %v8311, %v8313
        %v8315 = vrot.slane %v8297, %v8314
        %v8317 = vunpack.c.l.s4 1983009808
        %v8318 = vunpack.c.0.s8 %v8317
        %v8319 = vlaneseq
        %v8320 = vshrl.u32 %v8319, 7
        %v8321 = vsub.s32 %v8318, %v8320
        %v8322 = vrot.slane %v8298, %v8321
        %8323 = vrot.lane.b32.xlu0 %v8308, 64
        %v8324 = vpop.permute.xlu0 %8323
        %8325 = vrot.lane.b32.xlu0 %v8315, 64
        %v8326 = vpop.permute.xlu0 %8325
        %8327 = vrot.lane.b32.xlu0 %v8322, 64
        %v8328 = vpop.permute.xlu0 %8327
        %v8332 = vld [vmem:[#allocation7 + $0x2] sm:$0x3]
        %v8333 = vsel %vm8224, %v8324, %v8332
        %8334 = vst [vmem:[#allocation7 + $0x2] sm:$0x3] %v8333
        %v8335 = vld [vmem:[#allocation7 + $0xc] sm:$0x3]
        %v8336 = vsel %vm8224, %v8326, %v8335
        %8337 = vst [vmem:[#allocation7 + $0xc] sm:$0x3] %v8336
        %v8338 = vld [vmem:[#allocation7 + $0x16] sm:$0x3]
        %v8339 = vsel %vm8224, %v8328, %v8338
        %8340 = vst [vmem:[#allocation7 + $0x16] sm:$0x3] %v8339
        %v8341 = vld [vmem:[%s8295] sm:$0x3]
        %v8342 = vld [vmem:[%s8295 + $0x4] sm:$0x3]
        %v8343 = vld [vmem:[%s8295 + $0x8] sm:$0x3]
        %v8348 = vunpack.c.l.s4 1983009808
        %v8349 = vunpack.c.0.s8 %v8348
        %v8350 = vlaneseq
        %v8351 = vshrl.u32 %v8350, 7
        %v8352 = vsub.s32 %v8349, %v8351
        %v8353 = vrot.slane %v8341, %v8352
        %v8355 = vunpack.c.l.s4 1983009808
        %v8356 = vunpack.c.0.s8 %v8355
        %v8357 = vlaneseq
        %v8358 = vshrl.u32 %v8357, 7
        %v8359 = vsub.s32 %v8356, %v8358
        %v8360 = vrot.slane %v8342, %v8359
        %v8362 = vunpack.c.l.s4 1983009808
        %v8363 = vunpack.c.0.s8 %v8362
        %v8364 = vlaneseq
        %v8365 = vshrl.u32 %v8364, 7
        %v8366 = vsub.s32 %v8363, %v8365
        %v8367 = vrot.slane %v8343, %v8366
        %v8369 = vshrl.u32 %v8353, 16
        %v8371 = vrot.slane %v8369, 6
        %v8372 = vshll.u32 %v8353, 16
        %v8374 = vrot.slane %v8372, 7
        %v8375 = vor.u32 %v8371, %v8374
        %v8376 = vrot.slane %v8375, 2
        %v8378 = vshrl.u32 %v8360, 16
        %v8380 = vrot.slane %v8378, 6
        %v8381 = vshll.u32 %v8360, 16
        %v8383 = vrot.slane %v8381, 7
        %v8384 = vor.u32 %v8380, %v8383
        %v8385 = vrot.slane %v8384, 2
        %v8387 = vshrl.u32 %v8367, 16
        %v8389 = vrot.slane %v8387, 6
        %v8390 = vshll.u32 %v8367, 16
        %v8392 = vrot.slane %v8390, 7
        %v8393 = vor.u32 %v8389, %v8392
        %v8394 = vrot.slane %v8393, 2
        %v8398 = vld [vmem:[#allocation7 + $0x4] sm:$0x3]
        %v8399 = vsel %vm8150, %v8376, %v8398
        %8400 = vst [vmem:[#allocation7 + $0x4] sm:$0x3] %v8399
        %v8401 = vld [vmem:[#allocation7 + $0xe] sm:$0x3]
        %v8402 = vsel %vm8150, %v8385, %v8401
        %8403 = vst [vmem:[#allocation7 + $0xe] sm:$0x3] %v8402
        %v8404 = vld [vmem:[#allocation7 + $0x18] sm:$0x3]
        %v8405 = vsel %vm8150, %v8394, %v8404
        %8406 = vst [vmem:[#allocation7 + $0x18] sm:$0x3] %v8405
        %v8407 = vld [vmem:[%s8295] sm:$0x6]
        %v8408 = vld [vmem:[%s8295 + $0x4] sm:$0x6]
        %v8409 = vld [vmem:[%s8295 + $0x8] sm:$0x6]
        %v8414 = vunpack.c.l.s4 1983009808
        %v8415 = vunpack.c.0.s8 %v8414
        %v8416 = vlaneseq
        %v8417 = vshrl.u32 %v8416, 7
        %v8418 = vsub.s32 %v8415, %v8417
        %v8419 = vrot.slane %v8407, %v8418
        %v8420 = vcombine.high %v8419, %v8419
        %v8422 = vunpack.c.l.s4 1983009808
        %v8423 = vunpack.c.0.s8 %v8422
        %v8424 = vlaneseq
        %v8425 = vshrl.u32 %v8424, 7
        %v8426 = vsub.s32 %v8423, %v8425
        %v8427 = vrot.slane %v8408, %v8426
        %v8428 = vcombine.high %v8427, %v8427
        %v8430 = vunpack.c.l.s4 1983009808
        %v8431 = vunpack.c.0.s8 %v8430
        %v8432 = vlaneseq
        %v8433 = vshrl.u32 %v8432, 7
        %v8434 = vsub.s32 %v8431, %v8433
        %v8435 = vrot.slane %v8409, %v8434
        %v8436 = vcombine.high %v8435, %v8435
        %v8437 = vrot.slane %v8419, 7
        %v8438 = vrot.slane %v8437, 2
        %v8439 = vrot.slane %v8420, 7
        %v8440 = vsel %vm8270, %v8438, %v8439
        %v8441 = vrot.slane %v8427, 7
        %v8442 = vrot.slane %v8441, 2
        %v8443 = vrot.slane %v8428, 7
        %v8444 = vsel %vm8270, %v8442, %v8443
        %v8445 = vrot.slane %v8435, 7
        %v8446 = vrot.slane %v8445, 2
        %v8447 = vrot.slane %v8436, 7
        %v8448 = vsel %vm8270, %v8446, %v8447
        %8449 = vrot.lane.b32.xlu0 %v8440, 64
        %v8450 = vpop.permute.xlu0 %8449
        %8451 = vrot.lane.b32.xlu0 %v8444, 64
        %v8452 = vpop.permute.xlu0 %8451
        %8453 = vrot.lane.b32.xlu0 %v8448, 64
        %v8454 = vpop.permute.xlu0 %8453
        %v8458 = vld [vmem:[#allocation7 + $0x4] sm:$0x3]
        %v8459 = vsel %vm8224, %v8450, %v8458
        %8460 = vst [vmem:[#allocation7 + $0x4] sm:$0x3] %v8459
        %v8461 = vld [vmem:[#allocation7 + $0xe] sm:$0x3]
        %v8462 = vsel %vm8224, %v8452, %v8461
        %8463 = vst [vmem:[#allocation7 + $0xe] sm:$0x3] %v8462
        %v8464 = vld [vmem:[#allocation7 + $0x18] sm:$0x3]
        %v8465 = vsel %vm8224, %v8454, %v8464
        %8466 = vst [vmem:[#allocation7 + $0x18] sm:$0x3] %v8465
        %s8467 = scalar_lea.vmem [#allocation6], 8
        %v8468 = vld [vmem:[%s8467] sm:$0x3]
        %v8469 = vld [vmem:[%s8467 + $0x4] sm:$0x3]
        %v8470 = vld [vmem:[%s8467 + $0x8] sm:$0x3]
        %v8471 = vld [vmem:[#allocation7 + $0x6] sm:$0x3]
        %v8472 = vsel %vm8150, %v8468, %v8471
        %8473 = vst [vmem:[#allocation7 + $0x6] sm:$0x3] %v8472
        %v8474 = vld [vmem:[#allocation7 + $0x10] sm:$0x3]
        %v8475 = vsel %vm8150, %v8469, %v8474
        %8476 = vst [vmem:[#allocation7 + $0x10] sm:$0x3] %v8475
        %v8477 = vld [vmem:[#allocation7 + $0x1a] sm:$0x3]
        %v8478 = vsel %vm8150, %v8470, %v8477
        %8479 = vst [vmem:[#allocation7 + $0x1a] sm:$0x3] %v8478
        %v8480 = vld [vmem:[%s8467] sm:$0x3]
        %v8481 = vld [vmem:[%s8467 + $0x4] sm:$0x3]
        %v8482 = vld [vmem:[%s8467 + $0x8] sm:$0x3]
        %v8487 = vunpack.c.l.s4 1983009808
        %v8488 = vunpack.c.0.s8 %v8487
        %v8489 = vlaneseq
        %v8490 = vshrl.u32 %v8489, 7
        %v8491 = vsub.s32 %v8488, %v8490
        %v8492 = vrot.slane %v8480, %v8491
        %v8494 = vunpack.c.l.s4 1983009808
        %v8495 = vunpack.c.0.s8 %v8494
        %v8496 = vlaneseq
        %v8497 = vshrl.u32 %v8496, 7
        %v8498 = vsub.s32 %v8495, %v8497
        %v8499 = vrot.slane %v8481, %v8498
        %v8501 = vunpack.c.l.s4 1983009808
        %v8502 = vunpack.c.0.s8 %v8501
        %v8503 = vlaneseq
        %v8504 = vshrl.u32 %v8503, 7
        %v8505 = vsub.s32 %v8502, %v8504
        %v8506 = vrot.slane %v8482, %v8505
        %v8508 = vshrl.u32 %v8492, 16
        %v8510 = vrot.slane %v8508, 6
        %v8511 = vshll.u32 %v8492, 16
        %v8513 = vrot.slane %v8511, 7
        %v8514 = vor.u32 %v8510, %v8513
        %v8515 = vrot.slane %v8514, 2
        %v8517 = vshrl.u32 %v8499, 16
        %v8519 = vrot.slane %v8517, 6
        %v8520 = vshll.u32 %v8499, 16
        %v8522 = vrot.slane %v8520, 7
        %v8523 = vor.u32 %v8519, %v8522
        %v8524 = vrot.slane %v8523, 2
        %v8526 = vshrl.u32 %v8506, 16
        %v8528 = vrot.slane %v8526, 6
        %v8529 = vshll.u32 %v8506, 16
        %v8531 = vrot.slane %v8529, 7
        %v8532 = vor.u32 %v8528, %v8531
        %v8533 = vrot.slane %v8532, 2
        %8534 = vrot.lane.b32.xlu0 %v8515, 64
        %v8535 = vpop.permute.xlu0 %8534
        %8536 = vrot.lane.b32.xlu0 %v8524, 64
        %v8537 = vpop.permute.xlu0 %8536
        %8538 = vrot.lane.b32.xlu0 %v8533, 64
        %v8539 = vpop.permute.xlu0 %8538
        %v8543 = vld [vmem:[#allocation7 + $0x6] sm:$0x3]
        %v8544 = vsel %vm8224, %v8535, %v8543
        %8545 = vst [vmem:[#allocation7 + $0x6] sm:$0x3] %v8544
        %v8546 = vld [vmem:[#allocation7 + $0x10] sm:$0x3]
        %v8547 = vsel %vm8224, %v8537, %v8546
        %8548 = vst [vmem:[#allocation7 + $0x10] sm:$0x3] %v8547
        %v8549 = vld [vmem:[#allocation7 + $0x1a] sm:$0x3]
        %v8550 = vsel %vm8224, %v8539, %v8549
        %8551 = vst [vmem:[#allocation7 + $0x1a] sm:$0x3] %v8550
        %v8552 = vld [vmem:[%s8467] sm:$0x6]
        %v8553 = vld [vmem:[%s8467 + $0x4] sm:$0x6]
        %v8554 = vld [vmem:[%s8467 + $0x8] sm:$0x6]
        %v8559 = vunpack.c.l.s4 1983009808
        %v8560 = vunpack.c.0.s8 %v8559
        %v8561 = vlaneseq
        %v8562 = vshrl.u32 %v8561, 7
        %v8563 = vsub.s32 %v8560, %v8562
        %v8564 = vrot.slane %v8552, %v8563
        %v8565 = vcombine.high %v8564, %v8564
        %v8567 = vunpack.c.l.s4 1983009808
        %v8568 = vunpack.c.0.s8 %v8567
        %v8569 = vlaneseq
        %v8570 = vshrl.u32 %v8569, 7
        %v8571 = vsub.s32 %v8568, %v8570
        %v8572 = vrot.slane %v8553, %v8571
        %v8573 = vcombine.high %v8572, %v8572
        %v8575 = vunpack.c.l.s4 1983009808
        %v8576 = vunpack.c.0.s8 %v8575
        %v8577 = vlaneseq
        %v8578 = vshrl.u32 %v8577, 7
        %v8579 = vsub.s32 %v8576, %v8578
        %v8580 = vrot.slane %v8554, %v8579
        %v8581 = vcombine.high %v8580, %v8580
        %v8582 = vrot.slane %v8564, 7
        %v8583 = vrot.slane %v8582, 2
        %v8584 = vrot.slane %v8565, 7
        %v8585 = vsel %vm8270, %v8583, %v8584
        %v8586 = vrot.slane %v8572, 7
        %v8587 = vrot.slane %v8586, 2
        %v8588 = vrot.slane %v8573, 7
        %v8589 = vsel %vm8270, %v8587, %v8588
        %v8590 = vrot.slane %v8580, 7
        %v8591 = vrot.slane %v8590, 2
        %v8592 = vrot.slane %v8581, 7
        %v8593 = vsel %vm8270, %v8591, %v8592
        %v8597 = vld [vmem:[#allocation7 + $0x8] sm:$0x3]
        %v8598 = vsel %vm8150, %v8585, %v8597
        %8599 = vst [vmem:[#allocation7 + $0x8] sm:$0x3] %v8598
        %v8600 = vld [vmem:[#allocation7 + $0x12] sm:$0x3]
        %v8601 = vsel %vm8150, %v8589, %v8600
        %8602 = vst [vmem:[#allocation7 + $0x12] sm:$0x3] %v8601
        %v8603 = vld [vmem:[#allocation7 + $0x1c] sm:$0x3]
        %v8604 = vsel %vm8150, %v8593, %v8603
        %8605 = vst [vmem:[#allocation7 + $0x1c] sm:$0x3] %v8604
        %v8606 = vld [vmem:[%s5] sm:$0xf]
        %v8607 = vld [vmem:[%s5 + $0x4] sm:$0xf]
        %v8608 = vld [vmem:[%s5 + $0x8] sm:$0xf]
        %v8609 = vld [vmem:[%s5 + $0xc] sm:$0xf]
        %v8610 = vld [vmem:[%s5 + $0x10] sm:$0xf]
        %v8611 = vld [vmem:[%s5 + $0x14] sm:$0xf]
        %v8612 = vld [vmem:[%s5 + $0x18] sm:$0xf]
        %v8613 = vld [vmem:[%s5 + $0x1c] sm:$0xf]
        %v8614 = vld [vmem:[%s5 + $0x20] sm:$0xf]
        %v8615 = vld [vmem:[%s5 + $0x24] sm:$0xf]
        %v8616 = vld [vmem:[%s5 + $0x28] sm:$0xf]
        %v8617 = vld [vmem:[%s5 + $0x2c] sm:$0xf]
        %v8618 = vld [vmem:[%s5 + $0x30] sm:$0xf]
        %v8619 = vld [vmem:[%s5 + $0x34] sm:$0xf]
        %v8620 = vld [vmem:[%s5 + $0x38] sm:$0xf]
        %v8621 = vld [vmem:[%s5 + $0x3c] sm:$0xf]
        %v8622 = vld [vmem:[%s5 + $0x40] sm:$0xf]
        %v8623 = vld [vmem:[%s5 + $0x44] sm:$0xf]
        %v8624 = vld [vmem:[%s5 + $0x48] sm:$0xf]
        %v8625 = vld [vmem:[%s5 + $0x4c] sm:$0xf]
        %v8626 = vld [vmem:[%s5 + $0x50] sm:$0xf]
        %v8627 = vld [vmem:[%s5 + $0x54] sm:$0xf]
        %v8628 = vld [vmem:[%s5 + $0x58] sm:$0xf]
        %v8629 = vld [vmem:[%s5 + $0x5c] sm:$0xf]
        %v8630 = vld [vmem:[%s5 + $0x60] sm:$0xf]
        %v8631 = vld [vmem:[%s5 + $0x64] sm:$0xf]
        %v8632 = vld [vmem:[%s5 + $0x68] sm:$0xf]
        %v8633 = vld [vmem:[%s5 + $0x6c] sm:$0xf]
        %v8634 = vld [vmem:[%s5 + $0x70] sm:$0xf]
        %v8635 = vld [vmem:[%s5 + $0x74] sm:$0xf]
        %v8636 = vld [vmem:[%s5 + $0x78] sm:$0xf]
        %v8637 = vld [vmem:[%s5 + $0x7c] sm:$0xf]
        %v8638 = vld [vmem:[%s5 + $0x80] sm:$0xf]
        %v8639 = vld [vmem:[%s5 + $0x84] sm:$0xf]
        %v8640 = vld [vmem:[%s5 + $0x88] sm:$0xf]
        %v8641 = vld [vmem:[%s5 + $0x8c] sm:$0xf]
        %v8642 = vld [vmem:[%s5 + $0x90] sm:$0xf]
        %v8643 = vld [vmem:[%s5 + $0x94] sm:$0xf]
        %v8644 = vld [vmem:[%s5 + $0x98] sm:$0xf]
        %v8645 = vld [vmem:[%s5 + $0x9c] sm:$0xf]
        %v8646 = vld [vmem:[%s5 + $0xa0] sm:$0xf]
        %v8647 = vld [vmem:[%s5 + $0xa4] sm:$0xf]
        %v8648 = vld [vmem:[%s5 + $0xa8] sm:$0xf]
        %v8649 = vld [vmem:[%s5 + $0xac] sm:$0xf]
        %v8650 = vld [vmem:[%s5 + $0xb0] sm:$0xf]
        %v8651 = vld [vmem:[%s5 + $0xb4] sm:$0xf]
        %v8652 = vld [vmem:[%s5 + $0xb8] sm:$0xf]
        %v8653 = vld [vmem:[%s5 + $0xbc] sm:$0xf]
        %v8654 = vld [vmem:[%s5 + $0xc0] sm:$0xf]
        %v8655 = vld [vmem:[%s5 + $0xc4] sm:$0xf]
        %v8656 = vld [vmem:[%s5 + $0xc8] sm:$0xf]
        %v8657 = vld [vmem:[%s5 + $0xcc] sm:$0xf]
        %v8658 = vld [vmem:[%s5 + $0xd0] sm:$0xf]
        %v8659 = vld [vmem:[%s5 + $0xd4] sm:$0xf]
        %v8660 = vld [vmem:[%s5 + $0xd8] sm:$0xf]
        %v8661 = vld [vmem:[%s5 + $0xdc] sm:$0xf]
        %v8662 = vld [vmem:[%s5 + $0xe0] sm:$0xf]
        %v8663 = vld [vmem:[%s5 + $0xe4] sm:$0xf]
        %v8664 = vld [vmem:[%s5 + $0xe8] sm:$0xf]
        %v8665 = vld [vmem:[%s5 + $0xec] sm:$0xf]
        %v8666 = vld [vmem:[%s5 + $0xf0] sm:$0xf]
        %v8667 = vld [vmem:[%s5 + $0xf4] sm:$0xf]
        %v8668 = vld [vmem:[%s5 + $0xf8] sm:$0xf]
        %v8669 = vld [vmem:[%s5 + $0xfc] sm:$0xf]
        %v8670 = vld [vmem:[%s5 + $0x100] sm:$0xf]
        %v8671 = vld [vmem:[%s5 + $0x104] sm:$0xf]
        %v8672 = vld [vmem:[%s5 + $0x108] sm:$0xf]
        %v8673 = vld [vmem:[%s5 + $0x10c] sm:$0xf]
        %v8674 = vld [vmem:[%s5 + $0x110] sm:$0xf]
        %v8675 = vld [vmem:[%s5 + $0x114] sm:$0xf]
        %v8676 = vld [vmem:[%s5 + $0x118] sm:$0xf]
        %v8677 = vld [vmem:[%s5 + $0x11c] sm:$0xf]
        %v8678 = vld [vmem:[%s6] sm:$0x1]
        %v8679 = vld [vmem:[#allocation7] sm:$0xff]
        %v8680 = vld [vmem:[#allocation7 + $0x8] sm:$0x3]
        %v8682 = vlaneseq
        %v8683 = vshrl.u32 %v8682, 7
        %v8684 = vsub.s32 0, %v8683
        %v8685 = vrot.slane %v8678, %v8684
        %v8689 = vcombine.high %v8679, %v8679
        %v8691 = vunpack.c.l.s4 1983009808
        %v8692 = vunpack.c.0.s8 %v8691
        %v8693 = vlaneseq
        %v8694 = vshrl.u32 %v8693, 7
        %v8695 = vsub.s32 %v8692, %v8694
        %v8696 = vrot.slane %v8679, %v8695
        %v8698 = vunpack.c.l.s4 1983009808
        %v8699 = vunpack.c.0.s8 %v8698
        %v8700 = vlaneseq
        %v8701 = vshrl.u32 %v8700, 7
        %v8702 = vsub.s32 %v8699, %v8701
        %v8703 = vrot.slane %v8689, %v8702
        %v8704 = vcombine.high %v8696, %v8696
        %v8705 = vcombine.high %v8703, %v8703
        %v8707 = vunpack.c.l.s4 1983009808
        %v8708 = vunpack.c.0.s8 %v8707
        %v8709 = vlaneseq
        %v8710 = vshrl.u32 %v8709, 7
        %v8711 = vsub.s32 %v8708, %v8710
        %v8712 = vrot.slane %v8680, %v8711
        %v8789 = vunpack.c.l.b16 %v8606
        %v8790 = vunpack.c.l.b16 %v8607
        %v8791 = vunpack.c.l.b16 %v8608
        %v8792 = vunpack.c.l.b16 %v8609
        %v8793 = vunpack.c.l.b16 %v8610
        %v8794 = vunpack.c.l.b16 %v8611
        %v8795 = vunpack.c.l.b16 %v8612
        %v8796 = vunpack.c.l.b16 %v8613
        %v8797 = vunpack.c.l.b16 %v8614
        %v8798 = vunpack.c.l.b16 %v8615
        %v8799 = vunpack.c.l.b16 %v8616
        %v8800 = vunpack.c.l.b16 %v8617
        %v8801 = vunpack.c.l.b16 %v8618
        %v8802 = vunpack.c.l.b16 %v8619
        %v8803 = vunpack.c.l.b16 %v8620
        %v8804 = vunpack.c.l.b16 %v8621
        %v8805 = vunpack.c.l.b16 %v8622
        %v8806 = vunpack.c.l.b16 %v8623
        %v8807 = vunpack.c.l.b16 %v8624
        %v8808 = vunpack.c.l.b16 %v8625
        %v8809 = vunpack.c.l.b16 %v8626
        %v8810 = vunpack.c.l.b16 %v8627
        %v8811 = vunpack.c.l.b16 %v8628
        %v8812 = vunpack.c.l.b16 %v8629
        %v8813 = vunpack.c.l.b16 %v8630
        %v8814 = vunpack.c.l.b16 %v8631
        %v8815 = vunpack.c.l.b16 %v8632
        %v8816 = vunpack.c.l.b16 %v8633
        %v8817 = vunpack.c.l.b16 %v8634
        %v8818 = vunpack.c.l.b16 %v8635
        %v8819 = vunpack.c.l.b16 %v8636
        %v8820 = vunpack.c.l.b16 %v8637
        %v8821 = vunpack.c.l.b16 %v8638
        %v8822 = vunpack.c.l.b16 %v8639
        %v8823 = vunpack.c.l.b16 %v8640
        %v8824 = vunpack.c.l.b16 %v8641
        %v8825 = vunpack.c.l.b16 %v8642
        %v8826 = vunpack.c.l.b16 %v8643
        %v8827 = vunpack.c.l.b16 %v8644
        %v8828 = vunpack.c.l.b16 %v8645
        %v8829 = vunpack.c.l.b16 %v8646
        %v8830 = vunpack.c.l.b16 %v8647
        %v8831 = vunpack.c.l.b16 %v8648
        %v8832 = vunpack.c.l.b16 %v8649
        %v8833 = vunpack.c.l.b16 %v8650
        %v8834 = vunpack.c.l.b16 %v8651
        %v8835 = vunpack.c.l.b16 %v8652
        %v8836 = vunpack.c.l.b16 %v8653
        %v8837 = vunpack.c.l.b16 %v8654
        %v8838 = vunpack.c.l.b16 %v8655
        %v8839 = vunpack.c.l.b16 %v8656
        %v8840 = vunpack.c.l.b16 %v8657
        %v8841 = vunpack.c.l.b16 %v8658
        %v8842 = vunpack.c.l.b16 %v8659
        %v8843 = vunpack.c.l.b16 %v8660
        %v8844 = vunpack.c.l.b16 %v8661
        %v8845 = vunpack.c.l.b16 %v8662
        %v8846 = vunpack.c.l.b16 %v8663
        %v8847 = vunpack.c.l.b16 %v8664
        %v8848 = vunpack.c.l.b16 %v8665
        %v8849 = vunpack.c.l.b16 %v8666
        %v8850 = vunpack.c.l.b16 %v8667
        %v8851 = vunpack.c.l.b16 %v8668
        %v8852 = vunpack.c.l.b16 %v8669
        %v8853 = vunpack.c.l.b16 %v8670
        %v8854 = vunpack.c.l.b16 %v8671
        %v8855 = vunpack.c.l.b16 %v8672
        %v8856 = vunpack.c.l.b16 %v8673
        %v8857 = vunpack.c.l.b16 %v8674
        %v8858 = vunpack.c.l.b16 %v8675
        %v8859 = vunpack.c.l.b16 %v8676
        %v8860 = vunpack.c.l.b16 %v8677
        %v8861 = vpack.c.b16 %v8790, %v8789
        %v8862 = vpack.c.b16 %v8792, %v8791
        %v8863 = vpack.c.b16 %v8794, %v8793
        %v8864 = vpack.c.b16 %v8796, %v8795
        %v8865 = vpack.c.b16 %v8798, %v8797
        %v8866 = vpack.c.b16 %v8800, %v8799
        %v8867 = vpack.c.b16 %v8802, %v8801
        %v8868 = vpack.c.b16 %v8804, %v8803
        %v8869 = vpack.c.b16 %v8806, %v8805
        %v8870 = vpack.c.b16 %v8808, %v8807
        %v8871 = vpack.c.b16 %v8810, %v8809
        %v8872 = vpack.c.b16 %v8812, %v8811
        %v8873 = vpack.c.b16 %v8814, %v8813
        %v8874 = vpack.c.b16 %v8816, %v8815
        %v8875 = vpack.c.b16 %v8818, %v8817
        %v8876 = vpack.c.b16 %v8820, %v8819
        %v8877 = vpack.c.b16 %v8822, %v8821
        %v8878 = vpack.c.b16 %v8824, %v8823
        %v8879 = vpack.c.b16 %v8826, %v8825
        %v8880 = vpack.c.b16 %v8828, %v8827
        %v8881 = vpack.c.b16 %v8830, %v8829
        %v8882 = vpack.c.b16 %v8832, %v8831
        %v8883 = vpack.c.b16 %v8834, %v8833
        %v8884 = vpack.c.b16 %v8836, %v8835
        %v8885 = vpack.c.b16 %v8838, %v8837
        %v8886 = vpack.c.b16 %v8840, %v8839
        %v8887 = vpack.c.b16 %v8842, %v8841
        %v8888 = vpack.c.b16 %v8844, %v8843
        %v8889 = vpack.c.b16 %v8846, %v8845
        %v8890 = vpack.c.b16 %v8848, %v8847
        %v8891 = vpack.c.b16 %v8850, %v8849
        %v8892 = vpack.c.b16 %v8852, %v8851
        %v8893 = vpack.c.b16 %v8854, %v8853
        %v8894 = vpack.c.b16 %v8856, %v8855
        %v8895 = vpack.c.b16 %v8858, %v8857
        %v8896 = vpack.c.b16 %v8860, %v8859
        %v8934 = vsel %vm6958, %v8712, 0
        %8936 = vmatprep.subr.bf16.mxu0 0
        %8937 = vmatpush1.bf16.msra.mxu0 %v8868
        %8938 = vmatprep.subr.bf16.mxu0 0
        %8939 = vmatpush1.bf16.msra.mxu0 %v8867
        %8940 = vmatprep.subr.bf16.mxu0 0
        %8941 = vmatpush1.bf16.msra.mxu0 %v8866
        %8942 = vmatprep.subr.bf16.mxu0 0
        %8943 = vmatpush1.bf16.msra.mxu0 %v8865
        %8944 = vmatprep.subr.bf16.mxu0 0
        %8945 = vmatpush1.bf16.msra.mxu0 %v8864
        %8946 = vmatprep.subr.bf16.mxu0 0
        %8947 = vmatpush1.bf16.msra.mxu0 %v8863
        %8948 = vmatprep.subr.bf16.mxu0 0
        %8949 = vmatpush1.bf16.msra.mxu0 %v8862
        %8950 = vmatprep.subr.bf16.mxu0 0
        %8951 = vmatpush1.bf16.msra.mxu0 %v8861
        %8952 = vmatprep.subr.bf16.mxu0 0
        %8953 = vmatpush2.bf16.msra.mxu0 %v8876
        %8954 = vmatprep.subr.bf16.mxu0 0
        %8955 = vmatpush2.bf16.msra.mxu0 %v8875
        %8956 = vmatprep.subr.bf16.mxu0 0
        %8957 = vmatpush2.bf16.msra.mxu0 %v8874
        %8958 = vmatprep.subr.bf16.mxu0 0
        %8959 = vmatpush2.bf16.msra.mxu0 %v8873
        %8960 = vmatprep.subr.bf16.mxu0 0
        %8961 = vmatpush2.bf16.msra.mxu0 %v8872
        %8962 = vmatprep.subr.bf16.mxu0 0
        %8963 = vmatpush2.bf16.msra.mxu0 %v8871
        %8964 = vmatprep.subr.bf16.mxu0 0
        %8965 = vmatpush2.bf16.msra.mxu0 %v8870
        %8966 = vmatprep.subr.bf16.mxu0 0
        %8967 = vmatpush2.bf16.msra.mxu0 %v8869
        %8968 = vmatprep.mubr.bf16.mxu0 %v8704
        %8969 = vmatmul.mubr.bf16.gmra.mxu0 %v8696
        %v8970 = vpop.f32.mrf.mxu0
        %v8971 = vadd.f32 %v8685, %v8970
        %v8972 = vpop.f32.mrf.mxu0
        %v8973 = vpop.f32.mrf.mxu0
        %v8974 = vpop.f32.mrf.mxu0
        %8975 = vdwg.mxu0
        %8976 = vmatprep.subr.bf16.mxu0 0
        %8977 = vmatpush1.bf16.msra.mxu0 %v8884
        %8978 = vmatprep.subr.bf16.mxu0 0
        %8979 = vmatpush1.bf16.msra.mxu0 %v8883
        %8980 = vmatprep.subr.bf16.mxu0 0
        %8981 = vmatpush1.bf16.msra.mxu0 %v8882
        %8982 = vmatprep.subr.bf16.mxu0 0
        %8983 = vmatpush1.bf16.msra.mxu0 %v8881
        %8984 = vmatprep.subr.bf16.mxu0 0
        %8985 = vmatpush1.bf16.msra.mxu0 %v8880
        %8986 = vmatprep.subr.bf16.mxu0 0
        %8987 = vmatpush1.bf16.msra.mxu0 %v8879
        %8988 = vmatprep.subr.bf16.mxu0 0
        %8989 = vmatpush1.bf16.msra.mxu0 %v8878
        %8990 = vmatprep.subr.bf16.mxu0 0
        %8991 = vmatpush1.bf16.msra.mxu0 %v8877
        %8992 = vmatprep.subr.bf16.mxu0 0
        %8993 = vmatpush2.bf16.msra.mxu0 %v8892
        %8994 = vmatprep.subr.bf16.mxu0 0
        %8995 = vmatpush2.bf16.msra.mxu0 %v8891
        %8996 = vmatprep.subr.bf16.mxu0 0
        %8997 = vmatpush2.bf16.msra.mxu0 %v8890
        %8998 = vmatprep.subr.bf16.mxu0 0
        %8999 = vmatpush2.bf16.msra.mxu0 %v8889
        %9000 = vmatprep.subr.bf16.mxu0 0
        %9001 = vmatpush2.bf16.msra.mxu0 %v8888
        %9002 = vmatprep.subr.bf16.mxu0 0
        %9003 = vmatpush2.bf16.msra.mxu0 %v8887
        %9004 = vmatprep.subr.bf16.mxu0 0
        %9005 = vmatpush2.bf16.msra.mxu0 %v8886
        %9006 = vmatprep.subr.bf16.mxu0 0
        %9007 = vmatpush2.bf16.msra.mxu0 %v8885
        %9008 = vmatprep.mubr.bf16.mxu0 %v8705
        %9009 = vmatmul.mubr.bf16.gmra.mxu0 %v8703
        %v9010 = vpop.f32.mrf.mxu0
        %v9011 = vadd.f32 %v8971, %v9010
        %v9012 = vpop.f32.mrf.mxu0
        %v9013 = vpop.f32.mrf.mxu0
        %v9014 = vpop.f32.mrf.mxu0
        %9015 = vdwg.mxu0
        %9016 = vmatprep.subr.bf16.mxu0 0
        %9017 = vmatpush1.bf16.msra.mxu0 0
        %9018 = vmatprep.subr.bf16.mxu0 0
        %9019 = vmatpush1.bf16.msra.mxu0 0
        %9020 = vmatprep.subr.bf16.mxu0 0
        %9021 = vmatpush1.bf16.msra.mxu0 0
        %9022 = vmatprep.subr.bf16.mxu0 0
        %9023 = vmatpush1.bf16.msra.mxu0 0
        %9024 = vmatprep.subr.bf16.mxu0 0
        %9025 = vmatpush1.bf16.msra.mxu0 %v8896
        %9026 = vmatprep.subr.bf16.mxu0 0
        %9027 = vmatpush1.bf16.msra.mxu0 %v8895
        %9028 = vmatprep.subr.bf16.mxu0 0
        %9029 = vmatpush1.bf16.msra.mxu0 %v8894
        %9030 = vmatprep.subr.bf16.mxu0 0
        %9031 = vmatpush1.bf16.msra.mxu0 %v8893
        %9032 = vmatprep.subr.bf16.mxu0 0
        %9033 = vmatpush2.bf16.msra.mxu0 0
        %9034 = vmatprep.subr.bf16.mxu0 0
        %9035 = vmatpush2.bf16.msra.mxu0 0
        %9036 = vmatprep.subr.bf16.mxu0 0
        %9037 = vmatpush2.bf16.msra.mxu0 0
        %9038 = vmatprep.subr.bf16.mxu0 0
        %9039 = vmatpush2.bf16.msra.mxu0 0
        %9040 = vmatprep.subr.bf16.mxu0 0
        %9041 = vmatpush2.bf16.msra.mxu0 0
        %9042 = vmatprep.subr.bf16.mxu0 0
        %9043 = vmatpush2.bf16.msra.mxu0 0
        %9044 = vmatprep.subr.bf16.mxu0 0
        %9045 = vmatpush2.bf16.msra.mxu0 0
        %9046 = vmatprep.subr.bf16.mxu0 0
        %9047 = vmatpush2.bf16.msra.mxu0 0
        %9048 = vmatprep.mubr.bf16.mxu0 0
        %9049 = vmatmul.mubr.bf16.gmra.mxu0 %v8934
        %v9050 = vpop.f32.mrf.mxu0
        %v9051 = vadd.f32 %v9011, %v9050
        %v9052 = vpop.f32.mrf.mxu0
        %v9053 = vpop.f32.mrf.mxu0
        %v9054 = vpop.f32.mrf.mxu0
        %9055 = vdwg.mxu0
        %v9056 = vmax.f32 %v9051, 0.0
        %s9057 = scalar_lea.vmem [#allocation7], 10
        %v9058 = vld [vmem:[%s9057] sm:$0xff]
        %v9059 = vld [vmem:[%s9057 + $0x8] sm:$0x3]
        %v9062 = vcombine.high %v9058, %v9058
        %v9064 = vunpack.c.l.s4 1983009808
        %v9065 = vunpack.c.0.s8 %v9064
        %v9066 = vlaneseq
        %v9067 = vshrl.u32 %v9066, 7
        %v9068 = vsub.s32 %v9065, %v9067
        %v9069 = vrot.slane %v9058, %v9068
        %v9071 = vunpack.c.l.s4 1983009808
        %v9072 = vunpack.c.0.s8 %v9071
        %v9073 = vlaneseq
        %v9074 = vshrl.u32 %v9073, 7
        %v9075 = vsub.s32 %v9072, %v9074
        %v9076 = vrot.slane %v9062, %v9075
        %v9077 = vcombine.high %v9069, %v9069
        %v9078 = vcombine.high %v9076, %v9076
        %v9080 = vunpack.c.l.s4 1983009808
        %v9081 = vunpack.c.0.s8 %v9080
        %v9082 = vlaneseq
        %v9083 = vshrl.u32 %v9082, 7
        %v9084 = vsub.s32 %v9081, %v9083
        %v9085 = vrot.slane %v9059, %v9084
        %v9091 = vsel %vm6958, %v9085, 0
        %9093 = vmatprep.subr.bf16.mxu0 0
        %9094 = vmatpush1.bf16.msra.mxu0 %v8868
        %9095 = vmatprep.subr.bf16.mxu0 0
        %9096 = vmatpush1.bf16.msra.mxu0 %v8867
        %9097 = vmatprep.subr.bf16.mxu0 0
        %9098 = vmatpush1.bf16.msra.mxu0 %v8866
        %9099 = vmatprep.subr.bf16.mxu0 0
        %9100 = vmatpush1.bf16.msra.mxu0 %v8865
        %9101 = vmatprep.subr.bf16.mxu0 0
        %9102 = vmatpush1.bf16.msra.mxu0 %v8864
        %9103 = vmatprep.subr.bf16.mxu0 0
        %9104 = vmatpush1.bf16.msra.mxu0 %v8863
        %9105 = vmatprep.subr.bf16.mxu0 0
        %9106 = vmatpush1.bf16.msra.mxu0 %v8862
        %9107 = vmatprep.subr.bf16.mxu0 0
        %9108 = vmatpush1.bf16.msra.mxu0 %v8861
        %9109 = vmatprep.subr.bf16.mxu0 0
        %9110 = vmatpush2.bf16.msra.mxu0 %v8876
        %9111 = vmatprep.subr.bf16.mxu0 0
        %9112 = vmatpush2.bf16.msra.mxu0 %v8875
        %9113 = vmatprep.subr.bf16.mxu0 0
        %9114 = vmatpush2.bf16.msra.mxu0 %v8874
        %9115 = vmatprep.subr.bf16.mxu0 0
        %9116 = vmatpush2.bf16.msra.mxu0 %v8873
        %9117 = vmatprep.subr.bf16.mxu0 0
        %9118 = vmatpush2.bf16.msra.mxu0 %v8872
        %9119 = vmatprep.subr.bf16.mxu0 0
        %9120 = vmatpush2.bf16.msra.mxu0 %v8871
        %9121 = vmatprep.subr.bf16.mxu0 0
        %9122 = vmatpush2.bf16.msra.mxu0 %v8870
        %9123 = vmatprep.subr.bf16.mxu0 0
        %9124 = vmatpush2.bf16.msra.mxu0 %v8869
        %9125 = vmatprep.mubr.bf16.mxu0 %v9077
        %9126 = vmatmul.mubr.bf16.gmra.mxu0 %v9069
        %v9127 = vpop.f32.mrf.mxu0
        %v9128 = vadd.f32 %v8685, %v9127
        %v9129 = vpop.f32.mrf.mxu0
        %v9130 = vpop.f32.mrf.mxu0
        %v9131 = vpop.f32.mrf.mxu0
        %9132 = vdwg.mxu0
        %9133 = vmatprep.subr.bf16.mxu0 0
        %9134 = vmatpush1.bf16.msra.mxu0 %v8884
        %9135 = vmatprep.subr.bf16.mxu0 0
        %9136 = vmatpush1.bf16.msra.mxu0 %v8883
        %9137 = vmatprep.subr.bf16.mxu0 0
        %9138 = vmatpush1.bf16.msra.mxu0 %v8882
        %9139 = vmatprep.subr.bf16.mxu0 0
        %9140 = vmatpush1.bf16.msra.mxu0 %v8881
        %9141 = vmatprep.subr.bf16.mxu0 0
        %9142 = vmatpush1.bf16.msra.mxu0 %v8880
        %9143 = vmatprep.subr.bf16.mxu0 0
        %9144 = vmatpush1.bf16.msra.mxu0 %v8879
        %9145 = vmatprep.subr.bf16.mxu0 0
        %9146 = vmatpush1.bf16.msra.mxu0 %v8878
        %9147 = vmatprep.subr.bf16.mxu0 0
        %9148 = vmatpush1.bf16.msra.mxu0 %v8877
        %9149 = vmatprep.subr.bf16.mxu0 0
        %9150 = vmatpush2.bf16.msra.mxu0 %v8892
        %9151 = vmatprep.subr.bf16.mxu0 0
        %9152 = vmatpush2.bf16.msra.mxu0 %v8891
        %9153 = vmatprep.subr.bf16.mxu0 0
        %9154 = vmatpush2.bf16.msra.mxu0 %v8890
        %9155 = vmatprep.subr.bf16.mxu0 0
        %9156 = vmatpush2.bf16.msra.mxu0 %v8889
        %9157 = vmatprep.subr.bf16.mxu0 0
        %9158 = vmatpush2.bf16.msra.mxu0 %v8888
        %9159 = vmatprep.subr.bf16.mxu0 0
        %9160 = vmatpush2.bf16.msra.mxu0 %v8887
        %9161 = vmatprep.subr.bf16.mxu0 0
        %9162 = vmatpush2.bf16.msra.mxu0 %v8886
        %9163 = vmatprep.subr.bf16.mxu0 0
        %9164 = vmatpush2.bf16.msra.mxu0 %v8885
        %9165 = vmatprep.mubr.bf16.mxu0 %v9078
        %9166 = vmatmul.mubr.bf16.gmra.mxu0 %v9076
        %v9167 = vpop.f32.mrf.mxu0
        %v9168 = vadd.f32 %v9128, %v9167
        %v9169 = vpop.f32.mrf.mxu0
        %v9170 = vpop.f32.mrf.mxu0
        %v9171 = vpop.f32.mrf.mxu0
        %9172 = vdwg.mxu0
        %9173 = vmatprep.subr.bf16.mxu0 0
        %9174 = vmatpush1.bf16.msra.mxu0 0
        %9175 = vmatprep.subr.bf16.mxu0 0
        %9176 = vmatpush1.bf16.msra.mxu0 0
        %9177 = vmatprep.subr.bf16.mxu0 0
        %9178 = vmatpush1.bf16.msra.mxu0 0
        %9179 = vmatprep.subr.bf16.mxu0 0
        %9180 = vmatpush1.bf16.msra.mxu0 0
        %9181 = vmatprep.subr.bf16.mxu0 0
        %9182 = vmatpush1.bf16.msra.mxu0 %v8896
        %9183 = vmatprep.subr.bf16.mxu0 0
        %9184 = vmatpush1.bf16.msra.mxu0 %v8895
        %9185 = vmatprep.subr.bf16.mxu0 0
        %9186 = vmatpush1.bf16.msra.mxu0 %v8894
        %9187 = vmatprep.subr.bf16.mxu0 0
        %9188 = vmatpush1.bf16.msra.mxu0 %v8893
        %9189 = vmatprep.subr.bf16.mxu0 0
        %9190 = vmatpush2.bf16.msra.mxu0 0
        %9191 = vmatprep.subr.bf16.mxu0 0
        %9192 = vmatpush2.bf16.msra.mxu0 0
        %9193 = vmatprep.subr.bf16.mxu0 0
        %9194 = vmatpush2.bf16.msra.mxu0 0
        %9195 = vmatprep.subr.bf16.mxu0 0
        %9196 = vmatpush2.bf16.msra.mxu0 0
        %9197 = vmatprep.subr.bf16.mxu0 0
        %9198 = vmatpush2.bf16.msra.mxu0 0
        %9199 = vmatprep.subr.bf16.mxu0 0
        %9200 = vmatpush2.bf16.msra.mxu0 0
        %9201 = vmatprep.subr.bf16.mxu0 0
        %9202 = vmatpush2.bf16.msra.mxu0 0
        %9203 = vmatprep.subr.bf16.mxu0 0
        %9204 = vmatpush2.bf16.msra.mxu0 0
        %9205 = vmatprep.mubr.bf16.mxu0 0
        %9206 = vmatmul.mubr.bf16.gmra.mxu0 %v9091
        %v9207 = vpop.f32.mrf.mxu0
        %v9208 = vadd.f32 %v9168, %v9207
        %v9209 = vpop.f32.mrf.mxu0
        %v9210 = vpop.f32.mrf.mxu0
        %v9211 = vpop.f32.mrf.mxu0
        %9212 = vdwg.mxu0
        %v9213 = vmax.f32 %v9208, 0.0
        %v9214 = vmax.f32 %v9056, %v9213
        %v9216 = vrot.slane %v9214, 1
        %v9218 = vmax.f32 %v9214, %v9216
        %v9219 = vpack.c.bf16 %v9218, %v9218
        %v9220 = vld [vmem:[%s7] sm:$0xf]
        %v9221 = vld [vmem:[%s7 + $0x4] sm:$0xf]
        %v9222 = vld [vmem:[%s7 + $0x8] sm:$0xf]
        %v9223 = vld [vmem:[%s7 + $0xc] sm:$0xf]
        %v9224 = vld [vmem:[%s7 + $0x10] sm:$0xf]
        %v9225 = vld [vmem:[%s7 + $0x14] sm:$0xf]
        %v9226 = vld [vmem:[%s7 + $0x18] sm:$0xf]
        %v9227 = vld [vmem:[%s7 + $0x1c] sm:$0xf]
        %v9228 = vld [vmem:[%s7 + $0x20] sm:$0xf]
        %v9229 = vld [vmem:[%s7 + $0x24] sm:$0xf]
        %v9230 = vld [vmem:[%s7 + $0x28] sm:$0xf]
        %v9231 = vld [vmem:[%s7 + $0x2c] sm:$0xf]
        %v9232 = vld [vmem:[%s7 + $0x30] sm:$0xf]
        %v9233 = vld [vmem:[%s7 + $0x34] sm:$0xf]
        %v9234 = vld [vmem:[%s7 + $0x38] sm:$0xf]
        %v9235 = vld [vmem:[%s7 + $0x3c] sm:$0xf]
        %v9236 = vld [vmem:[%s8] sm:$0x1]
        %v9253 = vunpack.c.l.b16 %v9220
        %v9254 = vunpack.c.l.b16 %v9221
        %v9255 = vunpack.c.l.b16 %v9222
        %v9256 = vunpack.c.l.b16 %v9223
        %v9257 = vunpack.c.l.b16 %v9224
        %v9258 = vunpack.c.l.b16 %v9225
        %v9259 = vunpack.c.l.b16 %v9226
        %v9260 = vunpack.c.l.b16 %v9227
        %v9261 = vunpack.c.l.b16 %v9228
        %v9262 = vunpack.c.l.b16 %v9229
        %v9263 = vunpack.c.l.b16 %v9230
        %v9264 = vunpack.c.l.b16 %v9231
        %v9265 = vunpack.c.l.b16 %v9232
        %v9266 = vunpack.c.l.b16 %v9233
        %v9267 = vunpack.c.l.b16 %v9234
        %v9268 = vunpack.c.l.b16 %v9235
        %v9269 = vpack.c.b16 %v9254, %v9253
        %v9270 = vpack.c.b16 %v9256, %v9255
        %v9271 = vpack.c.b16 %v9258, %v9257
        %v9272 = vpack.c.b16 %v9260, %v9259
        %v9273 = vpack.c.b16 %v9262, %v9261
        %v9274 = vpack.c.b16 %v9264, %v9263
        %v9275 = vpack.c.b16 %v9266, %v9265
        %v9276 = vpack.c.b16 %v9268, %v9267
        %9285 = vmatprep.subr.bf16.mxu0 0
        %9286 = vmatpush1.bf16.msra.mxu0 %v9276
        %9287 = vmatprep.subr.bf16.mxu0 0
        %9288 = vmatpush1.bf16.msra.mxu0 %v9275
        %9289 = vmatprep.subr.bf16.mxu0 0
        %9290 = vmatpush1.bf16.msra.mxu0 %v9274
        %9291 = vmatprep.subr.bf16.mxu0 0
        %9292 = vmatpush1.bf16.msra.mxu0 %v9273
        %9293 = vmatprep.subr.bf16.mxu0 0
        %9294 = vmatpush1.bf16.msra.mxu0 %v9272
        %9295 = vmatprep.subr.bf16.mxu0 0
        %9296 = vmatpush1.bf16.msra.mxu0 %v9271
        %9297 = vmatprep.subr.bf16.mxu0 0
        %9298 = vmatpush1.bf16.msra.mxu0 %v9270
        %9299 = vmatprep.subr.bf16.mxu0 0
        %9300 = vmatpush1.bf16.msra.mxu0 %v9269
        %9301 = vmatprep.subr.bf16.mxu0 0
        %9302 = vmatpush2.bf16.msra.mxu0 0
        %9303 = vmatprep.subr.bf16.mxu0 0
        %9304 = vmatpush2.bf16.msra.mxu0 0
        %9305 = vmatprep.subr.bf16.mxu0 0
        %9306 = vmatpush2.bf16.msra.mxu0 0
        %9307 = vmatprep.subr.bf16.mxu0 0
        %9308 = vmatpush2.bf16.msra.mxu0 0
        %9309 = vmatprep.subr.bf16.mxu0 0
        %9310 = vmatpush2.bf16.msra.mxu0 0
        %9311 = vmatprep.subr.bf16.mxu0 0
        %9312 = vmatpush2.bf16.msra.mxu0 0
        %9313 = vmatprep.subr.bf16.mxu0 0
        %9314 = vmatpush2.bf16.msra.mxu0 0
        %9315 = vmatprep.subr.bf16.mxu0 0
        %9316 = vmatpush2.bf16.msra.mxu0 0
        %9317 = vmatprep.mubr.bf16.mxu0 0
        %9318 = vmatmul.mubr.bf16.gmra.mxu0 %v9219
        %v9319 = vpop.f32.mrf.mxu0
        %v9320 = vadd.f32 %v9236, %v9319
        %v9321 = vpop.f32.mrf.mxu0
        %v9322 = vpop.f32.mrf.mxu0
        %v9323 = vpop.f32.mrf.mxu0
        %9324 = vdwg.mxu0
        %v9325 = vmax.f32 %v9320, 0.0
        %9326 = vst [vmem:[%s415] sm:$0x1] %v9325
        %v9327 = vpack.c.bf16 %v9325, %v9325
        %v9328 = vld [vmem:[%s9] sm:$0xf]
        %v9329 = vld [vmem:[%s9 + $0x4] sm:$0xf]
        %v9330 = vld [vmem:[%s9 + $0x8] sm:$0xf]
        %v9331 = vld [vmem:[%s9 + $0xc] sm:$0xf]
        %v9332 = vld [vmem:[%s9 + $0x10] sm:$0xf]
        %v9333 = vld [vmem:[%s9 + $0x14] sm:$0xf]
        %v9334 = vld [vmem:[%s9 + $0x18] sm:$0xf]
        %v9335 = vld [vmem:[%s9 + $0x1c] sm:$0xf]
        %v9336 = vld [vmem:[%s9 + $0x20] sm:$0xf]
        %v9337 = vld [vmem:[%s9 + $0x24] sm:$0xf]
        %v9338 = vld [vmem:[%s9 + $0x28] sm:$0xf]
        %v9339 = vld [vmem:[%s9 + $0x2c] sm:$0xf]
        %v9340 = vld [vmem:[%s9 + $0x30] sm:$0xf]
        %v9341 = vld [vmem:[%s9 + $0x34] sm:$0xf]
        %v9342 = vld [vmem:[%s9 + $0x38] sm:$0xf]
        %v9343 = vld [vmem:[%s9 + $0x3c] sm:$0xf]
        %v9344 = vld [vmem:[%s10] sm:$0x1]
        %v9361 = vunpack.c.l.b16 %v9328
        %v9362 = vunpack.c.l.b16 %v9329
        %v9363 = vunpack.c.l.b16 %v9330
        %v9364 = vunpack.c.l.b16 %v9331
        %v9365 = vunpack.c.l.b16 %v9332
        %v9366 = vunpack.c.l.b16 %v9333
        %v9367 = vunpack.c.l.b16 %v9334
        %v9368 = vunpack.c.l.b16 %v9335
        %v9369 = vunpack.c.l.b16 %v9336
        %v9370 = vunpack.c.l.b16 %v9337
        %v9371 = vunpack.c.l.b16 %v9338
        %v9372 = vunpack.c.l.b16 %v9339
        %v9373 = vunpack.c.l.b16 %v9340
        %v9374 = vunpack.c.l.b16 %v9341
        %v9375 = vunpack.c.l.b16 %v9342
        %v9376 = vunpack.c.l.b16 %v9343
        %v9377 = vpack.c.b16 %v9362, %v9361
        %v9378 = vpack.c.b16 %v9364, %v9363
        %v9379 = vpack.c.b16 %v9366, %v9365
        %v9380 = vpack.c.b16 %v9368, %v9367
        %v9381 = vpack.c.b16 %v9370, %v9369
        %v9382 = vpack.c.b16 %v9372, %v9371
        %v9383 = vpack.c.b16 %v9374, %v9373
        %v9384 = vpack.c.b16 %v9376, %v9375
        %9393 = vmatprep.subr.bf16.mxu0 0
        %9394 = vmatpush1.bf16.msra.mxu0 %v9384
        %9395 = vmatprep.subr.bf16.mxu0 0
        %9396 = vmatpush1.bf16.msra.mxu0 %v9383
        %9397 = vmatprep.subr.bf16.mxu0 0
        %9398 = vmatpush1.bf16.msra.mxu0 %v9382
        %9399 = vmatprep.subr.bf16.mxu0 0
        %9400 = vmatpush1.bf16.msra.mxu0 %v9381
        %9401 = vmatprep.subr.bf16.mxu0 0
        %9402 = vmatpush1.bf16.msra.mxu0 %v9380
        %9403 = vmatprep.subr.bf16.mxu0 0
        %9404 = vmatpush1.bf16.msra.mxu0 %v9379
        %9405 = vmatprep.subr.bf16.mxu0 0
        %9406 = vmatpush1.bf16.msra.mxu0 %v9378
        %9407 = vmatprep.subr.bf16.mxu0 0
        %9408 = vmatpush1.bf16.msra.mxu0 %v9377
        %9409 = vmatprep.subr.bf16.mxu0 0
        %9410 = vmatpush2.bf16.msra.mxu0 0
        %9411 = vmatprep.subr.bf16.mxu0 0
        %9412 = vmatpush2.bf16.msra.mxu0 0
        %9413 = vmatprep.subr.bf16.mxu0 0
        %9414 = vmatpush2.bf16.msra.mxu0 0
        %9415 = vmatprep.subr.bf16.mxu0 0
        %9416 = vmatpush2.bf16.msra.mxu0 0
        %9417 = vmatprep.subr.bf16.mxu0 0
        %9418 = vmatpush2.bf16.msra.mxu0 0
        %9419 = vmatprep.subr.bf16.mxu0 0
        %9420 = vmatpush2.bf16.msra.mxu0 0
        %9421 = vmatprep.subr.bf16.mxu0 0
        %9422 = vmatpush2.bf16.msra.mxu0 0
        %9423 = vmatprep.subr.bf16.mxu0 0
        %9424 = vmatpush2.bf16.msra.mxu0 0
        %9425 = vmatprep.mubr.bf16.mxu0 0
        %9426 = vmatmul.mubr.bf16.gmra.mxu0 %v9327
        %v9427 = vpop.f32.mrf.mxu0
        %v9428 = vadd.f32 %v9344, %v9427
        %v9429 = vpop.f32.mrf.mxu0
        %v9430 = vpop.f32.mrf.mxu0
        %v9431 = vpop.f32.mrf.mxu0
        %9432 = vdwg.mxu0
        %vm9433 = vcmask 73728
        %9434 = vst.msk [vmem:[%s409] sm:$0x1] %vm9433, %v9428
        %s9435 = sand.u32 %s274, 1
        %s9436 = scalar_lea.sflag [#allocation9], %s9435
        %s9437 = sand.u32 %s274, 1
        %s9438 = scalar_lea.vmem [#allocation8], %s9437
        %s9439 = sand.u32 %s300, 1
        %s9440 = scalar_lea.sflag [#allocation11], %s9439
        %s9441 = sand.u32 %s300, 1
        %s9442 = scalar_lea.vmem [#allocation10], %s9441
        // Predicated region
        $region65: #{network_forward.1} parent=63 // pred_check
          %p9443 = pneg %p284
        $region66: #{network_forward.1} parent=63 // pred_check_branch
          %9445 = sbr.rel (%p9443) target = $region68
        $region67: #{network_forward.1} parent=63 // pred_region
          %s9447 = ssub.s32 16, 16
          %9448 = vsyncadd %s9436, %s9447
          %s9449 = smul.addr %s30, 16
          %s9450 = scalar_lea.hbm %s11, %s9449
          %s9452 = sshll.u32 %s9438, 4
          %s9453 = int_to_ptr.vmem [resolvable:$true] %s9452
          %9455 = dma.vmem_to_hbm [thread:$0]  %s9453, 16, %s9450, %s9436
        $region68: #{network_forward.1} parent=63 // pred_fallthru
          _
        // Predicated region
        $region69: #{network_forward.1} parent=63 // pred_check
          %p9456 = pneg %p310
        $region70: #{network_forward.1} parent=63 // pred_check_branch
          %9458 = sbr.rel (%p9456) target = $region72
        $region71: #{network_forward.1} parent=63 // pred_region
          %s9460 = ssub.s32 16, 16
          %9461 = vsyncadd %s9440, %s9460
          %s9462 = smul.addr %s30, 16
          %s9463 = scalar_lea.hbm %s12, %s9462
          %s9465 = sshll.u32 %s9442, 4
          %s9466 = int_to_ptr.vmem [resolvable:$true] %s9465
          %9468 = dma.vmem_to_hbm [thread:$0]  %s9466, 16, %s9463, %s9440
        $region72: #{network_forward.1} parent=63 // pred_fallthru
          _
      $region64: #{network_forward.1} parent=5 // pred_fallthru
        _
      %p9469 = scmp.le.s32.totalorder 2, %s25
      // Predicated region
      $region73: #{network_forward.1} parent=5 // pred_check
        %p9470 = pneg %p9469
      $region74: #{network_forward.1} parent=5 // pred_check_branch
        %9472 = sbr.rel (%p9470) target = $region76
      $region75: #{network_forward.1} parent=5 // pred_region
        %s9473 = ssub.s32 %s25, 2
        // Predicated region
        $region77: #{network_forward.1} parent=75 // pred_check
          %p9474 = pneg %p290
        $region78: #{network_forward.1} parent=75 // pred_check_branch
          %9476 = sbr.rel (%p9474) target = $region80
        $region79: #{network_forward.1} parent=75 // pred_region
          %s9477 = sand.u32 %s275, 1
          %s9478 = scalar_lea.sflag [#allocation9], %s9477
          %s9479 = sand.u32 %s275, 1
          %s9480 = scalar_lea.vmem [#allocation8], %s9479
          %9481 = dma.done %s9478, 16
        $region80: #{network_forward.1} parent=75 // pred_fallthru
          _
        // Predicated region
        $region81: #{network_forward.1} parent=75 // pred_check
          %p9482 = pneg %p316
        $region82: #{network_forward.1} parent=75 // pred_check_branch
          %9484 = sbr.rel (%p9482) target = $region84
        $region83: #{network_forward.1} parent=75 // pred_region
          %s9485 = sand.u32 %s301, 1
          %s9486 = scalar_lea.sflag [#allocation11], %s9485
          %s9487 = sand.u32 %s301, 1
          %s9488 = scalar_lea.vmem [#allocation10], %s9487
          %9489 = dma.done %s9486, 16
        $region84: #{network_forward.1} parent=75 // pred_fallthru
          _
      $region76: #{network_forward.1} parent=5 // pred_fallthru
        _
    $region6: #{network_forward.1} parent=1 // loop_footer
      %s29 = sadd.s32 1, %s25
    $region7: #{network_forward.1} parent=1 // loop_footer_branch
      %24 = sbr.rel target = $region3
    $region8: #{network_forward.1} parent=1 // loop_exit
      _
    %9490 = vsyncpa [#allocation9], 1
    %s9491 = scalar_lea.sflag [#allocation9], 1
    %9492 = vsyncpa %s9491, 1
    %9493 = vsyncpa [#allocation11], 1
    %s9494 = scalar_lea.sflag [#allocation11], 1
    %9495 = vsyncpa %s9494, 1

</llo_original>
